<compile_context>
chip_gen: v7x
topology: tpu7x:2x2x1
jax: 0.10.0
libtpu: 0.0.40
codegen_flags: <defaults>
</compile_context>

<pallas_src>
import functools

import jax
import jax.numpy as jnp
from jax import lax
from jax.experimental import pallas as pl
from jax.experimental.pallas import tpu as pltpu


def cnn_fused_kernel(x_ref, w1b_ref, b1t_ref, w2_ref, b2_ref, wo_ref, bo_ref,
                     o_ref, xp_sc, x2p_sc, *, nb):
    f32 = jnp.float32
    bf16 = jnp.bfloat16

    # ---------------- conv1 (5x5, 1->64) as one MXU matmul -----------------
    # zero-pad the (64,64) input by 2 inside VMEM (no wrapper-side pad / extra HBM array)
    xp_sc[...] = jnp.zeros((nb, 68, 68), f32)
    xp_sc[:, 2:66, 2:66] = x_ref[...]
    # LHS row (n,h) = [xpad[n, h+kh, :] for kh in 0..4] concatenated  ->  (nb*64, 340)
    lhs = jnp.concatenate(
        [xp_sc[:, kh:kh + 64, :].reshape(nb * 64, 68).astype(bf16)
         for kh in range(5)], axis=-1)
    # banded conv1 weight: (340, 4096), column = dj*512 + j*64 + c  (output w = 8*j + dj)
    y1 = jnp.dot(lhs, w1b_ref[...], preferred_element_type=f32)        # (nb*64, 4096)
    y1 = jnp.maximum(y1 + b1t_ref[...], 0.0)                           # bias + ReLU

    # maxpool 8x8: pool h via reshape + max over the sublane axis,
    # pool w via elementwise max of 8 contiguous, 512-lane-aligned column blocks.
    y1 = jnp.max(y1.reshape(nb, 8, 8, 4096), axis=2)                   # (nb, 8, 4096)
    p1 = y1[:, :, 0:512]
    for dj in range(1, 8):
        p1 = jnp.maximum(p1, y1[:, :, dj * 512:(dj + 1) * 512])        # (nb, 8, 512): col = j*64 + c

    # ---------------- conv2 (5x5, 64->256), fused, padding via VMEM scratch ----------------
    # padded conv2 input kept flattened as (nb, 12, 12*64): lane index = b*64 + ci
    x2p_sc[...] = jnp.zeros((nb, 12, 768), f32)
    x2p_sc[:, 2:10, 128:640] = p1                                      # aligned single store

    # im2col, one (q = output column) row-block at a time; columns ordered (kh, kw, ci)
    row_blocks = []
    for q in range(8):
        blk = jnp.concatenate(
            [x2p_sc[:, kh:kh + 8, q * 64:(q + 5) * 64]
                 .reshape(nb * 8, 320).astype(bf16)
             for kh in range(5)], axis=-1)                             # (nb*8, 1600)
        row_blocks.append(blk)
    cols = jnp.concatenate(row_blocks, axis=0)                         # (nb*64, 1600): rows = (q, n, p)

    # single long-K bf16 dot against w2 reshaped to (1600, 256), f32 accumulation
    y2 = jnp.dot(cols, w2_ref[...], preferred_element_type=f32)        # (nb*64, 256)
    y2 = jnp.maximum(y2 + b2_ref[...], 0.0)

    # global 8x8 max pool (rows are (q, n, p))
    r = jnp.max(y2.reshape(8, nb, 8, 256), axis=2)                     # max over p -> (8, nb, 256)
    p2 = r[0]
    for q in range(1, 8):
        p2 = jnp.maximum(p2, r[q])                                     # max over q -> (nb, 256)

    # ---------------- linear 256 -> 10 ----------------
    out = jnp.dot(p2.astype(bf16), wo_ref[...],
                  preferred_element_type=f32) + bo_ref[...]            # (nb, 10)
    o_ref[...] = out.reshape(nb, 1, 10)


def _pick_nb(B):
    # batch tile: raise matmul M / amortize per-step overhead, but keep grid length >= 2
    # (both TensorCores on v7x) and VMEM footprint modest (works within default scoped VMEM).
    for nb in (4, 2):
        if B % nb == 0 and B // nb >= 2:
            return nb
    return 1


def _prep_params(params):
    """Torch-layout params -> kernel layouts (pure XLA, done once in the wrapper)."""
    w1, b1, w2, b2, wo, bo = params

    # conv1 "banded" weight: W1b[kh*68 + w', dj*512 + j*64 + c] = w1[c,0,kh, w'-(8j+dj)] (band)
    w1_t = jnp.transpose(w1[:, 0, :, :], (1, 2, 0))                    # (5, 5, 64)  [kh, kw, c]
    wprime = jnp.arange(68)[:, None]
    wout = jnp.arange(64)[None, :]
    kw_idx = wprime - wout                                             # (68, 64) = w' - w
    valid = (kw_idx >= 0) & (kw_idx < 5)
    band = w1_t[:, jnp.clip(kw_idx, 0, 4), :]                          # (5, 68, 64, 64) [kh, w', w, c]
    band = jnp.where(valid[None, :, :, None], band, 0.0)
    band = band.reshape(5, 68, 8, 8, 64)                               # [kh, w', j, dj, c]  (w = 8j+dj)
    band = jnp.transpose(band, (0, 1, 3, 2, 4))                        # [kh, w', dj, j, c]
    w1b = band.reshape(340, 4096).astype(jnp.bfloat16)

    b1t = jnp.tile(b1, 64).reshape(1, 4096).astype(jnp.float32)        # col%64 = channel

    w2k = jnp.transpose(w2, (2, 3, 1, 0)).reshape(1600, 256).astype(jnp.bfloat16)  # (kh,kw,ci, co)
    b2k = b2.reshape(1, 256).astype(jnp.float32)
    wok = jnp.transpose(wo, (1, 0)).astype(jnp.bfloat16)               # (256, 10)
    bok = bo.reshape(1, 10).astype(jnp.float32)
    return w1b, b1t, w2k, b2k, wok, bok


def cnn_forward_pallas(x_nchw, params):
    B = x_nchw.shape[0]
    nb = _pick_nb(B)
    w1b, b1t, w2k, b2k, wok, bok = _prep_params(params)
    x = x_nchw[:, 0, :, :]                                             # (B, 64, 64) - no wrapper pad

    kernel = functools.partial(cnn_fused_kernel, nb=nb)
    out = pl.pallas_call(
        kernel,
        out_shape=jax.ShapeDtypeStruct((B, 1, 10), jnp.float32),
        grid=(B // nb,),
        in_specs=[
            pl.BlockSpec((nb, 64, 64), lambda b: (b, 0, 0)),
            pl.BlockSpec((340, 4096), lambda b: (0, 0)),   # fetched once (constant index_map)
            pl.BlockSpec((1, 4096), lambda b: (0, 0)),
            pl.BlockSpec((1600, 256), lambda b: (0, 0)),
            pl.BlockSpec((1, 256), lambda b: (0, 0)),
            pl.BlockSpec((256, 10), lambda b: (0, 0)),
            pl.BlockSpec((1, 10), lambda b: (0, 0)),
        ],
        out_specs=pl.BlockSpec((nb, 1, 10), lambda b: (b, 0, 0)),
        scratch_shapes=[
            pltpu.VMEM((nb, 68, 68), jnp.float32),    # zero-padded conv1 input
            pltpu.VMEM((nb, 12, 768), jnp.float32),   # zero-padded pooled conv1 output (flattened W*C)
        ],
        compiler_params=pltpu.CompilerParams(
            dimension_semantics=("parallel",),
            vmem_limit_bytes=64 * 1024 * 1024),
    )(x, w1b, b1t, w2k, b2k, wok, bok)
    return out[:, 0, :]                                                # (B, 10)


def init_params(key):
    ks = jax.random.split(key, 6)
    w1 = jax.random.normal(ks[0], (64, 1, 5, 5), jnp.float32) * 0.10
    b1 = jax.random.normal(ks[1], (64,), jnp.float32) * 0.10
    w2 = jax.random.normal(ks[2], (256, 64, 5, 5), jnp.float32) * 0.05
    b2 = jax.random.normal(ks[3], (256,), jnp.float32) * 0.05
    wo = jax.random.normal(ks[4], (10, 256), jnp.float32) * 0.05
    bo = jax.random.normal(ks[5], (10,), jnp.float32) * 0.05
    return w1, b1, w2, b2, wo, bo


def ref_forward(x_nchw, params):
    # pure-JAX f32 reference mirroring the PyTorch forward (numerical check only)
    w1, b1, w2, b2, wo, bo = params
    dn = ('NHWC', 'HWIO', 'NHWC')
    x = jnp.transpose(x_nchw, (0, 2, 3, 1))
    y = lax.conv_general_dilated(x, jnp.transpose(w1, (2, 3, 1, 0)), (1, 1), 'SAME',
                                 dimension_numbers=dn) + b1
    y = jnp.maximum(y, 0.0)
    y = lax.reduce_window(y, -jnp.inf, lax.max, (1, 8, 8, 1), (1, 8, 8, 1), 'VALID')
    y = lax.conv_general_dilated(y, jnp.transpose(w2, (2, 3, 1, 0)), (1, 1), 'SAME',
                                 dimension_numbers=dn) + b2
    y = jnp.maximum(y, 0.0)
    y = lax.reduce_window(y, -jnp.inf, lax.max, (1, 8, 8, 1), (1, 8, 8, 1), 'VALID')
    y = y.reshape(y.shape[0], -1)                                      # (B, 256)
    return y @ wo.T + bo


if __name__ == "__main__":
    key = jax.random.PRNGKey(0)
    kx, kp = jax.random.split(key)
    # CNNv0 geometry implies 64x64 single-channel input (64 -> pool8 -> 8 -> pool8 -> 1).
    x = jax.random.normal(kx, (2, 1, 64, 64), jnp.float32)
    params = init_params(kp)

    out = cnn_forward_pallas(x, params)
    out = jax.block_until_ready(out)
    assert out.shape == (2, 10)

    ref = ref_forward(x, params)
    # tolerance absorbs the intentional bf16 matmul inputs (f32 accumulation); structural
    # errors (wrong band/im2col ordering) would be orders of magnitude larger.
    if not jnp.allclose(out, ref, atol=5e-2, rtol=5e-2):
        raise AssertionError(
            f"mismatch vs reference, max abs diff = {jnp.max(jnp.abs(out - ref))}")
    print("KERNEL_OK")
</pallas_src>

<mosaic_0001>
module attributes {stable_mosaic.version = 11 : i64} {
  func.func @cnn_fused_kernel(%arg0: i32, %arg1: memref<1x64x64xf32, #tpu.memory_space<vmem>>, %arg2: memref<340x4096xbf16, #tpu.memory_space<vmem>>, %arg3: memref<1x4096xf32, #tpu.memory_space<vmem>>, %arg4: memref<1600x256xbf16, #tpu.memory_space<vmem>>, %arg5: memref<1x256xf32, #tpu.memory_space<vmem>>, %arg6: memref<256x10xbf16, #tpu.memory_space<vmem>>, %arg7: memref<1x10xf32, #tpu.memory_space<vmem>>, %arg8: memref<1x1x10xf32, #tpu.memory_space<vmem>>, %arg9: memref<1x68x68xf32, #tpu.memory_space<vmem>>, %arg10: memref<1x12x768xf32, #tpu.memory_space<vmem>>) attributes {dimension_semantics = [#tpu.dimension_semantics<parallel>], iteration_bounds = array<i64: 2>, scalar_prefetch = 0 : i64, scratch_operands = 2 : i64, tpu.core_type = #tpu.core_type<tc>, window_params = [{transform_indices = @transform_0, window_bounds = array<i64: 1, 64, 64>}, {pipeline_mode = #tpu.pipeline_mode<synchronous>, transform_indices = @transform_1, window_bounds = array<i64: 340, 4096>}, {pipeline_mode = #tpu.pipeline_mode<synchronous>, transform_indices = @transform_2, window_bounds = array<i64: 1, 4096>}, {pipeline_mode = #tpu.pipeline_mode<synchronous>, transform_indices = @transform_3, window_bounds = array<i64: 1600, 256>}, {pipeline_mode = #tpu.pipeline_mode<synchronous>, transform_indices = @transform_4, window_bounds = array<i64: 1, 256>}, {pipeline_mode = #tpu.pipeline_mode<synchronous>, transform_indices = @transform_5, window_bounds = array<i64: 256, 10>}, {pipeline_mode = #tpu.pipeline_mode<synchronous>, transform_indices = @transform_6, window_bounds = array<i64: 1, 10>}, {transform_indices = @transform_7, window_bounds = array<i64: 1, 1, 10>}]} {
    %cst = arith.constant 0.000000e+00 : f32
    %0 = vector.broadcast %cst : f32 to vector<1x68x68xf32>
    %c0 = arith.constant 0 : index
    %c0_0 = arith.constant 0 : index
    %c0_1 = arith.constant 0 : index
    %1 = vector.load %arg9[%c0, %c0_0, %c0_1] : memref<1x68x68xf32, #tpu.memory_space<vmem>>, vector<1x68x68xf32>
    tpu.vector_store %arg9[%c0, %c0_0, %c0_1], %0 {strides = array<i32>} : memref<1x68x68xf32, #tpu.memory_space<vmem>>, vector<1x68x68xf32>,
    %c0_2 = arith.constant 0 : index
    %c0_3 = arith.constant 0 : index
    %c0_4 = arith.constant 0 : index
    %2 = vector.load %arg1[%c0_2, %c0_3, %c0_4] : memref<1x64x64xf32, #tpu.memory_space<vmem>>, vector<1x64x64xf32>
    %c0_5 = arith.constant 0 : index
    %c2 = arith.constant 2 : index
    %c2_6 = arith.constant 2 : index
    %3 = vector.load %arg9[%c0_5, %c2, %c2_6] : memref<1x68x68xf32, #tpu.memory_space<vmem>>, vector<1x64x64xf32>
    tpu.vector_store %arg9[%c0_5, %c2, %c2_6], %2 {strides = array<i32>} : memref<1x68x68xf32, #tpu.memory_space<vmem>>, vector<1x64x64xf32>,
    %c0_7 = arith.constant 0 : index
    %c0_8 = arith.constant 0 : index
    %c0_9 = arith.constant 0 : index
    %4 = vector.load %arg9[%c0_7, %c0_8, %c0_9] : memref<1x68x68xf32, #tpu.memory_space<vmem>>, vector<1x64x68xf32>
    %5 = vector.shape_cast %4 : vector<1x64x68xf32> to vector<64x68xf32>
    %6 = arith.truncf %5 : vector<64x68xf32> to vector<64x68xbf16>
    %c0_10 = arith.constant 0 : index
    %c1 = arith.constant 1 : index
    %c0_11 = arith.constant 0 : index
    %7 = vector.load %arg9[%c0_10, %c1, %c0_11] : memref<1x68x68xf32, #tpu.memory_space<vmem>>, vector<1x64x68xf32>
    %8 = vector.shape_cast %7 : vector<1x64x68xf32> to vector<64x68xf32>
    %9 = arith.truncf %8 : vector<64x68xf32> to vector<64x68xbf16>
    %c0_12 = arith.constant 0 : index
    %c2_13 = arith.constant 2 : index
    %c0_14 = arith.constant 0 : index
    %10 = vector.load %arg9[%c0_12, %c2_13, %c0_14] : memref<1x68x68xf32, #tpu.memory_space<vmem>>, vector<1x64x68xf32>
    %11 = vector.shape_cast %10 : vector<1x64x68xf32> to vector<64x68xf32>
    %12 = arith.truncf %11 : vector<64x68xf32> to vector<64x68xbf16>
    %c0_15 = arith.constant 0 : index
    %c3 = arith.constant 3 : index
    %c0_16 = arith.constant 0 : index
    %13 = vector.load %arg9[%c0_15, %c3, %c0_16] : memref<1x68x68xf32, #tpu.memory_space<vmem>>, vector<1x64x68xf32>
    %14 = vector.shape_cast %13 : vector<1x64x68xf32> to vector<64x68xf32>
    %15 = arith.truncf %14 : vector<64x68xf32> to vector<64x68xbf16>
    %c0_17 = arith.constant 0 : index
    %c4 = arith.constant 4 : index
    %c0_18 = arith.constant 0 : index
    %16 = vector.load %arg9[%c0_17, %c4, %c0_18] : memref<1x68x68xf32, #tpu.memory_space<vmem>>, vector<1x64x68xf32>
    %17 = vector.shape_cast %16 : vector<1x64x68xf32> to vector<64x68xf32>
    %18 = arith.truncf %17 : vector<64x68xf32> to vector<64x68xbf16>
    %19 = tpu.concatenate %6, %9, %12, %15, %18 in 1 : vector<64x68xbf16>, vector<64x68xbf16>, vector<64x68xbf16>, vector<64x68xbf16>, vector<64x68xbf16> -> vector<64x340xbf16>
    %c0_19 = arith.constant 0 : index
    %c0_20 = arith.constant 0 : index
    %20 = vector.load %arg2[%c0_19, %c0_20] : memref<340x4096xbf16, #tpu.memory_space<vmem>>, vector<340x4096xbf16>
    %cst_21 = arith.constant dense<0.000000e+00> : vector<64x4096xf32>
    %21 = tpu.matmul %19, %20, %cst_21 {dimension_numbers = #tpu.dot_dimension_numbers<[1], [0], [0], [1], [0, 0, 1, 1], [], []>} : vector<64x340xbf16>, vector<340x4096xbf16>, vector<64x4096xf32> -> vector<64x4096xf32>
    %c0_22 = arith.constant 0 : index
    %c0_23 = arith.constant 0 : index
    %22 = vector.load %arg3[%c0_22, %c0_23] : memref<1x4096xf32, #tpu.memory_space<vmem>>, vector<1x4096xf32>
    %23 = vector.broadcast %22 : vector<1x4096xf32> to vector<64x4096xf32>
    %24 = arith.addf %21, %23 : vector<64x4096xf32>
    %cst_24 = arith.constant 0.000000e+00 : f32
    %25 = vector.broadcast %cst_24 : f32 to vector<64x4096xf32>
    %26 = arith.maximumf %24, %25 : vector<64x4096xf32>
    %27 = vector.shape_cast %26 : vector<64x4096xf32> to vector<1x8x8x4096xf32>
    %cst_25 = arith.constant dense<0xFF800000> : vector<1x8x4096xf32>
    %28 = vector.multi_reduction <maximumf>, %27, %cst_25 [2] : vector<1x8x8x4096xf32> to vector<1x8x4096xf32>
    %29 = vector.extract_strided_slice %28 {offsets = [0, 0, 0], sizes = [1, 8, 512], strides = [1, 1, 1]} : vector<1x8x4096xf32> to vector<1x8x512xf32>
    %30 = vector.extract_strided_slice %28 {offsets = [0, 0, 512], sizes = [1, 8, 512], strides = [1, 1, 1]} : vector<1x8x4096xf32> to vector<1x8x512xf32>
    %31 = arith.maximumf %29, %30 : vector<1x8x512xf32>
    %32 = vector.extract_strided_slice %28 {offsets = [0, 0, 1024], sizes = [1, 8, 512], strides = [1, 1, 1]} : vector<1x8x4096xf32> to vector<1x8x512xf32>
    %33 = arith.maximumf %31, %32 : vector<1x8x512xf32>
    %34 = vector.extract_strided_slice %28 {offsets = [0, 0, 1536], sizes = [1, 8, 512], strides = [1, 1, 1]} : vector<1x8x4096xf32> to vector<1x8x512xf32>
    %35 = arith.maximumf %33, %34 : vector<1x8x512xf32>
    %36 = vector.extract_strided_slice %28 {offsets = [0, 0, 2048], sizes = [1, 8, 512], strides = [1, 1, 1]} : vector<1x8x4096xf32> to vector<1x8x512xf32>
    %37 = arith.maximumf %35, %36 : vector<1x8x512xf32>
    %38 = vector.extract_strided_slice %28 {offsets = [0, 0, 2560], sizes = [1, 8, 512], strides = [1, 1, 1]} : vector<1x8x4096xf32> to vector<1x8x512xf32>
    %39 = arith.maximumf %37, %38 : vector<1x8x512xf32>
    %40 = vector.extract_strided_slice %28 {offsets = [0, 0, 3072], sizes = [1, 8, 512], strides = [1, 1, 1]} : vector<1x8x4096xf32> to vector<1x8x512xf32>
    %41 = arith.maximumf %39, %40 : vector<1x8x512xf32>
    %42 = vector.extract_strided_slice %28 {offsets = [0, 0, 3584], sizes = [1, 8, 512], strides = [1, 1, 1]} : vector<1x8x4096xf32> to vector<1x8x512xf32>
    %43 = arith.maximumf %41, %42 : vector<1x8x512xf32>
    %cst_26 = arith.constant 0.000000e+00 : f32
    %44 = vector.broadcast %cst_26 : f32 to vector<1x12x768xf32>
    %c0_27 = arith.constant 0 : index
    %c0_28 = arith.constant 0 : index
    %c0_29 = arith.constant 0 : index
    %45 = vector.load %arg10[%c0_27, %c0_28, %c0_29] : memref<1x12x768xf32, #tpu.memory_space<vmem>>, vector<1x12x768xf32>
    tpu.vector_store %arg10[%c0_27, %c0_28, %c0_29], %44 {strides = array<i32>} : memref<1x12x768xf32, #tpu.memory_space<vmem>>, vector<1x12x768xf32>,
    %c0_30 = arith.constant 0 : index
    %c2_31 = arith.constant 2 : index
    %c128 = arith.constant 128 : index
    %46 = vector.load %arg10[%c0_30, %c2_31, %c128] : memref<1x12x768xf32, #tpu.memory_space<vmem>>, vector<1x8x512xf32>
    tpu.vector_store %arg10[%c0_30, %c2_31, %c128], %43 {strides = array<i32>} : memref<1x12x768xf32, #tpu.memory_space<vmem>>, vector<1x8x512xf32>,
    %c0_32 = arith.constant 0 : index
    %c0_33 = arith.constant 0 : index
    %c0_34 = arith.constant 0 : index
    %47 = vector.load %arg10[%c0_32, %c0_33, %c0_34] : memref<1x12x768xf32, #tpu.memory_space<vmem>>, vector<1x8x320xf32>
    %48 = vector.shape_cast %47 : vector<1x8x320xf32> to vector<8x320xf32>
    %49 = arith.truncf %48 : vector<8x320xf32> to vector<8x320xbf16>
    %c0_35 = arith.constant 0 : index
    %c1_36 = arith.constant 1 : index
    %c0_37 = arith.constant 0 : index
    %50 = vector.load %arg10[%c0_35, %c1_36, %c0_37] : memref<1x12x768xf32, #tpu.memory_space<vmem>>, vector<1x8x320xf32>
    %51 = vector.shape_cast %50 : vector<1x8x320xf32> to vector<8x320xf32>
    %52 = arith.truncf %51 : vector<8x320xf32> to vector<8x320xbf16>
    %c0_38 = arith.constant 0 : index
    %c2_39 = arith.constant 2 : index
    %c0_40 = arith.constant 0 : index
    %53 = vector.load %arg10[%c0_38, %c2_39, %c0_40] : memref<1x12x768xf32, #tpu.memory_space<vmem>>, vector<1x8x320xf32>
    %54 = vector.shape_cast %53 : vector<1x8x320xf32> to vector<8x320xf32>
    %55 = arith.truncf %54 : vector<8x320xf32> to vector<8x320xbf16>
    %c0_41 = arith.constant 0 : index
    %c3_42 = arith.constant 3 : index
    %c0_43 = arith.constant 0 : index
    %56 = vector.load %arg10[%c0_41, %c3_42, %c0_43] : memref<1x12x768xf32, #tpu.memory_space<vmem>>, vector<1x8x320xf32>
    %57 = vector.shape_cast %56 : vector<1x8x320xf32> to vector<8x320xf32>
    %58 = arith.truncf %57 : vector<8x320xf32> to vector<8x320xbf16>
    %c0_44 = arith.constant 0 : index
    %c4_45 = arith.constant 4 : index
    %c0_46 = arith.constant 0 : index
    %59 = vector.load %arg10[%c0_44, %c4_45, %c0_46] : memref<1x12x768xf32, #tpu.memory_space<vmem>>, vector<1x8x320xf32>
    %60 = vector.shape_cast %59 : vector<1x8x320xf32> to vector<8x320xf32>
    %61 = arith.truncf %60 : vector<8x320xf32> to vector<8x320xbf16>
    %62 = tpu.concatenate %49, %52, %55, %58, %61 in 1 : vector<8x320xbf16>, vector<8x320xbf16>, vector<8x320xbf16>, vector<8x320xbf16>, vector<8x320xbf16> -> vector<8x1600xbf16>
    %c0_47 = arith.constant 0 : index
    %c0_48 = arith.constant 0 : index
    %c64 = arith.constant 64 : index
    %63 = vector.load %arg10[%c0_47, %c0_48, %c64] : memref<1x12x768xf32, #tpu.memory_space<vmem>>, vector<1x8x320xf32>
    %64 = vector.shape_cast %63 : vector<1x8x320xf32> to vector<8x320xf32>
    %65 = arith.truncf %64 : vector<8x320xf32> to vector<8x320xbf16>
    %c0_49 = arith.constant 0 : index
    %c1_50 = arith.constant 1 : index
    %c64_51 = arith.constant 64 : index
    %66 = vector.load %arg10[%c0_49, %c1_50, %c64_51] : memref<1x12x768xf32, #tpu.memory_space<vmem>>, vector<1x8x320xf32>
    %67 = vector.shape_cast %66 : vector<1x8x320xf32> to vector<8x320xf32>
    %68 = arith.truncf %67 : vector<8x320xf32> to vector<8x320xbf16>
    %c0_52 = arith.constant 0 : index
    %c2_53 = arith.constant 2 : index
    %c64_54 = arith.constant 64 : index
    %69 = vector.load %arg10[%c0_52, %c2_53, %c64_54] : memref<1x12x768xf32, #tpu.memory_space<vmem>>, vector<1x8x320xf32>
    %70 = vector.shape_cast %69 : vector<1x8x320xf32> to vector<8x320xf32>
    %71 = arith.truncf %70 : vector<8x320xf32> to vector<8x320xbf16>
    %c0_55 = arith.constant 0 : index
    %c3_56 = arith.constant 3 : index
    %c64_57 = arith.constant 64 : index
    %72 = vector.load %arg10[%c0_55, %c3_56, %c64_57] : memref<1x12x768xf32, #tpu.memory_space<vmem>>, vector<1x8x320xf32>
    %73 = vector.shape_cast %72 : vector<1x8x320xf32> to vector<8x320xf32>
    %74 = arith.truncf %73 : vector<8x320xf32> to vector<8x320xbf16>
    %c0_58 = arith.constant 0 : index
    %c4_59 = arith.constant 4 : index
    %c64_60 = arith.constant 64 : index
    %75 = vector.load %arg10[%c0_58, %c4_59, %c64_60] : memref<1x12x768xf32, #tpu.memory_space<vmem>>, vector<1x8x320xf32>
    %76 = vector.shape_cast %75 : vector<1x8x320xf32> to vector<8x320xf32>
    %77 = arith.truncf %76 : vector<8x320xf32> to vector<8x320xbf16>
    %78 = tpu.concatenate %65, %68, %71, %74, %77 in 1 : vector<8x320xbf16>, vector<8x320xbf16>, vector<8x320xbf16>, vector<8x320xbf16>, vector<8x320xbf16> -> vector<8x1600xbf16>
    %c0_61 = arith.constant 0 : index
    %c0_62 = arith.constant 0 : index
    %c128_63 = arith.constant 128 : index
    %79 = vector.load %arg10[%c0_61, %c0_62, %c128_63] : memref<1x12x768xf32, #tpu.memory_space<vmem>>, vector<1x8x320xf32>
    %80 = vector.shape_cast %79 : vector<1x8x320xf32> to vector<8x320xf32>
    %81 = arith.truncf %80 : vector<8x320xf32> to vector<8x320xbf16>
    %c0_64 = arith.constant 0 : index
    %c1_65 = arith.constant 1 : index
    %c128_66 = arith.constant 128 : index
    %82 = vector.load %arg10[%c0_64, %c1_65, %c128_66] : memref<1x12x768xf32, #tpu.memory_space<vmem>>, vector<1x8x320xf32>
    %83 = vector.shape_cast %82 : vector<1x8x320xf32> to vector<8x320xf32>
    %84 = arith.truncf %83 : vector<8x320xf32> to vector<8x320xbf16>
    %c0_67 = arith.constant 0 : index
    %c2_68 = arith.constant 2 : index
    %c128_69 = arith.constant 128 : index
    %85 = vector.load %arg10[%c0_67, %c2_68, %c128_69] : memref<1x12x768xf32, #tpu.memory_space<vmem>>, vector<1x8x320xf32>
    %86 = vector.shape_cast %85 : vector<1x8x320xf32> to vector<8x320xf32>
    %87 = arith.truncf %86 : vector<8x320xf32> to vector<8x320xbf16>
    %c0_70 = arith.constant 0 : index
    %c3_71 = arith.constant 3 : index
    %c128_72 = arith.constant 128 : index
    %88 = vector.load %arg10[%c0_70, %c3_71, %c128_72] : memref<1x12x768xf32, #tpu.memory_space<vmem>>, vector<1x8x320xf32>
    %89 = vector.shape_cast %88 : vector<1x8x320xf32> to vector<8x320xf32>
    %90 = arith.truncf %89 : vector<8x320xf32> to vector<8x320xbf16>
    %c0_73 = arith.constant 0 : index
    %c4_74 = arith.constant 4 : index
    %c128_75 = arith.constant 128 : index
    %91 = vector.load %arg10[%c0_73, %c4_74, %c128_75] : memref<1x12x768xf32, #tpu.memory_space<vmem>>, vector<1x8x320xf32>
    %92 = vector.shape_cast %91 : vector<1x8x320xf32> to vector<8x320xf32>
    %93 = arith.truncf %92 : vector<8x320xf32> to vector<8x320xbf16>
    %94 = tpu.concatenate %81, %84, %87, %90, %93 in 1 : vector<8x320xbf16>, vector<8x320xbf16>, vector<8x320xbf16>, vector<8x320xbf16>, vector<8x320xbf16> -> vector<8x1600xbf16>
    %c0_76 = arith.constant 0 : index
    %c0_77 = arith.constant 0 : index
    %c192 = arith.constant 192 : index
    %95 = vector.load %arg10[%c0_76, %c0_77, %c192] : memref<1x12x768xf32, #tpu.memory_space<vmem>>, vector<1x8x320xf32>
    %96 = vector.shape_cast %95 : vector<1x8x320xf32> to vector<8x320xf32>
    %97 = arith.truncf %96 : vector<8x320xf32> to vector<8x320xbf16>
    %c0_78 = arith.constant 0 : index
    %c1_79 = arith.constant 1 : index
    %c192_80 = arith.constant 192 : index
    %98 = vector.load %arg10[%c0_78, %c1_79, %c192_80] : memref<1x12x768xf32, #tpu.memory_space<vmem>>, vector<1x8x320xf32>
    %99 = vector.shape_cast %98 : vector<1x8x320xf32> to vector<8x320xf32>
    %100 = arith.truncf %99 : vector<8x320xf32> to vector<8x320xbf16>
    %c0_81 = arith.constant 0 : index
    %c2_82 = arith.constant 2 : index
    %c192_83 = arith.constant 192 : index
    %101 = vector.load %arg10[%c0_81, %c2_82, %c192_83] : memref<1x12x768xf32, #tpu.memory_space<vmem>>, vector<1x8x320xf32>
    %102 = vector.shape_cast %101 : vector<1x8x320xf32> to vector<8x320xf32>
    %103 = arith.truncf %102 : vector<8x320xf32> to vector<8x320xbf16>
    %c0_84 = arith.constant 0 : index
    %c3_85 = arith.constant 3 : index
    %c192_86 = arith.constant 192 : index
    %104 = vector.load %arg10[%c0_84, %c3_85, %c192_86] : memref<1x12x768xf32, #tpu.memory_space<vmem>>, vector<1x8x320xf32>
    %105 = vector.shape_cast %104 : vector<1x8x320xf32> to vector<8x320xf32>
    %106 = arith.truncf %105 : vector<8x320xf32> to vector<8x320xbf16>
    %c0_87 = arith.constant 0 : index
    %c4_88 = arith.constant 4 : index
    %c192_89 = arith.constant 192 : index
    %107 = vector.load %arg10[%c0_87, %c4_88, %c192_89] : memref<1x12x768xf32, #tpu.memory_space<vmem>>, vector<1x8x320xf32>
    %108 = vector.shape_cast %107 : vector<1x8x320xf32> to vector<8x320xf32>
    %109 = arith.truncf %108 : vector<8x320xf32> to vector<8x320xbf16>
    %110 = tpu.concatenate %97, %100, %103, %106, %109 in 1 : vector<8x320xbf16>, vector<8x320xbf16>, vector<8x320xbf16>, vector<8x320xbf16>, vector<8x320xbf16> -> vector<8x1600xbf16>
    %c0_90 = arith.constant 0 : index
    %c0_91 = arith.constant 0 : index
    %c256 = arith.constant 256 : index
    %111 = vector.load %arg10[%c0_90, %c0_91, %c256] : memref<1x12x768xf32, #tpu.memory_space<vmem>>, vector<1x8x320xf32>
    %112 = vector.shape_cast %111 : vector<1x8x320xf32> to vector<8x320xf32>
    %113 = arith.truncf %112 : vector<8x320xf32> to vector<8x320xbf16>
    %c0_92 = arith.constant 0 : index
    %c1_93 = arith.constant 1 : index
    %c256_94 = arith.constant 256 : index
    %114 = vector.load %arg10[%c0_92, %c1_93, %c256_94] : memref<1x12x768xf32, #tpu.memory_space<vmem>>, vector<1x8x320xf32>
    %115 = vector.shape_cast %114 : vector<1x8x320xf32> to vector<8x320xf32>
    %116 = arith.truncf %115 : vector<8x320xf32> to vector<8x320xbf16>
    %c0_95 = arith.constant 0 : index
    %c2_96 = arith.constant 2 : index
    %c256_97 = arith.constant 256 : index
    %117 = vector.load %arg10[%c0_95, %c2_96, %c256_97] : memref<1x12x768xf32, #tpu.memory_space<vmem>>, vector<1x8x320xf32>
    %118 = vector.shape_cast %117 : vector<1x8x320xf32> to vector<8x320xf32>
    %119 = arith.truncf %118 : vector<8x320xf32> to vector<8x320xbf16>
    %c0_98 = arith.constant 0 : index
    %c3_99 = arith.constant 3 : index
    %c256_100 = arith.constant 256 : index
    %120 = vector.load %arg10[%c0_98, %c3_99, %c256_100] : memref<1x12x768xf32, #tpu.memory_space<vmem>>, vector<1x8x320xf32>
    %121 = vector.shape_cast %120 : vector<1x8x320xf32> to vector<8x320xf32>
    %122 = arith.truncf %121 : vector<8x320xf32> to vector<8x320xbf16>
    %c0_101 = arith.constant 0 : index
    %c4_102 = arith.constant 4 : index
    %c256_103 = arith.constant 256 : index
    %123 = vector.load %arg10[%c0_101, %c4_102, %c256_103] : memref<1x12x768xf32, #tpu.memory_space<vmem>>, vector<1x8x320xf32>
    %124 = vector.shape_cast %123 : vector<1x8x320xf32> to vector<8x320xf32>
    %125 = arith.truncf %124 : vector<8x320xf32> to vector<8x320xbf16>
    %126 = tpu.concatenate %113, %116, %119, %122, %125 in 1 : vector<8x320xbf16>, vector<8x320xbf16>, vector<8x320xbf16>, vector<8x320xbf16>, vector<8x320xbf16> -> vector<8x1600xbf16>
    %c0_104 = arith.constant 0 : index
    %c0_105 = arith.constant 0 : index
    %c320 = arith.constant 320 : index
    %127 = vector.load %arg10[%c0_104, %c0_105, %c320] : memref<1x12x768xf32, #tpu.memory_space<vmem>>, vector<1x8x320xf32>
    %128 = vector.shape_cast %127 : vector<1x8x320xf32> to vector<8x320xf32>
    %129 = arith.truncf %128 : vector<8x320xf32> to vector<8x320xbf16>
    %c0_106 = arith.constant 0 : index
    %c1_107 = arith.constant 1 : index
    %c320_108 = arith.constant 320 : index
    %130 = vector.load %arg10[%c0_106, %c1_107, %c320_108] : memref<1x12x768xf32, #tpu.memory_space<vmem>>, vector<1x8x320xf32>
    %131 = vector.shape_cast %130 : vector<1x8x320xf32> to vector<8x320xf32>
    %132 = arith.truncf %131 : vector<8x320xf32> to vector<8x320xbf16>
    %c0_109 = arith.constant 0 : index
    %c2_110 = arith.constant 2 : index
    %c320_111 = arith.constant 320 : index
    %133 = vector.load %arg10[%c0_109, %c2_110, %c320_111] : memref<1x12x768xf32, #tpu.memory_space<vmem>>, vector<1x8x320xf32>
    %134 = vector.shape_cast %133 : vector<1x8x320xf32> to vector<8x320xf32>
    %135 = arith.truncf %134 : vector<8x320xf32> to vector<8x320xbf16>
    %c0_112 = arith.constant 0 : index
    %c3_113 = arith.constant 3 : index
    %c320_114 = arith.constant 320 : index
    %136 = vector.load %arg10[%c0_112, %c3_113, %c320_114] : memref<1x12x768xf32, #tpu.memory_space<vmem>>, vector<1x8x320xf32>
    %137 = vector.shape_cast %136 : vector<1x8x320xf32> to vector<8x320xf32>
    %138 = arith.truncf %137 : vector<8x320xf32> to vector<8x320xbf16>
    %c0_115 = arith.constant 0 : index
    %c4_116 = arith.constant 4 : index
    %c320_117 = arith.constant 320 : index
    %139 = vector.load %arg10[%c0_115, %c4_116, %c320_117] : memref<1x12x768xf32, #tpu.memory_space<vmem>>, vector<1x8x320xf32>
    %140 = vector.shape_cast %139 : vector<1x8x320xf32> to vector<8x320xf32>
    %141 = arith.truncf %140 : vector<8x320xf32> to vector<8x320xbf16>
    %142 = tpu.concatenate %129, %132, %135, %138, %141 in 1 : vector<8x320xbf16>, vector<8x320xbf16>, vector<8x320xbf16>, vector<8x320xbf16>, vector<8x320xbf16> -> vector<8x1600xbf16>
    %c0_118 = arith.constant 0 : index
    %c0_119 = arith.constant 0 : index
    %c384 = arith.constant 384 : index
    %143 = vector.load %arg10[%c0_118, %c0_119, %c384] : memref<1x12x768xf32, #tpu.memory_space<vmem>>, vector<1x8x320xf32>
    %144 = vector.shape_cast %143 : vector<1x8x320xf32> to vector<8x320xf32>
    %145 = arith.truncf %144 : vector<8x320xf32> to vector<8x320xbf16>
    %c0_120 = arith.constant 0 : index
    %c1_121 = arith.constant 1 : index
    %c384_122 = arith.constant 384 : index
    %146 = vector.load %arg10[%c0_120, %c1_121, %c384_122] : memref<1x12x768xf32, #tpu.memory_space<vmem>>, vector<1x8x320xf32>
    %147 = vector.shape_cast %146 : vector<1x8x320xf32> to vector<8x320xf32>
    %148 = arith.truncf %147 : vector<8x320xf32> to vector<8x320xbf16>
    %c0_123 = arith.constant 0 : index
    %c2_124 = arith.constant 2 : index
    %c384_125 = arith.constant 384 : index
    %149 = vector.load %arg10[%c0_123, %c2_124, %c384_125] : memref<1x12x768xf32, #tpu.memory_space<vmem>>, vector<1x8x320xf32>
    %150 = vector.shape_cast %149 : vector<1x8x320xf32> to vector<8x320xf32>
    %151 = arith.truncf %150 : vector<8x320xf32> to vector<8x320xbf16>
    %c0_126 = arith.constant 0 : index
    %c3_127 = arith.constant 3 : index
    %c384_128 = arith.constant 384 : index
    %152 = vector.load %arg10[%c0_126, %c3_127, %c384_128] : memref<1x12x768xf32, #tpu.memory_space<vmem>>, vector<1x8x320xf32>
    %153 = vector.shape_cast %152 : vector<1x8x320xf32> to vector<8x320xf32>
    %154 = arith.truncf %153 : vector<8x320xf32> to vector<8x320xbf16>
    %c0_129 = arith.constant 0 : index
    %c4_130 = arith.constant 4 : index
    %c384_131 = arith.constant 384 : index
    %155 = vector.load %arg10[%c0_129, %c4_130, %c384_131] : memref<1x12x768xf32, #tpu.memory_space<vmem>>, vector<1x8x320xf32>
    %156 = vector.shape_cast %155 : vector<1x8x320xf32> to vector<8x320xf32>
    %157 = arith.truncf %156 : vector<8x320xf32> to vector<8x320xbf16>
    %158 = tpu.concatenate %145, %148, %151, %154, %157 in 1 : vector<8x320xbf16>, vector<8x320xbf16>, vector<8x320xbf16>, vector<8x320xbf16>, vector<8x320xbf16> -> vector<8x1600xbf16>
    %c0_132 = arith.constant 0 : index
    %c0_133 = arith.constant 0 : index
    %c448 = arith.constant 448 : index
    %159 = vector.load %arg10[%c0_132, %c0_133, %c448] : memref<1x12x768xf32, #tpu.memory_space<vmem>>, vector<1x8x320xf32>
    %160 = vector.shape_cast %159 : vector<1x8x320xf32> to vector<8x320xf32>
    %161 = arith.truncf %160 : vector<8x320xf32> to vector<8x320xbf16>
    %c0_134 = arith.constant 0 : index
    %c1_135 = arith.constant 1 : index
    %c448_136 = arith.constant 448 : index
    %162 = vector.load %arg10[%c0_134, %c1_135, %c448_136] : memref<1x12x768xf32, #tpu.memory_space<vmem>>, vector<1x8x320xf32>
    %163 = vector.shape_cast %162 : vector<1x8x320xf32> to vector<8x320xf32>
    %164 = arith.truncf %163 : vector<8x320xf32> to vector<8x320xbf16>
    %c0_137 = arith.constant 0 : index
    %c2_138 = arith.constant 2 : index
    %c448_139 = arith.constant 448 : index
    %165 = vector.load %arg10[%c0_137, %c2_138, %c448_139] : memref<1x12x768xf32, #tpu.memory_space<vmem>>, vector<1x8x320xf32>
    %166 = vector.shape_cast %165 : vector<1x8x320xf32> to vector<8x320xf32>
    %167 = arith.truncf %166 : vector<8x320xf32> to vector<8x320xbf16>
    %c0_140 = arith.constant 0 : index
    %c3_141 = arith.constant 3 : index
    %c448_142 = arith.constant 448 : index
    %168 = vector.load %arg10[%c0_140, %c3_141, %c448_142] : memref<1x12x768xf32, #tpu.memory_space<vmem>>, vector<1x8x320xf32>
    %169 = vector.shape_cast %168 : vector<1x8x320xf32> to vector<8x320xf32>
    %170 = arith.truncf %169 : vector<8x320xf32> to vector<8x320xbf16>
    %c0_143 = arith.constant 0 : index
    %c4_144 = arith.constant 4 : index
    %c448_145 = arith.constant 448 : index
    %171 = vector.load %arg10[%c0_143, %c4_144, %c448_145] : memref<1x12x768xf32, #tpu.memory_space<vmem>>, vector<1x8x320xf32>
    %172 = vector.shape_cast %171 : vector<1x8x320xf32> to vector<8x320xf32>
    %173 = arith.truncf %172 : vector<8x320xf32> to vector<8x320xbf16>
    %174 = tpu.concatenate %161, %164, %167, %170, %173 in 1 : vector<8x320xbf16>, vector<8x320xbf16>, vector<8x320xbf16>, vector<8x320xbf16>, vector<8x320xbf16> -> vector<8x1600xbf16>
    %175 = tpu.concatenate %62, %78, %94, %110, %126, %142, %158, %174 in 0 : vector<8x1600xbf16>, vector<8x1600xbf16>, vector<8x1600xbf16>, vector<8x1600xbf16>, vector<8x1600xbf16>, vector<8x1600xbf16>, vector<8x1600xbf16>, vector<8x1600xbf16> -> vector<64x1600xbf16>
    %c0_146 = arith.constant 0 : index
    %c0_147 = arith.constant 0 : index
    %176 = vector.load %arg4[%c0_146, %c0_147] : memref<1600x256xbf16, #tpu.memory_space<vmem>>, vector<1600x256xbf16>
    %cst_148 = arith.constant dense<0.000000e+00> : vector<64x256xf32>
    %177 = tpu.matmul %175, %176, %cst_148 {dimension_numbers = #tpu.dot_dimension_numbers<[1], [0], [0], [1], [0, 0, 1, 1], [], []>} : vector<64x1600xbf16>, vector<1600x256xbf16>, vector<64x256xf32> -> vector<64x256xf32>
    %c0_149 = arith.constant 0 : index
    %c0_150 = arith.constant 0 : index
    %178 = vector.load %arg5[%c0_149, %c0_150] : memref<1x256xf32, #tpu.memory_space<vmem>>, vector<1x256xf32>
    %179 = vector.broadcast %178 : vector<1x256xf32> to vector<64x256xf32>
    %180 = arith.addf %177, %179 : vector<64x256xf32>
    %cst_151 = arith.constant 0.000000e+00 : f32
    %181 = vector.broadcast %cst_151 : f32 to vector<64x256xf32>
    %182 = arith.maximumf %180, %181 : vector<64x256xf32>
    %183 = vector.shape_cast %182 : vector<64x256xf32> to vector<8x1x8x256xf32>
    %cst_152 = arith.constant dense<0xFF800000> : vector<8x1x256xf32>
    %184 = vector.multi_reduction <maximumf>, %183, %cst_152 [2] : vector<8x1x8x256xf32> to vector<8x1x256xf32>
    %185 = vector.extract_strided_slice %184 {offsets = [0, 0, 0], sizes = [1, 1, 256], strides = [1, 1, 1]} : vector<8x1x256xf32> to vector<1x1x256xf32>
    %186 = vector.shape_cast %185 : vector<1x1x256xf32> to vector<1x256xf32>
    %187 = vector.extract_strided_slice %184 {offsets = [1, 0, 0], sizes = [1, 1, 256], strides = [1, 1, 1]} : vector<8x1x256xf32> to vector<1x1x256xf32>
    %188 = vector.shape_cast %187 : vector<1x1x256xf32> to vector<1x256xf32>
    %189 = arith.maximumf %186, %188 : vector<1x256xf32>
    %190 = vector.extract_strided_slice %184 {offsets = [2, 0, 0], sizes = [1, 1, 256], strides = [1, 1, 1]} : vector<8x1x256xf32> to vector<1x1x256xf32>
    %191 = vector.shape_cast %190 : vector<1x1x256xf32> to vector<1x256xf32>
    %192 = arith.maximumf %189, %191 : vector<1x256xf32>
    %193 = vector.extract_strided_slice %184 {offsets = [3, 0, 0], sizes = [1, 1, 256], strides = [1, 1, 1]} : vector<8x1x256xf32> to vector<1x1x256xf32>
    %194 = vector.shape_cast %193 : vector<1x1x256xf32> to vector<1x256xf32>
    %195 = arith.maximumf %192, %194 : vector<1x256xf32>
    %196 = vector.extract_strided_slice %184 {offsets = [4, 0, 0], sizes = [1, 1, 256], strides = [1, 1, 1]} : vector<8x1x256xf32> to vector<1x1x256xf32>
    %197 = vector.shape_cast %196 : vector<1x1x256xf32> to vector<1x256xf32>
    %198 = arith.maximumf %195, %197 : vector<1x256xf32>
    %199 = vector.extract_strided_slice %184 {offsets = [5, 0, 0], sizes = [1, 1, 256], strides = [1, 1, 1]} : vector<8x1x256xf32> to vector<1x1x256xf32>
    %200 = vector.shape_cast %199 : vector<1x1x256xf32> to vector<1x256xf32>
    %201 = arith.maximumf %198, %200 : vector<1x256xf32>
    %202 = vector.extract_strided_slice %184 {offsets = [6, 0, 0], sizes = [1, 1, 256], strides = [1, 1, 1]} : vector<8x1x256xf32> to vector<1x1x256xf32>
    %203 = vector.shape_cast %202 : vector<1x1x256xf32> to vector<1x256xf32>
    %204 = arith.maximumf %201, %203 : vector<1x256xf32>
    %205 = vector.extract_strided_slice %184 {offsets = [7, 0, 0], sizes = [1, 1, 256], strides = [1, 1, 1]} : vector<8x1x256xf32> to vector<1x1x256xf32>
    %206 = vector.shape_cast %205 : vector<1x1x256xf32> to vector<1x256xf32>
    %207 = arith.maximumf %204, %206 : vector<1x256xf32>
    %208 = arith.truncf %207 : vector<1x256xf32> to vector<1x256xbf16>
    %c0_153 = arith.constant 0 : index
    %c0_154 = arith.constant 0 : index
    %209 = vector.load %arg6[%c0_153, %c0_154] : memref<256x10xbf16, #tpu.memory_space<vmem>>, vector<256x10xbf16>
    %cst_155 = arith.constant dense<0.000000e+00> : vector<1x10xf32>
    %210 = tpu.matmul %208, %209, %cst_155 {dimension_numbers = #tpu.dot_dimension_numbers<[1], [0], [0], [1], [0, 0, 1, 1], [], []>} : vector<1x256xbf16>, vector<256x10xbf16>, vector<1x10xf32> -> vector<1x10xf32>
    %c0_156 = arith.constant 0 : index
    %c0_157 = arith.constant 0 : index
    %211 = vector.load %arg7[%c0_156, %c0_157] : memref<1x10xf32, #tpu.memory_space<vmem>>, vector<1x10xf32>
    %212 = arith.addf %210, %211 : vector<1x10xf32>
    %213 = vector.shape_cast %212 : vector<1x10xf32> to vector<1x1x10xf32>
    %c0_158 = arith.constant 0 : index
    %c0_159 = arith.constant 0 : index
    %c0_160 = arith.constant 0 : index
    %214 = vector.load %arg8[%c0_158, %c0_159, %c0_160] : memref<1x1x10xf32, #tpu.memory_space<vmem>>, vector<1x1x10xf32>
    tpu.vector_store %arg8[%c0_158, %c0_159, %c0_160], %213 {strides = array<i32>} : memref<1x1x10xf32, #tpu.memory_space<vmem>>, vector<1x1x10xf32>,
    return
  }
  func.func @transform_0(%arg0: i32) -> (i32, i32, i32) {
    %c0_i32 = arith.constant 0 : i32
    %c0_i32_0 = arith.constant 0 : i32
    %c0_i32_1 = arith.constant 0 : i32
    return %arg0, %c0_i32, %c0_i32_0 : i32, i32, i32
  }
  func.func @transform_1(%arg0: i32) -> (i32, i32) {
    %c0_i32 = arith.constant 0 : i32
    %c0_i32_0 = arith.constant 0 : i32
    %c0_i32_1 = arith.constant 0 : i32
    return %c0_i32, %c0_i32_0 : i32, i32
  }
  func.func @transform_2(%arg0: i32) -> (i32, i32) {
    %c0_i32 = arith.constant 0 : i32
    %c0_i32_0 = arith.constant 0 : i32
    %c0_i32_1 = arith.constant 0 : i32
    return %c0_i32, %c0_i32_0 : i32, i32
  }
  func.func @transform_3(%arg0: i32) -> (i32, i32) {
    %c0_i32 = arith.constant 0 : i32
    %c0_i32_0 = arith.constant 0 : i32
    %c0_i32_1 = arith.constant 0 : i32
    return %c0_i32, %c0_i32_0 : i32, i32
  }
  func.func @transform_4(%arg0: i32) -> (i32, i32) {
    %c0_i32 = arith.constant 0 : i32
    %c0_i32_0 = arith.constant 0 : i32
    %c0_i32_1 = arith.constant 0 : i32
    return %c0_i32, %c0_i32_0 : i32, i32
  }
  func.func @transform_5(%arg0: i32) -> (i32, i32) {
    %c0_i32 = arith.constant 0 : i32
    %c0_i32_0 = arith.constant 0 : i32
    %c0_i32_1 = arith.constant 0 : i32
    return %c0_i32, %c0_i32_0 : i32, i32
  }
  func.func @transform_6(%arg0: i32) -> (i32, i32) {
    %c0_i32 = arith.constant 0 : i32
    %c0_i32_0 = arith.constant 0 : i32
    %c0_i32_1 = arith.constant 0 : i32
    return %c0_i32, %c0_i32_0 : i32, i32
  }
  func.func @transform_7(%arg0: i32) -> (i32, i32, i32) {
    %c0_i32 = arith.constant 0 : i32
    %c0_i32_0 = arith.constant 0 : i32
    %c0_i32_1 = arith.constant 0 : i32
    return %arg0, %c0_i32, %c0_i32_0 : i32, i32, i32
  }
}

</mosaic_0001>

<llo_original>
// kernel: tpu_custom_call.1
$region0: #{tpu_custom_call.1}
  #allocation0 [shape = 'u32[]', space=smem, size = 0x4, offset = 0x4, fixed_abs, tag = 'smem constant byte address 0x4 - core index']
  #allocation1 [shape = 'u32[144,128]{1,0:T(1,128)}', space=vmem, size = 0x12000, scoped, tag = 'internal scratch']
  #allocation2 [shape = 'f32[1,68,68]{2,1,0:T(8,128)}', space=vmem, size = 0x9000, scoped, tag = 'scratch operand']
  #allocation3 [shape = 'f32[1,12,768]{2,1,0:T(8,128)}', space=vmem, size = 0xc000, scoped, tag = 'scratch operand']
  %s0 = inlined_call_operand.hbm [shape: f32[2,64,64], index: 0, kind: input, shape index: {}]
  %s1 = inlined_call_operand.hbm [shape: bf16[340,4096], index: 1, kind: input, shape index: {}]
  %s2 = inlined_call_operand.hbm [shape: f32[1,4096], index: 2, kind: input, shape index: {}]
  %s3 = inlined_call_operand.hbm [shape: bf16[1600,256], index: 3, kind: input, shape index: {}]
  %s4 = inlined_call_operand.hbm [shape: f32[1,256], index: 4, kind: input, shape index: {}]
  %s5 = inlined_call_operand.hbm [shape: bf16[256,10], index: 5, kind: input, shape index: {}]
  %s6 = inlined_call_operand.hbm [shape: f32[1,10], index: 6, kind: input, shape index: {}]
  %s7 = inlined_call_operand.hbm [shape: f32[2,1,10], index: 7, kind: output, shape index: {}]
  %s8 = sld [smem:[#allocation0]]
  $region89: #{tpu_custom_call.1} parent=0
    _
  %s10 = ssub.s32 1, %s8
  %s11 = scalar_select 0, %s10, %s8
  $region1: #{tpu_custom_call.1} parent=0
    #allocation4 [shape = 'u8[65536]{0}', space=vmem, size = 0x10000, scoped, tag = 'input window, operand 0']
    #allocation5 [shape = 's32[2]{0}', space=sflag, size = 0x8, scoped, tag = 'scoped memory for tpu_custom_call.1']
    #allocation6 [shape = 's32[2]{0}', space=sflag, size = 0x8, scoped, tag = 'scoped memory for tpu_custom_call.1']
    #allocation7 [shape = 'u8[2818048]{0}', space=vmem, size = 0x2b0000, scoped, tag = 'input window, operand 1, single buffered']
    #allocation8 [shape = 's32[1]{0}', space=sflag, size = 0x4, scoped, tag = 'scoped memory for tpu_custom_call.1']
    #allocation9 [shape = 'u8[16384]{0}', space=vmem, size = 0x4000, scoped, tag = 'input window, operand 2, single buffered']
    #allocation10 [shape = 'u8[819200]{0}', space=vmem, size = 0xc8000, scoped, tag = 'input window, operand 3, single buffered']
    #allocation11 [shape = 's32[1]{0}', space=sflag, size = 0x4, scoped, tag = 'scoped memory for tpu_custom_call.1']
    #allocation12 [shape = 'u8[1024]{0}', space=vmem, size = 0x400, scoped, tag = 'input window, operand 4, single buffered']
    #allocation13 [shape = 'u8[65536]{0}', space=vmem, size = 0x10000, scoped, tag = 'input window, operand 5, single buffered']
    #allocation14 [shape = 's32[1]{0}', space=sflag, size = 0x4, scoped, tag = 'scoped memory for tpu_custom_call.1']
    #allocation15 [shape = 'u8[512]{0}', space=vmem, size = 0x400, scoped, tag = 'input window, operand 6, single buffered']
    #allocation16 [shape = 'u8[1024]{0}', space=vmem, size = 0x400, scoped, tag = 'output window, operand 0']
    %12 = vsyncpa [#allocation5], 0
    %s13 = scalar_lea.sflag [#allocation5], 1
    %14 = vsyncpa %s13, 0
    %15 = vsyncpa [#allocation8], 0
    %16 = vsyncpa [#allocation11], 0
    %17 = vsyncpa [#allocation14], 0
    %18 = vsyncpa [#allocation6], 0
    %s19 = scalar_lea.sflag [#allocation6], 1
    %20 = vsyncpa %s19, 0
    loop: start=0, step=1, limit=4
    $region2: #{tpu_custom_call.1} parent=1 // loop_pre_header
      _
    $region3: #{tpu_custom_call.1} parent=1 // loop_header
      %s22 = sphi 0, %s26
      %p23 = scmp.ge.s32.totalorder %s22, 4
      %s32 = sphi 0, %s34
      %s35 = sphi 0, %s32
      %s36 = sphi 0, %s35
      %s52 = sphi 0, %s36
      %s56 = sphi 0, %s56
      %s58 = sphi 0, %s56
      %s59 = sphi 0, %s58
      %s73 = sphi 0, %s59
      %s77 = sphi 0, %s77
      %s79 = sphi 0, %s77
      %s80 = sphi 0, %s79
      %s94 = sphi 0, %s80
      %s98 = sphi 0, %s98
      %s100 = sphi 0, %s98
      %s101 = sphi 0, %s100
      %s115 = sphi 0, %s101
      %s119 = sphi 0, %s119
      %s121 = sphi 0, %s119
      %s122 = sphi 0, %s121
      %s136 = sphi 0, %s122
      %s140 = sphi 0, %s140
      %s142 = sphi 0, %s140
      %s143 = sphi 0, %s142
      %s157 = sphi 0, %s143
      %s161 = sphi 0, %s161
      %s163 = sphi 0, %s161
      %s164 = sphi 0, %s163
      %s178 = sphi 0, %s164
      %s184 = sphi 0, %s186
      %s187 = sphi 0, %s184
      %s188 = sphi 0, %s187
      %s204 = sphi 0, %s188
    $region4: #{tpu_custom_call.1} parent=1 // loop_header_branch
      %25 = sbr.rel (%p23) target = $region8
    $region5: #{tpu_custom_call.1} parent=1 // loop_body
      %s27 = ssub.s32 %s22, 1
      %s28 = ssub.s32 %s22, 2
      %s29 = sadd.s32 %s22, 1
      %s30 = ssub.s32 %s22, %s29
      %p31 = scmp.eq.s32.totalorder %s30, 0
      %s33 = sadd.s32 %s32, 1
      %s34 = scalar_select %p31, %s32, %s33
      %p37 = pneg %p31
      %p38 = scmp.eq.s32.totalorder %s22, 1
      %p39 = por %p37, %p38
      %p40 = scmp.ne.s32.totalorder %s32, %s35
      %p41 = scmp.eq.s32.totalorder %s22, 0
      %p42 = por %p40, %p41
      %p43 = scmp.ne.s32.totalorder %s32, %s35
      %p44 = scmp.eq.s32.totalorder %s27, 1
      %p45 = por %p43, %p44
      %p46 = scmp.ne.s32.totalorder %s35, %s36
      %p47 = scmp.eq.s32.totalorder %s27, 0
      %p48 = por %p46, %p47
      %p49 = scmp.ne.s32.totalorder %s35, %s36
      %p50 = scmp.eq.s32.totalorder %s28, 1
      %p51 = por %p49, %p50
      %p53 = scmp.ne.s32.totalorder %s36, %s52
      %p54 = scmp.eq.s32.totalorder %s28, 0
      %p55 = por %p53, %p54
      %s57 = sadd.s32 %s56, 1
      %p60 = scmp.eq.s32.totalorder %s22, 1
      %p61 = scmp.ne.s32.totalorder %s56, %s58
      %p62 = scmp.eq.s32.totalorder %s22, 0
      %p63 = por %p61, %p62
      %p64 = scmp.ne.s32.totalorder %s56, %s58
      %p65 = scmp.eq.s32.totalorder %s27, 1
      %p66 = por %p64, %p65
      %p67 = scmp.ne.s32.totalorder %s58, %s59
      %p68 = scmp.eq.s32.totalorder %s27, 0
      %p69 = por %p67, %p68
      %p70 = scmp.ne.s32.totalorder %s58, %s59
      %p71 = scmp.eq.s32.totalorder %s28, 1
      %p72 = por %p70, %p71
      %p74 = scmp.ne.s32.totalorder %s59, %s73
      %p75 = scmp.eq.s32.totalorder %s28, 0
      %p76 = por %p74, %p75
      %s78 = sadd.s32 %s77, 1
      %p81 = scmp.eq.s32.totalorder %s22, 1
      %p82 = scmp.ne.s32.totalorder %s77, %s79
      %p83 = scmp.eq.s32.totalorder %s22, 0
      %p84 = por %p82, %p83
      %p85 = scmp.ne.s32.totalorder %s77, %s79
      %p86 = scmp.eq.s32.totalorder %s27, 1
      %p87 = por %p85, %p86
      %p88 = scmp.ne.s32.totalorder %s79, %s80
      %p89 = scmp.eq.s32.totalorder %s27, 0
      %p90 = por %p88, %p89
      %p91 = scmp.ne.s32.totalorder %s79, %s80
      %p92 = scmp.eq.s32.totalorder %s28, 1
      %p93 = por %p91, %p92
      %p95 = scmp.ne.s32.totalorder %s80, %s94
      %p96 = scmp.eq.s32.totalorder %s28, 0
      %p97 = por %p95, %p96
      %s99 = sadd.s32 %s98, 1
      %p102 = scmp.eq.s32.totalorder %s22, 1
      %p103 = scmp.ne.s32.totalorder %s98, %s100
      %p104 = scmp.eq.s32.totalorder %s22, 0
      %p105 = por %p103, %p104
      %p106 = scmp.ne.s32.totalorder %s98, %s100
      %p107 = scmp.eq.s32.totalorder %s27, 1
      %p108 = por %p106, %p107
      %p109 = scmp.ne.s32.totalorder %s100, %s101
      %p110 = scmp.eq.s32.totalorder %s27, 0
      %p111 = por %p109, %p110
      %p112 = scmp.ne.s32.totalorder %s100, %s101
      %p113 = scmp.eq.s32.totalorder %s28, 1
      %p114 = por %p112, %p113
      %p116 = scmp.ne.s32.totalorder %s101, %s115
      %p117 = scmp.eq.s32.totalorder %s28, 0
      %p118 = por %p116, %p117
      %s120 = sadd.s32 %s119, 1
      %p123 = scmp.eq.s32.totalorder %s22, 1
      %p124 = scmp.ne.s32.totalorder %s119, %s121
      %p125 = scmp.eq.s32.totalorder %s22, 0
      %p126 = por %p124, %p125
      %p127 = scmp.ne.s32.totalorder %s119, %s121
      %p128 = scmp.eq.s32.totalorder %s27, 1
      %p129 = por %p127, %p128
      %p130 = scmp.ne.s32.totalorder %s121, %s122
      %p131 = scmp.eq.s32.totalorder %s27, 0
      %p132 = por %p130, %p131
      %p133 = scmp.ne.s32.totalorder %s121, %s122
      %p134 = scmp.eq.s32.totalorder %s28, 1
      %p135 = por %p133, %p134
      %p137 = scmp.ne.s32.totalorder %s122, %s136
      %p138 = scmp.eq.s32.totalorder %s28, 0
      %p139 = por %p137, %p138
      %s141 = sadd.s32 %s140, 1
      %p144 = scmp.eq.s32.totalorder %s22, 1
      %p145 = scmp.ne.s32.totalorder %s140, %s142
      %p146 = scmp.eq.s32.totalorder %s22, 0
      %p147 = por %p145, %p146
      %p148 = scmp.ne.s32.totalorder %s140, %s142
      %p149 = scmp.eq.s32.totalorder %s27, 1
      %p150 = por %p148, %p149
      %p151 = scmp.ne.s32.totalorder %s142, %s143
      %p152 = scmp.eq.s32.totalorder %s27, 0
      %p153 = por %p151, %p152
      %p154 = scmp.ne.s32.totalorder %s142, %s143
      %p155 = scmp.eq.s32.totalorder %s28, 1
      %p156 = por %p154, %p155
      %p158 = scmp.ne.s32.totalorder %s143, %s157
      %p159 = scmp.eq.s32.totalorder %s28, 0
      %p160 = por %p158, %p159
      %s162 = sadd.s32 %s161, 1
      %p165 = scmp.eq.s32.totalorder %s22, 1
      %p166 = scmp.ne.s32.totalorder %s161, %s163
      %p167 = scmp.eq.s32.totalorder %s22, 0
      %p168 = por %p166, %p167
      %p169 = scmp.ne.s32.totalorder %s161, %s163
      %p170 = scmp.eq.s32.totalorder %s27, 1
      %p171 = por %p169, %p170
      %p172 = scmp.ne.s32.totalorder %s163, %s164
      %p173 = scmp.eq.s32.totalorder %s27, 0
      %p174 = por %p172, %p173
      %p175 = scmp.ne.s32.totalorder %s163, %s164
      %p176 = scmp.eq.s32.totalorder %s28, 1
      %p177 = por %p175, %p176
      %p179 = scmp.ne.s32.totalorder %s164, %s178
      %p180 = scmp.eq.s32.totalorder %s28, 0
      %p181 = por %p179, %p180
      %s182 = ssub.s32 %s22, %s29
      %p183 = scmp.eq.s32.totalorder %s182, 0
      %s185 = sadd.s32 %s184, 1
      %s186 = scalar_select %p183, %s184, %s185
      %p189 = pneg %p183
      %p190 = scmp.eq.s32.totalorder %s22, 1
      %p191 = por %p189, %p190
      %p192 = scmp.ne.s32.totalorder %s184, %s187
      %p193 = scmp.eq.s32.totalorder %s22, 0
      %p194 = por %p192, %p193
      %p195 = scmp.ne.s32.totalorder %s184, %s187
      %p196 = scmp.eq.s32.totalorder %s27, 1
      %p197 = por %p195, %p196
      %p198 = scmp.ne.s32.totalorder %s187, %s188
      %p199 = scmp.eq.s32.totalorder %s27, 0
      %p200 = por %p198, %p199
      %p201 = scmp.ne.s32.totalorder %s187, %s188
      %p202 = scmp.eq.s32.totalorder %s28, 1
      %p203 = por %p201, %p202
      %p205 = scmp.ne.s32.totalorder %s188, %s204
      %p206 = scmp.eq.s32.totalorder %s28, 0
      %p207 = por %p205, %p206
      %p208 = scmp.le.s32.totalorder 1, %s22
      %p209 = scmp.lt.s32.totalorder %s22, 3
      %p210 = pnand %p208, %p209
      %p211 = pneg %p210
      // Predicated region
      $region9: #{tpu_custom_call.1} parent=5 // pred_check
        _
      $region10: #{tpu_custom_call.1} parent=5 // pred_check_branch
        %213 = sbr.rel (%p210) target = $region12
      $region11: #{tpu_custom_call.1} parent=5 // pred_region
        %s214 = ssub.s32 %s22, 1
        // Predicated region
        $region13: #{tpu_custom_call.1} parent=11 // pred_check
          %p215 = pneg %p69
        $region14: #{tpu_custom_call.1} parent=11 // pred_check_branch
          %217 = sbr.rel (%p215) target = $region16
        $region15: #{tpu_custom_call.1} parent=11 // pred_region
          %s219 = ssub.s32 88064, 88064
          %220 = vsyncadd [#allocation8], %s219
          %s221 = sshll.u32 [#allocation7], 4
          %s222 = int_to_ptr.vmem [resolvable:$true] %s221
          %227 = dma.hbm_to_vmem [thread:$0]  %s1, 88064, %s222, [#allocation8], 2048, 2048, 128
        $region16: #{tpu_custom_call.1} parent=11 // pred_fallthru
          _
        // Predicated region
        $region17: #{tpu_custom_call.1} parent=11 // pred_check
          %p228 = pneg %p90
        $region18: #{tpu_custom_call.1} parent=11 // pred_check_branch
          %230 = sbr.rel (%p228) target = $region20
        $region19: #{tpu_custom_call.1} parent=11 // pred_region
          %s232 = ssub.s32 512, 512
          %233 = vsyncadd [#allocation8], %s232
          %s235 = sshll.u32 [#allocation9], 4
          %s236 = int_to_ptr.vmem [resolvable:$true] %s235
          %238 = dma.hbm_to_vmem [thread:$0]  %s2, 512, %s236, [#allocation8]
        $region20: #{tpu_custom_call.1} parent=11 // pred_fallthru
          _
        // Predicated region
        $region21: #{tpu_custom_call.1} parent=11 // pred_check
          %p239 = pneg %p111
        $region22: #{tpu_custom_call.1} parent=11 // pred_check_branch
          %241 = sbr.rel (%p239) target = $region24
        $region23: #{tpu_custom_call.1} parent=11 // pred_region
          %s243 = ssub.s32 25600, 25600
          %244 = vsyncadd [#allocation11], %s243
          %s245 = sshll.u32 [#allocation10], 4
          %s246 = int_to_ptr.vmem [resolvable:$true] %s245
          %251 = dma.hbm_to_vmem [thread:$0]  %s3, 25600, %s246, [#allocation11], 128, 128, 8
        $region24: #{tpu_custom_call.1} parent=11 // pred_fallthru
          _
        // Predicated region
        $region25: #{tpu_custom_call.1} parent=11 // pred_check
          %p252 = pneg %p132
        $region26: #{tpu_custom_call.1} parent=11 // pred_check_branch
          %254 = sbr.rel (%p252) target = $region28
        $region27: #{tpu_custom_call.1} parent=11 // pred_region
          %s256 = ssub.s32 32, 32
          %257 = vsyncadd [#allocation11], %s256
          %s259 = sshll.u32 [#allocation12], 4
          %s260 = int_to_ptr.vmem [resolvable:$true] %s259
          %262 = dma.hbm_to_vmem [thread:$0]  %s4, 32, %s260, [#allocation11]
        $region28: #{tpu_custom_call.1} parent=11 // pred_fallthru
          _
        // Predicated region
        $region29: #{tpu_custom_call.1} parent=11 // pred_check
          %p263 = pneg %p153
        $region30: #{tpu_custom_call.1} parent=11 // pred_check_branch
          %265 = sbr.rel (%p263) target = $region32
        $region31: #{tpu_custom_call.1} parent=11 // pred_region
          %s267 = ssub.s32 2048, 2048
          %268 = vsyncadd [#allocation14], %s267
          %s269 = sshll.u32 [#allocation13], 4
          %s270 = int_to_ptr.vmem [resolvable:$true] %s269
          %275 = dma.hbm_to_vmem [thread:$0]  %s5, 2048, %s270, [#allocation14], 64, 64, 4
        $region32: #{tpu_custom_call.1} parent=11 // pred_fallthru
          _
        // Predicated region
        $region33: #{tpu_custom_call.1} parent=11 // pred_check
          %p276 = pneg %p174
        $region34: #{tpu_custom_call.1} parent=11 // pred_check_branch
          %278 = sbr.rel (%p276) target = $region36
        $region35: #{tpu_custom_call.1} parent=11 // pred_region
          %s280 = ssub.s32 16, 16
          %281 = vsyncadd [#allocation14], %s280
          %s283 = sshll.u32 [#allocation15], 4
          %s284 = int_to_ptr.vmem [resolvable:$true] %s283
          %286 = dma.hbm_to_vmem [thread:$0]  %s6, 16, %s284, [#allocation14]
        $region36: #{tpu_custom_call.1} parent=11 // pred_fallthru
          _
      $region12: #{tpu_custom_call.1} parent=5 // pred_fallthru
        _
      %p287 = scmp.lt.s32.totalorder %s22, 2
      // Predicated region
      $region37: #{tpu_custom_call.1} parent=5 // pred_check
        %p288 = pneg %p287
      $region38: #{tpu_custom_call.1} parent=5 // pred_check_branch
        %290 = sbr.rel (%p288) target = $region40
      $region39: #{tpu_custom_call.1} parent=5 // pred_region
        // Predicated region
        $region41: #{tpu_custom_call.1} parent=39 // pred_check
          %p291 = pneg %p42
        $region42: #{tpu_custom_call.1} parent=39 // pred_check_branch
          %293 = sbr.rel (%p291) target = $region44
        $region43: #{tpu_custom_call.1} parent=39 // pred_region
          %s294 = sand.u32 %s32, 1
          %s295 = scalar_lea.sflag [#allocation5], %s294
          %s296 = sand.u32 %s32, 1
          %s297 = smul.addr %s296, 64
          %s298 = scalar_lea.vmem [#allocation4], %s297
          %s300 = ssub.s32 1024, 1024
          %301 = vsyncadd %s295, %s300
          %s302 = smul.addr %s22, 8
          %s303 = smul.addr %s302, 128
          %s304 = scalar_lea.hbm %s0, %s303
          %s305 = sshll.u32 %s298, 4
          %s306 = int_to_ptr.vmem [resolvable:$true] %s305
          %311 = dma.hbm_to_vmem [thread:$0]  %s304, 1024, %s306, %s295, 128, 128, 8
        $region44: #{tpu_custom_call.1} parent=39 // pred_fallthru
          _
      $region40: #{tpu_custom_call.1} parent=5 // pred_fallthru
        _
      %p312 = scmp.le.s32.totalorder 1, %s22
      %p313 = scmp.lt.s32.totalorder %s22, 3
      %p314 = pnand %p312, %p313
      %p315 = pneg %p314
      // Predicated region
      $region45: #{tpu_custom_call.1} parent=5 // pred_check
        _
      $region46: #{tpu_custom_call.1} parent=5 // pred_check_branch
        %317 = sbr.rel (%p314) target = $region48
      $region47: #{tpu_custom_call.1} parent=5 // pred_region
        %s318 = ssub.s32 %s22, 1
        %s319 = sand.u32 %s35, 1
        %s320 = scalar_lea.sflag [#allocation5], %s319
        %s321 = sand.u32 %s35, 1
        %s322 = smul.addr %s321, 64
        %s323 = scalar_lea.vmem [#allocation4], %s322
        // Predicated region
        $region49: #{tpu_custom_call.1} parent=47 // pred_check
          %p324 = pneg %p48
        $region50: #{tpu_custom_call.1} parent=47 // pred_check_branch
          %326 = sbr.rel (%p324) target = $region52
        $region51: #{tpu_custom_call.1} parent=47 // pred_region
          %327 = dma.done %s320, 1024
        $region52: #{tpu_custom_call.1} parent=47 // pred_fallthru
          _
        // Predicated region
        $region53: #{tpu_custom_call.1} parent=47 // pred_check
          %p328 = pneg %p69
        $region54: #{tpu_custom_call.1} parent=47 // pred_check_branch
          %330 = sbr.rel (%p328) target = $region56
        $region55: #{tpu_custom_call.1} parent=47 // pred_region
          %331 = dma.done [#allocation8], 88064
        $region56: #{tpu_custom_call.1} parent=47 // pred_fallthru
          _
        // Predicated region
        $region57: #{tpu_custom_call.1} parent=47 // pred_check
          %p332 = pneg %p90
        $region58: #{tpu_custom_call.1} parent=47 // pred_check_branch
          %334 = sbr.rel (%p332) target = $region60
        $region59: #{tpu_custom_call.1} parent=47 // pred_region
          %335 = dma.done [#allocation8], 512
        $region60: #{tpu_custom_call.1} parent=47 // pred_fallthru
          _
        // Predicated region
        $region61: #{tpu_custom_call.1} parent=47 // pred_check
          %p336 = pneg %p111
        $region62: #{tpu_custom_call.1} parent=47 // pred_check_branch
          %338 = sbr.rel (%p336) target = $region64
        $region63: #{tpu_custom_call.1} parent=47 // pred_region
          %339 = dma.done [#allocation11], 25600
        $region64: #{tpu_custom_call.1} parent=47 // pred_fallthru
          _
        // Predicated region
        $region65: #{tpu_custom_call.1} parent=47 // pred_check
          %p340 = pneg %p132
        $region66: #{tpu_custom_call.1} parent=47 // pred_check_branch
          %342 = sbr.rel (%p340) target = $region68
        $region67: #{tpu_custom_call.1} parent=47 // pred_region
          %343 = dma.done [#allocation11], 32
        $region68: #{tpu_custom_call.1} parent=47 // pred_fallthru
          _
        // Predicated region
        $region69: #{tpu_custom_call.1} parent=47 // pred_check
          %p344 = pneg %p153
        $region70: #{tpu_custom_call.1} parent=47 // pred_check_branch
          %346 = sbr.rel (%p344) target = $region72
        $region71: #{tpu_custom_call.1} parent=47 // pred_region
          %347 = dma.done [#allocation14], 2048
        $region72: #{tpu_custom_call.1} parent=47 // pred_fallthru
          _
        // Predicated region
        $region73: #{tpu_custom_call.1} parent=47 // pred_check
          %p348 = pneg %p174
        $region74: #{tpu_custom_call.1} parent=47 // pred_check_branch
          %350 = sbr.rel (%p348) target = $region76
        $region75: #{tpu_custom_call.1} parent=47 // pred_region
          %351 = dma.done [#allocation14], 16
        $region76: #{tpu_custom_call.1} parent=47 // pred_fallthru
          _
        %s352 = sand.u32 %s35, 1
        %s353 = scalar_lea.sflag [#allocation5], %s352
        %s354 = sand.u32 %s35, 1
        %s355 = smul.addr %s354, 64
        %s356 = scalar_lea.vmem [#allocation4], %s355
        %p357 = pneg %p48
        %p358 = pneg %p45
        %p359 = pneg %p69
        %p360 = pneg %p66
        %p361 = pneg %p90
        %p362 = pneg %p87
        %p363 = pneg %p111
        %p364 = pneg %p108
        %p365 = pneg %p132
        %p366 = pneg %p129
        %p367 = pneg %p153
        %p368 = pneg %p150
        %p369 = pneg %p174
        %p370 = pneg %p171
        %p371 = pneg %p200
        %p372 = pneg %p197
        %s373 = sand.u32 %s187, 1
        %s374 = scalar_lea.sflag [#allocation6], %s373
        %s375 = sand.u32 %s187, 1
        %s376 = scalar_lea.vmem [#allocation16], %s375
        %vm378 = vcmask 556032
        %379 = vst.msk [vmem:[#allocation2] sm:$0xff] %vm378, 0.0
        %380 = vst.msk [vmem:[#allocation2 + $0x8] sm:$0xff] %vm378, 0.0
        %381 = vst.msk [vmem:[#allocation2 + $0x10] sm:$0xff] %vm378, 0.0
        %382 = vst.msk [vmem:[#allocation2 + $0x18] sm:$0xff] %vm378, 0.0
        %383 = vst.msk [vmem:[#allocation2 + $0x20] sm:$0xff] %vm378, 0.0
        %384 = vst.msk [vmem:[#allocation2 + $0x28] sm:$0xff] %vm378, 0.0
        %385 = vst.msk [vmem:[#allocation2 + $0x30] sm:$0xff] %vm378, 0.0
        %386 = vst.msk [vmem:[#allocation2 + $0x38] sm:$0xff] %vm378, 0.0
        %vm387 = vcmask 551936
        %388 = vst.msk [vmem:[#allocation2 + $0x40] sm:$0xf] %vm387, 0.0
        %v389 = vld [vmem:[%s323] sm:$0xff]
        %v390 = vld [vmem:[%s323 + $0x8] sm:$0xff]
        %v391 = vld [vmem:[%s323 + $0x10] sm:$0xff]
        %v392 = vld [vmem:[%s323 + $0x18] sm:$0xff]
        %v393 = vld [vmem:[%s323 + $0x20] sm:$0xff]
        %v394 = vld [vmem:[%s323 + $0x28] sm:$0xff]
        %v395 = vld [vmem:[%s323 + $0x30] sm:$0xff]
        %v396 = vld [vmem:[%s323 + $0x38] sm:$0xff]
        %405 = vrot.lane.b32.xlu0 %v389, 2
        %v406 = vpop.permute.xlu0 %405
        %407 = vrot.lane.b32.xlu0 %v390, 2
        %v408 = vpop.permute.xlu0 %407
        %409 = vrot.lane.b32.xlu0 %v391, 2
        %v410 = vpop.permute.xlu0 %409
        %411 = vrot.lane.b32.xlu0 %v392, 2
        %v412 = vpop.permute.xlu0 %411
        %413 = vrot.lane.b32.xlu0 %v393, 2
        %v414 = vpop.permute.xlu0 %413
        %415 = vrot.lane.b32.xlu0 %v394, 2
        %v416 = vpop.permute.xlu0 %415
        %417 = vrot.lane.b32.xlu0 %v395, 2
        %v418 = vpop.permute.xlu0 %417
        %419 = vrot.lane.b32.xlu0 %v396, 2
        %v420 = vpop.permute.xlu0 %419
        %vm429 = vcmask 539664
        %430 = vst.msk [vmem:[#allocation2 + $0x2] sm:$0xff] %vm429, %v406
        %431 = vst.msk [vmem:[#allocation2 + $0xa] sm:$0xff] %vm429, %v408
        %432 = vst.msk [vmem:[#allocation2 + $0x12] sm:$0xff] %vm429, %v410
        %433 = vst.msk [vmem:[#allocation2 + $0x1a] sm:$0xff] %vm429, %v412
        %434 = vst.msk [vmem:[#allocation2 + $0x22] sm:$0xff] %vm429, %v414
        %435 = vst.msk [vmem:[#allocation2 + $0x2a] sm:$0xff] %vm429, %v416
        %436 = vst.msk [vmem:[#allocation2 + $0x32] sm:$0xff] %vm429, %v418
        %437 = vst.msk [vmem:[#allocation2 + $0x3a] sm:$0xff] %vm429, %v420
        %v438 = vld [vmem:[#allocation2] sm:$0xff]
        %v439 = vld [vmem:[#allocation2 + $0x8] sm:$0xff]
        %v440 = vld [vmem:[#allocation2 + $0x10] sm:$0xff]
        %v441 = vld [vmem:[#allocation2 + $0x18] sm:$0xff]
        %v442 = vld [vmem:[#allocation2 + $0x20] sm:$0xff]
        %v443 = vld [vmem:[#allocation2 + $0x28] sm:$0xff]
        %v444 = vld [vmem:[#allocation2 + $0x30] sm:$0xff]
        %v445 = vld [vmem:[#allocation2 + $0x38] sm:$0xff]
        %v446 = vpack.c.bf16 %v439, %v438
        %v447 = vpack.c.bf16 %v441, %v440
        %v448 = vpack.c.bf16 %v443, %v442
        %v449 = vpack.c.bf16 %v445, %v444
        %v450 = vld [vmem:[#allocation2 + $0x1] sm:$0xff]
        %v451 = vld [vmem:[#allocation2 + $0x9] sm:$0xff]
        %v452 = vld [vmem:[#allocation2 + $0x11] sm:$0xff]
        %v453 = vld [vmem:[#allocation2 + $0x19] sm:$0xff]
        %v454 = vld [vmem:[#allocation2 + $0x21] sm:$0xff]
        %v455 = vld [vmem:[#allocation2 + $0x29] sm:$0xff]
        %v456 = vld [vmem:[#allocation2 + $0x31] sm:$0xff]
        %v457 = vld [vmem:[#allocation2 + $0x39] sm:$0xff]
        %v458 = vpack.c.bf16 %v451, %v450
        %v459 = vpack.c.bf16 %v453, %v452
        %v460 = vpack.c.bf16 %v455, %v454
        %v461 = vpack.c.bf16 %v457, %v456
        %v462 = vld [vmem:[#allocation2 + $0x2] sm:$0xff]
        %v463 = vld [vmem:[#allocation2 + $0xa] sm:$0xff]
        %v464 = vld [vmem:[#allocation2 + $0x12] sm:$0xff]
        %v465 = vld [vmem:[#allocation2 + $0x1a] sm:$0xff]
        %v466 = vld [vmem:[#allocation2 + $0x22] sm:$0xff]
        %v467 = vld [vmem:[#allocation2 + $0x2a] sm:$0xff]
        %v468 = vld [vmem:[#allocation2 + $0x32] sm:$0xff]
        %v469 = vld [vmem:[#allocation2 + $0x3a] sm:$0xff]
        %v470 = vpack.c.bf16 %v463, %v462
        %v471 = vpack.c.bf16 %v465, %v464
        %v472 = vpack.c.bf16 %v467, %v466
        %v473 = vpack.c.bf16 %v469, %v468
        %v474 = vld [vmem:[#allocation2 + $0x3] sm:$0xff]
        %v475 = vld [vmem:[#allocation2 + $0xb] sm:$0xff]
        %v476 = vld [vmem:[#allocation2 + $0x13] sm:$0xff]
        %v477 = vld [vmem:[#allocation2 + $0x1b] sm:$0xff]
        %v478 = vld [vmem:[#allocation2 + $0x23] sm:$0xff]
        %v479 = vld [vmem:[#allocation2 + $0x2b] sm:$0xff]
        %v480 = vld [vmem:[#allocation2 + $0x33] sm:$0xff]
        %v481 = vld [vmem:[#allocation2 + $0x3b] sm:$0xff]
        %v482 = vpack.c.bf16 %v475, %v474
        %v483 = vpack.c.bf16 %v477, %v476
        %v484 = vpack.c.bf16 %v479, %v478
        %v485 = vpack.c.bf16 %v481, %v480
        %v486 = vld [vmem:[#allocation2 + $0x4] sm:$0xff]
        %v487 = vld [vmem:[#allocation2 + $0xc] sm:$0xff]
        %v488 = vld [vmem:[#allocation2 + $0x14] sm:$0xff]
        %v489 = vld [vmem:[#allocation2 + $0x1c] sm:$0xff]
        %v490 = vld [vmem:[#allocation2 + $0x24] sm:$0xff]
        %v491 = vld [vmem:[#allocation2 + $0x2c] sm:$0xff]
        %v492 = vld [vmem:[#allocation2 + $0x34] sm:$0xff]
        %v493 = vld [vmem:[#allocation2 + $0x3c] sm:$0xff]
        %v494 = vpack.c.bf16 %v487, %v486
        %v495 = vpack.c.bf16 %v489, %v488
        %v496 = vpack.c.bf16 %v491, %v490
        %v497 = vpack.c.bf16 %v493, %v492
        %502 = vrot.lane.b32.xlu0 %v458, 68
        %v503 = vpop.permute.xlu0 %502
        %504 = vrot.lane.b32.xlu0 %v459, 68
        %v505 = vpop.permute.xlu0 %504
        %506 = vrot.lane.b32.xlu0 %v460, 68
        %v507 = vpop.permute.xlu0 %506
        %508 = vrot.lane.b32.xlu0 %v461, 68
        %v509 = vpop.permute.xlu0 %508
        %514 = vrot.lane.b32.xlu0 %v470, 8
        %v515 = vpop.permute.xlu0 %514
        %516 = vrot.lane.b32.xlu0 %v471, 8
        %v517 = vpop.permute.xlu0 %516
        %518 = vrot.lane.b32.xlu0 %v472, 8
        %v519 = vpop.permute.xlu0 %518
        %520 = vrot.lane.b32.xlu0 %v473, 8
        %v521 = vpop.permute.xlu0 %520
        %526 = vrot.lane.b32.xlu0 %v482, 76
        %v527 = vpop.permute.xlu0 %526
        %528 = vrot.lane.b32.xlu0 %v483, 76
        %v529 = vpop.permute.xlu0 %528
        %530 = vrot.lane.b32.xlu0 %v484, 76
        %v531 = vpop.permute.xlu0 %530
        %532 = vrot.lane.b32.xlu0 %v485, 76
        %v533 = vpop.permute.xlu0 %532
        %538 = vrot.lane.b32.xlu0 %v494, 16
        %v539 = vpop.permute.xlu0 %538
        %540 = vrot.lane.b32.xlu0 %v495, 16
        %v541 = vpop.permute.xlu0 %540
        %542 = vrot.lane.b32.xlu0 %v496, 16
        %v543 = vpop.permute.xlu0 %542
        %544 = vrot.lane.b32.xlu0 %v497, 16
        %v545 = vpop.permute.xlu0 %544
        %v548 = vsel %vm378, %v446, %v503
        %v552 = vsel %vm378, %v447, %v505
        %v556 = vsel %vm378, %v448, %v507
        %v560 = vsel %vm378, %v449, %v509
        %vm562 = vcmask 64512
        %v564 = vsel %vm562, %v503, %v515
        %v566 = vsel %vm562, %v505, %v517
        %v568 = vsel %vm562, %v507, %v519
        %v570 = vsel %vm562, %v509, %v521
        %vm571 = vcmask 621568
        %v573 = vsel %vm571, %v564, %v527
        %v576 = vsel %vm571, %v566, %v529
        %v579 = vsel %vm571, %v568, %v531
        %v582 = vsel %vm571, %v570, %v533
        %vm584 = vcmask 130048
        %v586 = vsel %vm584, %v527, %v539
        %v588 = vsel %vm584, %v529, %v541
        %v590 = vsel %vm584, %v531, %v543
        %v592 = vsel %vm584, %v533, %v545
        %v593 = vld [vmem:[#allocation7] sm:$0xff]
        %v594 = vld [vmem:[#allocation7 + $0x8] sm:$0xff]
        %v595 = vld [vmem:[#allocation7 + $0x10] sm:$0xff]
        %v596 = vld [vmem:[#allocation7 + $0x18] sm:$0xff]
        %v597 = vld [vmem:[#allocation7 + $0x20] sm:$0xff]
        %v598 = vld [vmem:[#allocation7 + $0x28] sm:$0xff]
        %v599 = vld [vmem:[#allocation7 + $0x30] sm:$0xff]
        %v600 = vld [vmem:[#allocation7 + $0x38] sm:$0xff]
        %v601 = vld [vmem:[#allocation7 + $0x40] sm:$0xff]
        %v602 = vld [vmem:[#allocation7 + $0x48] sm:$0xff]
        %v603 = vld [vmem:[#allocation7 + $0x50] sm:$0xff]
        %v604 = vld [vmem:[#allocation7 + $0x58] sm:$0xff]
        %v605 = vld [vmem:[#allocation7 + $0x60] sm:$0xff]
        %v606 = vld [vmem:[#allocation7 + $0x68] sm:$0xff]
        %v607 = vld [vmem:[#allocation7 + $0x70] sm:$0xff]
        %v608 = vld [vmem:[#allocation7 + $0x78] sm:$0xff]
        %v609 = vld [vmem:[#allocation7 + $0x80] sm:$0xff]
        %v610 = vld [vmem:[#allocation7 + $0x88] sm:$0xff]
        %v611 = vld [vmem:[#allocation7 + $0x90] sm:$0xff]
        %v612 = vld [vmem:[#allocation7 + $0x98] sm:$0xff]
        %v613 = vld [vmem:[#allocation7 + $0xa0] sm:$0xff]
        %v614 = vld [vmem:[#allocation7 + $0xa8] sm:$0xff]
        %v615 = vld [vmem:[#allocation7 + $0xb0] sm:$0xff]
        %v616 = vld [vmem:[#allocation7 + $0xb8] sm:$0xff]
        %v617 = vld [vmem:[#allocation7 + $0xc0] sm:$0xff]
        %v618 = vld [vmem:[#allocation7 + $0xc8] sm:$0xff]
        %v619 = vld [vmem:[#allocation7 + $0xd0] sm:$0xff]
        %v620 = vld [vmem:[#allocation7 + $0xd8] sm:$0xff]
        %v621 = vld [vmem:[#allocation7 + $0xe0] sm:$0xff]
        %v622 = vld [vmem:[#allocation7 + $0xe8] sm:$0xff]
        %v623 = vld [vmem:[#allocation7 + $0xf0] sm:$0xff]
        %v624 = vld [vmem:[#allocation7 + $0xf8] sm:$0xff]
        %v625 = vld [vmem:[#allocation7 + $0x100] sm:$0xff]
        %v626 = vld [vmem:[#allocation7 + $0x108] sm:$0xff]
        %v627 = vld [vmem:[#allocation7 + $0x110] sm:$0xff]
        %v628 = vld [vmem:[#allocation7 + $0x118] sm:$0xff]
        %v629 = vld [vmem:[#allocation7 + $0x120] sm:$0xff]
        %v630 = vld [vmem:[#allocation7 + $0x128] sm:$0xff]
        %v631 = vld [vmem:[#allocation7 + $0x130] sm:$0xff]
        %v632 = vld [vmem:[#allocation7 + $0x138] sm:$0xff]
        %v633 = vld [vmem:[#allocation7 + $0x140] sm:$0xff]
        %v634 = vld [vmem:[#allocation7 + $0x148] sm:$0xff]
        %v635 = vld [vmem:[#allocation7 + $0x150] sm:$0xff]
        %v636 = vld [vmem:[#allocation7 + $0x158] sm:$0xff]
        %v637 = vld [vmem:[#allocation7 + $0x160] sm:$0xff]
        %v638 = vld [vmem:[#allocation7 + $0x168] sm:$0xff]
        %v639 = vld [vmem:[#allocation7 + $0x170] sm:$0xff]
        %v640 = vld [vmem:[#allocation7 + $0x178] sm:$0xff]
        %v641 = vld [vmem:[#allocation7 + $0x180] sm:$0xff]
        %v642 = vld [vmem:[#allocation7 + $0x188] sm:$0xff]
        %v643 = vld [vmem:[#allocation7 + $0x190] sm:$0xff]
        %v644 = vld [vmem:[#allocation7 + $0x198] sm:$0xff]
        %v645 = vld [vmem:[#allocation7 + $0x1a0] sm:$0xff]
        %v646 = vld [vmem:[#allocation7 + $0x1a8] sm:$0xff]
        %v647 = vld [vmem:[#allocation7 + $0x1b0] sm:$0xff]
        %v648 = vld [vmem:[#allocation7 + $0x1b8] sm:$0xff]
        %v649 = vld [vmem:[#allocation7 + $0x1c0] sm:$0xff]
        %v650 = vld [vmem:[#allocation7 + $0x1c8] sm:$0xff]
        %v651 = vld [vmem:[#allocation7 + $0x1d0] sm:$0xff]
        %v652 = vld [vmem:[#allocation7 + $0x1d8] sm:$0xff]
        %v653 = vld [vmem:[#allocation7 + $0x1e0] sm:$0xff]
        %v654 = vld [vmem:[#allocation7 + $0x1e8] sm:$0xff]
        %v655 = vld [vmem:[#allocation7 + $0x1f0] sm:$0xff]
        %v656 = vld [vmem:[#allocation7 + $0x1f8] sm:$0xff]
        %v657 = vld [vmem:[#allocation7 + $0x200] sm:$0xff]
        %v658 = vld [vmem:[#allocation7 + $0x208] sm:$0xff]
        %v659 = vld [vmem:[#allocation7 + $0x210] sm:$0xff]
        %v660 = vld [vmem:[#allocation7 + $0x218] sm:$0xff]
        %v661 = vld [vmem:[#allocation7 + $0x220] sm:$0xff]
        %v662 = vld [vmem:[#allocation7 + $0x228] sm:$0xff]
        %v663 = vld [vmem:[#allocation7 + $0x230] sm:$0xff]
        %v664 = vld [vmem:[#allocation7 + $0x238] sm:$0xff]
        %v665 = vld [vmem:[#allocation7 + $0x240] sm:$0xff]
        %v666 = vld [vmem:[#allocation7 + $0x248] sm:$0xff]
        %v667 = vld [vmem:[#allocation7 + $0x250] sm:$0xff]
        %v668 = vld [vmem:[#allocation7 + $0x258] sm:$0xff]
        %v669 = vld [vmem:[#allocation7 + $0x260] sm:$0xff]
        %v670 = vld [vmem:[#allocation7 + $0x268] sm:$0xff]
        %v671 = vld [vmem:[#allocation7 + $0x270] sm:$0xff]
        %v672 = vld [vmem:[#allocation7 + $0x278] sm:$0xff]
        %v673 = vld [vmem:[#allocation7 + $0x280] sm:$0xff]
        %v674 = vld [vmem:[#allocation7 + $0x288] sm:$0xff]
        %v675 = vld [vmem:[#allocation7 + $0x290] sm:$0xff]
        %v676 = vld [vmem:[#allocation7 + $0x298] sm:$0xff]
        %v677 = vld [vmem:[#allocation7 + $0x2a0] sm:$0xff]
        %v678 = vld [vmem:[#allocation7 + $0x2a8] sm:$0xff]
        %v679 = vld [vmem:[#allocation7 + $0x2b0] sm:$0xff]
        %v680 = vld [vmem:[#allocation7 + $0x2b8] sm:$0xff]
        %v681 = vld [vmem:[#allocation7 + $0x2c0] sm:$0xff]
        %v682 = vld [vmem:[#allocation7 + $0x2c8] sm:$0xff]
        %v683 = vld [vmem:[#allocation7 + $0x2d0] sm:$0xff]
        %v684 = vld [vmem:[#allocation7 + $0x2d8] sm:$0xff]
        %v685 = vld [vmem:[#allocation7 + $0x2e0] sm:$0xff]
        %v686 = vld [vmem:[#allocation7 + $0x2e8] sm:$0xff]
        %v687 = vld [vmem:[#allocation7 + $0x2f0] sm:$0xff]
        %v688 = vld [vmem:[#allocation7 + $0x2f8] sm:$0xff]
        %v689 = vld [vmem:[#allocation7 + $0x300] sm:$0xff]
        %v690 = vld [vmem:[#allocation7 + $0x308] sm:$0xff]
        %v691 = vld [vmem:[#allocation7 + $0x310] sm:$0xff]
        %v692 = vld [vmem:[#allocation7 + $0x318] sm:$0xff]
        %v693 = vld [vmem:[#allocation7 + $0x320] sm:$0xff]
        %v694 = vld [vmem:[#allocation7 + $0x328] sm:$0xff]
        %v695 = vld [vmem:[#allocation7 + $0x330] sm:$0xff]
        %v696 = vld [vmem:[#allocation7 + $0x338] sm:$0xff]
        %v697 = vld [vmem:[#allocation7 + $0x340] sm:$0xff]
        %v698 = vld [vmem:[#allocation7 + $0x348] sm:$0xff]
        %v699 = vld [vmem:[#allocation7 + $0x350] sm:$0xff]
        %v700 = vld [vmem:[#allocation7 + $0x358] sm:$0xff]
        %v701 = vld [vmem:[#allocation7 + $0x360] sm:$0xff]
        %v702 = vld [vmem:[#allocation7 + $0x368] sm:$0xff]
        %v703 = vld [vmem:[#allocation7 + $0x370] sm:$0xff]
        %v704 = vld [vmem:[#allocation7 + $0x378] sm:$0xff]
        %v705 = vld [vmem:[#allocation7 + $0x380] sm:$0xff]
        %v706 = vld [vmem:[#allocation7 + $0x388] sm:$0xff]
        %v707 = vld [vmem:[#allocation7 + $0x390] sm:$0xff]
        %v708 = vld [vmem:[#allocation7 + $0x398] sm:$0xff]
        %v709 = vld [vmem:[#allocation7 + $0x3a0] sm:$0xff]
        %v710 = vld [vmem:[#allocation7 + $0x3a8] sm:$0xff]
        %v711 = vld [vmem:[#allocation7 + $0x3b0] sm:$0xff]
        %v712 = vld [vmem:[#allocation7 + $0x3b8] sm:$0xff]
        %v713 = vld [vmem:[#allocation7 + $0x3c0] sm:$0xff]
        %v714 = vld [vmem:[#allocation7 + $0x3c8] sm:$0xff]
        %v715 = vld [vmem:[#allocation7 + $0x3d0] sm:$0xff]
        %v716 = vld [vmem:[#allocation7 + $0x3d8] sm:$0xff]
        %v717 = vld [vmem:[#allocation7 + $0x3e0] sm:$0xff]
        %v718 = vld [vmem:[#allocation7 + $0x3e8] sm:$0xff]
        %v719 = vld [vmem:[#allocation7 + $0x3f0] sm:$0xff]
        %v720 = vld [vmem:[#allocation7 + $0x3f8] sm:$0xff]
        %v721 = vld [vmem:[#allocation7 + $0x400] sm:$0xff]
        %v722 = vld [vmem:[#allocation7 + $0x408] sm:$0xff]
        %v723 = vld [vmem:[#allocation7 + $0x410] sm:$0xff]
        %v724 = vld [vmem:[#allocation7 + $0x418] sm:$0xff]
        %v725 = vld [vmem:[#allocation7 + $0x420] sm:$0xff]
        %v726 = vld [vmem:[#allocation7 + $0x428] sm:$0xff]
        %v727 = vld [vmem:[#allocation7 + $0x430] sm:$0xff]
        %v728 = vld [vmem:[#allocation7 + $0x438] sm:$0xff]
        %v729 = vld [vmem:[#allocation7 + $0x440] sm:$0xff]
        %v730 = vld [vmem:[#allocation7 + $0x448] sm:$0xff]
        %v731 = vld [vmem:[#allocation7 + $0x450] sm:$0xff]
        %v732 = vld [vmem:[#allocation7 + $0x458] sm:$0xff]
        %v733 = vld [vmem:[#allocation7 + $0x460] sm:$0xff]
        %v734 = vld [vmem:[#allocation7 + $0x468] sm:$0xff]
        %v735 = vld [vmem:[#allocation7 + $0x470] sm:$0xff]
        %v736 = vld [vmem:[#allocation7 + $0x478] sm:$0xff]
        %v737 = vld [vmem:[#allocation7 + $0x480] sm:$0xff]
        %v738 = vld [vmem:[#allocation7 + $0x488] sm:$0xff]
        %v739 = vld [vmem:[#allocation7 + $0x490] sm:$0xff]
        %v740 = vld [vmem:[#allocation7 + $0x498] sm:$0xff]
        %v741 = vld [vmem:[#allocation7 + $0x4a0] sm:$0xff]
        %v742 = vld [vmem:[#allocation7 + $0x4a8] sm:$0xff]
        %v743 = vld [vmem:[#allocation7 + $0x4b0] sm:$0xff]
        %v744 = vld [vmem:[#allocation7 + $0x4b8] sm:$0xff]
        %v745 = vld [vmem:[#allocation7 + $0x4c0] sm:$0xff]
        %v746 = vld [vmem:[#allocation7 + $0x4c8] sm:$0xff]
        %v747 = vld [vmem:[#allocation7 + $0x4d0] sm:$0xff]
        %v748 = vld [vmem:[#allocation7 + $0x4d8] sm:$0xff]
        %v749 = vld [vmem:[#allocation7 + $0x4e0] sm:$0xff]
        %v750 = vld [vmem:[#allocation7 + $0x4e8] sm:$0xff]
        %v751 = vld [vmem:[#allocation7 + $0x4f0] sm:$0xff]
        %v752 = vld [vmem:[#allocation7 + $0x4f8] sm:$0xff]
        %v753 = vld [vmem:[#allocation7 + $0x500] sm:$0xff]
        %v754 = vld [vmem:[#allocation7 + $0x508] sm:$0xff]
        %v755 = vld [vmem:[#allocation7 + $0x510] sm:$0xff]
        %v756 = vld [vmem:[#allocation7 + $0x518] sm:$0xff]
        %v757 = vld [vmem:[#allocation7 + $0x520] sm:$0xff]
        %v758 = vld [vmem:[#allocation7 + $0x528] sm:$0xff]
        %v759 = vld [vmem:[#allocation7 + $0x530] sm:$0xff]
        %v760 = vld [vmem:[#allocation7 + $0x538] sm:$0xff]
        %v761 = vld [vmem:[#allocation7 + $0x540] sm:$0xff]
        %v762 = vld [vmem:[#allocation7 + $0x548] sm:$0xff]
        %v763 = vld [vmem:[#allocation7 + $0x550] sm:$0xff]
        %v764 = vld [vmem:[#allocation7 + $0x558] sm:$0xff]
        %v765 = vld [vmem:[#allocation7 + $0x560] sm:$0xff]
        %v766 = vld [vmem:[#allocation7 + $0x568] sm:$0xff]
        %v767 = vld [vmem:[#allocation7 + $0x570] sm:$0xff]
        %v768 = vld [vmem:[#allocation7 + $0x578] sm:$0xff]
        %v769 = vld [vmem:[#allocation7 + $0x580] sm:$0xff]
        %v770 = vld [vmem:[#allocation7 + $0x588] sm:$0xff]
        %v771 = vld [vmem:[#allocation7 + $0x590] sm:$0xff]
        %v772 = vld [vmem:[#allocation7 + $0x598] sm:$0xff]
        %v773 = vld [vmem:[#allocation7 + $0x5a0] sm:$0xff]
        %v774 = vld [vmem:[#allocation7 + $0x5a8] sm:$0xff]
        %v775 = vld [vmem:[#allocation7 + $0x5b0] sm:$0xff]
        %v776 = vld [vmem:[#allocation7 + $0x5b8] sm:$0xff]
        %v777 = vld [vmem:[#allocation7 + $0x5c0] sm:$0xff]
        %v778 = vld [vmem:[#allocation7 + $0x5c8] sm:$0xff]
        %v779 = vld [vmem:[#allocation7 + $0x5d0] sm:$0xff]
        %v780 = vld [vmem:[#allocation7 + $0x5d8] sm:$0xff]
        %v781 = vld [vmem:[#allocation7 + $0x5e0] sm:$0xff]
        %v782 = vld [vmem:[#allocation7 + $0x5e8] sm:$0xff]
        %v783 = vld [vmem:[#allocation7 + $0x5f0] sm:$0xff]
        %v784 = vld [vmem:[#allocation7 + $0x5f8] sm:$0xff]
        %v785 = vld [vmem:[#allocation7 + $0x600] sm:$0xff]
        %v786 = vld [vmem:[#allocation7 + $0x608] sm:$0xff]
        %v787 = vld [vmem:[#allocation7 + $0x610] sm:$0xff]
        %v788 = vld [vmem:[#allocation7 + $0x618] sm:$0xff]
        %v789 = vld [vmem:[#allocation7 + $0x620] sm:$0xff]
        %v790 = vld [vmem:[#allocation7 + $0x628] sm:$0xff]
        %v791 = vld [vmem:[#allocation7 + $0x630] sm:$0xff]
        %v792 = vld [vmem:[#allocation7 + $0x638] sm:$0xff]
        %v793 = vld [vmem:[#allocation7 + $0x640] sm:$0xff]
        %v794 = vld [vmem:[#allocation7 + $0x648] sm:$0xff]
        %v795 = vld [vmem:[#allocation7 + $0x650] sm:$0xff]
        %v796 = vld [vmem:[#allocation7 + $0x658] sm:$0xff]
        %v797 = vld [vmem:[#allocation7 + $0x660] sm:$0xff]
        %v798 = vld [vmem:[#allocation7 + $0x668] sm:$0xff]
        %v799 = vld [vmem:[#allocation7 + $0x670] sm:$0xff]
        %v800 = vld [vmem:[#allocation7 + $0x678] sm:$0xff]
        %v801 = vld [vmem:[#allocation7 + $0x680] sm:$0xff]
        %v802 = vld [vmem:[#allocation7 + $0x688] sm:$0xff]
        %v803 = vld [vmem:[#allocation7 + $0x690] sm:$0xff]
        %v804 = vld [vmem:[#allocation7 + $0x698] sm:$0xff]
        %v805 = vld [vmem:[#allocation7 + $0x6a0] sm:$0xff]
        %v806 = vld [vmem:[#allocation7 + $0x6a8] sm:$0xff]
        %v807 = vld [vmem:[#allocation7 + $0x6b0] sm:$0xff]
        %v808 = vld [vmem:[#allocation7 + $0x6b8] sm:$0xff]
        %v809 = vld [vmem:[#allocation7 + $0x6c0] sm:$0xff]
        %v810 = vld [vmem:[#allocation7 + $0x6c8] sm:$0xff]
        %v811 = vld [vmem:[#allocation7 + $0x6d0] sm:$0xff]
        %v812 = vld [vmem:[#allocation7 + $0x6d8] sm:$0xff]
        %v813 = vld [vmem:[#allocation7 + $0x6e0] sm:$0xff]
        %v814 = vld [vmem:[#allocation7 + $0x6e8] sm:$0xff]
        %v815 = vld [vmem:[#allocation7 + $0x6f0] sm:$0xff]
        %v816 = vld [vmem:[#allocation7 + $0x6f8] sm:$0xff]
        %v817 = vld [vmem:[#allocation7 + $0x700] sm:$0xff]
        %v818 = vld [vmem:[#allocation7 + $0x708] sm:$0xff]
        %v819 = vld [vmem:[#allocation7 + $0x710] sm:$0xff]
        %v820 = vld [vmem:[#allocation7 + $0x718] sm:$0xff]
        %v821 = vld [vmem:[#allocation7 + $0x720] sm:$0xff]
        %v822 = vld [vmem:[#allocation7 + $0x728] sm:$0xff]
        %v823 = vld [vmem:[#allocation7 + $0x730] sm:$0xff]
        %v824 = vld [vmem:[#allocation7 + $0x738] sm:$0xff]
        %v825 = vld [vmem:[#allocation7 + $0x740] sm:$0xff]
        %v826 = vld [vmem:[#allocation7 + $0x748] sm:$0xff]
        %v827 = vld [vmem:[#allocation7 + $0x750] sm:$0xff]
        %v828 = vld [vmem:[#allocation7 + $0x758] sm:$0xff]
        %v829 = vld [vmem:[#allocation7 + $0x760] sm:$0xff]
        %v830 = vld [vmem:[#allocation7 + $0x768] sm:$0xff]
        %v831 = vld [vmem:[#allocation7 + $0x770] sm:$0xff]
        %v832 = vld [vmem:[#allocation7 + $0x778] sm:$0xff]
        %v833 = vld [vmem:[#allocation7 + $0x780] sm:$0xff]
        %v834 = vld [vmem:[#allocation7 + $0x788] sm:$0xff]
        %v835 = vld [vmem:[#allocation7 + $0x790] sm:$0xff]
        %v836 = vld [vmem:[#allocation7 + $0x798] sm:$0xff]
        %v837 = vld [vmem:[#allocation7 + $0x7a0] sm:$0xff]
        %v838 = vld [vmem:[#allocation7 + $0x7a8] sm:$0xff]
        %v839 = vld [vmem:[#allocation7 + $0x7b0] sm:$0xff]
        %v840 = vld [vmem:[#allocation7 + $0x7b8] sm:$0xff]
        %v841 = vld [vmem:[#allocation7 + $0x7c0] sm:$0xff]
        %v842 = vld [vmem:[#allocation7 + $0x7c8] sm:$0xff]
        %v843 = vld [vmem:[#allocation7 + $0x7d0] sm:$0xff]
        %v844 = vld [vmem:[#allocation7 + $0x7d8] sm:$0xff]
        %v845 = vld [vmem:[#allocation7 + $0x7e0] sm:$0xff]
        %v846 = vld [vmem:[#allocation7 + $0x7e8] sm:$0xff]
        %v847 = vld [vmem:[#allocation7 + $0x7f0] sm:$0xff]
        %v848 = vld [vmem:[#allocation7 + $0x7f8] sm:$0xff]
        %v849 = vld [vmem:[#allocation7 + $0x800] sm:$0xff]
        %v850 = vld [vmem:[#allocation7 + $0x808] sm:$0xff]
        %v851 = vld [vmem:[#allocation7 + $0x810] sm:$0xff]
        %v852 = vld [vmem:[#allocation7 + $0x818] sm:$0xff]
        %v853 = vld [vmem:[#allocation7 + $0x820] sm:$0xff]
        %v854 = vld [vmem:[#allocation7 + $0x828] sm:$0xff]
        %v855 = vld [vmem:[#allocation7 + $0x830] sm:$0xff]
        %v856 = vld [vmem:[#allocation7 + $0x838] sm:$0xff]
        %v857 = vld [vmem:[#allocation7 + $0x840] sm:$0xff]
        %v858 = vld [vmem:[#allocation7 + $0x848] sm:$0xff]
        %v859 = vld [vmem:[#allocation7 + $0x850] sm:$0xff]
        %v860 = vld [vmem:[#allocation7 + $0x858] sm:$0xff]
        %v861 = vld [vmem:[#allocation7 + $0x860] sm:$0xff]
        %v862 = vld [vmem:[#allocation7 + $0x868] sm:$0xff]
        %v863 = vld [vmem:[#allocation7 + $0x870] sm:$0xff]
        %v864 = vld [vmem:[#allocation7 + $0x878] sm:$0xff]
        %v865 = vld [vmem:[#allocation7 + $0x880] sm:$0xff]
        %v866 = vld [vmem:[#allocation7 + $0x888] sm:$0xff]
        %v867 = vld [vmem:[#allocation7 + $0x890] sm:$0xff]
        %v868 = vld [vmem:[#allocation7 + $0x898] sm:$0xff]
        %v869 = vld [vmem:[#allocation7 + $0x8a0] sm:$0xff]
        %v870 = vld [vmem:[#allocation7 + $0x8a8] sm:$0xff]
        %v871 = vld [vmem:[#allocation7 + $0x8b0] sm:$0xff]
        %v872 = vld [vmem:[#allocation7 + $0x8b8] sm:$0xff]
        %v873 = vld [vmem:[#allocation7 + $0x8c0] sm:$0xff]
        %v874 = vld [vmem:[#allocation7 + $0x8c8] sm:$0xff]
        %v875 = vld [vmem:[#allocation7 + $0x8d0] sm:$0xff]
        %v876 = vld [vmem:[#allocation7 + $0x8d8] sm:$0xff]
        %v877 = vld [vmem:[#allocation7 + $0x8e0] sm:$0xff]
        %v878 = vld [vmem:[#allocation7 + $0x8e8] sm:$0xff]
        %v879 = vld [vmem:[#allocation7 + $0x8f0] sm:$0xff]
        %v880 = vld [vmem:[#allocation7 + $0x8f8] sm:$0xff]
        %v881 = vld [vmem:[#allocation7 + $0x900] sm:$0xff]
        %v882 = vld [vmem:[#allocation7 + $0x908] sm:$0xff]
        %v883 = vld [vmem:[#allocation7 + $0x910] sm:$0xff]
        %v884 = vld [vmem:[#allocation7 + $0x918] sm:$0xff]
        %v885 = vld [vmem:[#allocation7 + $0x920] sm:$0xff]
        %v886 = vld [vmem:[#allocation7 + $0x928] sm:$0xff]
        %v887 = vld [vmem:[#allocation7 + $0x930] sm:$0xff]
        %v888 = vld [vmem:[#allocation7 + $0x938] sm:$0xff]
        %v889 = vld [vmem:[#allocation7 + $0x940] sm:$0xff]
        %v890 = vld [vmem:[#allocation7 + $0x948] sm:$0xff]
        %v891 = vld [vmem:[#allocation7 + $0x950] sm:$0xff]
        %v892 = vld [vmem:[#allocation7 + $0x958] sm:$0xff]
        %v893 = vld [vmem:[#allocation7 + $0x960] sm:$0xff]
        %v894 = vld [vmem:[#allocation7 + $0x968] sm:$0xff]
        %v895 = vld [vmem:[#allocation7 + $0x970] sm:$0xff]
        %v896 = vld [vmem:[#allocation7 + $0x978] sm:$0xff]
        %v897 = vld [vmem:[#allocation7 + $0x980] sm:$0xff]
        %v898 = vld [vmem:[#allocation7 + $0x988] sm:$0xff]
        %v899 = vld [vmem:[#allocation7 + $0x990] sm:$0xff]
        %v900 = vld [vmem:[#allocation7 + $0x998] sm:$0xff]
        %v901 = vld [vmem:[#allocation7 + $0x9a0] sm:$0xff]
        %v902 = vld [vmem:[#allocation7 + $0x9a8] sm:$0xff]
        %v903 = vld [vmem:[#allocation7 + $0x9b0] sm:$0xff]
        %v904 = vld [vmem:[#allocation7 + $0x9b8] sm:$0xff]
        %v905 = vld [vmem:[#allocation7 + $0x9c0] sm:$0xff]
        %v906 = vld [vmem:[#allocation7 + $0x9c8] sm:$0xff]
        %v907 = vld [vmem:[#allocation7 + $0x9d0] sm:$0xff]
        %v908 = vld [vmem:[#allocation7 + $0x9d8] sm:$0xff]
        %v909 = vld [vmem:[#allocation7 + $0x9e0] sm:$0xff]
        %v910 = vld [vmem:[#allocation7 + $0x9e8] sm:$0xff]
        %v911 = vld [vmem:[#allocation7 + $0x9f0] sm:$0xff]
        %v912 = vld [vmem:[#allocation7 + $0x9f8] sm:$0xff]
        %v913 = vld [vmem:[#allocation7 + $0xa00] sm:$0xff]
        %v914 = vld [vmem:[#allocation7 + $0xa08] sm:$0xff]
        %v915 = vld [vmem:[#allocation7 + $0xa10] sm:$0xff]
        %v916 = vld [vmem:[#allocation7 + $0xa18] sm:$0xff]
        %v917 = vld [vmem:[#allocation7 + $0xa20] sm:$0xff]
        %v918 = vld [vmem:[#allocation7 + $0xa28] sm:$0xff]
        %v919 = vld [vmem:[#allocation7 + $0xa30] sm:$0xff]
        %v920 = vld [vmem:[#allocation7 + $0xa38] sm:$0xff]
        %v921 = vld [vmem:[#allocation7 + $0xa40] sm:$0xff]
        %v922 = vld [vmem:[#allocation7 + $0xa48] sm:$0xff]
        %v923 = vld [vmem:[#allocation7 + $0xa50] sm:$0xff]
        %v924 = vld [vmem:[#allocation7 + $0xa58] sm:$0xff]
        %v925 = vld [vmem:[#allocation7 + $0xa60] sm:$0xff]
        %v926 = vld [vmem:[#allocation7 + $0xa68] sm:$0xff]
        %v927 = vld [vmem:[#allocation7 + $0xa70] sm:$0xff]
        %v928 = vld [vmem:[#allocation7 + $0xa78] sm:$0xff]
        %v929 = vld [vmem:[#allocation7 + $0xa80] sm:$0xff]
        %v930 = vld [vmem:[#allocation7 + $0xa88] sm:$0xff]
        %v931 = vld [vmem:[#allocation7 + $0xa90] sm:$0xff]
        %v932 = vld [vmem:[#allocation7 + $0xa98] sm:$0xff]
        %v933 = vld [vmem:[#allocation7 + $0xaa0] sm:$0xff]
        %v934 = vld [vmem:[#allocation7 + $0xaa8] sm:$0xff]
        %v935 = vld [vmem:[#allocation7 + $0xab0] sm:$0xff]
        %v936 = vld [vmem:[#allocation7 + $0xab8] sm:$0xff]
        %v937 = vld [vmem:[#allocation7 + $0xac0] sm:$0xff]
        %v938 = vld [vmem:[#allocation7 + $0xac8] sm:$0xff]
        %v939 = vld [vmem:[#allocation7 + $0xad0] sm:$0xff]
        %v940 = vld [vmem:[#allocation7 + $0xad8] sm:$0xff]
        %v941 = vld [vmem:[#allocation7 + $0xae0] sm:$0xff]
        %v942 = vld [vmem:[#allocation7 + $0xae8] sm:$0xff]
        %v943 = vld [vmem:[#allocation7 + $0xaf0] sm:$0xff]
        %v944 = vld [vmem:[#allocation7 + $0xaf8] sm:$0xff]
        %v945 = vld [vmem:[#allocation7 + $0xb00] sm:$0xff]
        %v946 = vld [vmem:[#allocation7 + $0xb08] sm:$0xff]
        %v947 = vld [vmem:[#allocation7 + $0xb10] sm:$0xff]
        %v948 = vld [vmem:[#allocation7 + $0xb18] sm:$0xff]
        %v949 = vld [vmem:[#allocation7 + $0xb20] sm:$0xff]
        %v950 = vld [vmem:[#allocation7 + $0xb28] sm:$0xff]
        %v951 = vld [vmem:[#allocation7 + $0xb30] sm:$0xff]
        %v952 = vld [vmem:[#allocation7 + $0xb38] sm:$0xff]
        %v953 = vld [vmem:[#allocation7 + $0xb40] sm:$0xff]
        %v954 = vld [vmem:[#allocation7 + $0xb48] sm:$0xff]
        %v955 = vld [vmem:[#allocation7 + $0xb50] sm:$0xff]
        %v956 = vld [vmem:[#allocation7 + $0xb58] sm:$0xff]
        %v957 = vld [vmem:[#allocation7 + $0xb60] sm:$0xff]
        %v958 = vld [vmem:[#allocation7 + $0xb68] sm:$0xff]
        %v959 = vld [vmem:[#allocation7 + $0xb70] sm:$0xff]
        %v960 = vld [vmem:[#allocation7 + $0xb78] sm:$0xff]
        %v961 = vld [vmem:[#allocation7 + $0xb80] sm:$0xff]
        %v962 = vld [vmem:[#allocation7 + $0xb88] sm:$0xff]
        %v963 = vld [vmem:[#allocation7 + $0xb90] sm:$0xff]
        %v964 = vld [vmem:[#allocation7 + $0xb98] sm:$0xff]
        %v965 = vld [vmem:[#allocation7 + $0xba0] sm:$0xff]
        %v966 = vld [vmem:[#allocation7 + $0xba8] sm:$0xff]
        %v967 = vld [vmem:[#allocation7 + $0xbb0] sm:$0xff]
        %v968 = vld [vmem:[#allocation7 + $0xbb8] sm:$0xff]
        %v969 = vld [vmem:[#allocation7 + $0xbc0] sm:$0xff]
        %v970 = vld [vmem:[#allocation7 + $0xbc8] sm:$0xff]
        %v971 = vld [vmem:[#allocation7 + $0xbd0] sm:$0xff]
        %v972 = vld [vmem:[#allocation7 + $0xbd8] sm:$0xff]
        %v973 = vld [vmem:[#allocation7 + $0xbe0] sm:$0xff]
        %v974 = vld [vmem:[#allocation7 + $0xbe8] sm:$0xff]
        %v975 = vld [vmem:[#allocation7 + $0xbf0] sm:$0xff]
        %v976 = vld [vmem:[#allocation7 + $0xbf8] sm:$0xff]
        %v977 = vld [vmem:[#allocation7 + $0xc00] sm:$0xff]
        %v978 = vld [vmem:[#allocation7 + $0xc08] sm:$0xff]
        %v979 = vld [vmem:[#allocation7 + $0xc10] sm:$0xff]
        %v980 = vld [vmem:[#allocation7 + $0xc18] sm:$0xff]
        %v981 = vld [vmem:[#allocation7 + $0xc20] sm:$0xff]
        %v982 = vld [vmem:[#allocation7 + $0xc28] sm:$0xff]
        %v983 = vld [vmem:[#allocation7 + $0xc30] sm:$0xff]
        %v984 = vld [vmem:[#allocation7 + $0xc38] sm:$0xff]
        %v985 = vld [vmem:[#allocation7 + $0xc40] sm:$0xff]
        %v986 = vld [vmem:[#allocation7 + $0xc48] sm:$0xff]
        %v987 = vld [vmem:[#allocation7 + $0xc50] sm:$0xff]
        %v988 = vld [vmem:[#allocation7 + $0xc58] sm:$0xff]
        %v989 = vld [vmem:[#allocation7 + $0xc60] sm:$0xff]
        %v990 = vld [vmem:[#allocation7 + $0xc68] sm:$0xff]
        %v991 = vld [vmem:[#allocation7 + $0xc70] sm:$0xff]
        %v992 = vld [vmem:[#allocation7 + $0xc78] sm:$0xff]
        %v993 = vld [vmem:[#allocation7 + $0xc80] sm:$0xff]
        %v994 = vld [vmem:[#allocation7 + $0xc88] sm:$0xff]
        %v995 = vld [vmem:[#allocation7 + $0xc90] sm:$0xff]
        %v996 = vld [vmem:[#allocation7 + $0xc98] sm:$0xff]
        %v997 = vld [vmem:[#allocation7 + $0xca0] sm:$0xff]
        %v998 = vld [vmem:[#allocation7 + $0xca8] sm:$0xff]
        %v999 = vld [vmem:[#allocation7 + $0xcb0] sm:$0xff]
        %v1000 = vld [vmem:[#allocation7 + $0xcb8] sm:$0xff]
        %v1001 = vld [vmem:[#allocation7 + $0xcc0] sm:$0xff]
        %v1002 = vld [vmem:[#allocation7 + $0xcc8] sm:$0xff]
        %v1003 = vld [vmem:[#allocation7 + $0xcd0] sm:$0xff]
        %v1004 = vld [vmem:[#allocation7 + $0xcd8] sm:$0xff]
        %v1005 = vld [vmem:[#allocation7 + $0xce0] sm:$0xff]
        %v1006 = vld [vmem:[#allocation7 + $0xce8] sm:$0xff]
        %v1007 = vld [vmem:[#allocation7 + $0xcf0] sm:$0xff]
        %v1008 = vld [vmem:[#allocation7 + $0xcf8] sm:$0xff]
        %v1009 = vld [vmem:[#allocation7 + $0xd00] sm:$0xff]
        %v1010 = vld [vmem:[#allocation7 + $0xd08] sm:$0xff]
        %v1011 = vld [vmem:[#allocation7 + $0xd10] sm:$0xff]
        %v1012 = vld [vmem:[#allocation7 + $0xd18] sm:$0xff]
        %v1013 = vld [vmem:[#allocation7 + $0xd20] sm:$0xff]
        %v1014 = vld [vmem:[#allocation7 + $0xd28] sm:$0xff]
        %v1015 = vld [vmem:[#allocation7 + $0xd30] sm:$0xff]
        %v1016 = vld [vmem:[#allocation7 + $0xd38] sm:$0xff]
        %v1017 = vld [vmem:[#allocation7 + $0xd40] sm:$0xff]
        %v1018 = vld [vmem:[#allocation7 + $0xd48] sm:$0xff]
        %v1019 = vld [vmem:[#allocation7 + $0xd50] sm:$0xff]
        %v1020 = vld [vmem:[#allocation7 + $0xd58] sm:$0xff]
        %v1021 = vld [vmem:[#allocation7 + $0xd60] sm:$0xff]
        %v1022 = vld [vmem:[#allocation7 + $0xd68] sm:$0xff]
        %v1023 = vld [vmem:[#allocation7 + $0xd70] sm:$0xff]
        %v1024 = vld [vmem:[#allocation7 + $0xd78] sm:$0xff]
        %v1025 = vld [vmem:[#allocation7 + $0xd80] sm:$0xff]
        %v1026 = vld [vmem:[#allocation7 + $0xd88] sm:$0xff]
        %v1027 = vld [vmem:[#allocation7 + $0xd90] sm:$0xff]
        %v1028 = vld [vmem:[#allocation7 + $0xd98] sm:$0xff]
        %v1029 = vld [vmem:[#allocation7 + $0xda0] sm:$0xff]
        %v1030 = vld [vmem:[#allocation7 + $0xda8] sm:$0xff]
        %v1031 = vld [vmem:[#allocation7 + $0xdb0] sm:$0xff]
        %v1032 = vld [vmem:[#allocation7 + $0xdb8] sm:$0xff]
        %v1033 = vld [vmem:[#allocation7 + $0xdc0] sm:$0xff]
        %v1034 = vld [vmem:[#allocation7 + $0xdc8] sm:$0xff]
        %v1035 = vld [vmem:[#allocation7 + $0xdd0] sm:$0xff]
        %v1036 = vld [vmem:[#allocation7 + $0xdd8] sm:$0xff]
        %v1037 = vld [vmem:[#allocation7 + $0xde0] sm:$0xff]
        %v1038 = vld [vmem:[#allocation7 + $0xde8] sm:$0xff]
        %v1039 = vld [vmem:[#allocation7 + $0xdf0] sm:$0xff]
        %v1040 = vld [vmem:[#allocation7 + $0xdf8] sm:$0xff]
        %v1041 = vld [vmem:[#allocation7 + $0xe00] sm:$0xff]
        %v1042 = vld [vmem:[#allocation7 + $0xe08] sm:$0xff]
        %v1043 = vld [vmem:[#allocation7 + $0xe10] sm:$0xff]
        %v1044 = vld [vmem:[#allocation7 + $0xe18] sm:$0xff]
        %v1045 = vld [vmem:[#allocation7 + $0xe20] sm:$0xff]
        %v1046 = vld [vmem:[#allocation7 + $0xe28] sm:$0xff]
        %v1047 = vld [vmem:[#allocation7 + $0xe30] sm:$0xff]
        %v1048 = vld [vmem:[#allocation7 + $0xe38] sm:$0xff]
        %v1049 = vld [vmem:[#allocation7 + $0xe40] sm:$0xff]
        %v1050 = vld [vmem:[#allocation7 + $0xe48] sm:$0xff]
        %v1051 = vld [vmem:[#allocation7 + $0xe50] sm:$0xff]
        %v1052 = vld [vmem:[#allocation7 + $0xe58] sm:$0xff]
        %v1053 = vld [vmem:[#allocation7 + $0xe60] sm:$0xff]
        %v1054 = vld [vmem:[#allocation7 + $0xe68] sm:$0xff]
        %v1055 = vld [vmem:[#allocation7 + $0xe70] sm:$0xff]
        %v1056 = vld [vmem:[#allocation7 + $0xe78] sm:$0xff]
        %v1057 = vld [vmem:[#allocation7 + $0xe80] sm:$0xff]
        %v1058 = vld [vmem:[#allocation7 + $0xe88] sm:$0xff]
        %v1059 = vld [vmem:[#allocation7 + $0xe90] sm:$0xff]
        %v1060 = vld [vmem:[#allocation7 + $0xe98] sm:$0xff]
        %v1061 = vld [vmem:[#allocation7 + $0xea0] sm:$0xff]
        %v1062 = vld [vmem:[#allocation7 + $0xea8] sm:$0xff]
        %v1063 = vld [vmem:[#allocation7 + $0xeb0] sm:$0xff]
        %v1064 = vld [vmem:[#allocation7 + $0xeb8] sm:$0xff]
        %v1065 = vld [vmem:[#allocation7 + $0xec0] sm:$0xff]
        %v1066 = vld [vmem:[#allocation7 + $0xec8] sm:$0xff]
        %v1067 = vld [vmem:[#allocation7 + $0xed0] sm:$0xff]
        %v1068 = vld [vmem:[#allocation7 + $0xed8] sm:$0xff]
        %v1069 = vld [vmem:[#allocation7 + $0xee0] sm:$0xff]
        %v1070 = vld [vmem:[#allocation7 + $0xee8] sm:$0xff]
        %v1071 = vld [vmem:[#allocation7 + $0xef0] sm:$0xff]
        %v1072 = vld [vmem:[#allocation7 + $0xef8] sm:$0xff]
        %v1073 = vld [vmem:[#allocation7 + $0xf00] sm:$0xff]
        %v1074 = vld [vmem:[#allocation7 + $0xf08] sm:$0xff]
        %v1075 = vld [vmem:[#allocation7 + $0xf10] sm:$0xff]
        %v1076 = vld [vmem:[#allocation7 + $0xf18] sm:$0xff]
        %v1077 = vld [vmem:[#allocation7 + $0xf20] sm:$0xff]
        %v1078 = vld [vmem:[#allocation7 + $0xf28] sm:$0xff]
        %v1079 = vld [vmem:[#allocation7 + $0xf30] sm:$0xff]
        %v1080 = vld [vmem:[#allocation7 + $0xf38] sm:$0xff]
        %v1081 = vld [vmem:[#allocation7 + $0xf40] sm:$0xff]
        %v1082 = vld [vmem:[#allocation7 + $0xf48] sm:$0xff]
        %v1083 = vld [vmem:[#allocation7 + $0xf50] sm:$0xff]
        %v1084 = vld [vmem:[#allocation7 + $0xf58] sm:$0xff]
        %v1085 = vld [vmem:[#allocation7 + $0xf60] sm:$0xff]
        %v1086 = vld [vmem:[#allocation7 + $0xf68] sm:$0xff]
        %v1087 = vld [vmem:[#allocation7 + $0xf70] sm:$0xff]
        %v1088 = vld [vmem:[#allocation7 + $0xf78] sm:$0xff]
        %v1089 = vld [vmem:[#allocation7 + $0xf80] sm:$0xff]
        %v1090 = vld [vmem:[#allocation7 + $0xf88] sm:$0xff]
        %v1091 = vld [vmem:[#allocation7 + $0xf90] sm:$0xff]
        %v1092 = vld [vmem:[#allocation7 + $0xf98] sm:$0xff]
        %v1093 = vld [vmem:[#allocation7 + $0xfa0] sm:$0xff]
        %v1094 = vld [vmem:[#allocation7 + $0xfa8] sm:$0xff]
        %v1095 = vld [vmem:[#allocation7 + $0xfb0] sm:$0xff]
        %v1096 = vld [vmem:[#allocation7 + $0xfb8] sm:$0xff]
        %v1097 = vld [vmem:[#allocation7 + $0xfc0] sm:$0xff]
        %v1098 = vld [vmem:[#allocation7 + $0xfc8] sm:$0xff]
        %v1099 = vld [vmem:[#allocation7 + $0xfd0] sm:$0xff]
        %v1100 = vld [vmem:[#allocation7 + $0xfd8] sm:$0xff]
        %v1101 = vld [vmem:[#allocation7 + $0xfe0] sm:$0xff]
        %v1102 = vld [vmem:[#allocation7 + $0xfe8] sm:$0xff]
        %v1103 = vld [vmem:[#allocation7 + $0xff0] sm:$0xff]
        %v1104 = vld [vmem:[#allocation7 + $0xff8] sm:$0xff]
        %v1105 = vld [vmem:[#allocation7 + $0x1000] sm:$0xff]
        %v1106 = vld [vmem:[#allocation7 + $0x1008] sm:$0xff]
        %v1107 = vld [vmem:[#allocation7 + $0x1010] sm:$0xff]
        %v1108 = vld [vmem:[#allocation7 + $0x1018] sm:$0xff]
        %v1109 = vld [vmem:[#allocation7 + $0x1020] sm:$0xff]
        %v1110 = vld [vmem:[#allocation7 + $0x1028] sm:$0xff]
        %v1111 = vld [vmem:[#allocation7 + $0x1030] sm:$0xff]
        %v1112 = vld [vmem:[#allocation7 + $0x1038] sm:$0xff]
        %v1113 = vld [vmem:[#allocation7 + $0x1040] sm:$0xff]
        %v1114 = vld [vmem:[#allocation7 + $0x1048] sm:$0xff]
        %v1115 = vld [vmem:[#allocation7 + $0x1050] sm:$0xff]
        %v1116 = vld [vmem:[#allocation7 + $0x1058] sm:$0xff]
        %v1117 = vld [vmem:[#allocation7 + $0x1060] sm:$0xff]
        %v1118 = vld [vmem:[#allocation7 + $0x1068] sm:$0xff]
        %v1119 = vld [vmem:[#allocation7 + $0x1070] sm:$0xff]
        %v1120 = vld [vmem:[#allocation7 + $0x1078] sm:$0xff]
        %v1121 = vld [vmem:[#allocation7 + $0x1080] sm:$0xff]
        %v1122 = vld [vmem:[#allocation7 + $0x1088] sm:$0xff]
        %v1123 = vld [vmem:[#allocation7 + $0x1090] sm:$0xff]
        %v1124 = vld [vmem:[#allocation7 + $0x1098] sm:$0xff]
        %v1125 = vld [vmem:[#allocation7 + $0x10a0] sm:$0xff]
        %v1126 = vld [vmem:[#allocation7 + $0x10a8] sm:$0xff]
        %v1127 = vld [vmem:[#allocation7 + $0x10b0] sm:$0xff]
        %v1128 = vld [vmem:[#allocation7 + $0x10b8] sm:$0xff]
        %v1129 = vld [vmem:[#allocation7 + $0x10c0] sm:$0xff]
        %v1130 = vld [vmem:[#allocation7 + $0x10c8] sm:$0xff]
        %v1131 = vld [vmem:[#allocation7 + $0x10d0] sm:$0xff]
        %v1132 = vld [vmem:[#allocation7 + $0x10d8] sm:$0xff]
        %v1133 = vld [vmem:[#allocation7 + $0x10e0] sm:$0xff]
        %v1134 = vld [vmem:[#allocation7 + $0x10e8] sm:$0xff]
        %v1135 = vld [vmem:[#allocation7 + $0x10f0] sm:$0xff]
        %v1136 = vld [vmem:[#allocation7 + $0x10f8] sm:$0xff]
        %v1137 = vld [vmem:[#allocation7 + $0x1100] sm:$0xff]
        %v1138 = vld [vmem:[#allocation7 + $0x1108] sm:$0xff]
        %v1139 = vld [vmem:[#allocation7 + $0x1110] sm:$0xff]
        %v1140 = vld [vmem:[#allocation7 + $0x1118] sm:$0xff]
        %v1141 = vld [vmem:[#allocation7 + $0x1120] sm:$0xff]
        %v1142 = vld [vmem:[#allocation7 + $0x1128] sm:$0xff]
        %v1143 = vld [vmem:[#allocation7 + $0x1130] sm:$0xff]
        %v1144 = vld [vmem:[#allocation7 + $0x1138] sm:$0xff]
        %v1145 = vld [vmem:[#allocation7 + $0x1140] sm:$0xff]
        %v1146 = vld [vmem:[#allocation7 + $0x1148] sm:$0xff]
        %v1147 = vld [vmem:[#allocation7 + $0x1150] sm:$0xff]
        %v1148 = vld [vmem:[#allocation7 + $0x1158] sm:$0xff]
        %v1149 = vld [vmem:[#allocation7 + $0x1160] sm:$0xff]
        %v1150 = vld [vmem:[#allocation7 + $0x1168] sm:$0xff]
        %v1151 = vld [vmem:[#allocation7 + $0x1170] sm:$0xff]
        %v1152 = vld [vmem:[#allocation7 + $0x1178] sm:$0xff]
        %v1153 = vld [vmem:[#allocation7 + $0x1180] sm:$0xff]
        %v1154 = vld [vmem:[#allocation7 + $0x1188] sm:$0xff]
        %v1155 = vld [vmem:[#allocation7 + $0x1190] sm:$0xff]
        %v1156 = vld [vmem:[#allocation7 + $0x1198] sm:$0xff]
        %v1157 = vld [vmem:[#allocation7 + $0x11a0] sm:$0xff]
        %v1158 = vld [vmem:[#allocation7 + $0x11a8] sm:$0xff]
        %v1159 = vld [vmem:[#allocation7 + $0x11b0] sm:$0xff]
        %v1160 = vld [vmem:[#allocation7 + $0x11b8] sm:$0xff]
        %v1161 = vld [vmem:[#allocation7 + $0x11c0] sm:$0xff]
        %v1162 = vld [vmem:[#allocation7 + $0x11c8] sm:$0xff]
        %v1163 = vld [vmem:[#allocation7 + $0x11d0] sm:$0xff]
        %v1164 = vld [vmem:[#allocation7 + $0x11d8] sm:$0xff]
        %v1165 = vld [vmem:[#allocation7 + $0x11e0] sm:$0xff]
        %v1166 = vld [vmem:[#allocation7 + $0x11e8] sm:$0xff]
        %v1167 = vld [vmem:[#allocation7 + $0x11f0] sm:$0xff]
        %v1168 = vld [vmem:[#allocation7 + $0x11f8] sm:$0xff]
        %v1169 = vld [vmem:[#allocation7 + $0x1200] sm:$0xff]
        %v1170 = vld [vmem:[#allocation7 + $0x1208] sm:$0xff]
        %v1171 = vld [vmem:[#allocation7 + $0x1210] sm:$0xff]
        %v1172 = vld [vmem:[#allocation7 + $0x1218] sm:$0xff]
        %v1173 = vld [vmem:[#allocation7 + $0x1220] sm:$0xff]
        %v1174 = vld [vmem:[#allocation7 + $0x1228] sm:$0xff]
        %v1175 = vld [vmem:[#allocation7 + $0x1230] sm:$0xff]
        %v1176 = vld [vmem:[#allocation7 + $0x1238] sm:$0xff]
        %v1177 = vld [vmem:[#allocation7 + $0x1240] sm:$0xff]
        %v1178 = vld [vmem:[#allocation7 + $0x1248] sm:$0xff]
        %v1179 = vld [vmem:[#allocation7 + $0x1250] sm:$0xff]
        %v1180 = vld [vmem:[#allocation7 + $0x1258] sm:$0xff]
        %v1181 = vld [vmem:[#allocation7 + $0x1260] sm:$0xff]
        %v1182 = vld [vmem:[#allocation7 + $0x1268] sm:$0xff]
        %v1183 = vld [vmem:[#allocation7 + $0x1270] sm:$0xff]
        %v1184 = vld [vmem:[#allocation7 + $0x1278] sm:$0xff]
        %v1185 = vld [vmem:[#allocation7 + $0x1280] sm:$0xff]
        %v1186 = vld [vmem:[#allocation7 + $0x1288] sm:$0xff]
        %v1187 = vld [vmem:[#allocation7 + $0x1290] sm:$0xff]
        %v1188 = vld [vmem:[#allocation7 + $0x1298] sm:$0xff]
        %v1189 = vld [vmem:[#allocation7 + $0x12a0] sm:$0xff]
        %v1190 = vld [vmem:[#allocation7 + $0x12a8] sm:$0xff]
        %v1191 = vld [vmem:[#allocation7 + $0x12b0] sm:$0xff]
        %v1192 = vld [vmem:[#allocation7 + $0x12b8] sm:$0xff]
        %v1193 = vld [vmem:[#allocation7 + $0x12c0] sm:$0xff]
        %v1194 = vld [vmem:[#allocation7 + $0x12c8] sm:$0xff]
        %v1195 = vld [vmem:[#allocation7 + $0x12d0] sm:$0xff]
        %v1196 = vld [vmem:[#allocation7 + $0x12d8] sm:$0xff]
        %v1197 = vld [vmem:[#allocation7 + $0x12e0] sm:$0xff]
        %v1198 = vld [vmem:[#allocation7 + $0x12e8] sm:$0xff]
        %v1199 = vld [vmem:[#allocation7 + $0x12f0] sm:$0xff]
        %v1200 = vld [vmem:[#allocation7 + $0x12f8] sm:$0xff]
        %v1201 = vld [vmem:[#allocation7 + $0x1300] sm:$0xff]
        %v1202 = vld [vmem:[#allocation7 + $0x1308] sm:$0xff]
        %v1203 = vld [vmem:[#allocation7 + $0x1310] sm:$0xff]
        %v1204 = vld [vmem:[#allocation7 + $0x1318] sm:$0xff]
        %v1205 = vld [vmem:[#allocation7 + $0x1320] sm:$0xff]
        %v1206 = vld [vmem:[#allocation7 + $0x1328] sm:$0xff]
        %v1207 = vld [vmem:[#allocation7 + $0x1330] sm:$0xff]
        %v1208 = vld [vmem:[#allocation7 + $0x1338] sm:$0xff]
        %v1209 = vld [vmem:[#allocation7 + $0x1340] sm:$0xff]
        %v1210 = vld [vmem:[#allocation7 + $0x1348] sm:$0xff]
        %v1211 = vld [vmem:[#allocation7 + $0x1350] sm:$0xff]
        %v1212 = vld [vmem:[#allocation7 + $0x1358] sm:$0xff]
        %v1213 = vld [vmem:[#allocation7 + $0x1360] sm:$0xff]
        %v1214 = vld [vmem:[#allocation7 + $0x1368] sm:$0xff]
        %v1215 = vld [vmem:[#allocation7 + $0x1370] sm:$0xff]
        %v1216 = vld [vmem:[#allocation7 + $0x1378] sm:$0xff]
        %v1217 = vld [vmem:[#allocation7 + $0x1380] sm:$0xff]
        %v1218 = vld [vmem:[#allocation7 + $0x1388] sm:$0xff]
        %v1219 = vld [vmem:[#allocation7 + $0x1390] sm:$0xff]
        %v1220 = vld [vmem:[#allocation7 + $0x1398] sm:$0xff]
        %v1221 = vld [vmem:[#allocation7 + $0x13a0] sm:$0xff]
        %v1222 = vld [vmem:[#allocation7 + $0x13a8] sm:$0xff]
        %v1223 = vld [vmem:[#allocation7 + $0x13b0] sm:$0xff]
        %v1224 = vld [vmem:[#allocation7 + $0x13b8] sm:$0xff]
        %v1225 = vld [vmem:[#allocation7 + $0x13c0] sm:$0xff]
        %v1226 = vld [vmem:[#allocation7 + $0x13c8] sm:$0xff]
        %v1227 = vld [vmem:[#allocation7 + $0x13d0] sm:$0xff]
        %v1228 = vld [vmem:[#allocation7 + $0x13d8] sm:$0xff]
        %v1229 = vld [vmem:[#allocation7 + $0x13e0] sm:$0xff]
        %v1230 = vld [vmem:[#allocation7 + $0x13e8] sm:$0xff]
        %v1231 = vld [vmem:[#allocation7 + $0x13f0] sm:$0xff]
        %v1232 = vld [vmem:[#allocation7 + $0x13f8] sm:$0xff]
        %v1233 = vld [vmem:[#allocation7 + $0x1400] sm:$0xff]
        %v1234 = vld [vmem:[#allocation7 + $0x1408] sm:$0xff]
        %v1235 = vld [vmem:[#allocation7 + $0x1410] sm:$0xff]
        %v1236 = vld [vmem:[#allocation7 + $0x1418] sm:$0xff]
        %v1237 = vld [vmem:[#allocation7 + $0x1420] sm:$0xff]
        %v1238 = vld [vmem:[#allocation7 + $0x1428] sm:$0xff]
        %v1239 = vld [vmem:[#allocation7 + $0x1430] sm:$0xff]
        %v1240 = vld [vmem:[#allocation7 + $0x1438] sm:$0xff]
        %v1241 = vld [vmem:[#allocation7 + $0x1440] sm:$0xff]
        %v1242 = vld [vmem:[#allocation7 + $0x1448] sm:$0xff]
        %v1243 = vld [vmem:[#allocation7 + $0x1450] sm:$0xff]
        %v1244 = vld [vmem:[#allocation7 + $0x1458] sm:$0xff]
        %v1245 = vld [vmem:[#allocation7 + $0x1460] sm:$0xff]
        %v1246 = vld [vmem:[#allocation7 + $0x1468] sm:$0xff]
        %v1247 = vld [vmem:[#allocation7 + $0x1470] sm:$0xff]
        %v1248 = vld [vmem:[#allocation7 + $0x1478] sm:$0xff]
        %v1249 = vld [vmem:[#allocation7 + $0x1480] sm:$0xff]
        %v1250 = vld [vmem:[#allocation7 + $0x1488] sm:$0xff]
        %v1251 = vld [vmem:[#allocation7 + $0x1490] sm:$0xff]
        %v1252 = vld [vmem:[#allocation7 + $0x1498] sm:$0xff]
        %v1253 = vld [vmem:[#allocation7 + $0x14a0] sm:$0xff]
        %v1254 = vld [vmem:[#allocation7 + $0x14a8] sm:$0xff]
        %v1255 = vld [vmem:[#allocation7 + $0x14b0] sm:$0xff]
        %v1256 = vld [vmem:[#allocation7 + $0x14b8] sm:$0xff]
        %v1257 = vld [vmem:[#allocation7 + $0x14c0] sm:$0xff]
        %v1258 = vld [vmem:[#allocation7 + $0x14c8] sm:$0xff]
        %v1259 = vld [vmem:[#allocation7 + $0x14d0] sm:$0xff]
        %v1260 = vld [vmem:[#allocation7 + $0x14d8] sm:$0xff]
        %v1261 = vld [vmem:[#allocation7 + $0x14e0] sm:$0xff]
        %v1262 = vld [vmem:[#allocation7 + $0x14e8] sm:$0xff]
        %v1263 = vld [vmem:[#allocation7 + $0x14f0] sm:$0xff]
        %v1264 = vld [vmem:[#allocation7 + $0x14f8] sm:$0xff]
        %v1265 = vld [vmem:[#allocation7 + $0x1500] sm:$0x33]
        %v1266 = vld [vmem:[#allocation7 + $0x1508] sm:$0x33]
        %v1267 = vld [vmem:[#allocation7 + $0x1510] sm:$0x33]
        %v1268 = vld [vmem:[#allocation7 + $0x1518] sm:$0x33]
        %v1269 = vld [vmem:[#allocation7 + $0x1520] sm:$0x33]
        %v1270 = vld [vmem:[#allocation7 + $0x1528] sm:$0x33]
        %v1271 = vld [vmem:[#allocation7 + $0x1530] sm:$0x33]
        %v1272 = vld [vmem:[#allocation7 + $0x1538] sm:$0x33]
        %v1273 = vld [vmem:[#allocation7 + $0x1540] sm:$0x33]
        %v1274 = vld [vmem:[#allocation7 + $0x1548] sm:$0x33]
        %v1275 = vld [vmem:[#allocation7 + $0x1550] sm:$0x33]
        %v1276 = vld [vmem:[#allocation7 + $0x1558] sm:$0x33]
        %v1277 = vld [vmem:[#allocation7 + $0x1560] sm:$0x33]
        %v1278 = vld [vmem:[#allocation7 + $0x1568] sm:$0x33]
        %v1279 = vld [vmem:[#allocation7 + $0x1570] sm:$0x33]
        %v1280 = vld [vmem:[#allocation7 + $0x1578] sm:$0x33]
        %v1281 = vld [vmem:[#allocation9] sm:$0xff]
        %v1282 = vld [vmem:[#allocation9 + $0x8] sm:$0xff]
        %v1283 = vld [vmem:[#allocation9 + $0x10] sm:$0xff]
        %v1284 = vld [vmem:[#allocation9 + $0x18] sm:$0xff]
        %v1289 = vlaneseq
        %v1290 = vshrl.u32 %v1289, 7
        %v1291 = vsub.s32 0, %v1290
        %v1292 = vrot.slane %v1281, %v1291
        %v1293 = vlaneseq
        %v1294 = vshrl.u32 %v1293, 7
        %v1295 = vsub.s32 1, %v1294
        %v1296 = vrot.slane %v1281, %v1295
        %v1297 = vlaneseq
        %v1298 = vshrl.u32 %v1297, 7
        %v1299 = vsub.s32 2, %v1298
        %v1300 = vrot.slane %v1281, %v1299
        %v1301 = vlaneseq
        %v1302 = vshrl.u32 %v1301, 7
        %v1303 = vsub.s32 3, %v1302
        %v1304 = vrot.slane %v1281, %v1303
        %v1305 = vlaneseq
        %v1306 = vshrl.u32 %v1305, 7
        %v1307 = vsub.s32 4, %v1306
        %v1308 = vrot.slane %v1281, %v1307
        %v1309 = vlaneseq
        %v1310 = vshrl.u32 %v1309, 7
        %v1311 = vsub.s32 5, %v1310
        %v1312 = vrot.slane %v1281, %v1311
        %v1313 = vlaneseq
        %v1314 = vshrl.u32 %v1313, 7
        %v1315 = vsub.s32 6, %v1314
        %v1316 = vrot.slane %v1281, %v1315
        %v1317 = vlaneseq
        %v1318 = vshrl.u32 %v1317, 7
        %v1319 = vsub.s32 7, %v1318
        %v1320 = vrot.slane %v1281, %v1319
        %v1321 = vlaneseq
        %v1322 = vshrl.u32 %v1321, 7
        %v1323 = vsub.s32 0, %v1322
        %v1324 = vrot.slane %v1282, %v1323
        %v1325 = vlaneseq
        %v1326 = vshrl.u32 %v1325, 7
        %v1327 = vsub.s32 1, %v1326
        %v1328 = vrot.slane %v1282, %v1327
        %v1329 = vlaneseq
        %v1330 = vshrl.u32 %v1329, 7
        %v1331 = vsub.s32 2, %v1330
        %v1332 = vrot.slane %v1282, %v1331
        %v1333 = vlaneseq
        %v1334 = vshrl.u32 %v1333, 7
        %v1335 = vsub.s32 3, %v1334
        %v1336 = vrot.slane %v1282, %v1335
        %v1337 = vlaneseq
        %v1338 = vshrl.u32 %v1337, 7
        %v1339 = vsub.s32 4, %v1338
        %v1340 = vrot.slane %v1282, %v1339
        %v1341 = vlaneseq
        %v1342 = vshrl.u32 %v1341, 7
        %v1343 = vsub.s32 5, %v1342
        %v1344 = vrot.slane %v1282, %v1343
        %v1345 = vlaneseq
        %v1346 = vshrl.u32 %v1345, 7
        %v1347 = vsub.s32 6, %v1346
        %v1348 = vrot.slane %v1282, %v1347
        %v1349 = vlaneseq
        %v1350 = vshrl.u32 %v1349, 7
        %v1351 = vsub.s32 7, %v1350
        %v1352 = vrot.slane %v1282, %v1351
        %v1353 = vlaneseq
        %v1354 = vshrl.u32 %v1353, 7
        %v1355 = vsub.s32 0, %v1354
        %v1356 = vrot.slane %v1283, %v1355
        %v1357 = vlaneseq
        %v1358 = vshrl.u32 %v1357, 7
        %v1359 = vsub.s32 1, %v1358
        %v1360 = vrot.slane %v1283, %v1359
        %v1361 = vlaneseq
        %v1362 = vshrl.u32 %v1361, 7
        %v1363 = vsub.s32 2, %v1362
        %v1364 = vrot.slane %v1283, %v1363
        %v1365 = vlaneseq
        %v1366 = vshrl.u32 %v1365, 7
        %v1367 = vsub.s32 3, %v1366
        %v1368 = vrot.slane %v1283, %v1367
        %v1369 = vlaneseq
        %v1370 = vshrl.u32 %v1369, 7
        %v1371 = vsub.s32 4, %v1370
        %v1372 = vrot.slane %v1283, %v1371
        %v1373 = vlaneseq
        %v1374 = vshrl.u32 %v1373, 7
        %v1375 = vsub.s32 5, %v1374
        %v1376 = vrot.slane %v1283, %v1375
        %v1377 = vlaneseq
        %v1378 = vshrl.u32 %v1377, 7
        %v1379 = vsub.s32 6, %v1378
        %v1380 = vrot.slane %v1283, %v1379
        %v1381 = vlaneseq
        %v1382 = vshrl.u32 %v1381, 7
        %v1383 = vsub.s32 7, %v1382
        %v1384 = vrot.slane %v1283, %v1383
        %v1385 = vlaneseq
        %v1386 = vshrl.u32 %v1385, 7
        %v1387 = vsub.s32 0, %v1386
        %v1388 = vrot.slane %v1284, %v1387
        %v1389 = vlaneseq
        %v1390 = vshrl.u32 %v1389, 7
        %v1391 = vsub.s32 1, %v1390
        %v1392 = vrot.slane %v1284, %v1391
        %v1393 = vlaneseq
        %v1394 = vshrl.u32 %v1393, 7
        %v1395 = vsub.s32 2, %v1394
        %v1396 = vrot.slane %v1284, %v1395
        %v1397 = vlaneseq
        %v1398 = vshrl.u32 %v1397, 7
        %v1399 = vsub.s32 3, %v1398
        %v1400 = vrot.slane %v1284, %v1399
        %v1401 = vlaneseq
        %v1402 = vshrl.u32 %v1401, 7
        %v1403 = vsub.s32 4, %v1402
        %v1404 = vrot.slane %v1284, %v1403
        %v1405 = vlaneseq
        %v1406 = vshrl.u32 %v1405, 7
        %v1407 = vsub.s32 5, %v1406
        %v1408 = vrot.slane %v1284, %v1407
        %v1409 = vlaneseq
        %v1410 = vshrl.u32 %v1409, 7
        %v1411 = vsub.s32 6, %v1410
        %v1412 = vrot.slane %v1284, %v1411
        %v1413 = vlaneseq
        %v1414 = vshrl.u32 %v1413, 7
        %v1415 = vsub.s32 7, %v1414
        %v1416 = vrot.slane %v1284, %v1415
        %v2137 = vunpack.c.l.b16 %v593
        %v2138 = vunpack.c.h.b16 %v593
        %v2139 = vunpack.c.l.b16 %v594
        %v2140 = vunpack.c.h.b16 %v594
        %v2141 = vunpack.c.l.b16 %v595
        %v2142 = vunpack.c.h.b16 %v595
        %v2143 = vunpack.c.l.b16 %v596
        %v2144 = vunpack.c.h.b16 %v596
        %v2145 = vunpack.c.l.b16 %v597
        %v2146 = vunpack.c.h.b16 %v597
        %v2147 = vunpack.c.l.b16 %v598
        %v2148 = vunpack.c.h.b16 %v598
        %v2149 = vunpack.c.l.b16 %v599
        %v2150 = vunpack.c.h.b16 %v599
        %v2151 = vunpack.c.l.b16 %v600
        %v2152 = vunpack.c.h.b16 %v600
        %v2153 = vunpack.c.l.b16 %v601
        %v2154 = vunpack.c.h.b16 %v601
        %v2155 = vunpack.c.l.b16 %v602
        %v2156 = vunpack.c.h.b16 %v602
        %v2157 = vunpack.c.l.b16 %v603
        %v2158 = vunpack.c.h.b16 %v603
        %v2159 = vunpack.c.l.b16 %v604
        %v2160 = vunpack.c.h.b16 %v604
        %v2161 = vunpack.c.l.b16 %v605
        %v2162 = vunpack.c.h.b16 %v605
        %v2163 = vunpack.c.l.b16 %v606
        %v2164 = vunpack.c.h.b16 %v606
        %v2165 = vunpack.c.l.b16 %v607
        %v2166 = vunpack.c.h.b16 %v607
        %v2167 = vunpack.c.l.b16 %v608
        %v2168 = vunpack.c.h.b16 %v608
        %v2169 = vunpack.c.l.b16 %v609
        %v2170 = vunpack.c.h.b16 %v609
        %v2171 = vunpack.c.l.b16 %v610
        %v2172 = vunpack.c.h.b16 %v610
        %v2173 = vunpack.c.l.b16 %v611
        %v2174 = vunpack.c.h.b16 %v611
        %v2175 = vunpack.c.l.b16 %v612
        %v2176 = vunpack.c.h.b16 %v612
        %v2177 = vunpack.c.l.b16 %v613
        %v2178 = vunpack.c.h.b16 %v613
        %v2179 = vunpack.c.l.b16 %v614
        %v2180 = vunpack.c.h.b16 %v614
        %v2181 = vunpack.c.l.b16 %v615
        %v2182 = vunpack.c.h.b16 %v615
        %v2183 = vunpack.c.l.b16 %v616
        %v2184 = vunpack.c.h.b16 %v616
        %v2185 = vunpack.c.l.b16 %v617
        %v2186 = vunpack.c.h.b16 %v617
        %v2187 = vunpack.c.l.b16 %v618
        %v2188 = vunpack.c.h.b16 %v618
        %v2189 = vunpack.c.l.b16 %v619
        %v2190 = vunpack.c.h.b16 %v619
        %v2191 = vunpack.c.l.b16 %v620
        %v2192 = vunpack.c.h.b16 %v620
        %v2193 = vunpack.c.l.b16 %v621
        %v2194 = vunpack.c.h.b16 %v621
        %v2195 = vunpack.c.l.b16 %v622
        %v2196 = vunpack.c.h.b16 %v622
        %v2197 = vunpack.c.l.b16 %v623
        %v2198 = vunpack.c.h.b16 %v623
        %v2199 = vunpack.c.l.b16 %v624
        %v2200 = vunpack.c.h.b16 %v624
        %v2201 = vunpack.c.l.b16 %v625
        %v2202 = vunpack.c.h.b16 %v625
        %v2203 = vunpack.c.l.b16 %v626
        %v2204 = vunpack.c.h.b16 %v626
        %v2205 = vunpack.c.l.b16 %v627
        %v2206 = vunpack.c.h.b16 %v627
        %v2207 = vunpack.c.l.b16 %v628
        %v2208 = vunpack.c.h.b16 %v628
        %v2209 = vunpack.c.l.b16 %v629
        %v2210 = vunpack.c.h.b16 %v629
        %v2211 = vunpack.c.l.b16 %v630
        %v2212 = vunpack.c.h.b16 %v630
        %v2213 = vunpack.c.l.b16 %v631
        %v2214 = vunpack.c.h.b16 %v631
        %v2215 = vunpack.c.l.b16 %v632
        %v2216 = vunpack.c.h.b16 %v632
        %v2217 = vunpack.c.l.b16 %v633
        %v2218 = vunpack.c.h.b16 %v633
        %v2219 = vunpack.c.l.b16 %v634
        %v2220 = vunpack.c.h.b16 %v634
        %v2221 = vunpack.c.l.b16 %v635
        %v2222 = vunpack.c.h.b16 %v635
        %v2223 = vunpack.c.l.b16 %v636
        %v2224 = vunpack.c.h.b16 %v636
        %v2225 = vunpack.c.l.b16 %v637
        %v2226 = vunpack.c.h.b16 %v637
        %v2227 = vunpack.c.l.b16 %v638
        %v2228 = vunpack.c.h.b16 %v638
        %v2229 = vunpack.c.l.b16 %v639
        %v2230 = vunpack.c.h.b16 %v639
        %v2231 = vunpack.c.l.b16 %v640
        %v2232 = vunpack.c.h.b16 %v640
        %v2233 = vunpack.c.l.b16 %v641
        %v2234 = vunpack.c.h.b16 %v641
        %v2235 = vunpack.c.l.b16 %v642
        %v2236 = vunpack.c.h.b16 %v642
        %v2237 = vunpack.c.l.b16 %v643
        %v2238 = vunpack.c.h.b16 %v643
        %v2239 = vunpack.c.l.b16 %v644
        %v2240 = vunpack.c.h.b16 %v644
        %v2241 = vunpack.c.l.b16 %v645
        %v2242 = vunpack.c.h.b16 %v645
        %v2243 = vunpack.c.l.b16 %v646
        %v2244 = vunpack.c.h.b16 %v646
        %v2245 = vunpack.c.l.b16 %v647
        %v2246 = vunpack.c.h.b16 %v647
        %v2247 = vunpack.c.l.b16 %v648
        %v2248 = vunpack.c.h.b16 %v648
        %v2249 = vunpack.c.l.b16 %v649
        %v2250 = vunpack.c.h.b16 %v649
        %v2251 = vunpack.c.l.b16 %v650
        %v2252 = vunpack.c.h.b16 %v650
        %v2253 = vunpack.c.l.b16 %v651
        %v2254 = vunpack.c.h.b16 %v651
        %v2255 = vunpack.c.l.b16 %v652
        %v2256 = vunpack.c.h.b16 %v652
        %v2257 = vunpack.c.l.b16 %v653
        %v2258 = vunpack.c.h.b16 %v653
        %v2259 = vunpack.c.l.b16 %v654
        %v2260 = vunpack.c.h.b16 %v654
        %v2261 = vunpack.c.l.b16 %v655
        %v2262 = vunpack.c.h.b16 %v655
        %v2263 = vunpack.c.l.b16 %v656
        %v2264 = vunpack.c.h.b16 %v656
        %v2265 = vunpack.c.l.b16 %v657
        %v2266 = vunpack.c.h.b16 %v657
        %v2267 = vunpack.c.l.b16 %v658
        %v2268 = vunpack.c.h.b16 %v658
        %v2269 = vunpack.c.l.b16 %v659
        %v2270 = vunpack.c.h.b16 %v659
        %v2271 = vunpack.c.l.b16 %v660
        %v2272 = vunpack.c.h.b16 %v660
        %v2273 = vunpack.c.l.b16 %v661
        %v2274 = vunpack.c.h.b16 %v661
        %v2275 = vunpack.c.l.b16 %v662
        %v2276 = vunpack.c.h.b16 %v662
        %v2277 = vunpack.c.l.b16 %v663
        %v2278 = vunpack.c.h.b16 %v663
        %v2279 = vunpack.c.l.b16 %v664
        %v2280 = vunpack.c.h.b16 %v664
        %v2281 = vunpack.c.l.b16 %v665
        %v2282 = vunpack.c.h.b16 %v665
        %v2283 = vunpack.c.l.b16 %v666
        %v2284 = vunpack.c.h.b16 %v666
        %v2285 = vunpack.c.l.b16 %v667
        %v2286 = vunpack.c.h.b16 %v667
        %v2287 = vunpack.c.l.b16 %v668
        %v2288 = vunpack.c.h.b16 %v668
        %v2289 = vunpack.c.l.b16 %v669
        %v2290 = vunpack.c.h.b16 %v669
        %v2291 = vunpack.c.l.b16 %v670
        %v2292 = vunpack.c.h.b16 %v670
        %v2293 = vunpack.c.l.b16 %v671
        %v2294 = vunpack.c.h.b16 %v671
        %v2295 = vunpack.c.l.b16 %v672
        %v2296 = vunpack.c.h.b16 %v672
        %v2297 = vunpack.c.l.b16 %v673
        %v2298 = vunpack.c.h.b16 %v673
        %v2299 = vunpack.c.l.b16 %v674
        %v2300 = vunpack.c.h.b16 %v674
        %v2301 = vunpack.c.l.b16 %v675
        %v2302 = vunpack.c.h.b16 %v675
        %v2303 = vunpack.c.l.b16 %v676
        %v2304 = vunpack.c.h.b16 %v676
        %v2305 = vunpack.c.l.b16 %v677
        %v2306 = vunpack.c.h.b16 %v677
        %v2307 = vunpack.c.l.b16 %v678
        %v2308 = vunpack.c.h.b16 %v678
        %v2309 = vunpack.c.l.b16 %v679
        %v2310 = vunpack.c.h.b16 %v679
        %v2311 = vunpack.c.l.b16 %v680
        %v2312 = vunpack.c.h.b16 %v680
        %v2313 = vunpack.c.l.b16 %v681
        %v2314 = vunpack.c.h.b16 %v681
        %v2315 = vunpack.c.l.b16 %v682
        %v2316 = vunpack.c.h.b16 %v682
        %v2317 = vunpack.c.l.b16 %v683
        %v2318 = vunpack.c.h.b16 %v683
        %v2319 = vunpack.c.l.b16 %v684
        %v2320 = vunpack.c.h.b16 %v684
        %v2321 = vunpack.c.l.b16 %v685
        %v2322 = vunpack.c.h.b16 %v685
        %v2323 = vunpack.c.l.b16 %v686
        %v2324 = vunpack.c.h.b16 %v686
        %v2325 = vunpack.c.l.b16 %v687
        %v2326 = vunpack.c.h.b16 %v687
        %v2327 = vunpack.c.l.b16 %v688
        %v2328 = vunpack.c.h.b16 %v688
        %v2329 = vunpack.c.l.b16 %v689
        %v2330 = vunpack.c.h.b16 %v689
        %v2331 = vunpack.c.l.b16 %v690
        %v2332 = vunpack.c.h.b16 %v690
        %v2333 = vunpack.c.l.b16 %v691
        %v2334 = vunpack.c.h.b16 %v691
        %v2335 = vunpack.c.l.b16 %v692
        %v2336 = vunpack.c.h.b16 %v692
        %v2337 = vunpack.c.l.b16 %v693
        %v2338 = vunpack.c.h.b16 %v693
        %v2339 = vunpack.c.l.b16 %v694
        %v2340 = vunpack.c.h.b16 %v694
        %v2341 = vunpack.c.l.b16 %v695
        %v2342 = vunpack.c.h.b16 %v695
        %v2343 = vunpack.c.l.b16 %v696
        %v2344 = vunpack.c.h.b16 %v696
        %v2345 = vunpack.c.l.b16 %v697
        %v2346 = vunpack.c.h.b16 %v697
        %v2347 = vunpack.c.l.b16 %v698
        %v2348 = vunpack.c.h.b16 %v698
        %v2349 = vunpack.c.l.b16 %v699
        %v2350 = vunpack.c.h.b16 %v699
        %v2351 = vunpack.c.l.b16 %v700
        %v2352 = vunpack.c.h.b16 %v700
        %v2353 = vunpack.c.l.b16 %v701
        %v2354 = vunpack.c.h.b16 %v701
        %v2355 = vunpack.c.l.b16 %v702
        %v2356 = vunpack.c.h.b16 %v702
        %v2357 = vunpack.c.l.b16 %v703
        %v2358 = vunpack.c.h.b16 %v703
        %v2359 = vunpack.c.l.b16 %v704
        %v2360 = vunpack.c.h.b16 %v704
        %v2361 = vunpack.c.l.b16 %v705
        %v2362 = vunpack.c.h.b16 %v705
        %v2363 = vunpack.c.l.b16 %v706
        %v2364 = vunpack.c.h.b16 %v706
        %v2365 = vunpack.c.l.b16 %v707
        %v2366 = vunpack.c.h.b16 %v707
        %v2367 = vunpack.c.l.b16 %v708
        %v2368 = vunpack.c.h.b16 %v708
        %v2369 = vunpack.c.l.b16 %v709
        %v2370 = vunpack.c.h.b16 %v709
        %v2371 = vunpack.c.l.b16 %v710
        %v2372 = vunpack.c.h.b16 %v710
        %v2373 = vunpack.c.l.b16 %v711
        %v2374 = vunpack.c.h.b16 %v711
        %v2375 = vunpack.c.l.b16 %v712
        %v2376 = vunpack.c.h.b16 %v712
        %v2377 = vunpack.c.l.b16 %v713
        %v2378 = vunpack.c.h.b16 %v713
        %v2379 = vunpack.c.l.b16 %v714
        %v2380 = vunpack.c.h.b16 %v714
        %v2381 = vunpack.c.l.b16 %v715
        %v2382 = vunpack.c.h.b16 %v715
        %v2383 = vunpack.c.l.b16 %v716
        %v2384 = vunpack.c.h.b16 %v716
        %v2385 = vunpack.c.l.b16 %v717
        %v2386 = vunpack.c.h.b16 %v717
        %v2387 = vunpack.c.l.b16 %v718
        %v2388 = vunpack.c.h.b16 %v718
        %v2389 = vunpack.c.l.b16 %v719
        %v2390 = vunpack.c.h.b16 %v719
        %v2391 = vunpack.c.l.b16 %v720
        %v2392 = vunpack.c.h.b16 %v720
        %v2393 = vunpack.c.l.b16 %v721
        %v2394 = vunpack.c.h.b16 %v721
        %v2395 = vunpack.c.l.b16 %v722
        %v2396 = vunpack.c.h.b16 %v722
        %v2397 = vunpack.c.l.b16 %v723
        %v2398 = vunpack.c.h.b16 %v723
        %v2399 = vunpack.c.l.b16 %v724
        %v2400 = vunpack.c.h.b16 %v724
        %v2401 = vunpack.c.l.b16 %v725
        %v2402 = vunpack.c.h.b16 %v725
        %v2403 = vunpack.c.l.b16 %v726
        %v2404 = vunpack.c.h.b16 %v726
        %v2405 = vunpack.c.l.b16 %v727
        %v2406 = vunpack.c.h.b16 %v727
        %v2407 = vunpack.c.l.b16 %v728
        %v2408 = vunpack.c.h.b16 %v728
        %v2409 = vunpack.c.l.b16 %v729
        %v2410 = vunpack.c.h.b16 %v729
        %v2411 = vunpack.c.l.b16 %v730
        %v2412 = vunpack.c.h.b16 %v730
        %v2413 = vunpack.c.l.b16 %v731
        %v2414 = vunpack.c.h.b16 %v731
        %v2415 = vunpack.c.l.b16 %v732
        %v2416 = vunpack.c.h.b16 %v732
        %v2417 = vunpack.c.l.b16 %v733
        %v2418 = vunpack.c.h.b16 %v733
        %v2419 = vunpack.c.l.b16 %v734
        %v2420 = vunpack.c.h.b16 %v734
        %v2421 = vunpack.c.l.b16 %v735
        %v2422 = vunpack.c.h.b16 %v735
        %v2423 = vunpack.c.l.b16 %v736
        %v2424 = vunpack.c.h.b16 %v736
        %v2425 = vunpack.c.l.b16 %v737
        %v2426 = vunpack.c.h.b16 %v737
        %v2427 = vunpack.c.l.b16 %v738
        %v2428 = vunpack.c.h.b16 %v738
        %v2429 = vunpack.c.l.b16 %v739
        %v2430 = vunpack.c.h.b16 %v739
        %v2431 = vunpack.c.l.b16 %v740
        %v2432 = vunpack.c.h.b16 %v740
        %v2433 = vunpack.c.l.b16 %v741
        %v2434 = vunpack.c.h.b16 %v741
        %v2435 = vunpack.c.l.b16 %v742
        %v2436 = vunpack.c.h.b16 %v742
        %v2437 = vunpack.c.l.b16 %v743
        %v2438 = vunpack.c.h.b16 %v743
        %v2439 = vunpack.c.l.b16 %v744
        %v2440 = vunpack.c.h.b16 %v744
        %v2441 = vunpack.c.l.b16 %v745
        %v2442 = vunpack.c.h.b16 %v745
        %v2443 = vunpack.c.l.b16 %v746
        %v2444 = vunpack.c.h.b16 %v746
        %v2445 = vunpack.c.l.b16 %v747
        %v2446 = vunpack.c.h.b16 %v747
        %v2447 = vunpack.c.l.b16 %v748
        %v2448 = vunpack.c.h.b16 %v748
        %v2449 = vunpack.c.l.b16 %v749
        %v2450 = vunpack.c.h.b16 %v749
        %v2451 = vunpack.c.l.b16 %v750
        %v2452 = vunpack.c.h.b16 %v750
        %v2453 = vunpack.c.l.b16 %v751
        %v2454 = vunpack.c.h.b16 %v751
        %v2455 = vunpack.c.l.b16 %v752
        %v2456 = vunpack.c.h.b16 %v752
        %v2457 = vunpack.c.l.b16 %v753
        %v2458 = vunpack.c.h.b16 %v753
        %v2459 = vunpack.c.l.b16 %v754
        %v2460 = vunpack.c.h.b16 %v754
        %v2461 = vunpack.c.l.b16 %v755
        %v2462 = vunpack.c.h.b16 %v755
        %v2463 = vunpack.c.l.b16 %v756
        %v2464 = vunpack.c.h.b16 %v756
        %v2465 = vunpack.c.l.b16 %v757
        %v2466 = vunpack.c.h.b16 %v757
        %v2467 = vunpack.c.l.b16 %v758
        %v2468 = vunpack.c.h.b16 %v758
        %v2469 = vunpack.c.l.b16 %v759
        %v2470 = vunpack.c.h.b16 %v759
        %v2471 = vunpack.c.l.b16 %v760
        %v2472 = vunpack.c.h.b16 %v760
        %v2473 = vunpack.c.l.b16 %v761
        %v2474 = vunpack.c.h.b16 %v761
        %v2475 = vunpack.c.l.b16 %v762
        %v2476 = vunpack.c.h.b16 %v762
        %v2477 = vunpack.c.l.b16 %v763
        %v2478 = vunpack.c.h.b16 %v763
        %v2479 = vunpack.c.l.b16 %v764
        %v2480 = vunpack.c.h.b16 %v764
        %v2481 = vunpack.c.l.b16 %v765
        %v2482 = vunpack.c.h.b16 %v765
        %v2483 = vunpack.c.l.b16 %v766
        %v2484 = vunpack.c.h.b16 %v766
        %v2485 = vunpack.c.l.b16 %v767
        %v2486 = vunpack.c.h.b16 %v767
        %v2487 = vunpack.c.l.b16 %v768
        %v2488 = vunpack.c.h.b16 %v768
        %v2489 = vunpack.c.l.b16 %v769
        %v2490 = vunpack.c.h.b16 %v769
        %v2491 = vunpack.c.l.b16 %v770
        %v2492 = vunpack.c.h.b16 %v770
        %v2493 = vunpack.c.l.b16 %v771
        %v2494 = vunpack.c.h.b16 %v771
        %v2495 = vunpack.c.l.b16 %v772
        %v2496 = vunpack.c.h.b16 %v772
        %v2497 = vunpack.c.l.b16 %v773
        %v2498 = vunpack.c.h.b16 %v773
        %v2499 = vunpack.c.l.b16 %v774
        %v2500 = vunpack.c.h.b16 %v774
        %v2501 = vunpack.c.l.b16 %v775
        %v2502 = vunpack.c.h.b16 %v775
        %v2503 = vunpack.c.l.b16 %v776
        %v2504 = vunpack.c.h.b16 %v776
        %v2505 = vunpack.c.l.b16 %v777
        %v2506 = vunpack.c.h.b16 %v777
        %v2507 = vunpack.c.l.b16 %v778
        %v2508 = vunpack.c.h.b16 %v778
        %v2509 = vunpack.c.l.b16 %v779
        %v2510 = vunpack.c.h.b16 %v779
        %v2511 = vunpack.c.l.b16 %v780
        %v2512 = vunpack.c.h.b16 %v780
        %v2513 = vunpack.c.l.b16 %v781
        %v2514 = vunpack.c.h.b16 %v781
        %v2515 = vunpack.c.l.b16 %v782
        %v2516 = vunpack.c.h.b16 %v782
        %v2517 = vunpack.c.l.b16 %v783
        %v2518 = vunpack.c.h.b16 %v783
        %v2519 = vunpack.c.l.b16 %v784
        %v2520 = vunpack.c.h.b16 %v784
        %v2521 = vunpack.c.l.b16 %v785
        %v2522 = vunpack.c.h.b16 %v785
        %v2523 = vunpack.c.l.b16 %v786
        %v2524 = vunpack.c.h.b16 %v786
        %v2525 = vunpack.c.l.b16 %v787
        %v2526 = vunpack.c.h.b16 %v787
        %v2527 = vunpack.c.l.b16 %v788
        %v2528 = vunpack.c.h.b16 %v788
        %v2529 = vunpack.c.l.b16 %v789
        %v2530 = vunpack.c.h.b16 %v789
        %v2531 = vunpack.c.l.b16 %v790
        %v2532 = vunpack.c.h.b16 %v790
        %v2533 = vunpack.c.l.b16 %v791
        %v2534 = vunpack.c.h.b16 %v791
        %v2535 = vunpack.c.l.b16 %v792
        %v2536 = vunpack.c.h.b16 %v792
        %v2537 = vunpack.c.l.b16 %v793
        %v2538 = vunpack.c.h.b16 %v793
        %v2539 = vunpack.c.l.b16 %v794
        %v2540 = vunpack.c.h.b16 %v794
        %v2541 = vunpack.c.l.b16 %v795
        %v2542 = vunpack.c.h.b16 %v795
        %v2543 = vunpack.c.l.b16 %v796
        %v2544 = vunpack.c.h.b16 %v796
        %v2545 = vunpack.c.l.b16 %v797
        %v2546 = vunpack.c.h.b16 %v797
        %v2547 = vunpack.c.l.b16 %v798
        %v2548 = vunpack.c.h.b16 %v798
        %v2549 = vunpack.c.l.b16 %v799
        %v2550 = vunpack.c.h.b16 %v799
        %v2551 = vunpack.c.l.b16 %v800
        %v2552 = vunpack.c.h.b16 %v800
        %v2553 = vunpack.c.l.b16 %v801
        %v2554 = vunpack.c.h.b16 %v801
        %v2555 = vunpack.c.l.b16 %v802
        %v2556 = vunpack.c.h.b16 %v802
        %v2557 = vunpack.c.l.b16 %v803
        %v2558 = vunpack.c.h.b16 %v803
        %v2559 = vunpack.c.l.b16 %v804
        %v2560 = vunpack.c.h.b16 %v804
        %v2561 = vunpack.c.l.b16 %v805
        %v2562 = vunpack.c.h.b16 %v805
        %v2563 = vunpack.c.l.b16 %v806
        %v2564 = vunpack.c.h.b16 %v806
        %v2565 = vunpack.c.l.b16 %v807
        %v2566 = vunpack.c.h.b16 %v807
        %v2567 = vunpack.c.l.b16 %v808
        %v2568 = vunpack.c.h.b16 %v808
        %v2569 = vunpack.c.l.b16 %v809
        %v2570 = vunpack.c.h.b16 %v809
        %v2571 = vunpack.c.l.b16 %v810
        %v2572 = vunpack.c.h.b16 %v810
        %v2573 = vunpack.c.l.b16 %v811
        %v2574 = vunpack.c.h.b16 %v811
        %v2575 = vunpack.c.l.b16 %v812
        %v2576 = vunpack.c.h.b16 %v812
        %v2577 = vunpack.c.l.b16 %v813
        %v2578 = vunpack.c.h.b16 %v813
        %v2579 = vunpack.c.l.b16 %v814
        %v2580 = vunpack.c.h.b16 %v814
        %v2581 = vunpack.c.l.b16 %v815
        %v2582 = vunpack.c.h.b16 %v815
        %v2583 = vunpack.c.l.b16 %v816
        %v2584 = vunpack.c.h.b16 %v816
        %v2585 = vunpack.c.l.b16 %v817
        %v2586 = vunpack.c.h.b16 %v817
        %v2587 = vunpack.c.l.b16 %v818
        %v2588 = vunpack.c.h.b16 %v818
        %v2589 = vunpack.c.l.b16 %v819
        %v2590 = vunpack.c.h.b16 %v819
        %v2591 = vunpack.c.l.b16 %v820
        %v2592 = vunpack.c.h.b16 %v820
        %v2593 = vunpack.c.l.b16 %v821
        %v2594 = vunpack.c.h.b16 %v821
        %v2595 = vunpack.c.l.b16 %v822
        %v2596 = vunpack.c.h.b16 %v822
        %v2597 = vunpack.c.l.b16 %v823
        %v2598 = vunpack.c.h.b16 %v823
        %v2599 = vunpack.c.l.b16 %v824
        %v2600 = vunpack.c.h.b16 %v824
        %v2601 = vunpack.c.l.b16 %v825
        %v2602 = vunpack.c.h.b16 %v825
        %v2603 = vunpack.c.l.b16 %v826
        %v2604 = vunpack.c.h.b16 %v826
        %v2605 = vunpack.c.l.b16 %v827
        %v2606 = vunpack.c.h.b16 %v827
        %v2607 = vunpack.c.l.b16 %v828
        %v2608 = vunpack.c.h.b16 %v828
        %v2609 = vunpack.c.l.b16 %v829
        %v2610 = vunpack.c.h.b16 %v829
        %v2611 = vunpack.c.l.b16 %v830
        %v2612 = vunpack.c.h.b16 %v830
        %v2613 = vunpack.c.l.b16 %v831
        %v2614 = vunpack.c.h.b16 %v831
        %v2615 = vunpack.c.l.b16 %v832
        %v2616 = vunpack.c.h.b16 %v832
        %v2617 = vunpack.c.l.b16 %v833
        %v2618 = vunpack.c.h.b16 %v833
        %v2619 = vunpack.c.l.b16 %v834
        %v2620 = vunpack.c.h.b16 %v834
        %v2621 = vunpack.c.l.b16 %v835
        %v2622 = vunpack.c.h.b16 %v835
        %v2623 = vunpack.c.l.b16 %v836
        %v2624 = vunpack.c.h.b16 %v836
        %v2625 = vunpack.c.l.b16 %v837
        %v2626 = vunpack.c.h.b16 %v837
        %v2627 = vunpack.c.l.b16 %v838
        %v2628 = vunpack.c.h.b16 %v838
        %v2629 = vunpack.c.l.b16 %v839
        %v2630 = vunpack.c.h.b16 %v839
        %v2631 = vunpack.c.l.b16 %v840
        %v2632 = vunpack.c.h.b16 %v840
        %v2633 = vunpack.c.l.b16 %v841
        %v2634 = vunpack.c.h.b16 %v841
        %v2635 = vunpack.c.l.b16 %v842
        %v2636 = vunpack.c.h.b16 %v842
        %v2637 = vunpack.c.l.b16 %v843
        %v2638 = vunpack.c.h.b16 %v843
        %v2639 = vunpack.c.l.b16 %v844
        %v2640 = vunpack.c.h.b16 %v844
        %v2641 = vunpack.c.l.b16 %v845
        %v2642 = vunpack.c.h.b16 %v845
        %v2643 = vunpack.c.l.b16 %v846
        %v2644 = vunpack.c.h.b16 %v846
        %v2645 = vunpack.c.l.b16 %v847
        %v2646 = vunpack.c.h.b16 %v847
        %v2647 = vunpack.c.l.b16 %v848
        %v2648 = vunpack.c.h.b16 %v848
        %v2649 = vunpack.c.l.b16 %v849
        %v2650 = vunpack.c.h.b16 %v849
        %v2651 = vunpack.c.l.b16 %v850
        %v2652 = vunpack.c.h.b16 %v850
        %v2653 = vunpack.c.l.b16 %v851
        %v2654 = vunpack.c.h.b16 %v851
        %v2655 = vunpack.c.l.b16 %v852
        %v2656 = vunpack.c.h.b16 %v852
        %v2657 = vunpack.c.l.b16 %v853
        %v2658 = vunpack.c.h.b16 %v853
        %v2659 = vunpack.c.l.b16 %v854
        %v2660 = vunpack.c.h.b16 %v854
        %v2661 = vunpack.c.l.b16 %v855
        %v2662 = vunpack.c.h.b16 %v855
        %v2663 = vunpack.c.l.b16 %v856
        %v2664 = vunpack.c.h.b16 %v856
        %v2665 = vunpack.c.l.b16 %v857
        %v2666 = vunpack.c.h.b16 %v857
        %v2667 = vunpack.c.l.b16 %v858
        %v2668 = vunpack.c.h.b16 %v858
        %v2669 = vunpack.c.l.b16 %v859
        %v2670 = vunpack.c.h.b16 %v859
        %v2671 = vunpack.c.l.b16 %v860
        %v2672 = vunpack.c.h.b16 %v860
        %v2673 = vunpack.c.l.b16 %v861
        %v2674 = vunpack.c.h.b16 %v861
        %v2675 = vunpack.c.l.b16 %v862
        %v2676 = vunpack.c.h.b16 %v862
        %v2677 = vunpack.c.l.b16 %v863
        %v2678 = vunpack.c.h.b16 %v863
        %v2679 = vunpack.c.l.b16 %v864
        %v2680 = vunpack.c.h.b16 %v864
        %v2681 = vunpack.c.l.b16 %v865
        %v2682 = vunpack.c.h.b16 %v865
        %v2683 = vunpack.c.l.b16 %v866
        %v2684 = vunpack.c.h.b16 %v866
        %v2685 = vunpack.c.l.b16 %v867
        %v2686 = vunpack.c.h.b16 %v867
        %v2687 = vunpack.c.l.b16 %v868
        %v2688 = vunpack.c.h.b16 %v868
        %v2689 = vunpack.c.l.b16 %v869
        %v2690 = vunpack.c.h.b16 %v869
        %v2691 = vunpack.c.l.b16 %v870
        %v2692 = vunpack.c.h.b16 %v870
        %v2693 = vunpack.c.l.b16 %v871
        %v2694 = vunpack.c.h.b16 %v871
        %v2695 = vunpack.c.l.b16 %v872
        %v2696 = vunpack.c.h.b16 %v872
        %v2697 = vunpack.c.l.b16 %v873
        %v2698 = vunpack.c.h.b16 %v873
        %v2699 = vunpack.c.l.b16 %v874
        %v2700 = vunpack.c.h.b16 %v874
        %v2701 = vunpack.c.l.b16 %v875
        %v2702 = vunpack.c.h.b16 %v875
        %v2703 = vunpack.c.l.b16 %v876
        %v2704 = vunpack.c.h.b16 %v876
        %v2705 = vunpack.c.l.b16 %v877
        %v2706 = vunpack.c.h.b16 %v877
        %v2707 = vunpack.c.l.b16 %v878
        %v2708 = vunpack.c.h.b16 %v878
        %v2709 = vunpack.c.l.b16 %v879
        %v2710 = vunpack.c.h.b16 %v879
        %v2711 = vunpack.c.l.b16 %v880
        %v2712 = vunpack.c.h.b16 %v880
        %v2713 = vunpack.c.l.b16 %v881
        %v2714 = vunpack.c.h.b16 %v881
        %v2715 = vunpack.c.l.b16 %v882
        %v2716 = vunpack.c.h.b16 %v882
        %v2717 = vunpack.c.l.b16 %v883
        %v2718 = vunpack.c.h.b16 %v883
        %v2719 = vunpack.c.l.b16 %v884
        %v2720 = vunpack.c.h.b16 %v884
        %v2721 = vunpack.c.l.b16 %v885
        %v2722 = vunpack.c.h.b16 %v885
        %v2723 = vunpack.c.l.b16 %v886
        %v2724 = vunpack.c.h.b16 %v886
        %v2725 = vunpack.c.l.b16 %v887
        %v2726 = vunpack.c.h.b16 %v887
        %v2727 = vunpack.c.l.b16 %v888
        %v2728 = vunpack.c.h.b16 %v888
        %v2729 = vunpack.c.l.b16 %v889
        %v2730 = vunpack.c.h.b16 %v889
        %v2731 = vunpack.c.l.b16 %v890
        %v2732 = vunpack.c.h.b16 %v890
        %v2733 = vunpack.c.l.b16 %v891
        %v2734 = vunpack.c.h.b16 %v891
        %v2735 = vunpack.c.l.b16 %v892
        %v2736 = vunpack.c.h.b16 %v892
        %v2737 = vunpack.c.l.b16 %v893
        %v2738 = vunpack.c.h.b16 %v893
        %v2739 = vunpack.c.l.b16 %v894
        %v2740 = vunpack.c.h.b16 %v894
        %v2741 = vunpack.c.l.b16 %v895
        %v2742 = vunpack.c.h.b16 %v895
        %v2743 = vunpack.c.l.b16 %v896
        %v2744 = vunpack.c.h.b16 %v896
        %v2745 = vunpack.c.l.b16 %v897
        %v2746 = vunpack.c.h.b16 %v897
        %v2747 = vunpack.c.l.b16 %v898
        %v2748 = vunpack.c.h.b16 %v898
        %v2749 = vunpack.c.l.b16 %v899
        %v2750 = vunpack.c.h.b16 %v899
        %v2751 = vunpack.c.l.b16 %v900
        %v2752 = vunpack.c.h.b16 %v900
        %v2753 = vunpack.c.l.b16 %v901
        %v2754 = vunpack.c.h.b16 %v901
        %v2755 = vunpack.c.l.b16 %v902
        %v2756 = vunpack.c.h.b16 %v902
        %v2757 = vunpack.c.l.b16 %v903
        %v2758 = vunpack.c.h.b16 %v903
        %v2759 = vunpack.c.l.b16 %v904
        %v2760 = vunpack.c.h.b16 %v904
        %v2761 = vunpack.c.l.b16 %v905
        %v2762 = vunpack.c.h.b16 %v905
        %v2763 = vunpack.c.l.b16 %v906
        %v2764 = vunpack.c.h.b16 %v906
        %v2765 = vunpack.c.l.b16 %v907
        %v2766 = vunpack.c.h.b16 %v907
        %v2767 = vunpack.c.l.b16 %v908
        %v2768 = vunpack.c.h.b16 %v908
        %v2769 = vunpack.c.l.b16 %v909
        %v2770 = vunpack.c.h.b16 %v909
        %v2771 = vunpack.c.l.b16 %v910
        %v2772 = vunpack.c.h.b16 %v910
        %v2773 = vunpack.c.l.b16 %v911
        %v2774 = vunpack.c.h.b16 %v911
        %v2775 = vunpack.c.l.b16 %v912
        %v2776 = vunpack.c.h.b16 %v912
        %v2777 = vunpack.c.l.b16 %v913
        %v2778 = vunpack.c.h.b16 %v913
        %v2779 = vunpack.c.l.b16 %v914
        %v2780 = vunpack.c.h.b16 %v914
        %v2781 = vunpack.c.l.b16 %v915
        %v2782 = vunpack.c.h.b16 %v915
        %v2783 = vunpack.c.l.b16 %v916
        %v2784 = vunpack.c.h.b16 %v916
        %v2785 = vunpack.c.l.b16 %v917
        %v2786 = vunpack.c.h.b16 %v917
        %v2787 = vunpack.c.l.b16 %v918
        %v2788 = vunpack.c.h.b16 %v918
        %v2789 = vunpack.c.l.b16 %v919
        %v2790 = vunpack.c.h.b16 %v919
        %v2791 = vunpack.c.l.b16 %v920
        %v2792 = vunpack.c.h.b16 %v920
        %v2793 = vunpack.c.l.b16 %v921
        %v2794 = vunpack.c.h.b16 %v921
        %v2795 = vunpack.c.l.b16 %v922
        %v2796 = vunpack.c.h.b16 %v922
        %v2797 = vunpack.c.l.b16 %v923
        %v2798 = vunpack.c.h.b16 %v923
        %v2799 = vunpack.c.l.b16 %v924
        %v2800 = vunpack.c.h.b16 %v924
        %v2801 = vunpack.c.l.b16 %v925
        %v2802 = vunpack.c.h.b16 %v925
        %v2803 = vunpack.c.l.b16 %v926
        %v2804 = vunpack.c.h.b16 %v926
        %v2805 = vunpack.c.l.b16 %v927
        %v2806 = vunpack.c.h.b16 %v927
        %v2807 = vunpack.c.l.b16 %v928
        %v2808 = vunpack.c.h.b16 %v928
        %v2809 = vunpack.c.l.b16 %v929
        %v2810 = vunpack.c.h.b16 %v929
        %v2811 = vunpack.c.l.b16 %v930
        %v2812 = vunpack.c.h.b16 %v930
        %v2813 = vunpack.c.l.b16 %v931
        %v2814 = vunpack.c.h.b16 %v931
        %v2815 = vunpack.c.l.b16 %v932
        %v2816 = vunpack.c.h.b16 %v932
        %v2817 = vunpack.c.l.b16 %v933
        %v2818 = vunpack.c.h.b16 %v933
        %v2819 = vunpack.c.l.b16 %v934
        %v2820 = vunpack.c.h.b16 %v934
        %v2821 = vunpack.c.l.b16 %v935
        %v2822 = vunpack.c.h.b16 %v935
        %v2823 = vunpack.c.l.b16 %v936
        %v2824 = vunpack.c.h.b16 %v936
        %v2825 = vunpack.c.l.b16 %v937
        %v2826 = vunpack.c.h.b16 %v937
        %v2827 = vunpack.c.l.b16 %v938
        %v2828 = vunpack.c.h.b16 %v938
        %v2829 = vunpack.c.l.b16 %v939
        %v2830 = vunpack.c.h.b16 %v939
        %v2831 = vunpack.c.l.b16 %v940
        %v2832 = vunpack.c.h.b16 %v940
        %v2833 = vunpack.c.l.b16 %v941
        %v2834 = vunpack.c.h.b16 %v941
        %v2835 = vunpack.c.l.b16 %v942
        %v2836 = vunpack.c.h.b16 %v942
        %v2837 = vunpack.c.l.b16 %v943
        %v2838 = vunpack.c.h.b16 %v943
        %v2839 = vunpack.c.l.b16 %v944
        %v2840 = vunpack.c.h.b16 %v944
        %v2841 = vunpack.c.l.b16 %v945
        %v2842 = vunpack.c.h.b16 %v945
        %v2843 = vunpack.c.l.b16 %v946
        %v2844 = vunpack.c.h.b16 %v946
        %v2845 = vunpack.c.l.b16 %v947
        %v2846 = vunpack.c.h.b16 %v947
        %v2847 = vunpack.c.l.b16 %v948
        %v2848 = vunpack.c.h.b16 %v948
        %v2849 = vunpack.c.l.b16 %v949
        %v2850 = vunpack.c.h.b16 %v949
        %v2851 = vunpack.c.l.b16 %v950
        %v2852 = vunpack.c.h.b16 %v950
        %v2853 = vunpack.c.l.b16 %v951
        %v2854 = vunpack.c.h.b16 %v951
        %v2855 = vunpack.c.l.b16 %v952
        %v2856 = vunpack.c.h.b16 %v952
        %v2857 = vunpack.c.l.b16 %v953
        %v2858 = vunpack.c.h.b16 %v953
        %v2859 = vunpack.c.l.b16 %v954
        %v2860 = vunpack.c.h.b16 %v954
        %v2861 = vunpack.c.l.b16 %v955
        %v2862 = vunpack.c.h.b16 %v955
        %v2863 = vunpack.c.l.b16 %v956
        %v2864 = vunpack.c.h.b16 %v956
        %v2865 = vunpack.c.l.b16 %v957
        %v2866 = vunpack.c.h.b16 %v957
        %v2867 = vunpack.c.l.b16 %v958
        %v2868 = vunpack.c.h.b16 %v958
        %v2869 = vunpack.c.l.b16 %v959
        %v2870 = vunpack.c.h.b16 %v959
        %v2871 = vunpack.c.l.b16 %v960
        %v2872 = vunpack.c.h.b16 %v960
        %v2873 = vunpack.c.l.b16 %v961
        %v2874 = vunpack.c.h.b16 %v961
        %v2875 = vunpack.c.l.b16 %v962
        %v2876 = vunpack.c.h.b16 %v962
        %v2877 = vunpack.c.l.b16 %v963
        %v2878 = vunpack.c.h.b16 %v963
        %v2879 = vunpack.c.l.b16 %v964
        %v2880 = vunpack.c.h.b16 %v964
        %v2881 = vunpack.c.l.b16 %v965
        %v2882 = vunpack.c.h.b16 %v965
        %v2883 = vunpack.c.l.b16 %v966
        %v2884 = vunpack.c.h.b16 %v966
        %v2885 = vunpack.c.l.b16 %v967
        %v2886 = vunpack.c.h.b16 %v967
        %v2887 = vunpack.c.l.b16 %v968
        %v2888 = vunpack.c.h.b16 %v968
        %v2889 = vunpack.c.l.b16 %v969
        %v2890 = vunpack.c.h.b16 %v969
        %v2891 = vunpack.c.l.b16 %v970
        %v2892 = vunpack.c.h.b16 %v970
        %v2893 = vunpack.c.l.b16 %v971
        %v2894 = vunpack.c.h.b16 %v971
        %v2895 = vunpack.c.l.b16 %v972
        %v2896 = vunpack.c.h.b16 %v972
        %v2897 = vunpack.c.l.b16 %v973
        %v2898 = vunpack.c.h.b16 %v973
        %v2899 = vunpack.c.l.b16 %v974
        %v2900 = vunpack.c.h.b16 %v974
        %v2901 = vunpack.c.l.b16 %v975
        %v2902 = vunpack.c.h.b16 %v975
        %v2903 = vunpack.c.l.b16 %v976
        %v2904 = vunpack.c.h.b16 %v976
        %v2905 = vunpack.c.l.b16 %v977
        %v2906 = vunpack.c.h.b16 %v977
        %v2907 = vunpack.c.l.b16 %v978
        %v2908 = vunpack.c.h.b16 %v978
        %v2909 = vunpack.c.l.b16 %v979
        %v2910 = vunpack.c.h.b16 %v979
        %v2911 = vunpack.c.l.b16 %v980
        %v2912 = vunpack.c.h.b16 %v980
        %v2913 = vunpack.c.l.b16 %v981
        %v2914 = vunpack.c.h.b16 %v981
        %v2915 = vunpack.c.l.b16 %v982
        %v2916 = vunpack.c.h.b16 %v982
        %v2917 = vunpack.c.l.b16 %v983
        %v2918 = vunpack.c.h.b16 %v983
        %v2919 = vunpack.c.l.b16 %v984
        %v2920 = vunpack.c.h.b16 %v984
        %v2921 = vunpack.c.l.b16 %v985
        %v2922 = vunpack.c.h.b16 %v985
        %v2923 = vunpack.c.l.b16 %v986
        %v2924 = vunpack.c.h.b16 %v986
        %v2925 = vunpack.c.l.b16 %v987
        %v2926 = vunpack.c.h.b16 %v987
        %v2927 = vunpack.c.l.b16 %v988
        %v2928 = vunpack.c.h.b16 %v988
        %v2929 = vunpack.c.l.b16 %v989
        %v2930 = vunpack.c.h.b16 %v989
        %v2931 = vunpack.c.l.b16 %v990
        %v2932 = vunpack.c.h.b16 %v990
        %v2933 = vunpack.c.l.b16 %v991
        %v2934 = vunpack.c.h.b16 %v991
        %v2935 = vunpack.c.l.b16 %v992
        %v2936 = vunpack.c.h.b16 %v992
        %v2937 = vunpack.c.l.b16 %v993
        %v2938 = vunpack.c.h.b16 %v993
        %v2939 = vunpack.c.l.b16 %v994
        %v2940 = vunpack.c.h.b16 %v994
        %v2941 = vunpack.c.l.b16 %v995
        %v2942 = vunpack.c.h.b16 %v995
        %v2943 = vunpack.c.l.b16 %v996
        %v2944 = vunpack.c.h.b16 %v996
        %v2945 = vunpack.c.l.b16 %v997
        %v2946 = vunpack.c.h.b16 %v997
        %v2947 = vunpack.c.l.b16 %v998
        %v2948 = vunpack.c.h.b16 %v998
        %v2949 = vunpack.c.l.b16 %v999
        %v2950 = vunpack.c.h.b16 %v999
        %v2951 = vunpack.c.l.b16 %v1000
        %v2952 = vunpack.c.h.b16 %v1000
        %v2953 = vunpack.c.l.b16 %v1001
        %v2954 = vunpack.c.h.b16 %v1001
        %v2955 = vunpack.c.l.b16 %v1002
        %v2956 = vunpack.c.h.b16 %v1002
        %v2957 = vunpack.c.l.b16 %v1003
        %v2958 = vunpack.c.h.b16 %v1003
        %v2959 = vunpack.c.l.b16 %v1004
        %v2960 = vunpack.c.h.b16 %v1004
        %v2961 = vunpack.c.l.b16 %v1005
        %v2962 = vunpack.c.h.b16 %v1005
        %v2963 = vunpack.c.l.b16 %v1006
        %v2964 = vunpack.c.h.b16 %v1006
        %v2965 = vunpack.c.l.b16 %v1007
        %v2966 = vunpack.c.h.b16 %v1007
        %v2967 = vunpack.c.l.b16 %v1008
        %v2968 = vunpack.c.h.b16 %v1008
        %v2969 = vunpack.c.l.b16 %v1009
        %v2970 = vunpack.c.h.b16 %v1009
        %v2971 = vunpack.c.l.b16 %v1010
        %v2972 = vunpack.c.h.b16 %v1010
        %v2973 = vunpack.c.l.b16 %v1011
        %v2974 = vunpack.c.h.b16 %v1011
        %v2975 = vunpack.c.l.b16 %v1012
        %v2976 = vunpack.c.h.b16 %v1012
        %v2977 = vunpack.c.l.b16 %v1013
        %v2978 = vunpack.c.h.b16 %v1013
        %v2979 = vunpack.c.l.b16 %v1014
        %v2980 = vunpack.c.h.b16 %v1014
        %v2981 = vunpack.c.l.b16 %v1015
        %v2982 = vunpack.c.h.b16 %v1015
        %v2983 = vunpack.c.l.b16 %v1016
        %v2984 = vunpack.c.h.b16 %v1016
        %v2985 = vunpack.c.l.b16 %v1017
        %v2986 = vunpack.c.h.b16 %v1017
        %v2987 = vunpack.c.l.b16 %v1018
        %v2988 = vunpack.c.h.b16 %v1018
        %v2989 = vunpack.c.l.b16 %v1019
        %v2990 = vunpack.c.h.b16 %v1019
        %v2991 = vunpack.c.l.b16 %v1020
        %v2992 = vunpack.c.h.b16 %v1020
        %v2993 = vunpack.c.l.b16 %v1021
        %v2994 = vunpack.c.h.b16 %v1021
        %v2995 = vunpack.c.l.b16 %v1022
        %v2996 = vunpack.c.h.b16 %v1022
        %v2997 = vunpack.c.l.b16 %v1023
        %v2998 = vunpack.c.h.b16 %v1023
        %v2999 = vunpack.c.l.b16 %v1024
        %v3000 = vunpack.c.h.b16 %v1024
        %v3001 = vunpack.c.l.b16 %v1025
        %v3002 = vunpack.c.h.b16 %v1025
        %v3003 = vunpack.c.l.b16 %v1026
        %v3004 = vunpack.c.h.b16 %v1026
        %v3005 = vunpack.c.l.b16 %v1027
        %v3006 = vunpack.c.h.b16 %v1027
        %v3007 = vunpack.c.l.b16 %v1028
        %v3008 = vunpack.c.h.b16 %v1028
        %v3009 = vunpack.c.l.b16 %v1029
        %v3010 = vunpack.c.h.b16 %v1029
        %v3011 = vunpack.c.l.b16 %v1030
        %v3012 = vunpack.c.h.b16 %v1030
        %v3013 = vunpack.c.l.b16 %v1031
        %v3014 = vunpack.c.h.b16 %v1031
        %v3015 = vunpack.c.l.b16 %v1032
        %v3016 = vunpack.c.h.b16 %v1032
        %v3017 = vunpack.c.l.b16 %v1033
        %v3018 = vunpack.c.h.b16 %v1033
        %v3019 = vunpack.c.l.b16 %v1034
        %v3020 = vunpack.c.h.b16 %v1034
        %v3021 = vunpack.c.l.b16 %v1035
        %v3022 = vunpack.c.h.b16 %v1035
        %v3023 = vunpack.c.l.b16 %v1036
        %v3024 = vunpack.c.h.b16 %v1036
        %v3025 = vunpack.c.l.b16 %v1037
        %v3026 = vunpack.c.h.b16 %v1037
        %v3027 = vunpack.c.l.b16 %v1038
        %v3028 = vunpack.c.h.b16 %v1038
        %v3029 = vunpack.c.l.b16 %v1039
        %v3030 = vunpack.c.h.b16 %v1039
        %v3031 = vunpack.c.l.b16 %v1040
        %v3032 = vunpack.c.h.b16 %v1040
        %v3033 = vunpack.c.l.b16 %v1041
        %v3034 = vunpack.c.h.b16 %v1041
        %v3035 = vunpack.c.l.b16 %v1042
        %v3036 = vunpack.c.h.b16 %v1042
        %v3037 = vunpack.c.l.b16 %v1043
        %v3038 = vunpack.c.h.b16 %v1043
        %v3039 = vunpack.c.l.b16 %v1044
        %v3040 = vunpack.c.h.b16 %v1044
        %v3041 = vunpack.c.l.b16 %v1045
        %v3042 = vunpack.c.h.b16 %v1045
        %v3043 = vunpack.c.l.b16 %v1046
        %v3044 = vunpack.c.h.b16 %v1046
        %v3045 = vunpack.c.l.b16 %v1047
        %v3046 = vunpack.c.h.b16 %v1047
        %v3047 = vunpack.c.l.b16 %v1048
        %v3048 = vunpack.c.h.b16 %v1048
        %v3049 = vunpack.c.l.b16 %v1049
        %v3050 = vunpack.c.h.b16 %v1049
        %v3051 = vunpack.c.l.b16 %v1050
        %v3052 = vunpack.c.h.b16 %v1050
        %v3053 = vunpack.c.l.b16 %v1051
        %v3054 = vunpack.c.h.b16 %v1051
        %v3055 = vunpack.c.l.b16 %v1052
        %v3056 = vunpack.c.h.b16 %v1052
        %v3057 = vunpack.c.l.b16 %v1053
        %v3058 = vunpack.c.h.b16 %v1053
        %v3059 = vunpack.c.l.b16 %v1054
        %v3060 = vunpack.c.h.b16 %v1054
        %v3061 = vunpack.c.l.b16 %v1055
        %v3062 = vunpack.c.h.b16 %v1055
        %v3063 = vunpack.c.l.b16 %v1056
        %v3064 = vunpack.c.h.b16 %v1056
        %v3065 = vunpack.c.l.b16 %v1057
        %v3066 = vunpack.c.h.b16 %v1057
        %v3067 = vunpack.c.l.b16 %v1058
        %v3068 = vunpack.c.h.b16 %v1058
        %v3069 = vunpack.c.l.b16 %v1059
        %v3070 = vunpack.c.h.b16 %v1059
        %v3071 = vunpack.c.l.b16 %v1060
        %v3072 = vunpack.c.h.b16 %v1060
        %v3073 = vunpack.c.l.b16 %v1061
        %v3074 = vunpack.c.h.b16 %v1061
        %v3075 = vunpack.c.l.b16 %v1062
        %v3076 = vunpack.c.h.b16 %v1062
        %v3077 = vunpack.c.l.b16 %v1063
        %v3078 = vunpack.c.h.b16 %v1063
        %v3079 = vunpack.c.l.b16 %v1064
        %v3080 = vunpack.c.h.b16 %v1064
        %v3081 = vunpack.c.l.b16 %v1065
        %v3082 = vunpack.c.h.b16 %v1065
        %v3083 = vunpack.c.l.b16 %v1066
        %v3084 = vunpack.c.h.b16 %v1066
        %v3085 = vunpack.c.l.b16 %v1067
        %v3086 = vunpack.c.h.b16 %v1067
        %v3087 = vunpack.c.l.b16 %v1068
        %v3088 = vunpack.c.h.b16 %v1068
        %v3089 = vunpack.c.l.b16 %v1069
        %v3090 = vunpack.c.h.b16 %v1069
        %v3091 = vunpack.c.l.b16 %v1070
        %v3092 = vunpack.c.h.b16 %v1070
        %v3093 = vunpack.c.l.b16 %v1071
        %v3094 = vunpack.c.h.b16 %v1071
        %v3095 = vunpack.c.l.b16 %v1072
        %v3096 = vunpack.c.h.b16 %v1072
        %v3097 = vunpack.c.l.b16 %v1073
        %v3098 = vunpack.c.h.b16 %v1073
        %v3099 = vunpack.c.l.b16 %v1074
        %v3100 = vunpack.c.h.b16 %v1074
        %v3101 = vunpack.c.l.b16 %v1075
        %v3102 = vunpack.c.h.b16 %v1075
        %v3103 = vunpack.c.l.b16 %v1076
        %v3104 = vunpack.c.h.b16 %v1076
        %v3105 = vunpack.c.l.b16 %v1077
        %v3106 = vunpack.c.h.b16 %v1077
        %v3107 = vunpack.c.l.b16 %v1078
        %v3108 = vunpack.c.h.b16 %v1078
        %v3109 = vunpack.c.l.b16 %v1079
        %v3110 = vunpack.c.h.b16 %v1079
        %v3111 = vunpack.c.l.b16 %v1080
        %v3112 = vunpack.c.h.b16 %v1080
        %v3113 = vunpack.c.l.b16 %v1081
        %v3114 = vunpack.c.h.b16 %v1081
        %v3115 = vunpack.c.l.b16 %v1082
        %v3116 = vunpack.c.h.b16 %v1082
        %v3117 = vunpack.c.l.b16 %v1083
        %v3118 = vunpack.c.h.b16 %v1083
        %v3119 = vunpack.c.l.b16 %v1084
        %v3120 = vunpack.c.h.b16 %v1084
        %v3121 = vunpack.c.l.b16 %v1085
        %v3122 = vunpack.c.h.b16 %v1085
        %v3123 = vunpack.c.l.b16 %v1086
        %v3124 = vunpack.c.h.b16 %v1086
        %v3125 = vunpack.c.l.b16 %v1087
        %v3126 = vunpack.c.h.b16 %v1087
        %v3127 = vunpack.c.l.b16 %v1088
        %v3128 = vunpack.c.h.b16 %v1088
        %v3129 = vunpack.c.l.b16 %v1089
        %v3130 = vunpack.c.h.b16 %v1089
        %v3131 = vunpack.c.l.b16 %v1090
        %v3132 = vunpack.c.h.b16 %v1090
        %v3133 = vunpack.c.l.b16 %v1091
        %v3134 = vunpack.c.h.b16 %v1091
        %v3135 = vunpack.c.l.b16 %v1092
        %v3136 = vunpack.c.h.b16 %v1092
        %v3137 = vunpack.c.l.b16 %v1093
        %v3138 = vunpack.c.h.b16 %v1093
        %v3139 = vunpack.c.l.b16 %v1094
        %v3140 = vunpack.c.h.b16 %v1094
        %v3141 = vunpack.c.l.b16 %v1095
        %v3142 = vunpack.c.h.b16 %v1095
        %v3143 = vunpack.c.l.b16 %v1096
        %v3144 = vunpack.c.h.b16 %v1096
        %v3145 = vunpack.c.l.b16 %v1097
        %v3146 = vunpack.c.h.b16 %v1097
        %v3147 = vunpack.c.l.b16 %v1098
        %v3148 = vunpack.c.h.b16 %v1098
        %v3149 = vunpack.c.l.b16 %v1099
        %v3150 = vunpack.c.h.b16 %v1099
        %v3151 = vunpack.c.l.b16 %v1100
        %v3152 = vunpack.c.h.b16 %v1100
        %v3153 = vunpack.c.l.b16 %v1101
        %v3154 = vunpack.c.h.b16 %v1101
        %v3155 = vunpack.c.l.b16 %v1102
        %v3156 = vunpack.c.h.b16 %v1102
        %v3157 = vunpack.c.l.b16 %v1103
        %v3158 = vunpack.c.h.b16 %v1103
        %v3159 = vunpack.c.l.b16 %v1104
        %v3160 = vunpack.c.h.b16 %v1104
        %v3161 = vunpack.c.l.b16 %v1105
        %v3162 = vunpack.c.h.b16 %v1105
        %v3163 = vunpack.c.l.b16 %v1106
        %v3164 = vunpack.c.h.b16 %v1106
        %v3165 = vunpack.c.l.b16 %v1107
        %v3166 = vunpack.c.h.b16 %v1107
        %v3167 = vunpack.c.l.b16 %v1108
        %v3168 = vunpack.c.h.b16 %v1108
        %v3169 = vunpack.c.l.b16 %v1109
        %v3170 = vunpack.c.h.b16 %v1109
        %v3171 = vunpack.c.l.b16 %v1110
        %v3172 = vunpack.c.h.b16 %v1110
        %v3173 = vunpack.c.l.b16 %v1111
        %v3174 = vunpack.c.h.b16 %v1111
        %v3175 = vunpack.c.l.b16 %v1112
        %v3176 = vunpack.c.h.b16 %v1112
        %v3177 = vunpack.c.l.b16 %v1113
        %v3178 = vunpack.c.h.b16 %v1113
        %v3179 = vunpack.c.l.b16 %v1114
        %v3180 = vunpack.c.h.b16 %v1114
        %v3181 = vunpack.c.l.b16 %v1115
        %v3182 = vunpack.c.h.b16 %v1115
        %v3183 = vunpack.c.l.b16 %v1116
        %v3184 = vunpack.c.h.b16 %v1116
        %v3185 = vunpack.c.l.b16 %v1117
        %v3186 = vunpack.c.h.b16 %v1117
        %v3187 = vunpack.c.l.b16 %v1118
        %v3188 = vunpack.c.h.b16 %v1118
        %v3189 = vunpack.c.l.b16 %v1119
        %v3190 = vunpack.c.h.b16 %v1119
        %v3191 = vunpack.c.l.b16 %v1120
        %v3192 = vunpack.c.h.b16 %v1120
        %v3193 = vunpack.c.l.b16 %v1121
        %v3194 = vunpack.c.h.b16 %v1121
        %v3195 = vunpack.c.l.b16 %v1122
        %v3196 = vunpack.c.h.b16 %v1122
        %v3197 = vunpack.c.l.b16 %v1123
        %v3198 = vunpack.c.h.b16 %v1123
        %v3199 = vunpack.c.l.b16 %v1124
        %v3200 = vunpack.c.h.b16 %v1124
        %v3201 = vunpack.c.l.b16 %v1125
        %v3202 = vunpack.c.h.b16 %v1125
        %v3203 = vunpack.c.l.b16 %v1126
        %v3204 = vunpack.c.h.b16 %v1126
        %v3205 = vunpack.c.l.b16 %v1127
        %v3206 = vunpack.c.h.b16 %v1127
        %v3207 = vunpack.c.l.b16 %v1128
        %v3208 = vunpack.c.h.b16 %v1128
        %v3209 = vunpack.c.l.b16 %v1129
        %v3210 = vunpack.c.h.b16 %v1129
        %v3211 = vunpack.c.l.b16 %v1130
        %v3212 = vunpack.c.h.b16 %v1130
        %v3213 = vunpack.c.l.b16 %v1131
        %v3214 = vunpack.c.h.b16 %v1131
        %v3215 = vunpack.c.l.b16 %v1132
        %v3216 = vunpack.c.h.b16 %v1132
        %v3217 = vunpack.c.l.b16 %v1133
        %v3218 = vunpack.c.h.b16 %v1133
        %v3219 = vunpack.c.l.b16 %v1134
        %v3220 = vunpack.c.h.b16 %v1134
        %v3221 = vunpack.c.l.b16 %v1135
        %v3222 = vunpack.c.h.b16 %v1135
        %v3223 = vunpack.c.l.b16 %v1136
        %v3224 = vunpack.c.h.b16 %v1136
        %v3225 = vunpack.c.l.b16 %v1137
        %v3226 = vunpack.c.h.b16 %v1137
        %v3227 = vunpack.c.l.b16 %v1138
        %v3228 = vunpack.c.h.b16 %v1138
        %v3229 = vunpack.c.l.b16 %v1139
        %v3230 = vunpack.c.h.b16 %v1139
        %v3231 = vunpack.c.l.b16 %v1140
        %v3232 = vunpack.c.h.b16 %v1140
        %v3233 = vunpack.c.l.b16 %v1141
        %v3234 = vunpack.c.h.b16 %v1141
        %v3235 = vunpack.c.l.b16 %v1142
        %v3236 = vunpack.c.h.b16 %v1142
        %v3237 = vunpack.c.l.b16 %v1143
        %v3238 = vunpack.c.h.b16 %v1143
        %v3239 = vunpack.c.l.b16 %v1144
        %v3240 = vunpack.c.h.b16 %v1144
        %v3241 = vunpack.c.l.b16 %v1145
        %v3242 = vunpack.c.h.b16 %v1145
        %v3243 = vunpack.c.l.b16 %v1146
        %v3244 = vunpack.c.h.b16 %v1146
        %v3245 = vunpack.c.l.b16 %v1147
        %v3246 = vunpack.c.h.b16 %v1147
        %v3247 = vunpack.c.l.b16 %v1148
        %v3248 = vunpack.c.h.b16 %v1148
        %v3249 = vunpack.c.l.b16 %v1149
        %v3250 = vunpack.c.h.b16 %v1149
        %v3251 = vunpack.c.l.b16 %v1150
        %v3252 = vunpack.c.h.b16 %v1150
        %v3253 = vunpack.c.l.b16 %v1151
        %v3254 = vunpack.c.h.b16 %v1151
        %v3255 = vunpack.c.l.b16 %v1152
        %v3256 = vunpack.c.h.b16 %v1152
        %v3257 = vunpack.c.l.b16 %v1153
        %v3258 = vunpack.c.h.b16 %v1153
        %v3259 = vunpack.c.l.b16 %v1154
        %v3260 = vunpack.c.h.b16 %v1154
        %v3261 = vunpack.c.l.b16 %v1155
        %v3262 = vunpack.c.h.b16 %v1155
        %v3263 = vunpack.c.l.b16 %v1156
        %v3264 = vunpack.c.h.b16 %v1156
        %v3265 = vunpack.c.l.b16 %v1157
        %v3266 = vunpack.c.h.b16 %v1157
        %v3267 = vunpack.c.l.b16 %v1158
        %v3268 = vunpack.c.h.b16 %v1158
        %v3269 = vunpack.c.l.b16 %v1159
        %v3270 = vunpack.c.h.b16 %v1159
        %v3271 = vunpack.c.l.b16 %v1160
        %v3272 = vunpack.c.h.b16 %v1160
        %v3273 = vunpack.c.l.b16 %v1161
        %v3274 = vunpack.c.h.b16 %v1161
        %v3275 = vunpack.c.l.b16 %v1162
        %v3276 = vunpack.c.h.b16 %v1162
        %v3277 = vunpack.c.l.b16 %v1163
        %v3278 = vunpack.c.h.b16 %v1163
        %v3279 = vunpack.c.l.b16 %v1164
        %v3280 = vunpack.c.h.b16 %v1164
        %v3281 = vunpack.c.l.b16 %v1165
        %v3282 = vunpack.c.h.b16 %v1165
        %v3283 = vunpack.c.l.b16 %v1166
        %v3284 = vunpack.c.h.b16 %v1166
        %v3285 = vunpack.c.l.b16 %v1167
        %v3286 = vunpack.c.h.b16 %v1167
        %v3287 = vunpack.c.l.b16 %v1168
        %v3288 = vunpack.c.h.b16 %v1168
        %v3289 = vunpack.c.l.b16 %v1169
        %v3290 = vunpack.c.h.b16 %v1169
        %v3291 = vunpack.c.l.b16 %v1170
        %v3292 = vunpack.c.h.b16 %v1170
        %v3293 = vunpack.c.l.b16 %v1171
        %v3294 = vunpack.c.h.b16 %v1171
        %v3295 = vunpack.c.l.b16 %v1172
        %v3296 = vunpack.c.h.b16 %v1172
        %v3297 = vunpack.c.l.b16 %v1173
        %v3298 = vunpack.c.h.b16 %v1173
        %v3299 = vunpack.c.l.b16 %v1174
        %v3300 = vunpack.c.h.b16 %v1174
        %v3301 = vunpack.c.l.b16 %v1175
        %v3302 = vunpack.c.h.b16 %v1175
        %v3303 = vunpack.c.l.b16 %v1176
        %v3304 = vunpack.c.h.b16 %v1176
        %v3305 = vunpack.c.l.b16 %v1177
        %v3306 = vunpack.c.h.b16 %v1177
        %v3307 = vunpack.c.l.b16 %v1178
        %v3308 = vunpack.c.h.b16 %v1178
        %v3309 = vunpack.c.l.b16 %v1179
        %v3310 = vunpack.c.h.b16 %v1179
        %v3311 = vunpack.c.l.b16 %v1180
        %v3312 = vunpack.c.h.b16 %v1180
        %v3313 = vunpack.c.l.b16 %v1181
        %v3314 = vunpack.c.h.b16 %v1181
        %v3315 = vunpack.c.l.b16 %v1182
        %v3316 = vunpack.c.h.b16 %v1182
        %v3317 = vunpack.c.l.b16 %v1183
        %v3318 = vunpack.c.h.b16 %v1183
        %v3319 = vunpack.c.l.b16 %v1184
        %v3320 = vunpack.c.h.b16 %v1184
        %v3321 = vunpack.c.l.b16 %v1185
        %v3322 = vunpack.c.h.b16 %v1185
        %v3323 = vunpack.c.l.b16 %v1186
        %v3324 = vunpack.c.h.b16 %v1186
        %v3325 = vunpack.c.l.b16 %v1187
        %v3326 = vunpack.c.h.b16 %v1187
        %v3327 = vunpack.c.l.b16 %v1188
        %v3328 = vunpack.c.h.b16 %v1188
        %v3329 = vunpack.c.l.b16 %v1189
        %v3330 = vunpack.c.h.b16 %v1189
        %v3331 = vunpack.c.l.b16 %v1190
        %v3332 = vunpack.c.h.b16 %v1190
        %v3333 = vunpack.c.l.b16 %v1191
        %v3334 = vunpack.c.h.b16 %v1191
        %v3335 = vunpack.c.l.b16 %v1192
        %v3336 = vunpack.c.h.b16 %v1192
        %v3337 = vunpack.c.l.b16 %v1193
        %v3338 = vunpack.c.h.b16 %v1193
        %v3339 = vunpack.c.l.b16 %v1194
        %v3340 = vunpack.c.h.b16 %v1194
        %v3341 = vunpack.c.l.b16 %v1195
        %v3342 = vunpack.c.h.b16 %v1195
        %v3343 = vunpack.c.l.b16 %v1196
        %v3344 = vunpack.c.h.b16 %v1196
        %v3345 = vunpack.c.l.b16 %v1197
        %v3346 = vunpack.c.h.b16 %v1197
        %v3347 = vunpack.c.l.b16 %v1198
        %v3348 = vunpack.c.h.b16 %v1198
        %v3349 = vunpack.c.l.b16 %v1199
        %v3350 = vunpack.c.h.b16 %v1199
        %v3351 = vunpack.c.l.b16 %v1200
        %v3352 = vunpack.c.h.b16 %v1200
        %v3353 = vunpack.c.l.b16 %v1201
        %v3354 = vunpack.c.h.b16 %v1201
        %v3355 = vunpack.c.l.b16 %v1202
        %v3356 = vunpack.c.h.b16 %v1202
        %v3357 = vunpack.c.l.b16 %v1203
        %v3358 = vunpack.c.h.b16 %v1203
        %v3359 = vunpack.c.l.b16 %v1204
        %v3360 = vunpack.c.h.b16 %v1204
        %v3361 = vunpack.c.l.b16 %v1205
        %v3362 = vunpack.c.h.b16 %v1205
        %v3363 = vunpack.c.l.b16 %v1206
        %v3364 = vunpack.c.h.b16 %v1206
        %v3365 = vunpack.c.l.b16 %v1207
        %v3366 = vunpack.c.h.b16 %v1207
        %v3367 = vunpack.c.l.b16 %v1208
        %v3368 = vunpack.c.h.b16 %v1208
        %v3369 = vunpack.c.l.b16 %v1209
        %v3370 = vunpack.c.h.b16 %v1209
        %v3371 = vunpack.c.l.b16 %v1210
        %v3372 = vunpack.c.h.b16 %v1210
        %v3373 = vunpack.c.l.b16 %v1211
        %v3374 = vunpack.c.h.b16 %v1211
        %v3375 = vunpack.c.l.b16 %v1212
        %v3376 = vunpack.c.h.b16 %v1212
        %v3377 = vunpack.c.l.b16 %v1213
        %v3378 = vunpack.c.h.b16 %v1213
        %v3379 = vunpack.c.l.b16 %v1214
        %v3380 = vunpack.c.h.b16 %v1214
        %v3381 = vunpack.c.l.b16 %v1215
        %v3382 = vunpack.c.h.b16 %v1215
        %v3383 = vunpack.c.l.b16 %v1216
        %v3384 = vunpack.c.h.b16 %v1216
        %v3385 = vunpack.c.l.b16 %v1217
        %v3386 = vunpack.c.h.b16 %v1217
        %v3387 = vunpack.c.l.b16 %v1218
        %v3388 = vunpack.c.h.b16 %v1218
        %v3389 = vunpack.c.l.b16 %v1219
        %v3390 = vunpack.c.h.b16 %v1219
        %v3391 = vunpack.c.l.b16 %v1220
        %v3392 = vunpack.c.h.b16 %v1220
        %v3393 = vunpack.c.l.b16 %v1221
        %v3394 = vunpack.c.h.b16 %v1221
        %v3395 = vunpack.c.l.b16 %v1222
        %v3396 = vunpack.c.h.b16 %v1222
        %v3397 = vunpack.c.l.b16 %v1223
        %v3398 = vunpack.c.h.b16 %v1223
        %v3399 = vunpack.c.l.b16 %v1224
        %v3400 = vunpack.c.h.b16 %v1224
        %v3401 = vunpack.c.l.b16 %v1225
        %v3402 = vunpack.c.h.b16 %v1225
        %v3403 = vunpack.c.l.b16 %v1226
        %v3404 = vunpack.c.h.b16 %v1226
        %v3405 = vunpack.c.l.b16 %v1227
        %v3406 = vunpack.c.h.b16 %v1227
        %v3407 = vunpack.c.l.b16 %v1228
        %v3408 = vunpack.c.h.b16 %v1228
        %v3409 = vunpack.c.l.b16 %v1229
        %v3410 = vunpack.c.h.b16 %v1229
        %v3411 = vunpack.c.l.b16 %v1230
        %v3412 = vunpack.c.h.b16 %v1230
        %v3413 = vunpack.c.l.b16 %v1231
        %v3414 = vunpack.c.h.b16 %v1231
        %v3415 = vunpack.c.l.b16 %v1232
        %v3416 = vunpack.c.h.b16 %v1232
        %v3417 = vunpack.c.l.b16 %v1233
        %v3418 = vunpack.c.h.b16 %v1233
        %v3419 = vunpack.c.l.b16 %v1234
        %v3420 = vunpack.c.h.b16 %v1234
        %v3421 = vunpack.c.l.b16 %v1235
        %v3422 = vunpack.c.h.b16 %v1235
        %v3423 = vunpack.c.l.b16 %v1236
        %v3424 = vunpack.c.h.b16 %v1236
        %v3425 = vunpack.c.l.b16 %v1237
        %v3426 = vunpack.c.h.b16 %v1237
        %v3427 = vunpack.c.l.b16 %v1238
        %v3428 = vunpack.c.h.b16 %v1238
        %v3429 = vunpack.c.l.b16 %v1239
        %v3430 = vunpack.c.h.b16 %v1239
        %v3431 = vunpack.c.l.b16 %v1240
        %v3432 = vunpack.c.h.b16 %v1240
        %v3433 = vunpack.c.l.b16 %v1241
        %v3434 = vunpack.c.h.b16 %v1241
        %v3435 = vunpack.c.l.b16 %v1242
        %v3436 = vunpack.c.h.b16 %v1242
        %v3437 = vunpack.c.l.b16 %v1243
        %v3438 = vunpack.c.h.b16 %v1243
        %v3439 = vunpack.c.l.b16 %v1244
        %v3440 = vunpack.c.h.b16 %v1244
        %v3441 = vunpack.c.l.b16 %v1245
        %v3442 = vunpack.c.h.b16 %v1245
        %v3443 = vunpack.c.l.b16 %v1246
        %v3444 = vunpack.c.h.b16 %v1246
        %v3445 = vunpack.c.l.b16 %v1247
        %v3446 = vunpack.c.h.b16 %v1247
        %v3447 = vunpack.c.l.b16 %v1248
        %v3448 = vunpack.c.h.b16 %v1248
        %v3449 = vunpack.c.l.b16 %v1249
        %v3450 = vunpack.c.h.b16 %v1249
        %v3451 = vunpack.c.l.b16 %v1250
        %v3452 = vunpack.c.h.b16 %v1250
        %v3453 = vunpack.c.l.b16 %v1251
        %v3454 = vunpack.c.h.b16 %v1251
        %v3455 = vunpack.c.l.b16 %v1252
        %v3456 = vunpack.c.h.b16 %v1252
        %v3457 = vunpack.c.l.b16 %v1253
        %v3458 = vunpack.c.h.b16 %v1253
        %v3459 = vunpack.c.l.b16 %v1254
        %v3460 = vunpack.c.h.b16 %v1254
        %v3461 = vunpack.c.l.b16 %v1255
        %v3462 = vunpack.c.h.b16 %v1255
        %v3463 = vunpack.c.l.b16 %v1256
        %v3464 = vunpack.c.h.b16 %v1256
        %v3465 = vunpack.c.l.b16 %v1257
        %v3466 = vunpack.c.h.b16 %v1257
        %v3467 = vunpack.c.l.b16 %v1258
        %v3468 = vunpack.c.h.b16 %v1258
        %v3469 = vunpack.c.l.b16 %v1259
        %v3470 = vunpack.c.h.b16 %v1259
        %v3471 = vunpack.c.l.b16 %v1260
        %v3472 = vunpack.c.h.b16 %v1260
        %v3473 = vunpack.c.l.b16 %v1261
        %v3474 = vunpack.c.h.b16 %v1261
        %v3475 = vunpack.c.l.b16 %v1262
        %v3476 = vunpack.c.h.b16 %v1262
        %v3477 = vunpack.c.l.b16 %v1263
        %v3478 = vunpack.c.h.b16 %v1263
        %v3479 = vunpack.c.l.b16 %v1264
        %v3480 = vunpack.c.h.b16 %v1264
        %v3481 = vunpack.c.l.b16 %v1265
        %v3482 = vunpack.c.h.b16 %v1265
        %v3483 = vunpack.c.l.b16 %v1266
        %v3484 = vunpack.c.h.b16 %v1266
        %v3485 = vunpack.c.l.b16 %v1267
        %v3486 = vunpack.c.h.b16 %v1267
        %v3487 = vunpack.c.l.b16 %v1268
        %v3488 = vunpack.c.h.b16 %v1268
        %v3489 = vunpack.c.l.b16 %v1269
        %v3490 = vunpack.c.h.b16 %v1269
        %v3491 = vunpack.c.l.b16 %v1270
        %v3492 = vunpack.c.h.b16 %v1270
        %v3493 = vunpack.c.l.b16 %v1271
        %v3494 = vunpack.c.h.b16 %v1271
        %v3495 = vunpack.c.l.b16 %v1272
        %v3496 = vunpack.c.h.b16 %v1272
        %v3497 = vunpack.c.l.b16 %v1273
        %v3498 = vunpack.c.h.b16 %v1273
        %v3499 = vunpack.c.l.b16 %v1274
        %v3500 = vunpack.c.h.b16 %v1274
        %v3501 = vunpack.c.l.b16 %v1275
        %v3502 = vunpack.c.h.b16 %v1275
        %v3503 = vunpack.c.l.b16 %v1276
        %v3504 = vunpack.c.h.b16 %v1276
        %v3505 = vunpack.c.l.b16 %v1277
        %v3506 = vunpack.c.h.b16 %v1277
        %v3507 = vunpack.c.l.b16 %v1278
        %v3508 = vunpack.c.h.b16 %v1278
        %v3509 = vunpack.c.l.b16 %v1279
        %v3510 = vunpack.c.h.b16 %v1279
        %v3511 = vunpack.c.l.b16 %v1280
        %v3512 = vunpack.c.h.b16 %v1280
        %v3513 = vpack.c.b16 %v2169, %v2137
        %v3514 = vpack.c.b16 %v2170, %v2138
        %v3515 = vpack.c.b16 %v2171, %v2139
        %v3516 = vpack.c.b16 %v2172, %v2140
        %v3517 = vpack.c.b16 %v2173, %v2141
        %v3518 = vpack.c.b16 %v2174, %v2142
        %v3519 = vpack.c.b16 %v2175, %v2143
        %v3520 = vpack.c.b16 %v2176, %v2144
        %v3521 = vpack.c.b16 %v2177, %v2145
        %v3522 = vpack.c.b16 %v2178, %v2146
        %v3523 = vpack.c.b16 %v2179, %v2147
        %v3524 = vpack.c.b16 %v2180, %v2148
        %v3525 = vpack.c.b16 %v2181, %v2149
        %v3526 = vpack.c.b16 %v2182, %v2150
        %v3527 = vpack.c.b16 %v2183, %v2151
        %v3528 = vpack.c.b16 %v2184, %v2152
        %v3529 = vpack.c.b16 %v2185, %v2153
        %v3530 = vpack.c.b16 %v2186, %v2154
        %v3531 = vpack.c.b16 %v2187, %v2155
        %v3532 = vpack.c.b16 %v2188, %v2156
        %v3533 = vpack.c.b16 %v2189, %v2157
        %v3534 = vpack.c.b16 %v2190, %v2158
        %v3535 = vpack.c.b16 %v2191, %v2159
        %v3536 = vpack.c.b16 %v2192, %v2160
        %v3537 = vpack.c.b16 %v2193, %v2161
        %v3538 = vpack.c.b16 %v2194, %v2162
        %v3539 = vpack.c.b16 %v2195, %v2163
        %v3540 = vpack.c.b16 %v2196, %v2164
        %v3541 = vpack.c.b16 %v2197, %v2165
        %v3542 = vpack.c.b16 %v2198, %v2166
        %v3543 = vpack.c.b16 %v2199, %v2167
        %v3544 = vpack.c.b16 %v2200, %v2168
        %v3545 = vpack.c.b16 %v2233, %v2201
        %v3546 = vpack.c.b16 %v2234, %v2202
        %v3547 = vpack.c.b16 %v2235, %v2203
        %v3548 = vpack.c.b16 %v2236, %v2204
        %v3549 = vpack.c.b16 %v2237, %v2205
        %v3550 = vpack.c.b16 %v2238, %v2206
        %v3551 = vpack.c.b16 %v2239, %v2207
        %v3552 = vpack.c.b16 %v2240, %v2208
        %v3553 = vpack.c.b16 %v2241, %v2209
        %v3554 = vpack.c.b16 %v2242, %v2210
        %v3555 = vpack.c.b16 %v2243, %v2211
        %v3556 = vpack.c.b16 %v2244, %v2212
        %v3557 = vpack.c.b16 %v2245, %v2213
        %v3558 = vpack.c.b16 %v2246, %v2214
        %v3559 = vpack.c.b16 %v2247, %v2215
        %v3560 = vpack.c.b16 %v2248, %v2216
        %v3561 = vpack.c.b16 %v2249, %v2217
        %v3562 = vpack.c.b16 %v2250, %v2218
        %v3563 = vpack.c.b16 %v2251, %v2219
        %v3564 = vpack.c.b16 %v2252, %v2220
        %v3565 = vpack.c.b16 %v2253, %v2221
        %v3566 = vpack.c.b16 %v2254, %v2222
        %v3567 = vpack.c.b16 %v2255, %v2223
        %v3568 = vpack.c.b16 %v2256, %v2224
        %v3569 = vpack.c.b16 %v2257, %v2225
        %v3570 = vpack.c.b16 %v2258, %v2226
        %v3571 = vpack.c.b16 %v2259, %v2227
        %v3572 = vpack.c.b16 %v2260, %v2228
        %v3573 = vpack.c.b16 %v2261, %v2229
        %v3574 = vpack.c.b16 %v2262, %v2230
        %v3575 = vpack.c.b16 %v2263, %v2231
        %v3576 = vpack.c.b16 %v2264, %v2232
        %v3577 = vpack.c.b16 %v2297, %v2265
        %v3578 = vpack.c.b16 %v2298, %v2266
        %v3579 = vpack.c.b16 %v2299, %v2267
        %v3580 = vpack.c.b16 %v2300, %v2268
        %v3581 = vpack.c.b16 %v2301, %v2269
        %v3582 = vpack.c.b16 %v2302, %v2270
        %v3583 = vpack.c.b16 %v2303, %v2271
        %v3584 = vpack.c.b16 %v2304, %v2272
        %v3585 = vpack.c.b16 %v2305, %v2273
        %v3586 = vpack.c.b16 %v2306, %v2274
        %v3587 = vpack.c.b16 %v2307, %v2275
        %v3588 = vpack.c.b16 %v2308, %v2276
        %v3589 = vpack.c.b16 %v2309, %v2277
        %v3590 = vpack.c.b16 %v2310, %v2278
        %v3591 = vpack.c.b16 %v2311, %v2279
        %v3592 = vpack.c.b16 %v2312, %v2280
        %v3593 = vpack.c.b16 %v2313, %v2281
        %v3594 = vpack.c.b16 %v2314, %v2282
        %v3595 = vpack.c.b16 %v2315, %v2283
        %v3596 = vpack.c.b16 %v2316, %v2284
        %v3597 = vpack.c.b16 %v2317, %v2285
        %v3598 = vpack.c.b16 %v2318, %v2286
        %v3599 = vpack.c.b16 %v2319, %v2287
        %v3600 = vpack.c.b16 %v2320, %v2288
        %v3601 = vpack.c.b16 %v2321, %v2289
        %v3602 = vpack.c.b16 %v2322, %v2290
        %v3603 = vpack.c.b16 %v2323, %v2291
        %v3604 = vpack.c.b16 %v2324, %v2292
        %v3605 = vpack.c.b16 %v2325, %v2293
        %v3606 = vpack.c.b16 %v2326, %v2294
        %v3607 = vpack.c.b16 %v2327, %v2295
        %v3608 = vpack.c.b16 %v2328, %v2296
        %v3609 = vpack.c.b16 %v2361, %v2329
        %v3610 = vpack.c.b16 %v2362, %v2330
        %v3611 = vpack.c.b16 %v2363, %v2331
        %v3612 = vpack.c.b16 %v2364, %v2332
        %v3613 = vpack.c.b16 %v2365, %v2333
        %v3614 = vpack.c.b16 %v2366, %v2334
        %v3615 = vpack.c.b16 %v2367, %v2335
        %v3616 = vpack.c.b16 %v2368, %v2336
        %v3617 = vpack.c.b16 %v2369, %v2337
        %v3618 = vpack.c.b16 %v2370, %v2338
        %v3619 = vpack.c.b16 %v2371, %v2339
        %v3620 = vpack.c.b16 %v2372, %v2340
        %v3621 = vpack.c.b16 %v2373, %v2341
        %v3622 = vpack.c.b16 %v2374, %v2342
        %v3623 = vpack.c.b16 %v2375, %v2343
        %v3624 = vpack.c.b16 %v2376, %v2344
        %v3625 = vpack.c.b16 %v2377, %v2345
        %v3626 = vpack.c.b16 %v2378, %v2346
        %v3627 = vpack.c.b16 %v2379, %v2347
        %v3628 = vpack.c.b16 %v2380, %v2348
        %v3629 = vpack.c.b16 %v2381, %v2349
        %v3630 = vpack.c.b16 %v2382, %v2350
        %v3631 = vpack.c.b16 %v2383, %v2351
        %v3632 = vpack.c.b16 %v2384, %v2352
        %v3633 = vpack.c.b16 %v2385, %v2353
        %v3634 = vpack.c.b16 %v2386, %v2354
        %v3635 = vpack.c.b16 %v2387, %v2355
        %v3636 = vpack.c.b16 %v2388, %v2356
        %v3637 = vpack.c.b16 %v2389, %v2357
        %v3638 = vpack.c.b16 %v2390, %v2358
        %v3639 = vpack.c.b16 %v2391, %v2359
        %v3640 = vpack.c.b16 %v2392, %v2360
        %v3641 = vpack.c.b16 %v2425, %v2393
        %v3642 = vpack.c.b16 %v2426, %v2394
        %v3643 = vpack.c.b16 %v2427, %v2395
        %v3644 = vpack.c.b16 %v2428, %v2396
        %v3645 = vpack.c.b16 %v2429, %v2397
        %v3646 = vpack.c.b16 %v2430, %v2398
        %v3647 = vpack.c.b16 %v2431, %v2399
        %v3648 = vpack.c.b16 %v2432, %v2400
        %v3649 = vpack.c.b16 %v2433, %v2401
        %v3650 = vpack.c.b16 %v2434, %v2402
        %v3651 = vpack.c.b16 %v2435, %v2403
        %v3652 = vpack.c.b16 %v2436, %v2404
        %v3653 = vpack.c.b16 %v2437, %v2405
        %v3654 = vpack.c.b16 %v2438, %v2406
        %v3655 = vpack.c.b16 %v2439, %v2407
        %v3656 = vpack.c.b16 %v2440, %v2408
        %v3657 = vpack.c.b16 %v2441, %v2409
        %v3658 = vpack.c.b16 %v2442, %v2410
        %v3659 = vpack.c.b16 %v2443, %v2411
        %v3660 = vpack.c.b16 %v2444, %v2412
        %v3661 = vpack.c.b16 %v2445, %v2413
        %v3662 = vpack.c.b16 %v2446, %v2414
        %v3663 = vpack.c.b16 %v2447, %v2415
        %v3664 = vpack.c.b16 %v2448, %v2416
        %v3665 = vpack.c.b16 %v2449, %v2417
        %v3666 = vpack.c.b16 %v2450, %v2418
        %v3667 = vpack.c.b16 %v2451, %v2419
        %v3668 = vpack.c.b16 %v2452, %v2420
        %v3669 = vpack.c.b16 %v2453, %v2421
        %v3670 = vpack.c.b16 %v2454, %v2422
        %v3671 = vpack.c.b16 %v2455, %v2423
        %v3672 = vpack.c.b16 %v2456, %v2424
        %v3673 = vpack.c.b16 %v2489, %v2457
        %v3674 = vpack.c.b16 %v2490, %v2458
        %v3675 = vpack.c.b16 %v2491, %v2459
        %v3676 = vpack.c.b16 %v2492, %v2460
        %v3677 = vpack.c.b16 %v2493, %v2461
        %v3678 = vpack.c.b16 %v2494, %v2462
        %v3679 = vpack.c.b16 %v2495, %v2463
        %v3680 = vpack.c.b16 %v2496, %v2464
        %v3681 = vpack.c.b16 %v2497, %v2465
        %v3682 = vpack.c.b16 %v2498, %v2466
        %v3683 = vpack.c.b16 %v2499, %v2467
        %v3684 = vpack.c.b16 %v2500, %v2468
        %v3685 = vpack.c.b16 %v2501, %v2469
        %v3686 = vpack.c.b16 %v2502, %v2470
        %v3687 = vpack.c.b16 %v2503, %v2471
        %v3688 = vpack.c.b16 %v2504, %v2472
        %v3689 = vpack.c.b16 %v2505, %v2473
        %v3690 = vpack.c.b16 %v2506, %v2474
        %v3691 = vpack.c.b16 %v2507, %v2475
        %v3692 = vpack.c.b16 %v2508, %v2476
        %v3693 = vpack.c.b16 %v2509, %v2477
        %v3694 = vpack.c.b16 %v2510, %v2478
        %v3695 = vpack.c.b16 %v2511, %v2479
        %v3696 = vpack.c.b16 %v2512, %v2480
        %v3697 = vpack.c.b16 %v2513, %v2481
        %v3698 = vpack.c.b16 %v2514, %v2482
        %v3699 = vpack.c.b16 %v2515, %v2483
        %v3700 = vpack.c.b16 %v2516, %v2484
        %v3701 = vpack.c.b16 %v2517, %v2485
        %v3702 = vpack.c.b16 %v2518, %v2486
        %v3703 = vpack.c.b16 %v2519, %v2487
        %v3704 = vpack.c.b16 %v2520, %v2488
        %v3705 = vpack.c.b16 %v2553, %v2521
        %v3706 = vpack.c.b16 %v2554, %v2522
        %v3707 = vpack.c.b16 %v2555, %v2523
        %v3708 = vpack.c.b16 %v2556, %v2524
        %v3709 = vpack.c.b16 %v2557, %v2525
        %v3710 = vpack.c.b16 %v2558, %v2526
        %v3711 = vpack.c.b16 %v2559, %v2527
        %v3712 = vpack.c.b16 %v2560, %v2528
        %v3713 = vpack.c.b16 %v2561, %v2529
        %v3714 = vpack.c.b16 %v2562, %v2530
        %v3715 = vpack.c.b16 %v2563, %v2531
        %v3716 = vpack.c.b16 %v2564, %v2532
        %v3717 = vpack.c.b16 %v2565, %v2533
        %v3718 = vpack.c.b16 %v2566, %v2534
        %v3719 = vpack.c.b16 %v2567, %v2535
        %v3720 = vpack.c.b16 %v2568, %v2536
        %v3721 = vpack.c.b16 %v2569, %v2537
        %v3722 = vpack.c.b16 %v2570, %v2538
        %v3723 = vpack.c.b16 %v2571, %v2539
        %v3724 = vpack.c.b16 %v2572, %v2540
        %v3725 = vpack.c.b16 %v2573, %v2541
        %v3726 = vpack.c.b16 %v2574, %v2542
        %v3727 = vpack.c.b16 %v2575, %v2543
        %v3728 = vpack.c.b16 %v2576, %v2544
        %v3729 = vpack.c.b16 %v2577, %v2545
        %v3730 = vpack.c.b16 %v2578, %v2546
        %v3731 = vpack.c.b16 %v2579, %v2547
        %v3732 = vpack.c.b16 %v2580, %v2548
        %v3733 = vpack.c.b16 %v2581, %v2549
        %v3734 = vpack.c.b16 %v2582, %v2550
        %v3735 = vpack.c.b16 %v2583, %v2551
        %v3736 = vpack.c.b16 %v2584, %v2552
        %v3737 = vpack.c.b16 %v2617, %v2585
        %v3738 = vpack.c.b16 %v2618, %v2586
        %v3739 = vpack.c.b16 %v2619, %v2587
        %v3740 = vpack.c.b16 %v2620, %v2588
        %v3741 = vpack.c.b16 %v2621, %v2589
        %v3742 = vpack.c.b16 %v2622, %v2590
        %v3743 = vpack.c.b16 %v2623, %v2591
        %v3744 = vpack.c.b16 %v2624, %v2592
        %v3745 = vpack.c.b16 %v2625, %v2593
        %v3746 = vpack.c.b16 %v2626, %v2594
        %v3747 = vpack.c.b16 %v2627, %v2595
        %v3748 = vpack.c.b16 %v2628, %v2596
        %v3749 = vpack.c.b16 %v2629, %v2597
        %v3750 = vpack.c.b16 %v2630, %v2598
        %v3751 = vpack.c.b16 %v2631, %v2599
        %v3752 = vpack.c.b16 %v2632, %v2600
        %v3753 = vpack.c.b16 %v2633, %v2601
        %v3754 = vpack.c.b16 %v2634, %v2602
        %v3755 = vpack.c.b16 %v2635, %v2603
        %v3756 = vpack.c.b16 %v2636, %v2604
        %v3757 = vpack.c.b16 %v2637, %v2605
        %v3758 = vpack.c.b16 %v2638, %v2606
        %v3759 = vpack.c.b16 %v2639, %v2607
        %v3760 = vpack.c.b16 %v2640, %v2608
        %v3761 = vpack.c.b16 %v2641, %v2609
        %v3762 = vpack.c.b16 %v2642, %v2610
        %v3763 = vpack.c.b16 %v2643, %v2611
        %v3764 = vpack.c.b16 %v2644, %v2612
        %v3765 = vpack.c.b16 %v2645, %v2613
        %v3766 = vpack.c.b16 %v2646, %v2614
        %v3767 = vpack.c.b16 %v2647, %v2615
        %v3768 = vpack.c.b16 %v2648, %v2616
        %v3769 = vpack.c.b16 %v2681, %v2649
        %v3770 = vpack.c.b16 %v2682, %v2650
        %v3771 = vpack.c.b16 %v2683, %v2651
        %v3772 = vpack.c.b16 %v2684, %v2652
        %v3773 = vpack.c.b16 %v2685, %v2653
        %v3774 = vpack.c.b16 %v2686, %v2654
        %v3775 = vpack.c.b16 %v2687, %v2655
        %v3776 = vpack.c.b16 %v2688, %v2656
        %v3777 = vpack.c.b16 %v2689, %v2657
        %v3778 = vpack.c.b16 %v2690, %v2658
        %v3779 = vpack.c.b16 %v2691, %v2659
        %v3780 = vpack.c.b16 %v2692, %v2660
        %v3781 = vpack.c.b16 %v2693, %v2661
        %v3782 = vpack.c.b16 %v2694, %v2662
        %v3783 = vpack.c.b16 %v2695, %v2663
        %v3784 = vpack.c.b16 %v2696, %v2664
        %v3785 = vpack.c.b16 %v2697, %v2665
        %v3786 = vpack.c.b16 %v2698, %v2666
        %v3787 = vpack.c.b16 %v2699, %v2667
        %v3788 = vpack.c.b16 %v2700, %v2668
        %v3789 = vpack.c.b16 %v2701, %v2669
        %v3790 = vpack.c.b16 %v2702, %v2670
        %v3791 = vpack.c.b16 %v2703, %v2671
        %v3792 = vpack.c.b16 %v2704, %v2672
        %v3793 = vpack.c.b16 %v2705, %v2673
        %v3794 = vpack.c.b16 %v2706, %v2674
        %v3795 = vpack.c.b16 %v2707, %v2675
        %v3796 = vpack.c.b16 %v2708, %v2676
        %v3797 = vpack.c.b16 %v2709, %v2677
        %v3798 = vpack.c.b16 %v2710, %v2678
        %v3799 = vpack.c.b16 %v2711, %v2679
        %v3800 = vpack.c.b16 %v2712, %v2680
        %v3801 = vpack.c.b16 %v2745, %v2713
        %v3802 = vpack.c.b16 %v2746, %v2714
        %v3803 = vpack.c.b16 %v2747, %v2715
        %v3804 = vpack.c.b16 %v2748, %v2716
        %v3805 = vpack.c.b16 %v2749, %v2717
        %v3806 = vpack.c.b16 %v2750, %v2718
        %v3807 = vpack.c.b16 %v2751, %v2719
        %v3808 = vpack.c.b16 %v2752, %v2720
        %v3809 = vpack.c.b16 %v2753, %v2721
        %v3810 = vpack.c.b16 %v2754, %v2722
        %v3811 = vpack.c.b16 %v2755, %v2723
        %v3812 = vpack.c.b16 %v2756, %v2724
        %v3813 = vpack.c.b16 %v2757, %v2725
        %v3814 = vpack.c.b16 %v2758, %v2726
        %v3815 = vpack.c.b16 %v2759, %v2727
        %v3816 = vpack.c.b16 %v2760, %v2728
        %v3817 = vpack.c.b16 %v2761, %v2729
        %v3818 = vpack.c.b16 %v2762, %v2730
        %v3819 = vpack.c.b16 %v2763, %v2731
        %v3820 = vpack.c.b16 %v2764, %v2732
        %v3821 = vpack.c.b16 %v2765, %v2733
        %v3822 = vpack.c.b16 %v2766, %v2734
        %v3823 = vpack.c.b16 %v2767, %v2735
        %v3824 = vpack.c.b16 %v2768, %v2736
        %v3825 = vpack.c.b16 %v2769, %v2737
        %v3826 = vpack.c.b16 %v2770, %v2738
        %v3827 = vpack.c.b16 %v2771, %v2739
        %v3828 = vpack.c.b16 %v2772, %v2740
        %v3829 = vpack.c.b16 %v2773, %v2741
        %v3830 = vpack.c.b16 %v2774, %v2742
        %v3831 = vpack.c.b16 %v2775, %v2743
        %v3832 = vpack.c.b16 %v2776, %v2744
        %v3833 = vpack.c.b16 %v2809, %v2777
        %v3834 = vpack.c.b16 %v2810, %v2778
        %v3835 = vpack.c.b16 %v2811, %v2779
        %v3836 = vpack.c.b16 %v2812, %v2780
        %v3837 = vpack.c.b16 %v2813, %v2781
        %v3838 = vpack.c.b16 %v2814, %v2782
        %v3839 = vpack.c.b16 %v2815, %v2783
        %v3840 = vpack.c.b16 %v2816, %v2784
        %v3841 = vpack.c.b16 %v2817, %v2785
        %v3842 = vpack.c.b16 %v2818, %v2786
        %v3843 = vpack.c.b16 %v2819, %v2787
        %v3844 = vpack.c.b16 %v2820, %v2788
        %v3845 = vpack.c.b16 %v2821, %v2789
        %v3846 = vpack.c.b16 %v2822, %v2790
        %v3847 = vpack.c.b16 %v2823, %v2791
        %v3848 = vpack.c.b16 %v2824, %v2792
        %v3849 = vpack.c.b16 %v2825, %v2793
        %v3850 = vpack.c.b16 %v2826, %v2794
        %v3851 = vpack.c.b16 %v2827, %v2795
        %v3852 = vpack.c.b16 %v2828, %v2796
        %v3853 = vpack.c.b16 %v2829, %v2797
        %v3854 = vpack.c.b16 %v2830, %v2798
        %v3855 = vpack.c.b16 %v2831, %v2799
        %v3856 = vpack.c.b16 %v2832, %v2800
        %v3857 = vpack.c.b16 %v2833, %v2801
        %v3858 = vpack.c.b16 %v2834, %v2802
        %v3859 = vpack.c.b16 %v2835, %v2803
        %v3860 = vpack.c.b16 %v2836, %v2804
        %v3861 = vpack.c.b16 %v2837, %v2805
        %v3862 = vpack.c.b16 %v2838, %v2806
        %v3863 = vpack.c.b16 %v2839, %v2807
        %v3864 = vpack.c.b16 %v2840, %v2808
        %v3865 = vpack.c.b16 %v2873, %v2841
        %v3866 = vpack.c.b16 %v2874, %v2842
        %v3867 = vpack.c.b16 %v2875, %v2843
        %v3868 = vpack.c.b16 %v2876, %v2844
        %v3869 = vpack.c.b16 %v2877, %v2845
        %v3870 = vpack.c.b16 %v2878, %v2846
        %v3871 = vpack.c.b16 %v2879, %v2847
        %v3872 = vpack.c.b16 %v2880, %v2848
        %v3873 = vpack.c.b16 %v2881, %v2849
        %v3874 = vpack.c.b16 %v2882, %v2850
        %v3875 = vpack.c.b16 %v2883, %v2851
        %v3876 = vpack.c.b16 %v2884, %v2852
        %v3877 = vpack.c.b16 %v2885, %v2853
        %v3878 = vpack.c.b16 %v2886, %v2854
        %v3879 = vpack.c.b16 %v2887, %v2855
        %v3880 = vpack.c.b16 %v2888, %v2856
        %v3881 = vpack.c.b16 %v2889, %v2857
        %v3882 = vpack.c.b16 %v2890, %v2858
        %v3883 = vpack.c.b16 %v2891, %v2859
        %v3884 = vpack.c.b16 %v2892, %v2860
        %v3885 = vpack.c.b16 %v2893, %v2861
        %v3886 = vpack.c.b16 %v2894, %v2862
        %v3887 = vpack.c.b16 %v2895, %v2863
        %v3888 = vpack.c.b16 %v2896, %v2864
        %v3889 = vpack.c.b16 %v2897, %v2865
        %v3890 = vpack.c.b16 %v2898, %v2866
        %v3891 = vpack.c.b16 %v2899, %v2867
        %v3892 = vpack.c.b16 %v2900, %v2868
        %v3893 = vpack.c.b16 %v2901, %v2869
        %v3894 = vpack.c.b16 %v2902, %v2870
        %v3895 = vpack.c.b16 %v2903, %v2871
        %v3896 = vpack.c.b16 %v2904, %v2872
        %v3897 = vpack.c.b16 %v2937, %v2905
        %v3898 = vpack.c.b16 %v2938, %v2906
        %v3899 = vpack.c.b16 %v2939, %v2907
        %v3900 = vpack.c.b16 %v2940, %v2908
        %v3901 = vpack.c.b16 %v2941, %v2909
        %v3902 = vpack.c.b16 %v2942, %v2910
        %v3903 = vpack.c.b16 %v2943, %v2911
        %v3904 = vpack.c.b16 %v2944, %v2912
        %v3905 = vpack.c.b16 %v2945, %v2913
        %v3906 = vpack.c.b16 %v2946, %v2914
        %v3907 = vpack.c.b16 %v2947, %v2915
        %v3908 = vpack.c.b16 %v2948, %v2916
        %v3909 = vpack.c.b16 %v2949, %v2917
        %v3910 = vpack.c.b16 %v2950, %v2918
        %v3911 = vpack.c.b16 %v2951, %v2919
        %v3912 = vpack.c.b16 %v2952, %v2920
        %v3913 = vpack.c.b16 %v2953, %v2921
        %v3914 = vpack.c.b16 %v2954, %v2922
        %v3915 = vpack.c.b16 %v2955, %v2923
        %v3916 = vpack.c.b16 %v2956, %v2924
        %v3917 = vpack.c.b16 %v2957, %v2925
        %v3918 = vpack.c.b16 %v2958, %v2926
        %v3919 = vpack.c.b16 %v2959, %v2927
        %v3920 = vpack.c.b16 %v2960, %v2928
        %v3921 = vpack.c.b16 %v2961, %v2929
        %v3922 = vpack.c.b16 %v2962, %v2930
        %v3923 = vpack.c.b16 %v2963, %v2931
        %v3924 = vpack.c.b16 %v2964, %v2932
        %v3925 = vpack.c.b16 %v2965, %v2933
        %v3926 = vpack.c.b16 %v2966, %v2934
        %v3927 = vpack.c.b16 %v2967, %v2935
        %v3928 = vpack.c.b16 %v2968, %v2936
        %v3929 = vpack.c.b16 %v3001, %v2969
        %v3930 = vpack.c.b16 %v3002, %v2970
        %v3931 = vpack.c.b16 %v3003, %v2971
        %v3932 = vpack.c.b16 %v3004, %v2972
        %v3933 = vpack.c.b16 %v3005, %v2973
        %v3934 = vpack.c.b16 %v3006, %v2974
        %v3935 = vpack.c.b16 %v3007, %v2975
        %v3936 = vpack.c.b16 %v3008, %v2976
        %v3937 = vpack.c.b16 %v3009, %v2977
        %v3938 = vpack.c.b16 %v3010, %v2978
        %v3939 = vpack.c.b16 %v3011, %v2979
        %v3940 = vpack.c.b16 %v3012, %v2980
        %v3941 = vpack.c.b16 %v3013, %v2981
        %v3942 = vpack.c.b16 %v3014, %v2982
        %v3943 = vpack.c.b16 %v3015, %v2983
        %v3944 = vpack.c.b16 %v3016, %v2984
        %v3945 = vpack.c.b16 %v3017, %v2985
        %v3946 = vpack.c.b16 %v3018, %v2986
        %v3947 = vpack.c.b16 %v3019, %v2987
        %v3948 = vpack.c.b16 %v3020, %v2988
        %v3949 = vpack.c.b16 %v3021, %v2989
        %v3950 = vpack.c.b16 %v3022, %v2990
        %v3951 = vpack.c.b16 %v3023, %v2991
        %v3952 = vpack.c.b16 %v3024, %v2992
        %v3953 = vpack.c.b16 %v3025, %v2993
        %v3954 = vpack.c.b16 %v3026, %v2994
        %v3955 = vpack.c.b16 %v3027, %v2995
        %v3956 = vpack.c.b16 %v3028, %v2996
        %v3957 = vpack.c.b16 %v3029, %v2997
        %v3958 = vpack.c.b16 %v3030, %v2998
        %v3959 = vpack.c.b16 %v3031, %v2999
        %v3960 = vpack.c.b16 %v3032, %v3000
        %v3961 = vpack.c.b16 %v3065, %v3033
        %v3962 = vpack.c.b16 %v3066, %v3034
        %v3963 = vpack.c.b16 %v3067, %v3035
        %v3964 = vpack.c.b16 %v3068, %v3036
        %v3965 = vpack.c.b16 %v3069, %v3037
        %v3966 = vpack.c.b16 %v3070, %v3038
        %v3967 = vpack.c.b16 %v3071, %v3039
        %v3968 = vpack.c.b16 %v3072, %v3040
        %v3969 = vpack.c.b16 %v3073, %v3041
        %v3970 = vpack.c.b16 %v3074, %v3042
        %v3971 = vpack.c.b16 %v3075, %v3043
        %v3972 = vpack.c.b16 %v3076, %v3044
        %v3973 = vpack.c.b16 %v3077, %v3045
        %v3974 = vpack.c.b16 %v3078, %v3046
        %v3975 = vpack.c.b16 %v3079, %v3047
        %v3976 = vpack.c.b16 %v3080, %v3048
        %v3977 = vpack.c.b16 %v3081, %v3049
        %v3978 = vpack.c.b16 %v3082, %v3050
        %v3979 = vpack.c.b16 %v3083, %v3051
        %v3980 = vpack.c.b16 %v3084, %v3052
        %v3981 = vpack.c.b16 %v3085, %v3053
        %v3982 = vpack.c.b16 %v3086, %v3054
        %v3983 = vpack.c.b16 %v3087, %v3055
        %v3984 = vpack.c.b16 %v3088, %v3056
        %v3985 = vpack.c.b16 %v3089, %v3057
        %v3986 = vpack.c.b16 %v3090, %v3058
        %v3987 = vpack.c.b16 %v3091, %v3059
        %v3988 = vpack.c.b16 %v3092, %v3060
        %v3989 = vpack.c.b16 %v3093, %v3061
        %v3990 = vpack.c.b16 %v3094, %v3062
        %v3991 = vpack.c.b16 %v3095, %v3063
        %v3992 = vpack.c.b16 %v3096, %v3064
        %v3993 = vpack.c.b16 %v3129, %v3097
        %v3994 = vpack.c.b16 %v3130, %v3098
        %v3995 = vpack.c.b16 %v3131, %v3099
        %v3996 = vpack.c.b16 %v3132, %v3100
        %v3997 = vpack.c.b16 %v3133, %v3101
        %v3998 = vpack.c.b16 %v3134, %v3102
        %v3999 = vpack.c.b16 %v3135, %v3103
        %v4000 = vpack.c.b16 %v3136, %v3104
        %v4001 = vpack.c.b16 %v3137, %v3105
        %v4002 = vpack.c.b16 %v3138, %v3106
        %v4003 = vpack.c.b16 %v3139, %v3107
        %v4004 = vpack.c.b16 %v3140, %v3108
        %v4005 = vpack.c.b16 %v3141, %v3109
        %v4006 = vpack.c.b16 %v3142, %v3110
        %v4007 = vpack.c.b16 %v3143, %v3111
        %v4008 = vpack.c.b16 %v3144, %v3112
        %v4009 = vpack.c.b16 %v3145, %v3113
        %v4010 = vpack.c.b16 %v3146, %v3114
        %v4011 = vpack.c.b16 %v3147, %v3115
        %v4012 = vpack.c.b16 %v3148, %v3116
        %v4013 = vpack.c.b16 %v3149, %v3117
        %v4014 = vpack.c.b16 %v3150, %v3118
        %v4015 = vpack.c.b16 %v3151, %v3119
        %v4016 = vpack.c.b16 %v3152, %v3120
        %v4017 = vpack.c.b16 %v3153, %v3121
        %v4018 = vpack.c.b16 %v3154, %v3122
        %v4019 = vpack.c.b16 %v3155, %v3123
        %v4020 = vpack.c.b16 %v3156, %v3124
        %v4021 = vpack.c.b16 %v3157, %v3125
        %v4022 = vpack.c.b16 %v3158, %v3126
        %v4023 = vpack.c.b16 %v3159, %v3127
        %v4024 = vpack.c.b16 %v3160, %v3128
        %v4025 = vpack.c.b16 %v3193, %v3161
        %v4026 = vpack.c.b16 %v3194, %v3162
        %v4027 = vpack.c.b16 %v3195, %v3163
        %v4028 = vpack.c.b16 %v3196, %v3164
        %v4029 = vpack.c.b16 %v3197, %v3165
        %v4030 = vpack.c.b16 %v3198, %v3166
        %v4031 = vpack.c.b16 %v3199, %v3167
        %v4032 = vpack.c.b16 %v3200, %v3168
        %v4033 = vpack.c.b16 %v3201, %v3169
        %v4034 = vpack.c.b16 %v3202, %v3170
        %v4035 = vpack.c.b16 %v3203, %v3171
        %v4036 = vpack.c.b16 %v3204, %v3172
        %v4037 = vpack.c.b16 %v3205, %v3173
        %v4038 = vpack.c.b16 %v3206, %v3174
        %v4039 = vpack.c.b16 %v3207, %v3175
        %v4040 = vpack.c.b16 %v3208, %v3176
        %v4041 = vpack.c.b16 %v3209, %v3177
        %v4042 = vpack.c.b16 %v3210, %v3178
        %v4043 = vpack.c.b16 %v3211, %v3179
        %v4044 = vpack.c.b16 %v3212, %v3180
        %v4045 = vpack.c.b16 %v3213, %v3181
        %v4046 = vpack.c.b16 %v3214, %v3182
        %v4047 = vpack.c.b16 %v3215, %v3183
        %v4048 = vpack.c.b16 %v3216, %v3184
        %v4049 = vpack.c.b16 %v3217, %v3185
        %v4050 = vpack.c.b16 %v3218, %v3186
        %v4051 = vpack.c.b16 %v3219, %v3187
        %v4052 = vpack.c.b16 %v3220, %v3188
        %v4053 = vpack.c.b16 %v3221, %v3189
        %v4054 = vpack.c.b16 %v3222, %v3190
        %v4055 = vpack.c.b16 %v3223, %v3191
        %v4056 = vpack.c.b16 %v3224, %v3192
        %v4057 = vpack.c.b16 %v3257, %v3225
        %v4058 = vpack.c.b16 %v3258, %v3226
        %v4059 = vpack.c.b16 %v3259, %v3227
        %v4060 = vpack.c.b16 %v3260, %v3228
        %v4061 = vpack.c.b16 %v3261, %v3229
        %v4062 = vpack.c.b16 %v3262, %v3230
        %v4063 = vpack.c.b16 %v3263, %v3231
        %v4064 = vpack.c.b16 %v3264, %v3232
        %v4065 = vpack.c.b16 %v3265, %v3233
        %v4066 = vpack.c.b16 %v3266, %v3234
        %v4067 = vpack.c.b16 %v3267, %v3235
        %v4068 = vpack.c.b16 %v3268, %v3236
        %v4069 = vpack.c.b16 %v3269, %v3237
        %v4070 = vpack.c.b16 %v3270, %v3238
        %v4071 = vpack.c.b16 %v3271, %v3239
        %v4072 = vpack.c.b16 %v3272, %v3240
        %v4073 = vpack.c.b16 %v3273, %v3241
        %v4074 = vpack.c.b16 %v3274, %v3242
        %v4075 = vpack.c.b16 %v3275, %v3243
        %v4076 = vpack.c.b16 %v3276, %v3244
        %v4077 = vpack.c.b16 %v3277, %v3245
        %v4078 = vpack.c.b16 %v3278, %v3246
        %v4079 = vpack.c.b16 %v3279, %v3247
        %v4080 = vpack.c.b16 %v3280, %v3248
        %v4081 = vpack.c.b16 %v3281, %v3249
        %v4082 = vpack.c.b16 %v3282, %v3250
        %v4083 = vpack.c.b16 %v3283, %v3251
        %v4084 = vpack.c.b16 %v3284, %v3252
        %v4085 = vpack.c.b16 %v3285, %v3253
        %v4086 = vpack.c.b16 %v3286, %v3254
        %v4087 = vpack.c.b16 %v3287, %v3255
        %v4088 = vpack.c.b16 %v3288, %v3256
        %v4089 = vpack.c.b16 %v3321, %v3289
        %v4090 = vpack.c.b16 %v3322, %v3290
        %v4091 = vpack.c.b16 %v3323, %v3291
        %v4092 = vpack.c.b16 %v3324, %v3292
        %v4093 = vpack.c.b16 %v3325, %v3293
        %v4094 = vpack.c.b16 %v3326, %v3294
        %v4095 = vpack.c.b16 %v3327, %v3295
        %v4096 = vpack.c.b16 %v3328, %v3296
        %v4097 = vpack.c.b16 %v3329, %v3297
        %v4098 = vpack.c.b16 %v3330, %v3298
        %v4099 = vpack.c.b16 %v3331, %v3299
        %v4100 = vpack.c.b16 %v3332, %v3300
        %v4101 = vpack.c.b16 %v3333, %v3301
        %v4102 = vpack.c.b16 %v3334, %v3302
        %v4103 = vpack.c.b16 %v3335, %v3303
        %v4104 = vpack.c.b16 %v3336, %v3304
        %v4105 = vpack.c.b16 %v3337, %v3305
        %v4106 = vpack.c.b16 %v3338, %v3306
        %v4107 = vpack.c.b16 %v3339, %v3307
        %v4108 = vpack.c.b16 %v3340, %v3308
        %v4109 = vpack.c.b16 %v3341, %v3309
        %v4110 = vpack.c.b16 %v3342, %v3310
        %v4111 = vpack.c.b16 %v3343, %v3311
        %v4112 = vpack.c.b16 %v3344, %v3312
        %v4113 = vpack.c.b16 %v3345, %v3313
        %v4114 = vpack.c.b16 %v3346, %v3314
        %v4115 = vpack.c.b16 %v3347, %v3315
        %v4116 = vpack.c.b16 %v3348, %v3316
        %v4117 = vpack.c.b16 %v3349, %v3317
        %v4118 = vpack.c.b16 %v3350, %v3318
        %v4119 = vpack.c.b16 %v3351, %v3319
        %v4120 = vpack.c.b16 %v3352, %v3320
        %v4121 = vpack.c.b16 %v3385, %v3353
        %v4122 = vpack.c.b16 %v3386, %v3354
        %v4123 = vpack.c.b16 %v3387, %v3355
        %v4124 = vpack.c.b16 %v3388, %v3356
        %v4125 = vpack.c.b16 %v3389, %v3357
        %v4126 = vpack.c.b16 %v3390, %v3358
        %v4127 = vpack.c.b16 %v3391, %v3359
        %v4128 = vpack.c.b16 %v3392, %v3360
        %v4129 = vpack.c.b16 %v3393, %v3361
        %v4130 = vpack.c.b16 %v3394, %v3362
        %v4131 = vpack.c.b16 %v3395, %v3363
        %v4132 = vpack.c.b16 %v3396, %v3364
        %v4133 = vpack.c.b16 %v3397, %v3365
        %v4134 = vpack.c.b16 %v3398, %v3366
        %v4135 = vpack.c.b16 %v3399, %v3367
        %v4136 = vpack.c.b16 %v3400, %v3368
        %v4137 = vpack.c.b16 %v3401, %v3369
        %v4138 = vpack.c.b16 %v3402, %v3370
        %v4139 = vpack.c.b16 %v3403, %v3371
        %v4140 = vpack.c.b16 %v3404, %v3372
        %v4141 = vpack.c.b16 %v3405, %v3373
        %v4142 = vpack.c.b16 %v3406, %v3374
        %v4143 = vpack.c.b16 %v3407, %v3375
        %v4144 = vpack.c.b16 %v3408, %v3376
        %v4145 = vpack.c.b16 %v3409, %v3377
        %v4146 = vpack.c.b16 %v3410, %v3378
        %v4147 = vpack.c.b16 %v3411, %v3379
        %v4148 = vpack.c.b16 %v3412, %v3380
        %v4149 = vpack.c.b16 %v3413, %v3381
        %v4150 = vpack.c.b16 %v3414, %v3382
        %v4151 = vpack.c.b16 %v3415, %v3383
        %v4152 = vpack.c.b16 %v3416, %v3384
        %v4153 = vpack.c.b16 %v3449, %v3417
        %v4154 = vpack.c.b16 %v3450, %v3418
        %v4155 = vpack.c.b16 %v3451, %v3419
        %v4156 = vpack.c.b16 %v3452, %v3420
        %v4157 = vpack.c.b16 %v3453, %v3421
        %v4158 = vpack.c.b16 %v3454, %v3422
        %v4159 = vpack.c.b16 %v3455, %v3423
        %v4160 = vpack.c.b16 %v3456, %v3424
        %v4161 = vpack.c.b16 %v3457, %v3425
        %v4162 = vpack.c.b16 %v3458, %v3426
        %v4163 = vpack.c.b16 %v3459, %v3427
        %v4164 = vpack.c.b16 %v3460, %v3428
        %v4165 = vpack.c.b16 %v3461, %v3429
        %v4166 = vpack.c.b16 %v3462, %v3430
        %v4167 = vpack.c.b16 %v3463, %v3431
        %v4168 = vpack.c.b16 %v3464, %v3432
        %v4169 = vpack.c.b16 %v3465, %v3433
        %v4170 = vpack.c.b16 %v3466, %v3434
        %v4171 = vpack.c.b16 %v3467, %v3435
        %v4172 = vpack.c.b16 %v3468, %v3436
        %v4173 = vpack.c.b16 %v3469, %v3437
        %v4174 = vpack.c.b16 %v3470, %v3438
        %v4175 = vpack.c.b16 %v3471, %v3439
        %v4176 = vpack.c.b16 %v3472, %v3440
        %v4177 = vpack.c.b16 %v3473, %v3441
        %v4178 = vpack.c.b16 %v3474, %v3442
        %v4179 = vpack.c.b16 %v3475, %v3443
        %v4180 = vpack.c.b16 %v3476, %v3444
        %v4181 = vpack.c.b16 %v3477, %v3445
        %v4182 = vpack.c.b16 %v3478, %v3446
        %v4183 = vpack.c.b16 %v3479, %v3447
        %v4184 = vpack.c.b16 %v3480, %v3448
        %v4185 = vpack.c.b16 %v3481, %v3481
        %v4186 = vpack.c.b16 %v3482, %v3482
        %v4187 = vpack.c.b16 %v3483, %v3483
        %v4188 = vpack.c.b16 %v3484, %v3484
        %v4189 = vpack.c.b16 %v3485, %v3485
        %v4190 = vpack.c.b16 %v3486, %v3486
        %v4191 = vpack.c.b16 %v3487, %v3487
        %v4192 = vpack.c.b16 %v3488, %v3488
        %v4193 = vpack.c.b16 %v3489, %v3489
        %v4194 = vpack.c.b16 %v3490, %v3490
        %v4195 = vpack.c.b16 %v3491, %v3491
        %v4196 = vpack.c.b16 %v3492, %v3492
        %v4197 = vpack.c.b16 %v3493, %v3493
        %v4198 = vpack.c.b16 %v3494, %v3494
        %v4199 = vpack.c.b16 %v3495, %v3495
        %v4200 = vpack.c.b16 %v3496, %v3496
        %v4201 = vpack.c.b16 %v3497, %v3497
        %v4202 = vpack.c.b16 %v3498, %v3498
        %v4203 = vpack.c.b16 %v3499, %v3499
        %v4204 = vpack.c.b16 %v3500, %v3500
        %v4205 = vpack.c.b16 %v3501, %v3501
        %v4206 = vpack.c.b16 %v3502, %v3502
        %v4207 = vpack.c.b16 %v3503, %v3503
        %v4208 = vpack.c.b16 %v3504, %v3504
        %v4209 = vpack.c.b16 %v3505, %v3505
        %v4210 = vpack.c.b16 %v3506, %v3506
        %v4211 = vpack.c.b16 %v3507, %v3507
        %v4212 = vpack.c.b16 %v3508, %v3508
        %v4213 = vpack.c.b16 %v3509, %v3509
        %v4214 = vpack.c.b16 %v3510, %v3510
        %v4215 = vpack.c.b16 %v3511, %v3511
        %v4216 = vpack.c.b16 %v3512, %v3512
        %vm4889 = vcmask 687104
        %v4890 = vsel %vm4889, %v586, 0
        %v4892 = vsel %vm4889, %v588, 0
        %v4894 = vsel %vm4889, %v590, 0
        %v4896 = vsel %vm4889, %v592, 0
        %vm4898 = vcmask 1041408
        %v4900 = vsel %vm4898, %v4185, 0
        %v4903 = vsel %vm4898, %v4186, 0
        %v4906 = vsel %vm4898, %v4187, 0
        %v4909 = vsel %vm4898, %v4188, 0
        %v4912 = vsel %vm4898, %v4189, 0
        %v4915 = vsel %vm4898, %v4190, 0
        %v4918 = vsel %vm4898, %v4191, 0
        %v4921 = vsel %vm4898, %v4192, 0
        %v4924 = vsel %vm4898, %v4193, 0
        %v4927 = vsel %vm4898, %v4194, 0
        %v4930 = vsel %vm4898, %v4195, 0
        %v4933 = vsel %vm4898, %v4196, 0
        %v4936 = vsel %vm4898, %v4197, 0
        %v4939 = vsel %vm4898, %v4198, 0
        %v4942 = vsel %vm4898, %v4199, 0
        %v4945 = vsel %vm4898, %v4200, 0
        %v4948 = vsel %vm4898, %v4201, 0
        %v4951 = vsel %vm4898, %v4202, 0
        %v4954 = vsel %vm4898, %v4203, 0
        %v4957 = vsel %vm4898, %v4204, 0
        %v4960 = vsel %vm4898, %v4205, 0
        %v4963 = vsel %vm4898, %v4206, 0
        %v4966 = vsel %vm4898, %v4207, 0
        %v4969 = vsel %vm4898, %v4208, 0
        %v4972 = vsel %vm4898, %v4209, 0
        %v4975 = vsel %vm4898, %v4210, 0
        %v4978 = vsel %vm4898, %v4211, 0
        %v4981 = vsel %vm4898, %v4212, 0
        %v4984 = vsel %vm4898, %v4213, 0
        %v4987 = vsel %vm4898, %v4214, 0
        %v4990 = vsel %vm4898, %v4215, 0
        %v4993 = vsel %vm4898, %v4216, 0
        %4995 = vmatprep.subr.bf16.mxu0 %v3514
        %4996 = vmatpush1.bf16.msra.mxu0 %v3513
        %4997 = vmatprep.subr.bf16.mxu0 %v3546
        %4998 = vmatpush1.bf16.msra.mxu0 %v3545
        %4999 = vmatprep.subr.bf16.mxu0 %v3578
        %5000 = vmatpush1.bf16.msra.mxu0 %v3577
        %5001 = vmatprep.subr.bf16.mxu0 %v3610
        %5002 = vmatpush1.bf16.msra.mxu0 %v3609
        %5003 = vmatprep.subr.bf16.mxu0 %v3642
        %5004 = vmatpush1.bf16.msra.mxu0 %v3641
        %5005 = vmatprep.subr.bf16.mxu0 %v3674
        %5006 = vmatpush1.bf16.msra.mxu0 %v3673
        %5007 = vmatprep.subr.bf16.mxu0 %v3706
        %5008 = vmatpush1.bf16.msra.mxu0 %v3705
        %5009 = vmatprep.subr.bf16.mxu0 %v3738
        %5010 = vmatpush1.bf16.msra.mxu0 %v3737
        %5011 = vmatprep.subr.bf16.mxu0 %v3770
        %5012 = vmatpush1.bf16.msra.mxu0 %v3769
        %5013 = vmatprep.subr.bf16.mxu0 %v3802
        %5014 = vmatpush1.bf16.msra.mxu0 %v3801
        %5015 = vmatprep.subr.bf16.mxu0 %v3834
        %5016 = vmatpush1.bf16.msra.mxu0 %v3833
        %5017 = vmatprep.subr.bf16.mxu0 %v3866
        %5018 = vmatpush1.bf16.msra.mxu0 %v3865
        %5019 = vmatprep.subr.bf16.mxu0 %v3898
        %5020 = vmatpush1.bf16.msra.mxu0 %v3897
        %5021 = vmatprep.subr.bf16.mxu0 %v3930
        %5022 = vmatpush1.bf16.msra.mxu0 %v3929
        %5023 = vmatprep.subr.bf16.mxu0 %v3962
        %5024 = vmatpush1.bf16.msra.mxu0 %v3961
        %5025 = vmatprep.subr.bf16.mxu0 %v3994
        %5026 = vmatpush1.bf16.msra.mxu0 %v3993
        %5027 = vmatprep.mubr.bf16.mxu0 %v573
        %5028 = vmatmul.mubr.bf16.gmra.mrb[0].mxu0 %v548
        %v5029 = vpop.f32.mrb[0].mxu0
        %v5030 = vadd.f32 %v1292, %v5029
        %v5031 = vpop.f32.mrb[0].mxu0
        %v5032 = vadd.f32 %v1296, %v5031
        %v5033 = vpop.f32.mrb[0].mxu0
        %v5034 = vadd.f32 %v1292, %v5033
        %v5035 = vpop.f32.mrb[0].mxu0
        %v5036 = vadd.f32 %v1296, %v5035
        %5037 = vmatprep.mubr.bf16.mxu0 %v576
        %5038 = vmatmul.mubr.bf16.gmra.mrb[0].mxu0 %v552
        %v5039 = vpop.f32.mrb[0].mxu0
        %v5040 = vadd.f32 %v1292, %v5039
        %v5041 = vpop.f32.mrb[0].mxu0
        %v5042 = vadd.f32 %v1296, %v5041
        %v5043 = vpop.f32.mrb[0].mxu0
        %v5044 = vadd.f32 %v1292, %v5043
        %v5045 = vpop.f32.mrb[0].mxu0
        %v5046 = vadd.f32 %v1296, %v5045
        %5047 = vmatprep.mubr.bf16.mxu0 %v579
        %5048 = vmatmul.mubr.bf16.gmra.mrb[0].mxu0 %v556
        %v5049 = vpop.f32.mrb[0].mxu0
        %v5050 = vadd.f32 %v1292, %v5049
        %v5051 = vpop.f32.mrb[0].mxu0
        %v5052 = vadd.f32 %v1296, %v5051
        %v5053 = vpop.f32.mrb[0].mxu0
        %v5054 = vadd.f32 %v1292, %v5053
        %v5055 = vpop.f32.mrb[0].mxu0
        %v5056 = vadd.f32 %v1296, %v5055
        %5057 = vmatprep.mubr.bf16.mxu0 %v582
        %5058 = vmatmul.mubr.bf16.gmra.mrb[0].mxu0 %v560
        %v5059 = vpop.f32.mrb[0].mxu0
        %v5060 = vadd.f32 %v1292, %v5059
        %v5061 = vpop.f32.mrb[0].mxu0
        %v5062 = vadd.f32 %v1296, %v5061
        %v5063 = vpop.f32.mrb[0].mxu0
        %v5064 = vadd.f32 %v1292, %v5063
        %v5065 = vpop.f32.mrb[0].mxu0
        %v5066 = vadd.f32 %v1296, %v5065
        %5067 = vdwg.mxu0
        %5068 = vmatprep.subr.bf16.mxu0 %v4026
        %5069 = vmatpush1.bf16.msra.mxu0 %v4025
        %5070 = vmatprep.subr.bf16.mxu0 %v4058
        %5071 = vmatpush1.bf16.msra.mxu0 %v4057
        %5072 = vmatprep.subr.bf16.mxu0 %v4090
        %5073 = vmatpush1.bf16.msra.mxu0 %v4089
        %5074 = vmatprep.subr.bf16.mxu0 %v4122
        %5075 = vmatpush1.bf16.msra.mxu0 %v4121
        %5076 = vmatprep.subr.bf16.mxu0 %v4154
        %5077 = vmatpush1.bf16.msra.mxu0 %v4153
        %5078 = vmatprep.subr.bf16.mxu0 %v4903
        %5079 = vmatpush1.bf16.msra.mxu0 %v4900
        %5080 = vmatprep.subr.bf16.mxu0 0
        %5081 = vmatpush1.bf16.msra.mxu0 0
        %5082 = vmatprep.subr.bf16.mxu0 0
        %5083 = vmatpush1.bf16.msra.mxu0 0
        %5084 = vmatprep.subr.bf16.mxu0 0
        %5085 = vmatpush1.bf16.msra.mxu0 0
        %5086 = vmatprep.subr.bf16.mxu0 0
        %5087 = vmatpush1.bf16.msra.mxu0 0
        %5088 = vmatprep.subr.bf16.mxu0 0
        %5089 = vmatpush1.bf16.msra.mxu0 0
        %5090 = vmatprep.subr.bf16.mxu0 0
        %5091 = vmatpush1.bf16.msra.mxu0 0
        %5092 = vmatprep.subr.bf16.mxu0 0
        %5093 = vmatpush1.bf16.msra.mxu0 0
        %5094 = vmatprep.subr.bf16.mxu0 0
        %5095 = vmatpush1.bf16.msra.mxu0 0
        %5096 = vmatprep.subr.bf16.mxu0 0
        %5097 = vmatpush1.bf16.msra.mxu0 0
        %5098 = vmatprep.subr.bf16.mxu0 0
        %5099 = vmatpush1.bf16.msra.mxu0 0
        %5100 = vmatprep.mubr.bf16.mxu0 0
        %5101 = vmatmul.mubr.bf16.gmra.mrb[0].mxu0 %v4890
        %v5102 = vpop.f32.mrb[0].mxu0
        %v5103 = vadd.f32 %v5030, %v5102
        %v5104 = vpop.f32.mrb[0].mxu0
        %v5105 = vadd.f32 %v5032, %v5104
        %v5106 = vpop.f32.mrb[0].mxu0
        %v5107 = vadd.f32 %v5034, %v5106
        %v5108 = vpop.f32.mrb[0].mxu0
        %v5109 = vadd.f32 %v5036, %v5108
        %5110 = vmatprep.mubr.bf16.mxu0 0
        %5111 = vmatmul.mubr.bf16.gmra.mrb[0].mxu0 %v4892
        %v5112 = vpop.f32.mrb[0].mxu0
        %v5113 = vadd.f32 %v5040, %v5112
        %v5114 = vpop.f32.mrb[0].mxu0
        %v5115 = vadd.f32 %v5042, %v5114
        %v5116 = vpop.f32.mrb[0].mxu0
        %v5117 = vadd.f32 %v5044, %v5116
        %v5118 = vpop.f32.mrb[0].mxu0
        %v5119 = vadd.f32 %v5046, %v5118
        %5120 = vmatprep.mubr.bf16.mxu0 0
        %5121 = vmatmul.mubr.bf16.gmra.mrb[0].mxu0 %v4894
        %v5122 = vpop.f32.mrb[0].mxu0
        %v5123 = vadd.f32 %v5050, %v5122
        %v5124 = vpop.f32.mrb[0].mxu0
        %v5125 = vadd.f32 %v5052, %v5124
        %v5126 = vpop.f32.mrb[0].mxu0
        %v5127 = vadd.f32 %v5054, %v5126
        %v5128 = vpop.f32.mrb[0].mxu0
        %v5129 = vadd.f32 %v5056, %v5128
        %5130 = vmatprep.mubr.bf16.mxu0 0
        %5131 = vmatmul.mubr.bf16.gmra.mrb[0].mxu0 %v4896
        %v5132 = vpop.f32.mrb[0].mxu0
        %v5133 = vadd.f32 %v5060, %v5132
        %v5134 = vpop.f32.mrb[0].mxu0
        %v5135 = vadd.f32 %v5062, %v5134
        %v5136 = vpop.f32.mrb[0].mxu0
        %v5137 = vadd.f32 %v5064, %v5136
        %v5138 = vpop.f32.mrb[0].mxu0
        %v5139 = vadd.f32 %v5066, %v5138
        %5140 = vdwg.mxu0
        %5141 = vmatprep.subr.bf16.mxu0 %v3516
        %5142 = vmatpush1.bf16.msra.mxu0 %v3515
        %5143 = vmatprep.subr.bf16.mxu0 %v3548
        %5144 = vmatpush1.bf16.msra.mxu0 %v3547
        %5145 = vmatprep.subr.bf16.mxu0 %v3580
        %5146 = vmatpush1.bf16.msra.mxu0 %v3579
        %5147 = vmatprep.subr.bf16.mxu0 %v3612
        %5148 = vmatpush1.bf16.msra.mxu0 %v3611
        %5149 = vmatprep.subr.bf16.mxu0 %v3644
        %5150 = vmatpush1.bf16.msra.mxu0 %v3643
        %5151 = vmatprep.subr.bf16.mxu0 %v3676
        %5152 = vmatpush1.bf16.msra.mxu0 %v3675
        %5153 = vmatprep.subr.bf16.mxu0 %v3708
        %5154 = vmatpush1.bf16.msra.mxu0 %v3707
        %5155 = vmatprep.subr.bf16.mxu0 %v3740
        %5156 = vmatpush1.bf16.msra.mxu0 %v3739
        %5157 = vmatprep.subr.bf16.mxu0 %v3772
        %5158 = vmatpush1.bf16.msra.mxu0 %v3771
        %5159 = vmatprep.subr.bf16.mxu0 %v3804
        %5160 = vmatpush1.bf16.msra.mxu0 %v3803
        %5161 = vmatprep.subr.bf16.mxu0 %v3836
        %5162 = vmatpush1.bf16.msra.mxu0 %v3835
        %5163 = vmatprep.subr.bf16.mxu0 %v3868
        %5164 = vmatpush1.bf16.msra.mxu0 %v3867
        %5165 = vmatprep.subr.bf16.mxu0 %v3900
        %5166 = vmatpush1.bf16.msra.mxu0 %v3899
        %5167 = vmatprep.subr.bf16.mxu0 %v3932
        %5168 = vmatpush1.bf16.msra.mxu0 %v3931
        %5169 = vmatprep.subr.bf16.mxu0 %v3964
        %5170 = vmatpush1.bf16.msra.mxu0 %v3963
        %5171 = vmatprep.subr.bf16.mxu0 %v3996
        %5172 = vmatpush1.bf16.msra.mxu0 %v3995
        %5173 = vmatprep.mubr.bf16.mxu0 %v573
        %5174 = vmatmul.mubr.bf16.gmra.mrb[0].mxu0 %v548
        %v5175 = vpop.f32.mrb[0].mxu0
        %v5176 = vadd.f32 %v1300, %v5175
        %v5177 = vpop.f32.mrb[0].mxu0
        %v5178 = vadd.f32 %v1304, %v5177
        %v5179 = vpop.f32.mrb[0].mxu0
        %v5180 = vadd.f32 %v1300, %v5179
        %v5181 = vpop.f32.mrb[0].mxu0
        %v5182 = vadd.f32 %v1304, %v5181
        %5183 = vmatprep.mubr.bf16.mxu0 %v576
        %5184 = vmatmul.mubr.bf16.gmra.mrb[0].mxu0 %v552
        %v5185 = vpop.f32.mrb[0].mxu0
        %v5186 = vadd.f32 %v1300, %v5185
        %v5187 = vpop.f32.mrb[0].mxu0
        %v5188 = vadd.f32 %v1304, %v5187
        %v5189 = vpop.f32.mrb[0].mxu0
        %v5190 = vadd.f32 %v1300, %v5189
        %v5191 = vpop.f32.mrb[0].mxu0
        %v5192 = vadd.f32 %v1304, %v5191
        %5193 = vmatprep.mubr.bf16.mxu0 %v579
        %5194 = vmatmul.mubr.bf16.gmra.mrb[0].mxu0 %v556
        %v5195 = vpop.f32.mrb[0].mxu0
        %v5196 = vadd.f32 %v1300, %v5195
        %v5197 = vpop.f32.mrb[0].mxu0
        %v5198 = vadd.f32 %v1304, %v5197
        %v5199 = vpop.f32.mrb[0].mxu0
        %v5200 = vadd.f32 %v1300, %v5199
        %v5201 = vpop.f32.mrb[0].mxu0
        %v5202 = vadd.f32 %v1304, %v5201
        %5203 = vmatprep.mubr.bf16.mxu0 %v582
        %5204 = vmatmul.mubr.bf16.gmra.mrb[0].mxu0 %v560
        %v5205 = vpop.f32.mrb[0].mxu0
        %v5206 = vadd.f32 %v1300, %v5205
        %v5207 = vpop.f32.mrb[0].mxu0
        %v5208 = vadd.f32 %v1304, %v5207
        %v5209 = vpop.f32.mrb[0].mxu0
        %v5210 = vadd.f32 %v1300, %v5209
        %v5211 = vpop.f32.mrb[0].mxu0
        %v5212 = vadd.f32 %v1304, %v5211
        %5213 = vdwg.mxu0
        %5214 = vmatprep.subr.bf16.mxu0 %v4028
        %5215 = vmatpush1.bf16.msra.mxu0 %v4027
        %5216 = vmatprep.subr.bf16.mxu0 %v4060
        %5217 = vmatpush1.bf16.msra.mxu0 %v4059
        %5218 = vmatprep.subr.bf16.mxu0 %v4092
        %5219 = vmatpush1.bf16.msra.mxu0 %v4091
        %5220 = vmatprep.subr.bf16.mxu0 %v4124
        %5221 = vmatpush1.bf16.msra.mxu0 %v4123
        %5222 = vmatprep.subr.bf16.mxu0 %v4156
        %5223 = vmatpush1.bf16.msra.mxu0 %v4155
        %5224 = vmatprep.subr.bf16.mxu0 %v4909
        %5225 = vmatpush1.bf16.msra.mxu0 %v4906
        %5226 = vmatprep.subr.bf16.mxu0 0
        %5227 = vmatpush1.bf16.msra.mxu0 0
        %5228 = vmatprep.subr.bf16.mxu0 0
        %5229 = vmatpush1.bf16.msra.mxu0 0
        %5230 = vmatprep.subr.bf16.mxu0 0
        %5231 = vmatpush1.bf16.msra.mxu0 0
        %5232 = vmatprep.subr.bf16.mxu0 0
        %5233 = vmatpush1.bf16.msra.mxu0 0
        %5234 = vmatprep.subr.bf16.mxu0 0
        %5235 = vmatpush1.bf16.msra.mxu0 0
        %5236 = vmatprep.subr.bf16.mxu0 0
        %5237 = vmatpush1.bf16.msra.mxu0 0
        %5238 = vmatprep.subr.bf16.mxu0 0
        %5239 = vmatpush1.bf16.msra.mxu0 0
        %5240 = vmatprep.subr.bf16.mxu0 0
        %5241 = vmatpush1.bf16.msra.mxu0 0
        %5242 = vmatprep.subr.bf16.mxu0 0
        %5243 = vmatpush1.bf16.msra.mxu0 0
        %5244 = vmatprep.subr.bf16.mxu0 0
        %5245 = vmatpush1.bf16.msra.mxu0 0
        %5246 = vmatprep.mubr.bf16.mxu0 0
        %5247 = vmatmul.mubr.bf16.gmra.mrb[0].mxu0 %v4890
        %v5248 = vpop.f32.mrb[0].mxu0
        %v5249 = vadd.f32 %v5176, %v5248
        %v5250 = vpop.f32.mrb[0].mxu0
        %v5251 = vadd.f32 %v5178, %v5250
        %v5252 = vpop.f32.mrb[0].mxu0
        %v5253 = vadd.f32 %v5180, %v5252
        %v5254 = vpop.f32.mrb[0].mxu0
        %v5255 = vadd.f32 %v5182, %v5254
        %5256 = vmatprep.mubr.bf16.mxu0 0
        %5257 = vmatmul.mubr.bf16.gmra.mrb[0].mxu0 %v4892
        %v5258 = vpop.f32.mrb[0].mxu0
        %v5259 = vadd.f32 %v5186, %v5258
        %v5260 = vpop.f32.mrb[0].mxu0
        %v5261 = vadd.f32 %v5188, %v5260
        %v5262 = vpop.f32.mrb[0].mxu0
        %v5263 = vadd.f32 %v5190, %v5262
        %v5264 = vpop.f32.mrb[0].mxu0
        %v5265 = vadd.f32 %v5192, %v5264
        %5266 = vmatprep.mubr.bf16.mxu0 0
        %5267 = vmatmul.mubr.bf16.gmra.mrb[0].mxu0 %v4894
        %v5268 = vpop.f32.mrb[0].mxu0
        %v5269 = vadd.f32 %v5196, %v5268
        %v5270 = vpop.f32.mrb[0].mxu0
        %v5271 = vadd.f32 %v5198, %v5270
        %v5272 = vpop.f32.mrb[0].mxu0
        %v5273 = vadd.f32 %v5200, %v5272
        %v5274 = vpop.f32.mrb[0].mxu0
        %v5275 = vadd.f32 %v5202, %v5274
        %5276 = vmatprep.mubr.bf16.mxu0 0
        %5277 = vmatmul.mubr.bf16.gmra.mrb[0].mxu0 %v4896
        %v5278 = vpop.f32.mrb[0].mxu0
        %v5279 = vadd.f32 %v5206, %v5278
        %v5280 = vpop.f32.mrb[0].mxu0
        %v5281 = vadd.f32 %v5208, %v5280
        %v5282 = vpop.f32.mrb[0].mxu0
        %v5283 = vadd.f32 %v5210, %v5282
        %v5284 = vpop.f32.mrb[0].mxu0
        %v5285 = vadd.f32 %v5212, %v5284
        %5286 = vdwg.mxu0
        %5287 = vmatprep.subr.bf16.mxu0 %v3518
        %5288 = vmatpush1.bf16.msra.mxu0 %v3517
        %5289 = vmatprep.subr.bf16.mxu0 %v3550
        %5290 = vmatpush1.bf16.msra.mxu0 %v3549
        %5291 = vmatprep.subr.bf16.mxu0 %v3582
        %5292 = vmatpush1.bf16.msra.mxu0 %v3581
        %5293 = vmatprep.subr.bf16.mxu0 %v3614
        %5294 = vmatpush1.bf16.msra.mxu0 %v3613
        %5295 = vmatprep.subr.bf16.mxu0 %v3646
        %5296 = vmatpush1.bf16.msra.mxu0 %v3645
        %5297 = vmatprep.subr.bf16.mxu0 %v3678
        %5298 = vmatpush1.bf16.msra.mxu0 %v3677
        %5299 = vmatprep.subr.bf16.mxu0 %v3710
        %5300 = vmatpush1.bf16.msra.mxu0 %v3709
        %5301 = vmatprep.subr.bf16.mxu0 %v3742
        %5302 = vmatpush1.bf16.msra.mxu0 %v3741
        %5303 = vmatprep.subr.bf16.mxu0 %v3774
        %5304 = vmatpush1.bf16.msra.mxu0 %v3773
        %5305 = vmatprep.subr.bf16.mxu0 %v3806
        %5306 = vmatpush1.bf16.msra.mxu0 %v3805
        %5307 = vmatprep.subr.bf16.mxu0 %v3838
        %5308 = vmatpush1.bf16.msra.mxu0 %v3837
        %5309 = vmatprep.subr.bf16.mxu0 %v3870
        %5310 = vmatpush1.bf16.msra.mxu0 %v3869
        %5311 = vmatprep.subr.bf16.mxu0 %v3902
        %5312 = vmatpush1.bf16.msra.mxu0 %v3901
        %5313 = vmatprep.subr.bf16.mxu0 %v3934
        %5314 = vmatpush1.bf16.msra.mxu0 %v3933
        %5315 = vmatprep.subr.bf16.mxu0 %v3966
        %5316 = vmatpush1.bf16.msra.mxu0 %v3965
        %5317 = vmatprep.subr.bf16.mxu0 %v3998
        %5318 = vmatpush1.bf16.msra.mxu0 %v3997
        %5319 = vmatprep.mubr.bf16.mxu0 %v573
        %5320 = vmatmul.mubr.bf16.gmra.mrb[0].mxu0 %v548
        %v5321 = vpop.f32.mrb[0].mxu0
        %v5322 = vadd.f32 %v1308, %v5321
        %v5323 = vpop.f32.mrb[0].mxu0
        %v5324 = vadd.f32 %v1312, %v5323
        %v5325 = vpop.f32.mrb[0].mxu0
        %v5326 = vadd.f32 %v1308, %v5325
        %v5327 = vpop.f32.mrb[0].mxu0
        %v5328 = vadd.f32 %v1312, %v5327
        %5329 = vmatprep.mubr.bf16.mxu0 %v576
        %5330 = vmatmul.mubr.bf16.gmra.mrb[0].mxu0 %v552
        %v5331 = vpop.f32.mrb[0].mxu0
        %v5332 = vadd.f32 %v1308, %v5331
        %v5333 = vpop.f32.mrb[0].mxu0
        %v5334 = vadd.f32 %v1312, %v5333
        %v5335 = vpop.f32.mrb[0].mxu0
        %v5336 = vadd.f32 %v1308, %v5335
        %v5337 = vpop.f32.mrb[0].mxu0
        %v5338 = vadd.f32 %v1312, %v5337
        %5339 = vmatprep.mubr.bf16.mxu0 %v579
        %5340 = vmatmul.mubr.bf16.gmra.mrb[0].mxu0 %v556
        %v5341 = vpop.f32.mrb[0].mxu0
        %v5342 = vadd.f32 %v1308, %v5341
        %v5343 = vpop.f32.mrb[0].mxu0
        %v5344 = vadd.f32 %v1312, %v5343
        %v5345 = vpop.f32.mrb[0].mxu0
        %v5346 = vadd.f32 %v1308, %v5345
        %v5347 = vpop.f32.mrb[0].mxu0
        %v5348 = vadd.f32 %v1312, %v5347
        %5349 = vmatprep.mubr.bf16.mxu0 %v582
        %5350 = vmatmul.mubr.bf16.gmra.mrb[0].mxu0 %v560
        %v5351 = vpop.f32.mrb[0].mxu0
        %v5352 = vadd.f32 %v1308, %v5351
        %v5353 = vpop.f32.mrb[0].mxu0
        %v5354 = vadd.f32 %v1312, %v5353
        %v5355 = vpop.f32.mrb[0].mxu0
        %v5356 = vadd.f32 %v1308, %v5355
        %v5357 = vpop.f32.mrb[0].mxu0
        %v5358 = vadd.f32 %v1312, %v5357
        %5359 = vdwg.mxu0
        %5360 = vmatprep.subr.bf16.mxu0 %v4030
        %5361 = vmatpush1.bf16.msra.mxu0 %v4029
        %5362 = vmatprep.subr.bf16.mxu0 %v4062
        %5363 = vmatpush1.bf16.msra.mxu0 %v4061
        %5364 = vmatprep.subr.bf16.mxu0 %v4094
        %5365 = vmatpush1.bf16.msra.mxu0 %v4093
        %5366 = vmatprep.subr.bf16.mxu0 %v4126
        %5367 = vmatpush1.bf16.msra.mxu0 %v4125
        %5368 = vmatprep.subr.bf16.mxu0 %v4158
        %5369 = vmatpush1.bf16.msra.mxu0 %v4157
        %5370 = vmatprep.subr.bf16.mxu0 %v4915
        %5371 = vmatpush1.bf16.msra.mxu0 %v4912
        %5372 = vmatprep.subr.bf16.mxu0 0
        %5373 = vmatpush1.bf16.msra.mxu0 0
        %5374 = vmatprep.subr.bf16.mxu0 0
        %5375 = vmatpush1.bf16.msra.mxu0 0
        %5376 = vmatprep.subr.bf16.mxu0 0
        %5377 = vmatpush1.bf16.msra.mxu0 0
        %5378 = vmatprep.subr.bf16.mxu0 0
        %5379 = vmatpush1.bf16.msra.mxu0 0
        %5380 = vmatprep.subr.bf16.mxu0 0
        %5381 = vmatpush1.bf16.msra.mxu0 0
        %5382 = vmatprep.subr.bf16.mxu0 0
        %5383 = vmatpush1.bf16.msra.mxu0 0
        %5384 = vmatprep.subr.bf16.mxu0 0
        %5385 = vmatpush1.bf16.msra.mxu0 0
        %5386 = vmatprep.subr.bf16.mxu0 0
        %5387 = vmatpush1.bf16.msra.mxu0 0
        %5388 = vmatprep.subr.bf16.mxu0 0
        %5389 = vmatpush1.bf16.msra.mxu0 0
        %5390 = vmatprep.subr.bf16.mxu0 0
        %5391 = vmatpush1.bf16.msra.mxu0 0
        %5392 = vmatprep.mubr.bf16.mxu0 0
        %5393 = vmatmul.mubr.bf16.gmra.mrb[0].mxu0 %v4890
        %v5394 = vpop.f32.mrb[0].mxu0
        %v5395 = vadd.f32 %v5322, %v5394
        %v5396 = vpop.f32.mrb[0].mxu0
        %v5397 = vadd.f32 %v5324, %v5396
        %v5398 = vpop.f32.mrb[0].mxu0
        %v5399 = vadd.f32 %v5326, %v5398
        %v5400 = vpop.f32.mrb[0].mxu0
        %v5401 = vadd.f32 %v5328, %v5400
        %5402 = vmatprep.mubr.bf16.mxu0 0
        %5403 = vmatmul.mubr.bf16.gmra.mrb[0].mxu0 %v4892
        %v5404 = vpop.f32.mrb[0].mxu0
        %v5405 = vadd.f32 %v5332, %v5404
        %v5406 = vpop.f32.mrb[0].mxu0
        %v5407 = vadd.f32 %v5334, %v5406
        %v5408 = vpop.f32.mrb[0].mxu0
        %v5409 = vadd.f32 %v5336, %v5408
        %v5410 = vpop.f32.mrb[0].mxu0
        %v5411 = vadd.f32 %v5338, %v5410
        %5412 = vmatprep.mubr.bf16.mxu0 0
        %5413 = vmatmul.mubr.bf16.gmra.mrb[0].mxu0 %v4894
        %v5414 = vpop.f32.mrb[0].mxu0
        %v5415 = vadd.f32 %v5342, %v5414
        %v5416 = vpop.f32.mrb[0].mxu0
        %v5417 = vadd.f32 %v5344, %v5416
        %v5418 = vpop.f32.mrb[0].mxu0
        %v5419 = vadd.f32 %v5346, %v5418
        %v5420 = vpop.f32.mrb[0].mxu0
        %v5421 = vadd.f32 %v5348, %v5420
        %5422 = vmatprep.mubr.bf16.mxu0 0
        %5423 = vmatmul.mubr.bf16.gmra.mrb[0].mxu0 %v4896
        %v5424 = vpop.f32.mrb[0].mxu0
        %v5425 = vadd.f32 %v5352, %v5424
        %v5426 = vpop.f32.mrb[0].mxu0
        %v5427 = vadd.f32 %v5354, %v5426
        %v5428 = vpop.f32.mrb[0].mxu0
        %v5429 = vadd.f32 %v5356, %v5428
        %v5430 = vpop.f32.mrb[0].mxu0
        %v5431 = vadd.f32 %v5358, %v5430
        %5432 = vdwg.mxu0
        %5433 = vmatprep.subr.bf16.mxu0 %v3520
        %5434 = vmatpush1.bf16.msra.mxu0 %v3519
        %5435 = vmatprep.subr.bf16.mxu0 %v3552
        %5436 = vmatpush1.bf16.msra.mxu0 %v3551
        %5437 = vmatprep.subr.bf16.mxu0 %v3584
        %5438 = vmatpush1.bf16.msra.mxu0 %v3583
        %5439 = vmatprep.subr.bf16.mxu0 %v3616
        %5440 = vmatpush1.bf16.msra.mxu0 %v3615
        %5441 = vmatprep.subr.bf16.mxu0 %v3648
        %5442 = vmatpush1.bf16.msra.mxu0 %v3647
        %5443 = vmatprep.subr.bf16.mxu0 %v3680
        %5444 = vmatpush1.bf16.msra.mxu0 %v3679
        %5445 = vmatprep.subr.bf16.mxu0 %v3712
        %5446 = vmatpush1.bf16.msra.mxu0 %v3711
        %5447 = vmatprep.subr.bf16.mxu0 %v3744
        %5448 = vmatpush1.bf16.msra.mxu0 %v3743
        %5449 = vmatprep.subr.bf16.mxu0 %v3776
        %5450 = vmatpush1.bf16.msra.mxu0 %v3775
        %5451 = vmatprep.subr.bf16.mxu0 %v3808
        %5452 = vmatpush1.bf16.msra.mxu0 %v3807
        %5453 = vmatprep.subr.bf16.mxu0 %v3840
        %5454 = vmatpush1.bf16.msra.mxu0 %v3839
        %5455 = vmatprep.subr.bf16.mxu0 %v3872
        %5456 = vmatpush1.bf16.msra.mxu0 %v3871
        %5457 = vmatprep.subr.bf16.mxu0 %v3904
        %5458 = vmatpush1.bf16.msra.mxu0 %v3903
        %5459 = vmatprep.subr.bf16.mxu0 %v3936
        %5460 = vmatpush1.bf16.msra.mxu0 %v3935
        %5461 = vmatprep.subr.bf16.mxu0 %v3968
        %5462 = vmatpush1.bf16.msra.mxu0 %v3967
        %5463 = vmatprep.subr.bf16.mxu0 %v4000
        %5464 = vmatpush1.bf16.msra.mxu0 %v3999
        %5465 = vmatprep.mubr.bf16.mxu0 %v573
        %5466 = vmatmul.mubr.bf16.gmra.mrb[0].mxu0 %v548
        %v5467 = vpop.f32.mrb[0].mxu0
        %v5468 = vadd.f32 %v1316, %v5467
        %v5469 = vpop.f32.mrb[0].mxu0
        %v5470 = vadd.f32 %v1320, %v5469
        %v5471 = vpop.f32.mrb[0].mxu0
        %v5472 = vadd.f32 %v1316, %v5471
        %v5473 = vpop.f32.mrb[0].mxu0
        %v5474 = vadd.f32 %v1320, %v5473
        %5475 = vmatprep.mubr.bf16.mxu0 %v576
        %5476 = vmatmul.mubr.bf16.gmra.mrb[0].mxu0 %v552
        %v5477 = vpop.f32.mrb[0].mxu0
        %v5478 = vadd.f32 %v1316, %v5477
        %v5479 = vpop.f32.mrb[0].mxu0
        %v5480 = vadd.f32 %v1320, %v5479
        %v5481 = vpop.f32.mrb[0].mxu0
        %v5482 = vadd.f32 %v1316, %v5481
        %v5483 = vpop.f32.mrb[0].mxu0
        %v5484 = vadd.f32 %v1320, %v5483
        %5485 = vmatprep.mubr.bf16.mxu0 %v579
        %5486 = vmatmul.mubr.bf16.gmra.mrb[0].mxu0 %v556
        %v5487 = vpop.f32.mrb[0].mxu0
        %v5488 = vadd.f32 %v1316, %v5487
        %v5489 = vpop.f32.mrb[0].mxu0
        %v5490 = vadd.f32 %v1320, %v5489
        %v5491 = vpop.f32.mrb[0].mxu0
        %v5492 = vadd.f32 %v1316, %v5491
        %v5493 = vpop.f32.mrb[0].mxu0
        %v5494 = vadd.f32 %v1320, %v5493
        %5495 = vmatprep.mubr.bf16.mxu0 %v582
        %5496 = vmatmul.mubr.bf16.gmra.mrb[0].mxu0 %v560
        %v5497 = vpop.f32.mrb[0].mxu0
        %v5498 = vadd.f32 %v1316, %v5497
        %v5499 = vpop.f32.mrb[0].mxu0
        %v5500 = vadd.f32 %v1320, %v5499
        %v5501 = vpop.f32.mrb[0].mxu0
        %v5502 = vadd.f32 %v1316, %v5501
        %v5503 = vpop.f32.mrb[0].mxu0
        %v5504 = vadd.f32 %v1320, %v5503
        %5505 = vdwg.mxu0
        %5506 = vmatprep.subr.bf16.mxu0 %v4032
        %5507 = vmatpush1.bf16.msra.mxu0 %v4031
        %5508 = vmatprep.subr.bf16.mxu0 %v4064
        %5509 = vmatpush1.bf16.msra.mxu0 %v4063
        %5510 = vmatprep.subr.bf16.mxu0 %v4096
        %5511 = vmatpush1.bf16.msra.mxu0 %v4095
        %5512 = vmatprep.subr.bf16.mxu0 %v4128
        %5513 = vmatpush1.bf16.msra.mxu0 %v4127
        %5514 = vmatprep.subr.bf16.mxu0 %v4160
        %5515 = vmatpush1.bf16.msra.mxu0 %v4159
        %5516 = vmatprep.subr.bf16.mxu0 %v4921
        %5517 = vmatpush1.bf16.msra.mxu0 %v4918
        %5518 = vmatprep.subr.bf16.mxu0 0
        %5519 = vmatpush1.bf16.msra.mxu0 0
        %5520 = vmatprep.subr.bf16.mxu0 0
        %5521 = vmatpush1.bf16.msra.mxu0 0
        %5522 = vmatprep.subr.bf16.mxu0 0
        %5523 = vmatpush1.bf16.msra.mxu0 0
        %5524 = vmatprep.subr.bf16.mxu0 0
        %5525 = vmatpush1.bf16.msra.mxu0 0
        %5526 = vmatprep.subr.bf16.mxu0 0
        %5527 = vmatpush1.bf16.msra.mxu0 0
        %5528 = vmatprep.subr.bf16.mxu0 0
        %5529 = vmatpush1.bf16.msra.mxu0 0
        %5530 = vmatprep.subr.bf16.mxu0 0
        %5531 = vmatpush1.bf16.msra.mxu0 0
        %5532 = vmatprep.subr.bf16.mxu0 0
        %5533 = vmatpush1.bf16.msra.mxu0 0
        %5534 = vmatprep.subr.bf16.mxu0 0
        %5535 = vmatpush1.bf16.msra.mxu0 0
        %5536 = vmatprep.subr.bf16.mxu0 0
        %5537 = vmatpush1.bf16.msra.mxu0 0
        %5538 = vmatprep.mubr.bf16.mxu0 0
        %5539 = vmatmul.mubr.bf16.gmra.mrb[0].mxu0 %v4890
        %v5540 = vpop.f32.mrb[0].mxu0
        %v5541 = vadd.f32 %v5468, %v5540
        %v5542 = vpop.f32.mrb[0].mxu0
        %v5543 = vadd.f32 %v5470, %v5542
        %v5544 = vpop.f32.mrb[0].mxu0
        %v5545 = vadd.f32 %v5472, %v5544
        %v5546 = vpop.f32.mrb[0].mxu0
        %v5547 = vadd.f32 %v5474, %v5546
        %5548 = vmatprep.mubr.bf16.mxu0 0
        %5549 = vmatmul.mubr.bf16.gmra.mrb[0].mxu0 %v4892
        %v5550 = vpop.f32.mrb[0].mxu0
        %v5551 = vadd.f32 %v5478, %v5550
        %v5552 = vpop.f32.mrb[0].mxu0
        %v5553 = vadd.f32 %v5480, %v5552
        %v5554 = vpop.f32.mrb[0].mxu0
        %v5555 = vadd.f32 %v5482, %v5554
        %v5556 = vpop.f32.mrb[0].mxu0
        %v5557 = vadd.f32 %v5484, %v5556
        %5558 = vmatprep.mubr.bf16.mxu0 0
        %5559 = vmatmul.mubr.bf16.gmra.mrb[0].mxu0 %v4894
        %v5560 = vpop.f32.mrb[0].mxu0
        %v5561 = vadd.f32 %v5488, %v5560
        %v5562 = vpop.f32.mrb[0].mxu0
        %v5563 = vadd.f32 %v5490, %v5562
        %v5564 = vpop.f32.mrb[0].mxu0
        %v5565 = vadd.f32 %v5492, %v5564
        %v5566 = vpop.f32.mrb[0].mxu0
        %v5567 = vadd.f32 %v5494, %v5566
        %5568 = vmatprep.mubr.bf16.mxu0 0
        %5569 = vmatmul.mubr.bf16.gmra.mrb[0].mxu0 %v4896
        %v5570 = vpop.f32.mrb[0].mxu0
        %v5571 = vadd.f32 %v5498, %v5570
        %v5572 = vpop.f32.mrb[0].mxu0
        %v5573 = vadd.f32 %v5500, %v5572
        %v5574 = vpop.f32.mrb[0].mxu0
        %v5575 = vadd.f32 %v5502, %v5574
        %v5576 = vpop.f32.mrb[0].mxu0
        %v5577 = vadd.f32 %v5504, %v5576
        %5578 = vdwg.mxu0
        %5579 = vmatprep.subr.bf16.mxu0 %v3522
        %5580 = vmatpush1.bf16.msra.mxu0 %v3521
        %5581 = vmatprep.subr.bf16.mxu0 %v3554
        %5582 = vmatpush1.bf16.msra.mxu0 %v3553
        %5583 = vmatprep.subr.bf16.mxu0 %v3586
        %5584 = vmatpush1.bf16.msra.mxu0 %v3585
        %5585 = vmatprep.subr.bf16.mxu0 %v3618
        %5586 = vmatpush1.bf16.msra.mxu0 %v3617
        %5587 = vmatprep.subr.bf16.mxu0 %v3650
        %5588 = vmatpush1.bf16.msra.mxu0 %v3649
        %5589 = vmatprep.subr.bf16.mxu0 %v3682
        %5590 = vmatpush1.bf16.msra.mxu0 %v3681
        %5591 = vmatprep.subr.bf16.mxu0 %v3714
        %5592 = vmatpush1.bf16.msra.mxu0 %v3713
        %5593 = vmatprep.subr.bf16.mxu0 %v3746
        %5594 = vmatpush1.bf16.msra.mxu0 %v3745
        %5595 = vmatprep.subr.bf16.mxu0 %v3778
        %5596 = vmatpush1.bf16.msra.mxu0 %v3777
        %5597 = vmatprep.subr.bf16.mxu0 %v3810
        %5598 = vmatpush1.bf16.msra.mxu0 %v3809
        %5599 = vmatprep.subr.bf16.mxu0 %v3842
        %5600 = vmatpush1.bf16.msra.mxu0 %v3841
        %5601 = vmatprep.subr.bf16.mxu0 %v3874
        %5602 = vmatpush1.bf16.msra.mxu0 %v3873
        %5603 = vmatprep.subr.bf16.mxu0 %v3906
        %5604 = vmatpush1.bf16.msra.mxu0 %v3905
        %5605 = vmatprep.subr.bf16.mxu0 %v3938
        %5606 = vmatpush1.bf16.msra.mxu0 %v3937
        %5607 = vmatprep.subr.bf16.mxu0 %v3970
        %5608 = vmatpush1.bf16.msra.mxu0 %v3969
        %5609 = vmatprep.subr.bf16.mxu0 %v4002
        %5610 = vmatpush1.bf16.msra.mxu0 %v4001
        %5611 = vmatprep.mubr.bf16.mxu0 %v573
        %5612 = vmatmul.mubr.bf16.gmra.mrb[0].mxu0 %v548
        %v5613 = vpop.f32.mrb[0].mxu0
        %v5614 = vadd.f32 %v1324, %v5613
        %v5615 = vpop.f32.mrb[0].mxu0
        %v5616 = vadd.f32 %v1328, %v5615
        %v5617 = vpop.f32.mrb[0].mxu0
        %v5618 = vadd.f32 %v1324, %v5617
        %v5619 = vpop.f32.mrb[0].mxu0
        %v5620 = vadd.f32 %v1328, %v5619
        %5621 = vmatprep.mubr.bf16.mxu0 %v576
        %5622 = vmatmul.mubr.bf16.gmra.mrb[0].mxu0 %v552
        %v5623 = vpop.f32.mrb[0].mxu0
        %v5624 = vadd.f32 %v1324, %v5623
        %v5625 = vpop.f32.mrb[0].mxu0
        %v5626 = vadd.f32 %v1328, %v5625
        %v5627 = vpop.f32.mrb[0].mxu0
        %v5628 = vadd.f32 %v1324, %v5627
        %v5629 = vpop.f32.mrb[0].mxu0
        %v5630 = vadd.f32 %v1328, %v5629
        %5631 = vmatprep.mubr.bf16.mxu0 %v579
        %5632 = vmatmul.mubr.bf16.gmra.mrb[0].mxu0 %v556
        %v5633 = vpop.f32.mrb[0].mxu0
        %v5634 = vadd.f32 %v1324, %v5633
        %v5635 = vpop.f32.mrb[0].mxu0
        %v5636 = vadd.f32 %v1328, %v5635
        %v5637 = vpop.f32.mrb[0].mxu0
        %v5638 = vadd.f32 %v1324, %v5637
        %v5639 = vpop.f32.mrb[0].mxu0
        %v5640 = vadd.f32 %v1328, %v5639
        %5641 = vmatprep.mubr.bf16.mxu0 %v582
        %5642 = vmatmul.mubr.bf16.gmra.mrb[0].mxu0 %v560
        %v5643 = vpop.f32.mrb[0].mxu0
        %v5644 = vadd.f32 %v1324, %v5643
        %v5645 = vpop.f32.mrb[0].mxu0
        %v5646 = vadd.f32 %v1328, %v5645
        %v5647 = vpop.f32.mrb[0].mxu0
        %v5648 = vadd.f32 %v1324, %v5647
        %v5649 = vpop.f32.mrb[0].mxu0
        %v5650 = vadd.f32 %v1328, %v5649
        %5651 = vdwg.mxu0
        %5652 = vmatprep.subr.bf16.mxu0 %v4034
        %5653 = vmatpush1.bf16.msra.mxu0 %v4033
        %5654 = vmatprep.subr.bf16.mxu0 %v4066
        %5655 = vmatpush1.bf16.msra.mxu0 %v4065
        %5656 = vmatprep.subr.bf16.mxu0 %v4098
        %5657 = vmatpush1.bf16.msra.mxu0 %v4097
        %5658 = vmatprep.subr.bf16.mxu0 %v4130
        %5659 = vmatpush1.bf16.msra.mxu0 %v4129
        %5660 = vmatprep.subr.bf16.mxu0 %v4162
        %5661 = vmatpush1.bf16.msra.mxu0 %v4161
        %5662 = vmatprep.subr.bf16.mxu0 %v4927
        %5663 = vmatpush1.bf16.msra.mxu0 %v4924
        %5664 = vmatprep.subr.bf16.mxu0 0
        %5665 = vmatpush1.bf16.msra.mxu0 0
        %5666 = vmatprep.subr.bf16.mxu0 0
        %5667 = vmatpush1.bf16.msra.mxu0 0
        %5668 = vmatprep.subr.bf16.mxu0 0
        %5669 = vmatpush1.bf16.msra.mxu0 0
        %5670 = vmatprep.subr.bf16.mxu0 0
        %5671 = vmatpush1.bf16.msra.mxu0 0
        %5672 = vmatprep.subr.bf16.mxu0 0
        %5673 = vmatpush1.bf16.msra.mxu0 0
        %5674 = vmatprep.subr.bf16.mxu0 0
        %5675 = vmatpush1.bf16.msra.mxu0 0
        %5676 = vmatprep.subr.bf16.mxu0 0
        %5677 = vmatpush1.bf16.msra.mxu0 0
        %5678 = vmatprep.subr.bf16.mxu0 0
        %5679 = vmatpush1.bf16.msra.mxu0 0
        %5680 = vmatprep.subr.bf16.mxu0 0
        %5681 = vmatpush1.bf16.msra.mxu0 0
        %5682 = vmatprep.subr.bf16.mxu0 0
        %5683 = vmatpush1.bf16.msra.mxu0 0
        %5684 = vmatprep.mubr.bf16.mxu0 0
        %5685 = vmatmul.mubr.bf16.gmra.mrb[0].mxu0 %v4890
        %v5686 = vpop.f32.mrb[0].mxu0
        %v5687 = vadd.f32 %v5614, %v5686
        %v5688 = vpop.f32.mrb[0].mxu0
        %v5689 = vadd.f32 %v5616, %v5688
        %v5690 = vpop.f32.mrb[0].mxu0
        %v5691 = vadd.f32 %v5618, %v5690
        %v5692 = vpop.f32.mrb[0].mxu0
        %v5693 = vadd.f32 %v5620, %v5692
        %5694 = vmatprep.mubr.bf16.mxu0 0
        %5695 = vmatmul.mubr.bf16.gmra.mrb[0].mxu0 %v4892
        %v5696 = vpop.f32.mrb[0].mxu0
        %v5697 = vadd.f32 %v5624, %v5696
        %v5698 = vpop.f32.mrb[0].mxu0
        %v5699 = vadd.f32 %v5626, %v5698
        %v5700 = vpop.f32.mrb[0].mxu0
        %v5701 = vadd.f32 %v5628, %v5700
        %v5702 = vpop.f32.mrb[0].mxu0
        %v5703 = vadd.f32 %v5630, %v5702
        %5704 = vmatprep.mubr.bf16.mxu0 0
        %5705 = vmatmul.mubr.bf16.gmra.mrb[0].mxu0 %v4894
        %v5706 = vpop.f32.mrb[0].mxu0
        %v5707 = vadd.f32 %v5634, %v5706
        %v5708 = vpop.f32.mrb[0].mxu0
        %v5709 = vadd.f32 %v5636, %v5708
        %v5710 = vpop.f32.mrb[0].mxu0
        %v5711 = vadd.f32 %v5638, %v5710
        %v5712 = vpop.f32.mrb[0].mxu0
        %v5713 = vadd.f32 %v5640, %v5712
        %5714 = vmatprep.mubr.bf16.mxu0 0
        %5715 = vmatmul.mubr.bf16.gmra.mrb[0].mxu0 %v4896
        %v5716 = vpop.f32.mrb[0].mxu0
        %v5717 = vadd.f32 %v5644, %v5716
        %v5718 = vpop.f32.mrb[0].mxu0
        %v5719 = vadd.f32 %v5646, %v5718
        %v5720 = vpop.f32.mrb[0].mxu0
        %v5721 = vadd.f32 %v5648, %v5720
        %v5722 = vpop.f32.mrb[0].mxu0
        %v5723 = vadd.f32 %v5650, %v5722
        %5724 = vdwg.mxu0
        %5725 = vmatprep.subr.bf16.mxu0 %v3524
        %5726 = vmatpush1.bf16.msra.mxu0 %v3523
        %5727 = vmatprep.subr.bf16.mxu0 %v3556
        %5728 = vmatpush1.bf16.msra.mxu0 %v3555
        %5729 = vmatprep.subr.bf16.mxu0 %v3588
        %5730 = vmatpush1.bf16.msra.mxu0 %v3587
        %5731 = vmatprep.subr.bf16.mxu0 %v3620
        %5732 = vmatpush1.bf16.msra.mxu0 %v3619
        %5733 = vmatprep.subr.bf16.mxu0 %v3652
        %5734 = vmatpush1.bf16.msra.mxu0 %v3651
        %5735 = vmatprep.subr.bf16.mxu0 %v3684
        %5736 = vmatpush1.bf16.msra.mxu0 %v3683
        %5737 = vmatprep.subr.bf16.mxu0 %v3716
        %5738 = vmatpush1.bf16.msra.mxu0 %v3715
        %5739 = vmatprep.subr.bf16.mxu0 %v3748
        %5740 = vmatpush1.bf16.msra.mxu0 %v3747
        %5741 = vmatprep.subr.bf16.mxu0 %v3780
        %5742 = vmatpush1.bf16.msra.mxu0 %v3779
        %5743 = vmatprep.subr.bf16.mxu0 %v3812
        %5744 = vmatpush1.bf16.msra.mxu0 %v3811
        %5745 = vmatprep.subr.bf16.mxu0 %v3844
        %5746 = vmatpush1.bf16.msra.mxu0 %v3843
        %5747 = vmatprep.subr.bf16.mxu0 %v3876
        %5748 = vmatpush1.bf16.msra.mxu0 %v3875
        %5749 = vmatprep.subr.bf16.mxu0 %v3908
        %5750 = vmatpush1.bf16.msra.mxu0 %v3907
        %5751 = vmatprep.subr.bf16.mxu0 %v3940
        %5752 = vmatpush1.bf16.msra.mxu0 %v3939
        %5753 = vmatprep.subr.bf16.mxu0 %v3972
        %5754 = vmatpush1.bf16.msra.mxu0 %v3971
        %5755 = vmatprep.subr.bf16.mxu0 %v4004
        %5756 = vmatpush1.bf16.msra.mxu0 %v4003
        %5757 = vmatprep.mubr.bf16.mxu0 %v573
        %5758 = vmatmul.mubr.bf16.gmra.mrb[0].mxu0 %v548
        %v5759 = vpop.f32.mrb[0].mxu0
        %v5760 = vadd.f32 %v1332, %v5759
        %v5761 = vpop.f32.mrb[0].mxu0
        %v5762 = vadd.f32 %v1336, %v5761
        %v5763 = vpop.f32.mrb[0].mxu0
        %v5764 = vadd.f32 %v1332, %v5763
        %v5765 = vpop.f32.mrb[0].mxu0
        %v5766 = vadd.f32 %v1336, %v5765
        %5767 = vmatprep.mubr.bf16.mxu0 %v576
        %5768 = vmatmul.mubr.bf16.gmra.mrb[0].mxu0 %v552
        %v5769 = vpop.f32.mrb[0].mxu0
        %v5770 = vadd.f32 %v1332, %v5769
        %v5771 = vpop.f32.mrb[0].mxu0
        %v5772 = vadd.f32 %v1336, %v5771
        %v5773 = vpop.f32.mrb[0].mxu0
        %v5774 = vadd.f32 %v1332, %v5773
        %v5775 = vpop.f32.mrb[0].mxu0
        %v5776 = vadd.f32 %v1336, %v5775
        %5777 = vmatprep.mubr.bf16.mxu0 %v579
        %5778 = vmatmul.mubr.bf16.gmra.mrb[0].mxu0 %v556
        %v5779 = vpop.f32.mrb[0].mxu0
        %v5780 = vadd.f32 %v1332, %v5779
        %v5781 = vpop.f32.mrb[0].mxu0
        %v5782 = vadd.f32 %v1336, %v5781
        %v5783 = vpop.f32.mrb[0].mxu0
        %v5784 = vadd.f32 %v1332, %v5783
        %v5785 = vpop.f32.mrb[0].mxu0
        %v5786 = vadd.f32 %v1336, %v5785
        %5787 = vmatprep.mubr.bf16.mxu0 %v582
        %5788 = vmatmul.mubr.bf16.gmra.mrb[0].mxu0 %v560
        %v5789 = vpop.f32.mrb[0].mxu0
        %v5790 = vadd.f32 %v1332, %v5789
        %v5791 = vpop.f32.mrb[0].mxu0
        %v5792 = vadd.f32 %v1336, %v5791
        %v5793 = vpop.f32.mrb[0].mxu0
        %v5794 = vadd.f32 %v1332, %v5793
        %v5795 = vpop.f32.mrb[0].mxu0
        %v5796 = vadd.f32 %v1336, %v5795
        %5797 = vdwg.mxu0
        %5798 = vmatprep.subr.bf16.mxu0 %v4036
        %5799 = vmatpush1.bf16.msra.mxu0 %v4035
        %5800 = vmatprep.subr.bf16.mxu0 %v4068
        %5801 = vmatpush1.bf16.msra.mxu0 %v4067
        %5802 = vmatprep.subr.bf16.mxu0 %v4100
        %5803 = vmatpush1.bf16.msra.mxu0 %v4099
        %5804 = vmatprep.subr.bf16.mxu0 %v4132
        %5805 = vmatpush1.bf16.msra.mxu0 %v4131
        %5806 = vmatprep.subr.bf16.mxu0 %v4164
        %5807 = vmatpush1.bf16.msra.mxu0 %v4163
        %5808 = vmatprep.subr.bf16.mxu0 %v4933
        %5809 = vmatpush1.bf16.msra.mxu0 %v4930
        %5810 = vmatprep.subr.bf16.mxu0 0
        %5811 = vmatpush1.bf16.msra.mxu0 0
        %5812 = vmatprep.subr.bf16.mxu0 0
        %5813 = vmatpush1.bf16.msra.mxu0 0
        %5814 = vmatprep.subr.bf16.mxu0 0
        %5815 = vmatpush1.bf16.msra.mxu0 0
        %5816 = vmatprep.subr.bf16.mxu0 0
        %5817 = vmatpush1.bf16.msra.mxu0 0
        %5818 = vmatprep.subr.bf16.mxu0 0
        %5819 = vmatpush1.bf16.msra.mxu0 0
        %5820 = vmatprep.subr.bf16.mxu0 0
        %5821 = vmatpush1.bf16.msra.mxu0 0
        %5822 = vmatprep.subr.bf16.mxu0 0
        %5823 = vmatpush1.bf16.msra.mxu0 0
        %5824 = vmatprep.subr.bf16.mxu0 0
        %5825 = vmatpush1.bf16.msra.mxu0 0
        %5826 = vmatprep.subr.bf16.mxu0 0
        %5827 = vmatpush1.bf16.msra.mxu0 0
        %5828 = vmatprep.subr.bf16.mxu0 0
        %5829 = vmatpush1.bf16.msra.mxu0 0
        %5830 = vmatprep.mubr.bf16.mxu0 0
        %5831 = vmatmul.mubr.bf16.gmra.mrb[0].mxu0 %v4890
        %v5832 = vpop.f32.mrb[0].mxu0
        %v5833 = vadd.f32 %v5760, %v5832
        %v5834 = vpop.f32.mrb[0].mxu0
        %v5835 = vadd.f32 %v5762, %v5834
        %v5836 = vpop.f32.mrb[0].mxu0
        %v5837 = vadd.f32 %v5764, %v5836
        %v5838 = vpop.f32.mrb[0].mxu0
        %v5839 = vadd.f32 %v5766, %v5838
        %5840 = vmatprep.mubr.bf16.mxu0 0
        %5841 = vmatmul.mubr.bf16.gmra.mrb[0].mxu0 %v4892
        %v5842 = vpop.f32.mrb[0].mxu0
        %v5843 = vadd.f32 %v5770, %v5842
        %v5844 = vpop.f32.mrb[0].mxu0
        %v5845 = vadd.f32 %v5772, %v5844
        %v5846 = vpop.f32.mrb[0].mxu0
        %v5847 = vadd.f32 %v5774, %v5846
        %v5848 = vpop.f32.mrb[0].mxu0
        %v5849 = vadd.f32 %v5776, %v5848
        %5850 = vmatprep.mubr.bf16.mxu0 0
        %5851 = vmatmul.mubr.bf16.gmra.mrb[0].mxu0 %v4894
        %v5852 = vpop.f32.mrb[0].mxu0
        %v5853 = vadd.f32 %v5780, %v5852
        %v5854 = vpop.f32.mrb[0].mxu0
        %v5855 = vadd.f32 %v5782, %v5854
        %v5856 = vpop.f32.mrb[0].mxu0
        %v5857 = vadd.f32 %v5784, %v5856
        %v5858 = vpop.f32.mrb[0].mxu0
        %v5859 = vadd.f32 %v5786, %v5858
        %5860 = vmatprep.mubr.bf16.mxu0 0
        %5861 = vmatmul.mubr.bf16.gmra.mrb[0].mxu0 %v4896
        %v5862 = vpop.f32.mrb[0].mxu0
        %v5863 = vadd.f32 %v5790, %v5862
        %v5864 = vpop.f32.mrb[0].mxu0
        %v5865 = vadd.f32 %v5792, %v5864
        %v5866 = vpop.f32.mrb[0].mxu0
        %v5867 = vadd.f32 %v5794, %v5866
        %v5868 = vpop.f32.mrb[0].mxu0
        %v5869 = vadd.f32 %v5796, %v5868
        %5870 = vdwg.mxu0
        %5871 = vmatprep.subr.bf16.mxu0 %v3526
        %5872 = vmatpush1.bf16.msra.mxu0 %v3525
        %5873 = vmatprep.subr.bf16.mxu0 %v3558
        %5874 = vmatpush1.bf16.msra.mxu0 %v3557
        %5875 = vmatprep.subr.bf16.mxu0 %v3590
        %5876 = vmatpush1.bf16.msra.mxu0 %v3589
        %5877 = vmatprep.subr.bf16.mxu0 %v3622
        %5878 = vmatpush1.bf16.msra.mxu0 %v3621
        %5879 = vmatprep.subr.bf16.mxu0 %v3654
        %5880 = vmatpush1.bf16.msra.mxu0 %v3653
        %5881 = vmatprep.subr.bf16.mxu0 %v3686
        %5882 = vmatpush1.bf16.msra.mxu0 %v3685
        %5883 = vmatprep.subr.bf16.mxu0 %v3718
        %5884 = vmatpush1.bf16.msra.mxu0 %v3717
        %5885 = vmatprep.subr.bf16.mxu0 %v3750
        %5886 = vmatpush1.bf16.msra.mxu0 %v3749
        %5887 = vmatprep.subr.bf16.mxu0 %v3782
        %5888 = vmatpush1.bf16.msra.mxu0 %v3781
        %5889 = vmatprep.subr.bf16.mxu0 %v3814
        %5890 = vmatpush1.bf16.msra.mxu0 %v3813
        %5891 = vmatprep.subr.bf16.mxu0 %v3846
        %5892 = vmatpush1.bf16.msra.mxu0 %v3845
        %5893 = vmatprep.subr.bf16.mxu0 %v3878
        %5894 = vmatpush1.bf16.msra.mxu0 %v3877
        %5895 = vmatprep.subr.bf16.mxu0 %v3910
        %5896 = vmatpush1.bf16.msra.mxu0 %v3909
        %5897 = vmatprep.subr.bf16.mxu0 %v3942
        %5898 = vmatpush1.bf16.msra.mxu0 %v3941
        %5899 = vmatprep.subr.bf16.mxu0 %v3974
        %5900 = vmatpush1.bf16.msra.mxu0 %v3973
        %5901 = vmatprep.subr.bf16.mxu0 %v4006
        %5902 = vmatpush1.bf16.msra.mxu0 %v4005
        %5903 = vmatprep.mubr.bf16.mxu0 %v573
        %5904 = vmatmul.mubr.bf16.gmra.mrb[0].mxu0 %v548
        %v5905 = vpop.f32.mrb[0].mxu0
        %v5906 = vadd.f32 %v1340, %v5905
        %v5907 = vpop.f32.mrb[0].mxu0
        %v5908 = vadd.f32 %v1344, %v5907
        %v5909 = vpop.f32.mrb[0].mxu0
        %v5910 = vadd.f32 %v1340, %v5909
        %v5911 = vpop.f32.mrb[0].mxu0
        %v5912 = vadd.f32 %v1344, %v5911
        %5913 = vmatprep.mubr.bf16.mxu0 %v576
        %5914 = vmatmul.mubr.bf16.gmra.mrb[0].mxu0 %v552
        %v5915 = vpop.f32.mrb[0].mxu0
        %v5916 = vadd.f32 %v1340, %v5915
        %v5917 = vpop.f32.mrb[0].mxu0
        %v5918 = vadd.f32 %v1344, %v5917
        %v5919 = vpop.f32.mrb[0].mxu0
        %v5920 = vadd.f32 %v1340, %v5919
        %v5921 = vpop.f32.mrb[0].mxu0
        %v5922 = vadd.f32 %v1344, %v5921
        %5923 = vmatprep.mubr.bf16.mxu0 %v579
        %5924 = vmatmul.mubr.bf16.gmra.mrb[0].mxu0 %v556
        %v5925 = vpop.f32.mrb[0].mxu0
        %v5926 = vadd.f32 %v1340, %v5925
        %v5927 = vpop.f32.mrb[0].mxu0
        %v5928 = vadd.f32 %v1344, %v5927
        %v5929 = vpop.f32.mrb[0].mxu0
        %v5930 = vadd.f32 %v1340, %v5929
        %v5931 = vpop.f32.mrb[0].mxu0
        %v5932 = vadd.f32 %v1344, %v5931
        %5933 = vmatprep.mubr.bf16.mxu0 %v582
        %5934 = vmatmul.mubr.bf16.gmra.mrb[0].mxu0 %v560
        %v5935 = vpop.f32.mrb[0].mxu0
        %v5936 = vadd.f32 %v1340, %v5935
        %v5937 = vpop.f32.mrb[0].mxu0
        %v5938 = vadd.f32 %v1344, %v5937
        %v5939 = vpop.f32.mrb[0].mxu0
        %v5940 = vadd.f32 %v1340, %v5939
        %v5941 = vpop.f32.mrb[0].mxu0
        %v5942 = vadd.f32 %v1344, %v5941
        %5943 = vdwg.mxu0
        %5944 = vmatprep.subr.bf16.mxu0 %v4038
        %5945 = vmatpush1.bf16.msra.mxu0 %v4037
        %5946 = vmatprep.subr.bf16.mxu0 %v4070
        %5947 = vmatpush1.bf16.msra.mxu0 %v4069
        %5948 = vmatprep.subr.bf16.mxu0 %v4102
        %5949 = vmatpush1.bf16.msra.mxu0 %v4101
        %5950 = vmatprep.subr.bf16.mxu0 %v4134
        %5951 = vmatpush1.bf16.msra.mxu0 %v4133
        %5952 = vmatprep.subr.bf16.mxu0 %v4166
        %5953 = vmatpush1.bf16.msra.mxu0 %v4165
        %5954 = vmatprep.subr.bf16.mxu0 %v4939
        %5955 = vmatpush1.bf16.msra.mxu0 %v4936
        %5956 = vmatprep.subr.bf16.mxu0 0
        %5957 = vmatpush1.bf16.msra.mxu0 0
        %5958 = vmatprep.subr.bf16.mxu0 0
        %5959 = vmatpush1.bf16.msra.mxu0 0
        %5960 = vmatprep.subr.bf16.mxu0 0
        %5961 = vmatpush1.bf16.msra.mxu0 0
        %5962 = vmatprep.subr.bf16.mxu0 0
        %5963 = vmatpush1.bf16.msra.mxu0 0
        %5964 = vmatprep.subr.bf16.mxu0 0
        %5965 = vmatpush1.bf16.msra.mxu0 0
        %5966 = vmatprep.subr.bf16.mxu0 0
        %5967 = vmatpush1.bf16.msra.mxu0 0
        %5968 = vmatprep.subr.bf16.mxu0 0
        %5969 = vmatpush1.bf16.msra.mxu0 0
        %5970 = vmatprep.subr.bf16.mxu0 0
        %5971 = vmatpush1.bf16.msra.mxu0 0
        %5972 = vmatprep.subr.bf16.mxu0 0
        %5973 = vmatpush1.bf16.msra.mxu0 0
        %5974 = vmatprep.subr.bf16.mxu0 0
        %5975 = vmatpush1.bf16.msra.mxu0 0
        %5976 = vmatprep.mubr.bf16.mxu0 0
        %5977 = vmatmul.mubr.bf16.gmra.mrb[0].mxu0 %v4890
        %v5978 = vpop.f32.mrb[0].mxu0
        %v5979 = vadd.f32 %v5906, %v5978
        %v5980 = vpop.f32.mrb[0].mxu0
        %v5981 = vadd.f32 %v5908, %v5980
        %v5982 = vpop.f32.mrb[0].mxu0
        %v5983 = vadd.f32 %v5910, %v5982
        %v5984 = vpop.f32.mrb[0].mxu0
        %v5985 = vadd.f32 %v5912, %v5984
        %5986 = vmatprep.mubr.bf16.mxu0 0
        %5987 = vmatmul.mubr.bf16.gmra.mrb[0].mxu0 %v4892
        %v5988 = vpop.f32.mrb[0].mxu0
        %v5989 = vadd.f32 %v5916, %v5988
        %v5990 = vpop.f32.mrb[0].mxu0
        %v5991 = vadd.f32 %v5918, %v5990
        %v5992 = vpop.f32.mrb[0].mxu0
        %v5993 = vadd.f32 %v5920, %v5992
        %v5994 = vpop.f32.mrb[0].mxu0
        %v5995 = vadd.f32 %v5922, %v5994
        %5996 = vmatprep.mubr.bf16.mxu0 0
        %5997 = vmatmul.mubr.bf16.gmra.mrb[0].mxu0 %v4894
        %v5998 = vpop.f32.mrb[0].mxu0
        %v5999 = vadd.f32 %v5926, %v5998
        %v6000 = vpop.f32.mrb[0].mxu0
        %v6001 = vadd.f32 %v5928, %v6000
        %v6002 = vpop.f32.mrb[0].mxu0
        %v6003 = vadd.f32 %v5930, %v6002
        %v6004 = vpop.f32.mrb[0].mxu0
        %v6005 = vadd.f32 %v5932, %v6004
        %6006 = vmatprep.mubr.bf16.mxu0 0
        %6007 = vmatmul.mubr.bf16.gmra.mrb[0].mxu0 %v4896
        %v6008 = vpop.f32.mrb[0].mxu0
        %v6009 = vadd.f32 %v5936, %v6008
        %v6010 = vpop.f32.mrb[0].mxu0
        %v6011 = vadd.f32 %v5938, %v6010
        %v6012 = vpop.f32.mrb[0].mxu0
        %v6013 = vadd.f32 %v5940, %v6012
        %v6014 = vpop.f32.mrb[0].mxu0
        %v6015 = vadd.f32 %v5942, %v6014
        %6016 = vdwg.mxu0
        %6017 = vmatprep.subr.bf16.mxu0 %v3528
        %6018 = vmatpush1.bf16.msra.mxu0 %v3527
        %6019 = vmatprep.subr.bf16.mxu0 %v3560
        %6020 = vmatpush1.bf16.msra.mxu0 %v3559
        %6021 = vmatprep.subr.bf16.mxu0 %v3592
        %6022 = vmatpush1.bf16.msra.mxu0 %v3591
        %6023 = vmatprep.subr.bf16.mxu0 %v3624
        %6024 = vmatpush1.bf16.msra.mxu0 %v3623
        %6025 = vmatprep.subr.bf16.mxu0 %v3656
        %6026 = vmatpush1.bf16.msra.mxu0 %v3655
        %6027 = vmatprep.subr.bf16.mxu0 %v3688
        %6028 = vmatpush1.bf16.msra.mxu0 %v3687
        %6029 = vmatprep.subr.bf16.mxu0 %v3720
        %6030 = vmatpush1.bf16.msra.mxu0 %v3719
        %6031 = vmatprep.subr.bf16.mxu0 %v3752
        %6032 = vmatpush1.bf16.msra.mxu0 %v3751
        %6033 = vmatprep.subr.bf16.mxu0 %v3784
        %6034 = vmatpush1.bf16.msra.mxu0 %v3783
        %6035 = vmatprep.subr.bf16.mxu0 %v3816
        %6036 = vmatpush1.bf16.msra.mxu0 %v3815
        %6037 = vmatprep.subr.bf16.mxu0 %v3848
        %6038 = vmatpush1.bf16.msra.mxu0 %v3847
        %6039 = vmatprep.subr.bf16.mxu0 %v3880
        %6040 = vmatpush1.bf16.msra.mxu0 %v3879
        %6041 = vmatprep.subr.bf16.mxu0 %v3912
        %6042 = vmatpush1.bf16.msra.mxu0 %v3911
        %6043 = vmatprep.subr.bf16.mxu0 %v3944
        %6044 = vmatpush1.bf16.msra.mxu0 %v3943
        %6045 = vmatprep.subr.bf16.mxu0 %v3976
        %6046 = vmatpush1.bf16.msra.mxu0 %v3975
        %6047 = vmatprep.subr.bf16.mxu0 %v4008
        %6048 = vmatpush1.bf16.msra.mxu0 %v4007
        %6049 = vmatprep.mubr.bf16.mxu0 %v573
        %6050 = vmatmul.mubr.bf16.gmra.mrb[0].mxu0 %v548
        %v6051 = vpop.f32.mrb[0].mxu0
        %v6052 = vadd.f32 %v1348, %v6051
        %v6053 = vpop.f32.mrb[0].mxu0
        %v6054 = vadd.f32 %v1352, %v6053
        %v6055 = vpop.f32.mrb[0].mxu0
        %v6056 = vadd.f32 %v1348, %v6055
        %v6057 = vpop.f32.mrb[0].mxu0
        %v6058 = vadd.f32 %v1352, %v6057
        %6059 = vmatprep.mubr.bf16.mxu0 %v576
        %6060 = vmatmul.mubr.bf16.gmra.mrb[0].mxu0 %v552
        %v6061 = vpop.f32.mrb[0].mxu0
        %v6062 = vadd.f32 %v1348, %v6061
        %v6063 = vpop.f32.mrb[0].mxu0
        %v6064 = vadd.f32 %v1352, %v6063
        %v6065 = vpop.f32.mrb[0].mxu0
        %v6066 = vadd.f32 %v1348, %v6065
        %v6067 = vpop.f32.mrb[0].mxu0
        %v6068 = vadd.f32 %v1352, %v6067
        %6069 = vmatprep.mubr.bf16.mxu0 %v579
        %6070 = vmatmul.mubr.bf16.gmra.mrb[0].mxu0 %v556
        %v6071 = vpop.f32.mrb[0].mxu0
        %v6072 = vadd.f32 %v1348, %v6071
        %v6073 = vpop.f32.mrb[0].mxu0
        %v6074 = vadd.f32 %v1352, %v6073
        %v6075 = vpop.f32.mrb[0].mxu0
        %v6076 = vadd.f32 %v1348, %v6075
        %v6077 = vpop.f32.mrb[0].mxu0
        %v6078 = vadd.f32 %v1352, %v6077
        %6079 = vmatprep.mubr.bf16.mxu0 %v582
        %6080 = vmatmul.mubr.bf16.gmra.mrb[0].mxu0 %v560
        %v6081 = vpop.f32.mrb[0].mxu0
        %v6082 = vadd.f32 %v1348, %v6081
        %v6083 = vpop.f32.mrb[0].mxu0
        %v6084 = vadd.f32 %v1352, %v6083
        %v6085 = vpop.f32.mrb[0].mxu0
        %v6086 = vadd.f32 %v1348, %v6085
        %v6087 = vpop.f32.mrb[0].mxu0
        %v6088 = vadd.f32 %v1352, %v6087
        %6089 = vdwg.mxu0
        %6090 = vmatprep.subr.bf16.mxu0 %v4040
        %6091 = vmatpush1.bf16.msra.mxu0 %v4039
        %6092 = vmatprep.subr.bf16.mxu0 %v4072
        %6093 = vmatpush1.bf16.msra.mxu0 %v4071
        %6094 = vmatprep.subr.bf16.mxu0 %v4104
        %6095 = vmatpush1.bf16.msra.mxu0 %v4103
        %6096 = vmatprep.subr.bf16.mxu0 %v4136
        %6097 = vmatpush1.bf16.msra.mxu0 %v4135
        %6098 = vmatprep.subr.bf16.mxu0 %v4168
        %6099 = vmatpush1.bf16.msra.mxu0 %v4167
        %6100 = vmatprep.subr.bf16.mxu0 %v4945
        %6101 = vmatpush1.bf16.msra.mxu0 %v4942
        %6102 = vmatprep.subr.bf16.mxu0 0
        %6103 = vmatpush1.bf16.msra.mxu0 0
        %6104 = vmatprep.subr.bf16.mxu0 0
        %6105 = vmatpush1.bf16.msra.mxu0 0
        %6106 = vmatprep.subr.bf16.mxu0 0
        %6107 = vmatpush1.bf16.msra.mxu0 0
        %6108 = vmatprep.subr.bf16.mxu0 0
        %6109 = vmatpush1.bf16.msra.mxu0 0
        %6110 = vmatprep.subr.bf16.mxu0 0
        %6111 = vmatpush1.bf16.msra.mxu0 0
        %6112 = vmatprep.subr.bf16.mxu0 0
        %6113 = vmatpush1.bf16.msra.mxu0 0
        %6114 = vmatprep.subr.bf16.mxu0 0
        %6115 = vmatpush1.bf16.msra.mxu0 0
        %6116 = vmatprep.subr.bf16.mxu0 0
        %6117 = vmatpush1.bf16.msra.mxu0 0
        %6118 = vmatprep.subr.bf16.mxu0 0
        %6119 = vmatpush1.bf16.msra.mxu0 0
        %6120 = vmatprep.subr.bf16.mxu0 0
        %6121 = vmatpush1.bf16.msra.mxu0 0
        %6122 = vmatprep.mubr.bf16.mxu0 0
        %6123 = vmatmul.mubr.bf16.gmra.mrb[0].mxu0 %v4890
        %v6124 = vpop.f32.mrb[0].mxu0
        %v6125 = vadd.f32 %v6052, %v6124
        %v6126 = vpop.f32.mrb[0].mxu0
        %v6127 = vadd.f32 %v6054, %v6126
        %v6128 = vpop.f32.mrb[0].mxu0
        %v6129 = vadd.f32 %v6056, %v6128
        %v6130 = vpop.f32.mrb[0].mxu0
        %v6131 = vadd.f32 %v6058, %v6130
        %6132 = vmatprep.mubr.bf16.mxu0 0
        %6133 = vmatmul.mubr.bf16.gmra.mrb[0].mxu0 %v4892
        %v6134 = vpop.f32.mrb[0].mxu0
        %v6135 = vadd.f32 %v6062, %v6134
        %v6136 = vpop.f32.mrb[0].mxu0
        %v6137 = vadd.f32 %v6064, %v6136
        %v6138 = vpop.f32.mrb[0].mxu0
        %v6139 = vadd.f32 %v6066, %v6138
        %v6140 = vpop.f32.mrb[0].mxu0
        %v6141 = vadd.f32 %v6068, %v6140
        %6142 = vmatprep.mubr.bf16.mxu0 0
        %6143 = vmatmul.mubr.bf16.gmra.mrb[0].mxu0 %v4894
        %v6144 = vpop.f32.mrb[0].mxu0
        %v6145 = vadd.f32 %v6072, %v6144
        %v6146 = vpop.f32.mrb[0].mxu0
        %v6147 = vadd.f32 %v6074, %v6146
        %v6148 = vpop.f32.mrb[0].mxu0
        %v6149 = vadd.f32 %v6076, %v6148
        %v6150 = vpop.f32.mrb[0].mxu0
        %v6151 = vadd.f32 %v6078, %v6150
        %6152 = vmatprep.mubr.bf16.mxu0 0
        %6153 = vmatmul.mubr.bf16.gmra.mrb[0].mxu0 %v4896
        %v6154 = vpop.f32.mrb[0].mxu0
        %v6155 = vadd.f32 %v6082, %v6154
        %v6156 = vpop.f32.mrb[0].mxu0
        %v6157 = vadd.f32 %v6084, %v6156
        %v6158 = vpop.f32.mrb[0].mxu0
        %v6159 = vadd.f32 %v6086, %v6158
        %v6160 = vpop.f32.mrb[0].mxu0
        %v6161 = vadd.f32 %v6088, %v6160
        %6162 = vdwg.mxu0
        %6163 = vmatprep.subr.bf16.mxu0 %v3530
        %6164 = vmatpush1.bf16.msra.mxu0 %v3529
        %6165 = vmatprep.subr.bf16.mxu0 %v3562
        %6166 = vmatpush1.bf16.msra.mxu0 %v3561
        %6167 = vmatprep.subr.bf16.mxu0 %v3594
        %6168 = vmatpush1.bf16.msra.mxu0 %v3593
        %6169 = vmatprep.subr.bf16.mxu0 %v3626
        %6170 = vmatpush1.bf16.msra.mxu0 %v3625
        %6171 = vmatprep.subr.bf16.mxu0 %v3658
        %6172 = vmatpush1.bf16.msra.mxu0 %v3657
        %6173 = vmatprep.subr.bf16.mxu0 %v3690
        %6174 = vmatpush1.bf16.msra.mxu0 %v3689
        %6175 = vmatprep.subr.bf16.mxu0 %v3722
        %6176 = vmatpush1.bf16.msra.mxu0 %v3721
        %6177 = vmatprep.subr.bf16.mxu0 %v3754
        %6178 = vmatpush1.bf16.msra.mxu0 %v3753
        %6179 = vmatprep.subr.bf16.mxu0 %v3786
        %6180 = vmatpush1.bf16.msra.mxu0 %v3785
        %6181 = vmatprep.subr.bf16.mxu0 %v3818
        %6182 = vmatpush1.bf16.msra.mxu0 %v3817
        %6183 = vmatprep.subr.bf16.mxu0 %v3850
        %6184 = vmatpush1.bf16.msra.mxu0 %v3849
        %6185 = vmatprep.subr.bf16.mxu0 %v3882
        %6186 = vmatpush1.bf16.msra.mxu0 %v3881
        %6187 = vmatprep.subr.bf16.mxu0 %v3914
        %6188 = vmatpush1.bf16.msra.mxu0 %v3913
        %6189 = vmatprep.subr.bf16.mxu0 %v3946
        %6190 = vmatpush1.bf16.msra.mxu0 %v3945
        %6191 = vmatprep.subr.bf16.mxu0 %v3978
        %6192 = vmatpush1.bf16.msra.mxu0 %v3977
        %6193 = vmatprep.subr.bf16.mxu0 %v4010
        %6194 = vmatpush1.bf16.msra.mxu0 %v4009
        %6195 = vmatprep.mubr.bf16.mxu0 %v573
        %6196 = vmatmul.mubr.bf16.gmra.mrb[0].mxu0 %v548
        %v6197 = vpop.f32.mrb[0].mxu0
        %v6198 = vadd.f32 %v1356, %v6197
        %v6199 = vpop.f32.mrb[0].mxu0
        %v6200 = vadd.f32 %v1360, %v6199
        %v6201 = vpop.f32.mrb[0].mxu0
        %v6202 = vadd.f32 %v1356, %v6201
        %v6203 = vpop.f32.mrb[0].mxu0
        %v6204 = vadd.f32 %v1360, %v6203
        %6205 = vmatprep.mubr.bf16.mxu0 %v576
        %6206 = vmatmul.mubr.bf16.gmra.mrb[0].mxu0 %v552
        %v6207 = vpop.f32.mrb[0].mxu0
        %v6208 = vadd.f32 %v1356, %v6207
        %v6209 = vpop.f32.mrb[0].mxu0
        %v6210 = vadd.f32 %v1360, %v6209
        %v6211 = vpop.f32.mrb[0].mxu0
        %v6212 = vadd.f32 %v1356, %v6211
        %v6213 = vpop.f32.mrb[0].mxu0
        %v6214 = vadd.f32 %v1360, %v6213
        %6215 = vmatprep.mubr.bf16.mxu0 %v579
        %6216 = vmatmul.mubr.bf16.gmra.mrb[0].mxu0 %v556
        %v6217 = vpop.f32.mrb[0].mxu0
        %v6218 = vadd.f32 %v1356, %v6217
        %v6219 = vpop.f32.mrb[0].mxu0
        %v6220 = vadd.f32 %v1360, %v6219
        %v6221 = vpop.f32.mrb[0].mxu0
        %v6222 = vadd.f32 %v1356, %v6221
        %v6223 = vpop.f32.mrb[0].mxu0
        %v6224 = vadd.f32 %v1360, %v6223
        %6225 = vmatprep.mubr.bf16.mxu0 %v582
        %6226 = vmatmul.mubr.bf16.gmra.mrb[0].mxu0 %v560
        %v6227 = vpop.f32.mrb[0].mxu0
        %v6228 = vadd.f32 %v1356, %v6227
        %v6229 = vpop.f32.mrb[0].mxu0
        %v6230 = vadd.f32 %v1360, %v6229
        %v6231 = vpop.f32.mrb[0].mxu0
        %v6232 = vadd.f32 %v1356, %v6231
        %v6233 = vpop.f32.mrb[0].mxu0
        %v6234 = vadd.f32 %v1360, %v6233
        %6235 = vdwg.mxu0
        %6236 = vmatprep.subr.bf16.mxu0 %v4042
        %6237 = vmatpush1.bf16.msra.mxu0 %v4041
        %6238 = vmatprep.subr.bf16.mxu0 %v4074
        %6239 = vmatpush1.bf16.msra.mxu0 %v4073
        %6240 = vmatprep.subr.bf16.mxu0 %v4106
        %6241 = vmatpush1.bf16.msra.mxu0 %v4105
        %6242 = vmatprep.subr.bf16.mxu0 %v4138
        %6243 = vmatpush1.bf16.msra.mxu0 %v4137
        %6244 = vmatprep.subr.bf16.mxu0 %v4170
        %6245 = vmatpush1.bf16.msra.mxu0 %v4169
        %6246 = vmatprep.subr.bf16.mxu0 %v4951
        %6247 = vmatpush1.bf16.msra.mxu0 %v4948
        %6248 = vmatprep.subr.bf16.mxu0 0
        %6249 = vmatpush1.bf16.msra.mxu0 0
        %6250 = vmatprep.subr.bf16.mxu0 0
        %6251 = vmatpush1.bf16.msra.mxu0 0
        %6252 = vmatprep.subr.bf16.mxu0 0
        %6253 = vmatpush1.bf16.msra.mxu0 0
        %6254 = vmatprep.subr.bf16.mxu0 0
        %6255 = vmatpush1.bf16.msra.mxu0 0
        %6256 = vmatprep.subr.bf16.mxu0 0
        %6257 = vmatpush1.bf16.msra.mxu0 0
        %6258 = vmatprep.subr.bf16.mxu0 0
        %6259 = vmatpush1.bf16.msra.mxu0 0
        %6260 = vmatprep.subr.bf16.mxu0 0
        %6261 = vmatpush1.bf16.msra.mxu0 0
        %6262 = vmatprep.subr.bf16.mxu0 0
        %6263 = vmatpush1.bf16.msra.mxu0 0
        %6264 = vmatprep.subr.bf16.mxu0 0
        %6265 = vmatpush1.bf16.msra.mxu0 0
        %6266 = vmatprep.subr.bf16.mxu0 0
        %6267 = vmatpush1.bf16.msra.mxu0 0
        %6268 = vmatprep.mubr.bf16.mxu0 0
        %6269 = vmatmul.mubr.bf16.gmra.mrb[0].mxu0 %v4890
        %v6270 = vpop.f32.mrb[0].mxu0
        %v6271 = vadd.f32 %v6198, %v6270
        %v6272 = vpop.f32.mrb[0].mxu0
        %v6273 = vadd.f32 %v6200, %v6272
        %v6274 = vpop.f32.mrb[0].mxu0
        %v6275 = vadd.f32 %v6202, %v6274
        %v6276 = vpop.f32.mrb[0].mxu0
        %v6277 = vadd.f32 %v6204, %v6276
        %6278 = vmatprep.mubr.bf16.mxu0 0
        %6279 = vmatmul.mubr.bf16.gmra.mrb[0].mxu0 %v4892
        %v6280 = vpop.f32.mrb[0].mxu0
        %v6281 = vadd.f32 %v6208, %v6280
        %v6282 = vpop.f32.mrb[0].mxu0
        %v6283 = vadd.f32 %v6210, %v6282
        %v6284 = vpop.f32.mrb[0].mxu0
        %v6285 = vadd.f32 %v6212, %v6284
        %v6286 = vpop.f32.mrb[0].mxu0
        %v6287 = vadd.f32 %v6214, %v6286
        %6288 = vmatprep.mubr.bf16.mxu0 0
        %6289 = vmatmul.mubr.bf16.gmra.mrb[0].mxu0 %v4894
        %v6290 = vpop.f32.mrb[0].mxu0
        %v6291 = vadd.f32 %v6218, %v6290
        %v6292 = vpop.f32.mrb[0].mxu0
        %v6293 = vadd.f32 %v6220, %v6292
        %v6294 = vpop.f32.mrb[0].mxu0
        %v6295 = vadd.f32 %v6222, %v6294
        %v6296 = vpop.f32.mrb[0].mxu0
        %v6297 = vadd.f32 %v6224, %v6296
        %6298 = vmatprep.mubr.bf16.mxu0 0
        %6299 = vmatmul.mubr.bf16.gmra.mrb[0].mxu0 %v4896
        %v6300 = vpop.f32.mrb[0].mxu0
        %v6301 = vadd.f32 %v6228, %v6300
        %v6302 = vpop.f32.mrb[0].mxu0
        %v6303 = vadd.f32 %v6230, %v6302
        %v6304 = vpop.f32.mrb[0].mxu0
        %v6305 = vadd.f32 %v6232, %v6304
        %v6306 = vpop.f32.mrb[0].mxu0
        %v6307 = vadd.f32 %v6234, %v6306
        %6308 = vdwg.mxu0
        %6309 = vmatprep.subr.bf16.mxu0 %v3532
        %6310 = vmatpush1.bf16.msra.mxu0 %v3531
        %6311 = vmatprep.subr.bf16.mxu0 %v3564
        %6312 = vmatpush1.bf16.msra.mxu0 %v3563
        %6313 = vmatprep.subr.bf16.mxu0 %v3596
        %6314 = vmatpush1.bf16.msra.mxu0 %v3595
        %6315 = vmatprep.subr.bf16.mxu0 %v3628
        %6316 = vmatpush1.bf16.msra.mxu0 %v3627
        %6317 = vmatprep.subr.bf16.mxu0 %v3660
        %6318 = vmatpush1.bf16.msra.mxu0 %v3659
        %6319 = vmatprep.subr.bf16.mxu0 %v3692
        %6320 = vmatpush1.bf16.msra.mxu0 %v3691
        %6321 = vmatprep.subr.bf16.mxu0 %v3724
        %6322 = vmatpush1.bf16.msra.mxu0 %v3723
        %6323 = vmatprep.subr.bf16.mxu0 %v3756
        %6324 = vmatpush1.bf16.msra.mxu0 %v3755
        %6325 = vmatprep.subr.bf16.mxu0 %v3788
        %6326 = vmatpush1.bf16.msra.mxu0 %v3787
        %6327 = vmatprep.subr.bf16.mxu0 %v3820
        %6328 = vmatpush1.bf16.msra.mxu0 %v3819
        %6329 = vmatprep.subr.bf16.mxu0 %v3852
        %6330 = vmatpush1.bf16.msra.mxu0 %v3851
        %6331 = vmatprep.subr.bf16.mxu0 %v3884
        %6332 = vmatpush1.bf16.msra.mxu0 %v3883
        %6333 = vmatprep.subr.bf16.mxu0 %v3916
        %6334 = vmatpush1.bf16.msra.mxu0 %v3915
        %6335 = vmatprep.subr.bf16.mxu0 %v3948
        %6336 = vmatpush1.bf16.msra.mxu0 %v3947
        %6337 = vmatprep.subr.bf16.mxu0 %v3980
        %6338 = vmatpush1.bf16.msra.mxu0 %v3979
        %6339 = vmatprep.subr.bf16.mxu0 %v4012
        %6340 = vmatpush1.bf16.msra.mxu0 %v4011
        %6341 = vmatprep.mubr.bf16.mxu0 %v573
        %6342 = vmatmul.mubr.bf16.gmra.mrb[0].mxu0 %v548
        %v6343 = vpop.f32.mrb[0].mxu0
        %v6344 = vadd.f32 %v1364, %v6343
        %v6345 = vpop.f32.mrb[0].mxu0
        %v6346 = vadd.f32 %v1368, %v6345
        %v6347 = vpop.f32.mrb[0].mxu0
        %v6348 = vadd.f32 %v1364, %v6347
        %v6349 = vpop.f32.mrb[0].mxu0
        %v6350 = vadd.f32 %v1368, %v6349
        %6351 = vmatprep.mubr.bf16.mxu0 %v576
        %6352 = vmatmul.mubr.bf16.gmra.mrb[0].mxu0 %v552
        %v6353 = vpop.f32.mrb[0].mxu0
        %v6354 = vadd.f32 %v1364, %v6353
        %v6355 = vpop.f32.mrb[0].mxu0
        %v6356 = vadd.f32 %v1368, %v6355
        %v6357 = vpop.f32.mrb[0].mxu0
        %v6358 = vadd.f32 %v1364, %v6357
        %v6359 = vpop.f32.mrb[0].mxu0
        %v6360 = vadd.f32 %v1368, %v6359
        %6361 = vmatprep.mubr.bf16.mxu0 %v579
        %6362 = vmatmul.mubr.bf16.gmra.mrb[0].mxu0 %v556
        %v6363 = vpop.f32.mrb[0].mxu0
        %v6364 = vadd.f32 %v1364, %v6363
        %v6365 = vpop.f32.mrb[0].mxu0
        %v6366 = vadd.f32 %v1368, %v6365
        %v6367 = vpop.f32.mrb[0].mxu0
        %v6368 = vadd.f32 %v1364, %v6367
        %v6369 = vpop.f32.mrb[0].mxu0
        %v6370 = vadd.f32 %v1368, %v6369
        %6371 = vmatprep.mubr.bf16.mxu0 %v582
        %6372 = vmatmul.mubr.bf16.gmra.mrb[0].mxu0 %v560
        %v6373 = vpop.f32.mrb[0].mxu0
        %v6374 = vadd.f32 %v1364, %v6373
        %v6375 = vpop.f32.mrb[0].mxu0
        %v6376 = vadd.f32 %v1368, %v6375
        %v6377 = vpop.f32.mrb[0].mxu0
        %v6378 = vadd.f32 %v1364, %v6377
        %v6379 = vpop.f32.mrb[0].mxu0
        %v6380 = vadd.f32 %v1368, %v6379
        %6381 = vdwg.mxu0
        %6382 = vmatprep.subr.bf16.mxu0 %v4044
        %6383 = vmatpush1.bf16.msra.mxu0 %v4043
        %6384 = vmatprep.subr.bf16.mxu0 %v4076
        %6385 = vmatpush1.bf16.msra.mxu0 %v4075
        %6386 = vmatprep.subr.bf16.mxu0 %v4108
        %6387 = vmatpush1.bf16.msra.mxu0 %v4107
        %6388 = vmatprep.subr.bf16.mxu0 %v4140
        %6389 = vmatpush1.bf16.msra.mxu0 %v4139
        %6390 = vmatprep.subr.bf16.mxu0 %v4172
        %6391 = vmatpush1.bf16.msra.mxu0 %v4171
        %6392 = vmatprep.subr.bf16.mxu0 %v4957
        %6393 = vmatpush1.bf16.msra.mxu0 %v4954
        %6394 = vmatprep.subr.bf16.mxu0 0
        %6395 = vmatpush1.bf16.msra.mxu0 0
        %6396 = vmatprep.subr.bf16.mxu0 0
        %6397 = vmatpush1.bf16.msra.mxu0 0
        %6398 = vmatprep.subr.bf16.mxu0 0
        %6399 = vmatpush1.bf16.msra.mxu0 0
        %6400 = vmatprep.subr.bf16.mxu0 0
        %6401 = vmatpush1.bf16.msra.mxu0 0
        %6402 = vmatprep.subr.bf16.mxu0 0
        %6403 = vmatpush1.bf16.msra.mxu0 0
        %6404 = vmatprep.subr.bf16.mxu0 0
        %6405 = vmatpush1.bf16.msra.mxu0 0
        %6406 = vmatprep.subr.bf16.mxu0 0
        %6407 = vmatpush1.bf16.msra.mxu0 0
        %6408 = vmatprep.subr.bf16.mxu0 0
        %6409 = vmatpush1.bf16.msra.mxu0 0
        %6410 = vmatprep.subr.bf16.mxu0 0
        %6411 = vmatpush1.bf16.msra.mxu0 0
        %6412 = vmatprep.subr.bf16.mxu0 0
        %6413 = vmatpush1.bf16.msra.mxu0 0
        %6414 = vmatprep.mubr.bf16.mxu0 0
        %6415 = vmatmul.mubr.bf16.gmra.mrb[0].mxu0 %v4890
        %v6416 = vpop.f32.mrb[0].mxu0
        %v6417 = vadd.f32 %v6344, %v6416
        %v6418 = vpop.f32.mrb[0].mxu0
        %v6419 = vadd.f32 %v6346, %v6418
        %v6420 = vpop.f32.mrb[0].mxu0
        %v6421 = vadd.f32 %v6348, %v6420
        %v6422 = vpop.f32.mrb[0].mxu0
        %v6423 = vadd.f32 %v6350, %v6422
        %6424 = vmatprep.mubr.bf16.mxu0 0
        %6425 = vmatmul.mubr.bf16.gmra.mrb[0].mxu0 %v4892
        %v6426 = vpop.f32.mrb[0].mxu0
        %v6427 = vadd.f32 %v6354, %v6426
        %v6428 = vpop.f32.mrb[0].mxu0
        %v6429 = vadd.f32 %v6356, %v6428
        %v6430 = vpop.f32.mrb[0].mxu0
        %v6431 = vadd.f32 %v6358, %v6430
        %v6432 = vpop.f32.mrb[0].mxu0
        %v6433 = vadd.f32 %v6360, %v6432
        %6434 = vmatprep.mubr.bf16.mxu0 0
        %6435 = vmatmul.mubr.bf16.gmra.mrb[0].mxu0 %v4894
        %v6436 = vpop.f32.mrb[0].mxu0
        %v6437 = vadd.f32 %v6364, %v6436
        %v6438 = vpop.f32.mrb[0].mxu0
        %v6439 = vadd.f32 %v6366, %v6438
        %v6440 = vpop.f32.mrb[0].mxu0
        %v6441 = vadd.f32 %v6368, %v6440
        %v6442 = vpop.f32.mrb[0].mxu0
        %v6443 = vadd.f32 %v6370, %v6442
        %6444 = vmatprep.mubr.bf16.mxu0 0
        %6445 = vmatmul.mubr.bf16.gmra.mrb[0].mxu0 %v4896
        %v6446 = vpop.f32.mrb[0].mxu0
        %v6447 = vadd.f32 %v6374, %v6446
        %v6448 = vpop.f32.mrb[0].mxu0
        %v6449 = vadd.f32 %v6376, %v6448
        %v6450 = vpop.f32.mrb[0].mxu0
        %v6451 = vadd.f32 %v6378, %v6450
        %v6452 = vpop.f32.mrb[0].mxu0
        %v6453 = vadd.f32 %v6380, %v6452
        %6454 = vdwg.mxu0
        %6455 = vmatprep.subr.bf16.mxu0 %v3534
        %6456 = vmatpush1.bf16.msra.mxu0 %v3533
        %6457 = vmatprep.subr.bf16.mxu0 %v3566
        %6458 = vmatpush1.bf16.msra.mxu0 %v3565
        %6459 = vmatprep.subr.bf16.mxu0 %v3598
        %6460 = vmatpush1.bf16.msra.mxu0 %v3597
        %6461 = vmatprep.subr.bf16.mxu0 %v3630
        %6462 = vmatpush1.bf16.msra.mxu0 %v3629
        %6463 = vmatprep.subr.bf16.mxu0 %v3662
        %6464 = vmatpush1.bf16.msra.mxu0 %v3661
        %6465 = vmatprep.subr.bf16.mxu0 %v3694
        %6466 = vmatpush1.bf16.msra.mxu0 %v3693
        %6467 = vmatprep.subr.bf16.mxu0 %v3726
        %6468 = vmatpush1.bf16.msra.mxu0 %v3725
        %6469 = vmatprep.subr.bf16.mxu0 %v3758
        %6470 = vmatpush1.bf16.msra.mxu0 %v3757
        %6471 = vmatprep.subr.bf16.mxu0 %v3790
        %6472 = vmatpush1.bf16.msra.mxu0 %v3789
        %6473 = vmatprep.subr.bf16.mxu0 %v3822
        %6474 = vmatpush1.bf16.msra.mxu0 %v3821
        %6475 = vmatprep.subr.bf16.mxu0 %v3854
        %6476 = vmatpush1.bf16.msra.mxu0 %v3853
        %6477 = vmatprep.subr.bf16.mxu0 %v3886
        %6478 = vmatpush1.bf16.msra.mxu0 %v3885
        %6479 = vmatprep.subr.bf16.mxu0 %v3918
        %6480 = vmatpush1.bf16.msra.mxu0 %v3917
        %6481 = vmatprep.subr.bf16.mxu0 %v3950
        %6482 = vmatpush1.bf16.msra.mxu0 %v3949
        %6483 = vmatprep.subr.bf16.mxu0 %v3982
        %6484 = vmatpush1.bf16.msra.mxu0 %v3981
        %6485 = vmatprep.subr.bf16.mxu0 %v4014
        %6486 = vmatpush1.bf16.msra.mxu0 %v4013
        %6487 = vmatprep.mubr.bf16.mxu0 %v573
        %6488 = vmatmul.mubr.bf16.gmra.mrb[0].mxu0 %v548
        %v6489 = vpop.f32.mrb[0].mxu0
        %v6490 = vadd.f32 %v1372, %v6489
        %v6491 = vpop.f32.mrb[0].mxu0
        %v6492 = vadd.f32 %v1376, %v6491
        %v6493 = vpop.f32.mrb[0].mxu0
        %v6494 = vadd.f32 %v1372, %v6493
        %v6495 = vpop.f32.mrb[0].mxu0
        %v6496 = vadd.f32 %v1376, %v6495
        %6497 = vmatprep.mubr.bf16.mxu0 %v576
        %6498 = vmatmul.mubr.bf16.gmra.mrb[0].mxu0 %v552
        %v6499 = vpop.f32.mrb[0].mxu0
        %v6500 = vadd.f32 %v1372, %v6499
        %v6501 = vpop.f32.mrb[0].mxu0
        %v6502 = vadd.f32 %v1376, %v6501
        %v6503 = vpop.f32.mrb[0].mxu0
        %v6504 = vadd.f32 %v1372, %v6503
        %v6505 = vpop.f32.mrb[0].mxu0
        %v6506 = vadd.f32 %v1376, %v6505
        %6507 = vmatprep.mubr.bf16.mxu0 %v579
        %6508 = vmatmul.mubr.bf16.gmra.mrb[0].mxu0 %v556
        %v6509 = vpop.f32.mrb[0].mxu0
        %v6510 = vadd.f32 %v1372, %v6509
        %v6511 = vpop.f32.mrb[0].mxu0
        %v6512 = vadd.f32 %v1376, %v6511
        %v6513 = vpop.f32.mrb[0].mxu0
        %v6514 = vadd.f32 %v1372, %v6513
        %v6515 = vpop.f32.mrb[0].mxu0
        %v6516 = vadd.f32 %v1376, %v6515
        %6517 = vmatprep.mubr.bf16.mxu0 %v582
        %6518 = vmatmul.mubr.bf16.gmra.mrb[0].mxu0 %v560
        %v6519 = vpop.f32.mrb[0].mxu0
        %v6520 = vadd.f32 %v1372, %v6519
        %v6521 = vpop.f32.mrb[0].mxu0
        %v6522 = vadd.f32 %v1376, %v6521
        %v6523 = vpop.f32.mrb[0].mxu0
        %v6524 = vadd.f32 %v1372, %v6523
        %v6525 = vpop.f32.mrb[0].mxu0
        %v6526 = vadd.f32 %v1376, %v6525
        %6527 = vdwg.mxu0
        %6528 = vmatprep.subr.bf16.mxu0 %v4046
        %6529 = vmatpush1.bf16.msra.mxu0 %v4045
        %6530 = vmatprep.subr.bf16.mxu0 %v4078
        %6531 = vmatpush1.bf16.msra.mxu0 %v4077
        %6532 = vmatprep.subr.bf16.mxu0 %v4110
        %6533 = vmatpush1.bf16.msra.mxu0 %v4109
        %6534 = vmatprep.subr.bf16.mxu0 %v4142
        %6535 = vmatpush1.bf16.msra.mxu0 %v4141
        %6536 = vmatprep.subr.bf16.mxu0 %v4174
        %6537 = vmatpush1.bf16.msra.mxu0 %v4173
        %6538 = vmatprep.subr.bf16.mxu0 %v4963
        %6539 = vmatpush1.bf16.msra.mxu0 %v4960
        %6540 = vmatprep.subr.bf16.mxu0 0
        %6541 = vmatpush1.bf16.msra.mxu0 0
        %6542 = vmatprep.subr.bf16.mxu0 0
        %6543 = vmatpush1.bf16.msra.mxu0 0
        %6544 = vmatprep.subr.bf16.mxu0 0
        %6545 = vmatpush1.bf16.msra.mxu0 0
        %6546 = vmatprep.subr.bf16.mxu0 0
        %6547 = vmatpush1.bf16.msra.mxu0 0
        %6548 = vmatprep.subr.bf16.mxu0 0
        %6549 = vmatpush1.bf16.msra.mxu0 0
        %6550 = vmatprep.subr.bf16.mxu0 0
        %6551 = vmatpush1.bf16.msra.mxu0 0
        %6552 = vmatprep.subr.bf16.mxu0 0
        %6553 = vmatpush1.bf16.msra.mxu0 0
        %6554 = vmatprep.subr.bf16.mxu0 0
        %6555 = vmatpush1.bf16.msra.mxu0 0
        %6556 = vmatprep.subr.bf16.mxu0 0
        %6557 = vmatpush1.bf16.msra.mxu0 0
        %6558 = vmatprep.subr.bf16.mxu0 0
        %6559 = vmatpush1.bf16.msra.mxu0 0
        %6560 = vmatprep.mubr.bf16.mxu0 0
        %6561 = vmatmul.mubr.bf16.gmra.mrb[0].mxu0 %v4890
        %v6562 = vpop.f32.mrb[0].mxu0
        %v6563 = vadd.f32 %v6490, %v6562
        %v6564 = vpop.f32.mrb[0].mxu0
        %v6565 = vadd.f32 %v6492, %v6564
        %v6566 = vpop.f32.mrb[0].mxu0
        %v6567 = vadd.f32 %v6494, %v6566
        %v6568 = vpop.f32.mrb[0].mxu0
        %v6569 = vadd.f32 %v6496, %v6568
        %6570 = vmatprep.mubr.bf16.mxu0 0
        %6571 = vmatmul.mubr.bf16.gmra.mrb[0].mxu0 %v4892
        %v6572 = vpop.f32.mrb[0].mxu0
        %v6573 = vadd.f32 %v6500, %v6572
        %v6574 = vpop.f32.mrb[0].mxu0
        %v6575 = vadd.f32 %v6502, %v6574
        %v6576 = vpop.f32.mrb[0].mxu0
        %v6577 = vadd.f32 %v6504, %v6576
        %v6578 = vpop.f32.mrb[0].mxu0
        %v6579 = vadd.f32 %v6506, %v6578
        %6580 = vmatprep.mubr.bf16.mxu0 0
        %6581 = vmatmul.mubr.bf16.gmra.mrb[0].mxu0 %v4894
        %v6582 = vpop.f32.mrb[0].mxu0
        %v6583 = vadd.f32 %v6510, %v6582
        %v6584 = vpop.f32.mrb[0].mxu0
        %v6585 = vadd.f32 %v6512, %v6584
        %v6586 = vpop.f32.mrb[0].mxu0
        %v6587 = vadd.f32 %v6514, %v6586
        %v6588 = vpop.f32.mrb[0].mxu0
        %v6589 = vadd.f32 %v6516, %v6588
        %6590 = vmatprep.mubr.bf16.mxu0 0
        %6591 = vmatmul.mubr.bf16.gmra.mrb[0].mxu0 %v4896
        %v6592 = vpop.f32.mrb[0].mxu0
        %v6593 = vadd.f32 %v6520, %v6592
        %v6594 = vpop.f32.mrb[0].mxu0
        %v6595 = vadd.f32 %v6522, %v6594
        %v6596 = vpop.f32.mrb[0].mxu0
        %v6597 = vadd.f32 %v6524, %v6596
        %v6598 = vpop.f32.mrb[0].mxu0
        %v6599 = vadd.f32 %v6526, %v6598
        %6600 = vdwg.mxu0
        %6601 = vmatprep.subr.bf16.mxu0 %v3536
        %6602 = vmatpush1.bf16.msra.mxu0 %v3535
        %6603 = vmatprep.subr.bf16.mxu0 %v3568
        %6604 = vmatpush1.bf16.msra.mxu0 %v3567
        %6605 = vmatprep.subr.bf16.mxu0 %v3600
        %6606 = vmatpush1.bf16.msra.mxu0 %v3599
        %6607 = vmatprep.subr.bf16.mxu0 %v3632
        %6608 = vmatpush1.bf16.msra.mxu0 %v3631
        %6609 = vmatprep.subr.bf16.mxu0 %v3664
        %6610 = vmatpush1.bf16.msra.mxu0 %v3663
        %6611 = vmatprep.subr.bf16.mxu0 %v3696
        %6612 = vmatpush1.bf16.msra.mxu0 %v3695
        %6613 = vmatprep.subr.bf16.mxu0 %v3728
        %6614 = vmatpush1.bf16.msra.mxu0 %v3727
        %6615 = vmatprep.subr.bf16.mxu0 %v3760
        %6616 = vmatpush1.bf16.msra.mxu0 %v3759
        %6617 = vmatprep.subr.bf16.mxu0 %v3792
        %6618 = vmatpush1.bf16.msra.mxu0 %v3791
        %6619 = vmatprep.subr.bf16.mxu0 %v3824
        %6620 = vmatpush1.bf16.msra.mxu0 %v3823
        %6621 = vmatprep.subr.bf16.mxu0 %v3856
        %6622 = vmatpush1.bf16.msra.mxu0 %v3855
        %6623 = vmatprep.subr.bf16.mxu0 %v3888
        %6624 = vmatpush1.bf16.msra.mxu0 %v3887
        %6625 = vmatprep.subr.bf16.mxu0 %v3920
        %6626 = vmatpush1.bf16.msra.mxu0 %v3919
        %6627 = vmatprep.subr.bf16.mxu0 %v3952
        %6628 = vmatpush1.bf16.msra.mxu0 %v3951
        %6629 = vmatprep.subr.bf16.mxu0 %v3984
        %6630 = vmatpush1.bf16.msra.mxu0 %v3983
        %6631 = vmatprep.subr.bf16.mxu0 %v4016
        %6632 = vmatpush1.bf16.msra.mxu0 %v4015
        %6633 = vmatprep.mubr.bf16.mxu0 %v573
        %6634 = vmatmul.mubr.bf16.gmra.mrb[0].mxu0 %v548
        %v6635 = vpop.f32.mrb[0].mxu0
        %v6636 = vadd.f32 %v1380, %v6635
        %v6637 = vpop.f32.mrb[0].mxu0
        %v6638 = vadd.f32 %v1384, %v6637
        %v6639 = vpop.f32.mrb[0].mxu0
        %v6640 = vadd.f32 %v1380, %v6639
        %v6641 = vpop.f32.mrb[0].mxu0
        %v6642 = vadd.f32 %v1384, %v6641
        %6643 = vmatprep.mubr.bf16.mxu0 %v576
        %6644 = vmatmul.mubr.bf16.gmra.mrb[0].mxu0 %v552
        %v6645 = vpop.f32.mrb[0].mxu0
        %v6646 = vadd.f32 %v1380, %v6645
        %v6647 = vpop.f32.mrb[0].mxu0
        %v6648 = vadd.f32 %v1384, %v6647
        %v6649 = vpop.f32.mrb[0].mxu0
        %v6650 = vadd.f32 %v1380, %v6649
        %v6651 = vpop.f32.mrb[0].mxu0
        %v6652 = vadd.f32 %v1384, %v6651
        %6653 = vmatprep.mubr.bf16.mxu0 %v579
        %6654 = vmatmul.mubr.bf16.gmra.mrb[0].mxu0 %v556
        %v6655 = vpop.f32.mrb[0].mxu0
        %v6656 = vadd.f32 %v1380, %v6655
        %v6657 = vpop.f32.mrb[0].mxu0
        %v6658 = vadd.f32 %v1384, %v6657
        %v6659 = vpop.f32.mrb[0].mxu0
        %v6660 = vadd.f32 %v1380, %v6659
        %v6661 = vpop.f32.mrb[0].mxu0
        %v6662 = vadd.f32 %v1384, %v6661
        %6663 = vmatprep.mubr.bf16.mxu0 %v582
        %6664 = vmatmul.mubr.bf16.gmra.mrb[0].mxu0 %v560
        %v6665 = vpop.f32.mrb[0].mxu0
        %v6666 = vadd.f32 %v1380, %v6665
        %v6667 = vpop.f32.mrb[0].mxu0
        %v6668 = vadd.f32 %v1384, %v6667
        %v6669 = vpop.f32.mrb[0].mxu0
        %v6670 = vadd.f32 %v1380, %v6669
        %v6671 = vpop.f32.mrb[0].mxu0
        %v6672 = vadd.f32 %v1384, %v6671
        %6673 = vdwg.mxu0
        %6674 = vmatprep.subr.bf16.mxu0 %v4048
        %6675 = vmatpush1.bf16.msra.mxu0 %v4047
        %6676 = vmatprep.subr.bf16.mxu0 %v4080
        %6677 = vmatpush1.bf16.msra.mxu0 %v4079
        %6678 = vmatprep.subr.bf16.mxu0 %v4112
        %6679 = vmatpush1.bf16.msra.mxu0 %v4111
        %6680 = vmatprep.subr.bf16.mxu0 %v4144
        %6681 = vmatpush1.bf16.msra.mxu0 %v4143
        %6682 = vmatprep.subr.bf16.mxu0 %v4176
        %6683 = vmatpush1.bf16.msra.mxu0 %v4175
        %6684 = vmatprep.subr.bf16.mxu0 %v4969
        %6685 = vmatpush1.bf16.msra.mxu0 %v4966
        %6686 = vmatprep.subr.bf16.mxu0 0
        %6687 = vmatpush1.bf16.msra.mxu0 0
        %6688 = vmatprep.subr.bf16.mxu0 0
        %6689 = vmatpush1.bf16.msra.mxu0 0
        %6690 = vmatprep.subr.bf16.mxu0 0
        %6691 = vmatpush1.bf16.msra.mxu0 0
        %6692 = vmatprep.subr.bf16.mxu0 0
        %6693 = vmatpush1.bf16.msra.mxu0 0
        %6694 = vmatprep.subr.bf16.mxu0 0
        %6695 = vmatpush1.bf16.msra.mxu0 0
        %6696 = vmatprep.subr.bf16.mxu0 0
        %6697 = vmatpush1.bf16.msra.mxu0 0
        %6698 = vmatprep.subr.bf16.mxu0 0
        %6699 = vmatpush1.bf16.msra.mxu0 0
        %6700 = vmatprep.subr.bf16.mxu0 0
        %6701 = vmatpush1.bf16.msra.mxu0 0
        %6702 = vmatprep.subr.bf16.mxu0 0
        %6703 = vmatpush1.bf16.msra.mxu0 0
        %6704 = vmatprep.subr.bf16.mxu0 0
        %6705 = vmatpush1.bf16.msra.mxu0 0
        %6706 = vmatprep.mubr.bf16.mxu0 0
        %6707 = vmatmul.mubr.bf16.gmra.mrb[0].mxu0 %v4890
        %v6708 = vpop.f32.mrb[0].mxu0
        %v6709 = vadd.f32 %v6636, %v6708
        %v6710 = vpop.f32.mrb[0].mxu0
        %v6711 = vadd.f32 %v6638, %v6710
        %v6712 = vpop.f32.mrb[0].mxu0
        %v6713 = vadd.f32 %v6640, %v6712
        %v6714 = vpop.f32.mrb[0].mxu0
        %v6715 = vadd.f32 %v6642, %v6714
        %6716 = vmatprep.mubr.bf16.mxu0 0
        %6717 = vmatmul.mubr.bf16.gmra.mrb[0].mxu0 %v4892
        %v6718 = vpop.f32.mrb[0].mxu0
        %v6719 = vadd.f32 %v6646, %v6718
        %v6720 = vpop.f32.mrb[0].mxu0
        %v6721 = vadd.f32 %v6648, %v6720
        %v6722 = vpop.f32.mrb[0].mxu0
        %v6723 = vadd.f32 %v6650, %v6722
        %v6724 = vpop.f32.mrb[0].mxu0
        %v6725 = vadd.f32 %v6652, %v6724
        %6726 = vmatprep.mubr.bf16.mxu0 0
        %6727 = vmatmul.mubr.bf16.gmra.mrb[0].mxu0 %v4894
        %v6728 = vpop.f32.mrb[0].mxu0
        %v6729 = vadd.f32 %v6656, %v6728
        %v6730 = vpop.f32.mrb[0].mxu0
        %v6731 = vadd.f32 %v6658, %v6730
        %v6732 = vpop.f32.mrb[0].mxu0
        %v6733 = vadd.f32 %v6660, %v6732
        %v6734 = vpop.f32.mrb[0].mxu0
        %v6735 = vadd.f32 %v6662, %v6734
        %6736 = vmatprep.mubr.bf16.mxu0 0
        %6737 = vmatmul.mubr.bf16.gmra.mrb[0].mxu0 %v4896
        %v6738 = vpop.f32.mrb[0].mxu0
        %v6739 = vadd.f32 %v6666, %v6738
        %v6740 = vpop.f32.mrb[0].mxu0
        %v6741 = vadd.f32 %v6668, %v6740
        %v6742 = vpop.f32.mrb[0].mxu0
        %v6743 = vadd.f32 %v6670, %v6742
        %v6744 = vpop.f32.mrb[0].mxu0
        %v6745 = vadd.f32 %v6672, %v6744
        %6746 = vdwg.mxu0
        %6747 = vmatprep.subr.bf16.mxu0 %v3538
        %6748 = vmatpush1.bf16.msra.mxu0 %v3537
        %6749 = vmatprep.subr.bf16.mxu0 %v3570
        %6750 = vmatpush1.bf16.msra.mxu0 %v3569
        %6751 = vmatprep.subr.bf16.mxu0 %v3602
        %6752 = vmatpush1.bf16.msra.mxu0 %v3601
        %6753 = vmatprep.subr.bf16.mxu0 %v3634
        %6754 = vmatpush1.bf16.msra.mxu0 %v3633
        %6755 = vmatprep.subr.bf16.mxu0 %v3666
        %6756 = vmatpush1.bf16.msra.mxu0 %v3665
        %6757 = vmatprep.subr.bf16.mxu0 %v3698
        %6758 = vmatpush1.bf16.msra.mxu0 %v3697
        %6759 = vmatprep.subr.bf16.mxu0 %v3730
        %6760 = vmatpush1.bf16.msra.mxu0 %v3729
        %6761 = vmatprep.subr.bf16.mxu0 %v3762
        %6762 = vmatpush1.bf16.msra.mxu0 %v3761
        %6763 = vmatprep.subr.bf16.mxu0 %v3794
        %6764 = vmatpush1.bf16.msra.mxu0 %v3793
        %6765 = vmatprep.subr.bf16.mxu0 %v3826
        %6766 = vmatpush1.bf16.msra.mxu0 %v3825
        %6767 = vmatprep.subr.bf16.mxu0 %v3858
        %6768 = vmatpush1.bf16.msra.mxu0 %v3857
        %6769 = vmatprep.subr.bf16.mxu0 %v3890
        %6770 = vmatpush1.bf16.msra.mxu0 %v3889
        %6771 = vmatprep.subr.bf16.mxu0 %v3922
        %6772 = vmatpush1.bf16.msra.mxu0 %v3921
        %6773 = vmatprep.subr.bf16.mxu0 %v3954
        %6774 = vmatpush1.bf16.msra.mxu0 %v3953
        %6775 = vmatprep.subr.bf16.mxu0 %v3986
        %6776 = vmatpush1.bf16.msra.mxu0 %v3985
        %6777 = vmatprep.subr.bf16.mxu0 %v4018
        %6778 = vmatpush1.bf16.msra.mxu0 %v4017
        %6779 = vmatprep.mubr.bf16.mxu0 %v573
        %6780 = vmatmul.mubr.bf16.gmra.mrb[0].mxu0 %v548
        %v6781 = vpop.f32.mrb[0].mxu0
        %v6782 = vadd.f32 %v1388, %v6781
        %v6783 = vpop.f32.mrb[0].mxu0
        %v6784 = vadd.f32 %v1392, %v6783
        %v6785 = vpop.f32.mrb[0].mxu0
        %v6786 = vadd.f32 %v1388, %v6785
        %v6787 = vpop.f32.mrb[0].mxu0
        %v6788 = vadd.f32 %v1392, %v6787
        %6789 = vmatprep.mubr.bf16.mxu0 %v576
        %6790 = vmatmul.mubr.bf16.gmra.mrb[0].mxu0 %v552
        %v6791 = vpop.f32.mrb[0].mxu0
        %v6792 = vadd.f32 %v1388, %v6791
        %v6793 = vpop.f32.mrb[0].mxu0
        %v6794 = vadd.f32 %v1392, %v6793
        %v6795 = vpop.f32.mrb[0].mxu0
        %v6796 = vadd.f32 %v1388, %v6795
        %v6797 = vpop.f32.mrb[0].mxu0
        %v6798 = vadd.f32 %v1392, %v6797
        %6799 = vmatprep.mubr.bf16.mxu0 %v579
        %6800 = vmatmul.mubr.bf16.gmra.mrb[0].mxu0 %v556
        %v6801 = vpop.f32.mrb[0].mxu0
        %v6802 = vadd.f32 %v1388, %v6801
        %v6803 = vpop.f32.mrb[0].mxu0
        %v6804 = vadd.f32 %v1392, %v6803
        %v6805 = vpop.f32.mrb[0].mxu0
        %v6806 = vadd.f32 %v1388, %v6805
        %v6807 = vpop.f32.mrb[0].mxu0
        %v6808 = vadd.f32 %v1392, %v6807
        %6809 = vmatprep.mubr.bf16.mxu0 %v582
        %6810 = vmatmul.mubr.bf16.gmra.mrb[0].mxu0 %v560
        %v6811 = vpop.f32.mrb[0].mxu0
        %v6812 = vadd.f32 %v1388, %v6811
        %v6813 = vpop.f32.mrb[0].mxu0
        %v6814 = vadd.f32 %v1392, %v6813
        %v6815 = vpop.f32.mrb[0].mxu0
        %v6816 = vadd.f32 %v1388, %v6815
        %v6817 = vpop.f32.mrb[0].mxu0
        %v6818 = vadd.f32 %v1392, %v6817
        %6819 = vdwg.mxu0
        %6820 = vmatprep.subr.bf16.mxu0 %v4050
        %6821 = vmatpush1.bf16.msra.mxu0 %v4049
        %6822 = vmatprep.subr.bf16.mxu0 %v4082
        %6823 = vmatpush1.bf16.msra.mxu0 %v4081
        %6824 = vmatprep.subr.bf16.mxu0 %v4114
        %6825 = vmatpush1.bf16.msra.mxu0 %v4113
        %6826 = vmatprep.subr.bf16.mxu0 %v4146
        %6827 = vmatpush1.bf16.msra.mxu0 %v4145
        %6828 = vmatprep.subr.bf16.mxu0 %v4178
        %6829 = vmatpush1.bf16.msra.mxu0 %v4177
        %6830 = vmatprep.subr.bf16.mxu0 %v4975
        %6831 = vmatpush1.bf16.msra.mxu0 %v4972
        %6832 = vmatprep.subr.bf16.mxu0 0
        %6833 = vmatpush1.bf16.msra.mxu0 0
        %6834 = vmatprep.subr.bf16.mxu0 0
        %6835 = vmatpush1.bf16.msra.mxu0 0
        %6836 = vmatprep.subr.bf16.mxu0 0
        %6837 = vmatpush1.bf16.msra.mxu0 0
        %6838 = vmatprep.subr.bf16.mxu0 0
        %6839 = vmatpush1.bf16.msra.mxu0 0
        %6840 = vmatprep.subr.bf16.mxu0 0
        %6841 = vmatpush1.bf16.msra.mxu0 0
        %6842 = vmatprep.subr.bf16.mxu0 0
        %6843 = vmatpush1.bf16.msra.mxu0 0
        %6844 = vmatprep.subr.bf16.mxu0 0
        %6845 = vmatpush1.bf16.msra.mxu0 0
        %6846 = vmatprep.subr.bf16.mxu0 0
        %6847 = vmatpush1.bf16.msra.mxu0 0
        %6848 = vmatprep.subr.bf16.mxu0 0
        %6849 = vmatpush1.bf16.msra.mxu0 0
        %6850 = vmatprep.subr.bf16.mxu0 0
        %6851 = vmatpush1.bf16.msra.mxu0 0
        %6852 = vmatprep.mubr.bf16.mxu0 0
        %6853 = vmatmul.mubr.bf16.gmra.mrb[0].mxu0 %v4890
        %v6854 = vpop.f32.mrb[0].mxu0
        %v6855 = vadd.f32 %v6782, %v6854
        %v6856 = vpop.f32.mrb[0].mxu0
        %v6857 = vadd.f32 %v6784, %v6856
        %v6858 = vpop.f32.mrb[0].mxu0
        %v6859 = vadd.f32 %v6786, %v6858
        %v6860 = vpop.f32.mrb[0].mxu0
        %v6861 = vadd.f32 %v6788, %v6860
        %6862 = vmatprep.mubr.bf16.mxu0 0
        %6863 = vmatmul.mubr.bf16.gmra.mrb[0].mxu0 %v4892
        %v6864 = vpop.f32.mrb[0].mxu0
        %v6865 = vadd.f32 %v6792, %v6864
        %v6866 = vpop.f32.mrb[0].mxu0
        %v6867 = vadd.f32 %v6794, %v6866
        %v6868 = vpop.f32.mrb[0].mxu0
        %v6869 = vadd.f32 %v6796, %v6868
        %v6870 = vpop.f32.mrb[0].mxu0
        %v6871 = vadd.f32 %v6798, %v6870
        %6872 = vmatprep.mubr.bf16.mxu0 0
        %6873 = vmatmul.mubr.bf16.gmra.mrb[0].mxu0 %v4894
        %v6874 = vpop.f32.mrb[0].mxu0
        %v6875 = vadd.f32 %v6802, %v6874
        %v6876 = vpop.f32.mrb[0].mxu0
        %v6877 = vadd.f32 %v6804, %v6876
        %v6878 = vpop.f32.mrb[0].mxu0
        %v6879 = vadd.f32 %v6806, %v6878
        %v6880 = vpop.f32.mrb[0].mxu0
        %v6881 = vadd.f32 %v6808, %v6880
        %6882 = vmatprep.mubr.bf16.mxu0 0
        %6883 = vmatmul.mubr.bf16.gmra.mrb[0].mxu0 %v4896
        %v6884 = vpop.f32.mrb[0].mxu0
        %v6885 = vadd.f32 %v6812, %v6884
        %v6886 = vpop.f32.mrb[0].mxu0
        %v6887 = vadd.f32 %v6814, %v6886
        %v6888 = vpop.f32.mrb[0].mxu0
        %v6889 = vadd.f32 %v6816, %v6888
        %v6890 = vpop.f32.mrb[0].mxu0
        %v6891 = vadd.f32 %v6818, %v6890
        %6892 = vdwg.mxu0
        %6893 = vmatprep.subr.bf16.mxu0 %v3540
        %6894 = vmatpush1.bf16.msra.mxu0 %v3539
        %6895 = vmatprep.subr.bf16.mxu0 %v3572
        %6896 = vmatpush1.bf16.msra.mxu0 %v3571
        %6897 = vmatprep.subr.bf16.mxu0 %v3604
        %6898 = vmatpush1.bf16.msra.mxu0 %v3603
        %6899 = vmatprep.subr.bf16.mxu0 %v3636
        %6900 = vmatpush1.bf16.msra.mxu0 %v3635
        %6901 = vmatprep.subr.bf16.mxu0 %v3668
        %6902 = vmatpush1.bf16.msra.mxu0 %v3667
        %6903 = vmatprep.subr.bf16.mxu0 %v3700
        %6904 = vmatpush1.bf16.msra.mxu0 %v3699
        %6905 = vmatprep.subr.bf16.mxu0 %v3732
        %6906 = vmatpush1.bf16.msra.mxu0 %v3731
        %6907 = vmatprep.subr.bf16.mxu0 %v3764
        %6908 = vmatpush1.bf16.msra.mxu0 %v3763
        %6909 = vmatprep.subr.bf16.mxu0 %v3796
        %6910 = vmatpush1.bf16.msra.mxu0 %v3795
        %6911 = vmatprep.subr.bf16.mxu0 %v3828
        %6912 = vmatpush1.bf16.msra.mxu0 %v3827
        %6913 = vmatprep.subr.bf16.mxu0 %v3860
        %6914 = vmatpush1.bf16.msra.mxu0 %v3859
        %6915 = vmatprep.subr.bf16.mxu0 %v3892
        %6916 = vmatpush1.bf16.msra.mxu0 %v3891
        %6917 = vmatprep.subr.bf16.mxu0 %v3924
        %6918 = vmatpush1.bf16.msra.mxu0 %v3923
        %6919 = vmatprep.subr.bf16.mxu0 %v3956
        %6920 = vmatpush1.bf16.msra.mxu0 %v3955
        %6921 = vmatprep.subr.bf16.mxu0 %v3988
        %6922 = vmatpush1.bf16.msra.mxu0 %v3987
        %6923 = vmatprep.subr.bf16.mxu0 %v4020
        %6924 = vmatpush1.bf16.msra.mxu0 %v4019
        %6925 = vmatprep.mubr.bf16.mxu0 %v573
        %6926 = vmatmul.mubr.bf16.gmra.mrb[0].mxu0 %v548
        %v6927 = vpop.f32.mrb[0].mxu0
        %v6928 = vadd.f32 %v1396, %v6927
        %v6929 = vpop.f32.mrb[0].mxu0
        %v6930 = vadd.f32 %v1400, %v6929
        %v6931 = vpop.f32.mrb[0].mxu0
        %v6932 = vadd.f32 %v1396, %v6931
        %v6933 = vpop.f32.mrb[0].mxu0
        %v6934 = vadd.f32 %v1400, %v6933
        %6935 = vmatprep.mubr.bf16.mxu0 %v576
        %6936 = vmatmul.mubr.bf16.gmra.mrb[0].mxu0 %v552
        %v6937 = vpop.f32.mrb[0].mxu0
        %v6938 = vadd.f32 %v1396, %v6937
        %v6939 = vpop.f32.mrb[0].mxu0
        %v6940 = vadd.f32 %v1400, %v6939
        %v6941 = vpop.f32.mrb[0].mxu0
        %v6942 = vadd.f32 %v1396, %v6941
        %v6943 = vpop.f32.mrb[0].mxu0
        %v6944 = vadd.f32 %v1400, %v6943
        %6945 = vmatprep.mubr.bf16.mxu0 %v579
        %6946 = vmatmul.mubr.bf16.gmra.mrb[0].mxu0 %v556
        %v6947 = vpop.f32.mrb[0].mxu0
        %v6948 = vadd.f32 %v1396, %v6947
        %v6949 = vpop.f32.mrb[0].mxu0
        %v6950 = vadd.f32 %v1400, %v6949
        %v6951 = vpop.f32.mrb[0].mxu0
        %v6952 = vadd.f32 %v1396, %v6951
        %v6953 = vpop.f32.mrb[0].mxu0
        %v6954 = vadd.f32 %v1400, %v6953
        %6955 = vmatprep.mubr.bf16.mxu0 %v582
        %6956 = vmatmul.mubr.bf16.gmra.mrb[0].mxu0 %v560
        %v6957 = vpop.f32.mrb[0].mxu0
        %v6958 = vadd.f32 %v1396, %v6957
        %v6959 = vpop.f32.mrb[0].mxu0
        %v6960 = vadd.f32 %v1400, %v6959
        %v6961 = vpop.f32.mrb[0].mxu0
        %v6962 = vadd.f32 %v1396, %v6961
        %v6963 = vpop.f32.mrb[0].mxu0
        %v6964 = vadd.f32 %v1400, %v6963
        %6965 = vdwg.mxu0
        %6966 = vmatprep.subr.bf16.mxu0 %v4052
        %6967 = vmatpush1.bf16.msra.mxu0 %v4051
        %6968 = vmatprep.subr.bf16.mxu0 %v4084
        %6969 = vmatpush1.bf16.msra.mxu0 %v4083
        %6970 = vmatprep.subr.bf16.mxu0 %v4116
        %6971 = vmatpush1.bf16.msra.mxu0 %v4115
        %6972 = vmatprep.subr.bf16.mxu0 %v4148
        %6973 = vmatpush1.bf16.msra.mxu0 %v4147
        %6974 = vmatprep.subr.bf16.mxu0 %v4180
        %6975 = vmatpush1.bf16.msra.mxu0 %v4179
        %6976 = vmatprep.subr.bf16.mxu0 %v4981
        %6977 = vmatpush1.bf16.msra.mxu0 %v4978
        %6978 = vmatprep.subr.bf16.mxu0 0
        %6979 = vmatpush1.bf16.msra.mxu0 0
        %6980 = vmatprep.subr.bf16.mxu0 0
        %6981 = vmatpush1.bf16.msra.mxu0 0
        %6982 = vmatprep.subr.bf16.mxu0 0
        %6983 = vmatpush1.bf16.msra.mxu0 0
        %6984 = vmatprep.subr.bf16.mxu0 0
        %6985 = vmatpush1.bf16.msra.mxu0 0
        %6986 = vmatprep.subr.bf16.mxu0 0
        %6987 = vmatpush1.bf16.msra.mxu0 0
        %6988 = vmatprep.subr.bf16.mxu0 0
        %6989 = vmatpush1.bf16.msra.mxu0 0
        %6990 = vmatprep.subr.bf16.mxu0 0
        %6991 = vmatpush1.bf16.msra.mxu0 0
        %6992 = vmatprep.subr.bf16.mxu0 0
        %6993 = vmatpush1.bf16.msra.mxu0 0
        %6994 = vmatprep.subr.bf16.mxu0 0
        %6995 = vmatpush1.bf16.msra.mxu0 0
        %6996 = vmatprep.subr.bf16.mxu0 0
        %6997 = vmatpush1.bf16.msra.mxu0 0
        %6998 = vmatprep.mubr.bf16.mxu0 0
        %6999 = vmatmul.mubr.bf16.gmra.mrb[0].mxu0 %v4890
        %v7000 = vpop.f32.mrb[0].mxu0
        %v7001 = vadd.f32 %v6928, %v7000
        %v7002 = vpop.f32.mrb[0].mxu0
        %v7003 = vadd.f32 %v6930, %v7002
        %v7004 = vpop.f32.mrb[0].mxu0
        %v7005 = vadd.f32 %v6932, %v7004
        %v7006 = vpop.f32.mrb[0].mxu0
        %v7007 = vadd.f32 %v6934, %v7006
        %7008 = vmatprep.mubr.bf16.mxu0 0
        %7009 = vmatmul.mubr.bf16.gmra.mrb[0].mxu0 %v4892
        %v7010 = vpop.f32.mrb[0].mxu0
        %v7011 = vadd.f32 %v6938, %v7010
        %v7012 = vpop.f32.mrb[0].mxu0
        %v7013 = vadd.f32 %v6940, %v7012
        %v7014 = vpop.f32.mrb[0].mxu0
        %v7015 = vadd.f32 %v6942, %v7014
        %v7016 = vpop.f32.mrb[0].mxu0
        %v7017 = vadd.f32 %v6944, %v7016
        %7018 = vmatprep.mubr.bf16.mxu0 0
        %7019 = vmatmul.mubr.bf16.gmra.mrb[0].mxu0 %v4894
        %v7020 = vpop.f32.mrb[0].mxu0
        %v7021 = vadd.f32 %v6948, %v7020
        %v7022 = vpop.f32.mrb[0].mxu0
        %v7023 = vadd.f32 %v6950, %v7022
        %v7024 = vpop.f32.mrb[0].mxu0
        %v7025 = vadd.f32 %v6952, %v7024
        %v7026 = vpop.f32.mrb[0].mxu0
        %v7027 = vadd.f32 %v6954, %v7026
        %7028 = vmatprep.mubr.bf16.mxu0 0
        %7029 = vmatmul.mubr.bf16.gmra.mrb[0].mxu0 %v4896
        %v7030 = vpop.f32.mrb[0].mxu0
        %v7031 = vadd.f32 %v6958, %v7030
        %v7032 = vpop.f32.mrb[0].mxu0
        %v7033 = vadd.f32 %v6960, %v7032
        %v7034 = vpop.f32.mrb[0].mxu0
        %v7035 = vadd.f32 %v6962, %v7034
        %v7036 = vpop.f32.mrb[0].mxu0
        %v7037 = vadd.f32 %v6964, %v7036
        %7038 = vdwg.mxu0
        %7039 = vmatprep.subr.bf16.mxu0 %v3542
        %7040 = vmatpush1.bf16.msra.mxu0 %v3541
        %7041 = vmatprep.subr.bf16.mxu0 %v3574
        %7042 = vmatpush1.bf16.msra.mxu0 %v3573
        %7043 = vmatprep.subr.bf16.mxu0 %v3606
        %7044 = vmatpush1.bf16.msra.mxu0 %v3605
        %7045 = vmatprep.subr.bf16.mxu0 %v3638
        %7046 = vmatpush1.bf16.msra.mxu0 %v3637
        %7047 = vmatprep.subr.bf16.mxu0 %v3670
        %7048 = vmatpush1.bf16.msra.mxu0 %v3669
        %7049 = vmatprep.subr.bf16.mxu0 %v3702
        %7050 = vmatpush1.bf16.msra.mxu0 %v3701
        %7051 = vmatprep.subr.bf16.mxu0 %v3734
        %7052 = vmatpush1.bf16.msra.mxu0 %v3733
        %7053 = vmatprep.subr.bf16.mxu0 %v3766
        %7054 = vmatpush1.bf16.msra.mxu0 %v3765
        %7055 = vmatprep.subr.bf16.mxu0 %v3798
        %7056 = vmatpush1.bf16.msra.mxu0 %v3797
        %7057 = vmatprep.subr.bf16.mxu0 %v3830
        %7058 = vmatpush1.bf16.msra.mxu0 %v3829
        %7059 = vmatprep.subr.bf16.mxu0 %v3862
        %7060 = vmatpush1.bf16.msra.mxu0 %v3861
        %7061 = vmatprep.subr.bf16.mxu0 %v3894
        %7062 = vmatpush1.bf16.msra.mxu0 %v3893
        %7063 = vmatprep.subr.bf16.mxu0 %v3926
        %7064 = vmatpush1.bf16.msra.mxu0 %v3925
        %7065 = vmatprep.subr.bf16.mxu0 %v3958
        %7066 = vmatpush1.bf16.msra.mxu0 %v3957
        %7067 = vmatprep.subr.bf16.mxu0 %v3990
        %7068 = vmatpush1.bf16.msra.mxu0 %v3989
        %7069 = vmatprep.subr.bf16.mxu0 %v4022
        %7070 = vmatpush1.bf16.msra.mxu0 %v4021
        %7071 = vmatprep.mubr.bf16.mxu0 %v573
        %7072 = vmatmul.mubr.bf16.gmra.mrb[0].mxu0 %v548
        %v7073 = vpop.f32.mrb[0].mxu0
        %v7074 = vadd.f32 %v1404, %v7073
        %v7075 = vpop.f32.mrb[0].mxu0
        %v7076 = vadd.f32 %v1408, %v7075
        %v7077 = vpop.f32.mrb[0].mxu0
        %v7078 = vadd.f32 %v1404, %v7077
        %v7079 = vpop.f32.mrb[0].mxu0
        %v7080 = vadd.f32 %v1408, %v7079
        %7081 = vmatprep.mubr.bf16.mxu0 %v576
        %7082 = vmatmul.mubr.bf16.gmra.mrb[0].mxu0 %v552
        %v7083 = vpop.f32.mrb[0].mxu0
        %v7084 = vadd.f32 %v1404, %v7083
        %v7085 = vpop.f32.mrb[0].mxu0
        %v7086 = vadd.f32 %v1408, %v7085
        %v7087 = vpop.f32.mrb[0].mxu0
        %v7088 = vadd.f32 %v1404, %v7087
        %v7089 = vpop.f32.mrb[0].mxu0
        %v7090 = vadd.f32 %v1408, %v7089
        %7091 = vmatprep.mubr.bf16.mxu0 %v579
        %7092 = vmatmul.mubr.bf16.gmra.mrb[0].mxu0 %v556
        %v7093 = vpop.f32.mrb[0].mxu0
        %v7094 = vadd.f32 %v1404, %v7093
        %v7095 = vpop.f32.mrb[0].mxu0
        %v7096 = vadd.f32 %v1408, %v7095
        %v7097 = vpop.f32.mrb[0].mxu0
        %v7098 = vadd.f32 %v1404, %v7097
        %v7099 = vpop.f32.mrb[0].mxu0
        %v7100 = vadd.f32 %v1408, %v7099
        %7101 = vmatprep.mubr.bf16.mxu0 %v582
        %7102 = vmatmul.mubr.bf16.gmra.mrb[0].mxu0 %v560
        %v7103 = vpop.f32.mrb[0].mxu0
        %v7104 = vadd.f32 %v1404, %v7103
        %v7105 = vpop.f32.mrb[0].mxu0
        %v7106 = vadd.f32 %v1408, %v7105
        %v7107 = vpop.f32.mrb[0].mxu0
        %v7108 = vadd.f32 %v1404, %v7107
        %v7109 = vpop.f32.mrb[0].mxu0
        %v7110 = vadd.f32 %v1408, %v7109
        %7111 = vdwg.mxu0
        %7112 = vmatprep.subr.bf16.mxu0 %v4054
        %7113 = vmatpush1.bf16.msra.mxu0 %v4053
        %7114 = vmatprep.subr.bf16.mxu0 %v4086
        %7115 = vmatpush1.bf16.msra.mxu0 %v4085
        %7116 = vmatprep.subr.bf16.mxu0 %v4118
        %7117 = vmatpush1.bf16.msra.mxu0 %v4117
        %7118 = vmatprep.subr.bf16.mxu0 %v4150
        %7119 = vmatpush1.bf16.msra.mxu0 %v4149
        %7120 = vmatprep.subr.bf16.mxu0 %v4182
        %7121 = vmatpush1.bf16.msra.mxu0 %v4181
        %7122 = vmatprep.subr.bf16.mxu0 %v4987
        %7123 = vmatpush1.bf16.msra.mxu0 %v4984
        %7124 = vmatprep.subr.bf16.mxu0 0
        %7125 = vmatpush1.bf16.msra.mxu0 0
        %7126 = vmatprep.subr.bf16.mxu0 0
        %7127 = vmatpush1.bf16.msra.mxu0 0
        %7128 = vmatprep.subr.bf16.mxu0 0
        %7129 = vmatpush1.bf16.msra.mxu0 0
        %7130 = vmatprep.subr.bf16.mxu0 0
        %7131 = vmatpush1.bf16.msra.mxu0 0
        %7132 = vmatprep.subr.bf16.mxu0 0
        %7133 = vmatpush1.bf16.msra.mxu0 0
        %7134 = vmatprep.subr.bf16.mxu0 0
        %7135 = vmatpush1.bf16.msra.mxu0 0
        %7136 = vmatprep.subr.bf16.mxu0 0
        %7137 = vmatpush1.bf16.msra.mxu0 0
        %7138 = vmatprep.subr.bf16.mxu0 0
        %7139 = vmatpush1.bf16.msra.mxu0 0
        %7140 = vmatprep.subr.bf16.mxu0 0
        %7141 = vmatpush1.bf16.msra.mxu0 0
        %7142 = vmatprep.subr.bf16.mxu0 0
        %7143 = vmatpush1.bf16.msra.mxu0 0
        %7144 = vmatprep.mubr.bf16.mxu0 0
        %7145 = vmatmul.mubr.bf16.gmra.mrb[0].mxu0 %v4890
        %v7146 = vpop.f32.mrb[0].mxu0
        %v7147 = vadd.f32 %v7074, %v7146
        %v7148 = vpop.f32.mrb[0].mxu0
        %v7149 = vadd.f32 %v7076, %v7148
        %v7150 = vpop.f32.mrb[0].mxu0
        %v7151 = vadd.f32 %v7078, %v7150
        %v7152 = vpop.f32.mrb[0].mxu0
        %v7153 = vadd.f32 %v7080, %v7152
        %7154 = vmatprep.mubr.bf16.mxu0 0
        %7155 = vmatmul.mubr.bf16.gmra.mrb[0].mxu0 %v4892
        %v7156 = vpop.f32.mrb[0].mxu0
        %v7157 = vadd.f32 %v7084, %v7156
        %v7158 = vpop.f32.mrb[0].mxu0
        %v7159 = vadd.f32 %v7086, %v7158
        %v7160 = vpop.f32.mrb[0].mxu0
        %v7161 = vadd.f32 %v7088, %v7160
        %v7162 = vpop.f32.mrb[0].mxu0
        %v7163 = vadd.f32 %v7090, %v7162
        %7164 = vmatprep.mubr.bf16.mxu0 0
        %7165 = vmatmul.mubr.bf16.gmra.mrb[0].mxu0 %v4894
        %v7166 = vpop.f32.mrb[0].mxu0
        %v7167 = vadd.f32 %v7094, %v7166
        %v7168 = vpop.f32.mrb[0].mxu0
        %v7169 = vadd.f32 %v7096, %v7168
        %v7170 = vpop.f32.mrb[0].mxu0
        %v7171 = vadd.f32 %v7098, %v7170
        %v7172 = vpop.f32.mrb[0].mxu0
        %v7173 = vadd.f32 %v7100, %v7172
        %7174 = vmatprep.mubr.bf16.mxu0 0
        %7175 = vmatmul.mubr.bf16.gmra.mrb[0].mxu0 %v4896
        %v7176 = vpop.f32.mrb[0].mxu0
        %v7177 = vadd.f32 %v7104, %v7176
        %v7178 = vpop.f32.mrb[0].mxu0
        %v7179 = vadd.f32 %v7106, %v7178
        %v7180 = vpop.f32.mrb[0].mxu0
        %v7181 = vadd.f32 %v7108, %v7180
        %v7182 = vpop.f32.mrb[0].mxu0
        %v7183 = vadd.f32 %v7110, %v7182
        %7184 = vdwg.mxu0
        %7185 = vmatprep.subr.bf16.mxu0 %v3544
        %7186 = vmatpush1.bf16.msra.mxu0 %v3543
        %7187 = vmatprep.subr.bf16.mxu0 %v3576
        %7188 = vmatpush1.bf16.msra.mxu0 %v3575
        %7189 = vmatprep.subr.bf16.mxu0 %v3608
        %7190 = vmatpush1.bf16.msra.mxu0 %v3607
        %7191 = vmatprep.subr.bf16.mxu0 %v3640
        %7192 = vmatpush1.bf16.msra.mxu0 %v3639
        %7193 = vmatprep.subr.bf16.mxu0 %v3672
        %7194 = vmatpush1.bf16.msra.mxu0 %v3671
        %7195 = vmatprep.subr.bf16.mxu0 %v3704
        %7196 = vmatpush1.bf16.msra.mxu0 %v3703
        %7197 = vmatprep.subr.bf16.mxu0 %v3736
        %7198 = vmatpush1.bf16.msra.mxu0 %v3735
        %7199 = vmatprep.subr.bf16.mxu0 %v3768
        %7200 = vmatpush1.bf16.msra.mxu0 %v3767
        %7201 = vmatprep.subr.bf16.mxu0 %v3800
        %7202 = vmatpush1.bf16.msra.mxu0 %v3799
        %7203 = vmatprep.subr.bf16.mxu0 %v3832
        %7204 = vmatpush1.bf16.msra.mxu0 %v3831
        %7205 = vmatprep.subr.bf16.mxu0 %v3864
        %7206 = vmatpush1.bf16.msra.mxu0 %v3863
        %7207 = vmatprep.subr.bf16.mxu0 %v3896
        %7208 = vmatpush1.bf16.msra.mxu0 %v3895
        %7209 = vmatprep.subr.bf16.mxu0 %v3928
        %7210 = vmatpush1.bf16.msra.mxu0 %v3927
        %7211 = vmatprep.subr.bf16.mxu0 %v3960
        %7212 = vmatpush1.bf16.msra.mxu0 %v3959
        %7213 = vmatprep.subr.bf16.mxu0 %v3992
        %7214 = vmatpush1.bf16.msra.mxu0 %v3991
        %7215 = vmatprep.subr.bf16.mxu0 %v4024
        %7216 = vmatpush1.bf16.msra.mxu0 %v4023
        %7217 = vmatprep.mubr.bf16.mxu0 %v573
        %7218 = vmatmul.mubr.bf16.gmra.mrb[0].mxu0 %v548
        %v7219 = vpop.f32.mrb[0].mxu0
        %v7220 = vadd.f32 %v1412, %v7219
        %v7221 = vpop.f32.mrb[0].mxu0
        %v7222 = vadd.f32 %v1416, %v7221
        %v7223 = vpop.f32.mrb[0].mxu0
        %v7224 = vadd.f32 %v1412, %v7223
        %v7225 = vpop.f32.mrb[0].mxu0
        %v7226 = vadd.f32 %v1416, %v7225
        %7227 = vmatprep.mubr.bf16.mxu0 %v576
        %7228 = vmatmul.mubr.bf16.gmra.mrb[0].mxu0 %v552
        %v7229 = vpop.f32.mrb[0].mxu0
        %v7230 = vadd.f32 %v1412, %v7229
        %v7231 = vpop.f32.mrb[0].mxu0
        %v7232 = vadd.f32 %v1416, %v7231
        %v7233 = vpop.f32.mrb[0].mxu0
        %v7234 = vadd.f32 %v1412, %v7233
        %v7235 = vpop.f32.mrb[0].mxu0
        %v7236 = vadd.f32 %v1416, %v7235
        %7237 = vmatprep.mubr.bf16.mxu0 %v579
        %7238 = vmatmul.mubr.bf16.gmra.mrb[0].mxu0 %v556
        %v7239 = vpop.f32.mrb[0].mxu0
        %v7240 = vadd.f32 %v1412, %v7239
        %v7241 = vpop.f32.mrb[0].mxu0
        %v7242 = vadd.f32 %v1416, %v7241
        %v7243 = vpop.f32.mrb[0].mxu0
        %v7244 = vadd.f32 %v1412, %v7243
        %v7245 = vpop.f32.mrb[0].mxu0
        %v7246 = vadd.f32 %v1416, %v7245
        %7247 = vmatprep.mubr.bf16.mxu0 %v582
        %7248 = vmatmul.mubr.bf16.gmra.mrb[0].mxu0 %v560
        %v7249 = vpop.f32.mrb[0].mxu0
        %v7250 = vadd.f32 %v1412, %v7249
        %v7251 = vpop.f32.mrb[0].mxu0
        %v7252 = vadd.f32 %v1416, %v7251
        %v7253 = vpop.f32.mrb[0].mxu0
        %v7254 = vadd.f32 %v1412, %v7253
        %v7255 = vpop.f32.mrb[0].mxu0
        %v7256 = vadd.f32 %v1416, %v7255
        %7257 = vdwg.mxu0
        %7258 = vmatprep.subr.bf16.mxu0 %v4056
        %7259 = vmatpush1.bf16.msra.mxu0 %v4055
        %7260 = vmatprep.subr.bf16.mxu0 %v4088
        %7261 = vmatpush1.bf16.msra.mxu0 %v4087
        %7262 = vmatprep.subr.bf16.mxu0 %v4120
        %7263 = vmatpush1.bf16.msra.mxu0 %v4119
        %7264 = vmatprep.subr.bf16.mxu0 %v4152
        %7265 = vmatpush1.bf16.msra.mxu0 %v4151
        %7266 = vmatprep.subr.bf16.mxu0 %v4184
        %7267 = vmatpush1.bf16.msra.mxu0 %v4183
        %7268 = vmatprep.subr.bf16.mxu0 %v4993
        %7269 = vmatpush1.bf16.msra.mxu0 %v4990
        %7270 = vmatprep.subr.bf16.mxu0 0
        %7271 = vmatpush1.bf16.msra.mxu0 0
        %7272 = vmatprep.subr.bf16.mxu0 0
        %7273 = vmatpush1.bf16.msra.mxu0 0
        %7274 = vmatprep.subr.bf16.mxu0 0
        %7275 = vmatpush1.bf16.msra.mxu0 0
        %7276 = vmatprep.subr.bf16.mxu0 0
        %7277 = vmatpush1.bf16.msra.mxu0 0
        %7278 = vmatprep.subr.bf16.mxu0 0
        %7279 = vmatpush1.bf16.msra.mxu0 0
        %7280 = vmatprep.subr.bf16.mxu0 0
        %7281 = vmatpush1.bf16.msra.mxu0 0
        %7282 = vmatprep.subr.bf16.mxu0 0
        %7283 = vmatpush1.bf16.msra.mxu0 0
        %7284 = vmatprep.subr.bf16.mxu0 0
        %7285 = vmatpush1.bf16.msra.mxu0 0
        %7286 = vmatprep.subr.bf16.mxu0 0
        %7287 = vmatpush1.bf16.msra.mxu0 0
        %7288 = vmatprep.subr.bf16.mxu0 0
        %7289 = vmatpush1.bf16.msra.mxu0 0
        %7290 = vmatprep.mubr.bf16.mxu0 0
        %7291 = vmatmul.mubr.bf16.gmra.mrb[0].mxu0 %v4890
        %v7292 = vpop.f32.mrb[0].mxu0
        %v7293 = vadd.f32 %v7220, %v7292
        %v7294 = vpop.f32.mrb[0].mxu0
        %v7295 = vadd.f32 %v7222, %v7294
        %v7296 = vpop.f32.mrb[0].mxu0
        %v7297 = vadd.f32 %v7224, %v7296
        %v7298 = vpop.f32.mrb[0].mxu0
        %v7299 = vadd.f32 %v7226, %v7298
        %7300 = vmatprep.mubr.bf16.mxu0 0
        %7301 = vmatmul.mubr.bf16.gmra.mrb[0].mxu0 %v4892
        %v7302 = vpop.f32.mrb[0].mxu0
        %v7303 = vadd.f32 %v7230, %v7302
        %v7304 = vpop.f32.mrb[0].mxu0
        %v7305 = vadd.f32 %v7232, %v7304
        %v7306 = vpop.f32.mrb[0].mxu0
        %v7307 = vadd.f32 %v7234, %v7306
        %v7308 = vpop.f32.mrb[0].mxu0
        %v7309 = vadd.f32 %v7236, %v7308
        %7310 = vmatprep.mubr.bf16.mxu0 0
        %7311 = vmatmul.mubr.bf16.gmra.mrb[0].mxu0 %v4894
        %v7312 = vpop.f32.mrb[0].mxu0
        %v7313 = vadd.f32 %v7240, %v7312
        %v7314 = vpop.f32.mrb[0].mxu0
        %v7315 = vadd.f32 %v7242, %v7314
        %v7316 = vpop.f32.mrb[0].mxu0
        %v7317 = vadd.f32 %v7244, %v7316
        %v7318 = vpop.f32.mrb[0].mxu0
        %v7319 = vadd.f32 %v7246, %v7318
        %7320 = vmatprep.mubr.bf16.mxu0 0
        %7321 = vmatmul.mubr.bf16.gmra.mrb[0].mxu0 %v4896
        %v7322 = vpop.f32.mrb[0].mxu0
        %v7323 = vadd.f32 %v7250, %v7322
        %v7324 = vpop.f32.mrb[0].mxu0
        %v7325 = vadd.f32 %v7252, %v7324
        %v7326 = vpop.f32.mrb[0].mxu0
        %v7327 = vadd.f32 %v7254, %v7326
        %v7328 = vpop.f32.mrb[0].mxu0
        %v7329 = vadd.f32 %v7256, %v7328
        %7330 = vdwg.mxu0
        %v7331 = vmax.f32 %v5103, 0.0
        %v7332 = vmax.f32 %v5105, 0.0
        %v7333 = vmax.f32 %v5249, 0.0
        %v7334 = vmax.f32 %v5251, 0.0
        %v7335 = vmax.f32 %v5395, 0.0
        %v7336 = vmax.f32 %v5397, 0.0
        %v7337 = vmax.f32 %v5541, 0.0
        %v7338 = vmax.f32 %v5543, 0.0
        %v7339 = vmax.f32 %v5687, 0.0
        %v7340 = vmax.f32 %v5689, 0.0
        %v7341 = vmax.f32 %v5833, 0.0
        %v7342 = vmax.f32 %v5835, 0.0
        %v7343 = vmax.f32 %v5979, 0.0
        %v7344 = vmax.f32 %v5981, 0.0
        %v7345 = vmax.f32 %v6125, 0.0
        %v7346 = vmax.f32 %v6127, 0.0
        %v7347 = vmax.f32 %v6271, 0.0
        %v7348 = vmax.f32 %v6273, 0.0
        %v7349 = vmax.f32 %v6417, 0.0
        %v7350 = vmax.f32 %v6419, 0.0
        %v7351 = vmax.f32 %v6563, 0.0
        %v7352 = vmax.f32 %v6565, 0.0
        %v7353 = vmax.f32 %v6709, 0.0
        %v7354 = vmax.f32 %v6711, 0.0
        %v7355 = vmax.f32 %v6855, 0.0
        %v7356 = vmax.f32 %v6857, 0.0
        %v7357 = vmax.f32 %v7001, 0.0
        %v7358 = vmax.f32 %v7003, 0.0
        %v7359 = vmax.f32 %v7147, 0.0
        %v7360 = vmax.f32 %v7149, 0.0
        %v7361 = vmax.f32 %v7293, 0.0
        %v7362 = vmax.f32 %v7295, 0.0
        %v7363 = vmax.f32 %v5107, 0.0
        %v7364 = vmax.f32 %v5109, 0.0
        %v7365 = vmax.f32 %v5253, 0.0
        %v7366 = vmax.f32 %v5255, 0.0
        %v7367 = vmax.f32 %v5399, 0.0
        %v7368 = vmax.f32 %v5401, 0.0
        %v7369 = vmax.f32 %v5545, 0.0
        %v7370 = vmax.f32 %v5547, 0.0
        %v7371 = vmax.f32 %v5691, 0.0
        %v7372 = vmax.f32 %v5693, 0.0
        %v7373 = vmax.f32 %v5837, 0.0
        %v7374 = vmax.f32 %v5839, 0.0
        %v7375 = vmax.f32 %v5983, 0.0
        %v7376 = vmax.f32 %v5985, 0.0
        %v7377 = vmax.f32 %v6129, 0.0
        %v7378 = vmax.f32 %v6131, 0.0
        %v7379 = vmax.f32 %v6275, 0.0
        %v7380 = vmax.f32 %v6277, 0.0
        %v7381 = vmax.f32 %v6421, 0.0
        %v7382 = vmax.f32 %v6423, 0.0
        %v7383 = vmax.f32 %v6567, 0.0
        %v7384 = vmax.f32 %v6569, 0.0
        %v7385 = vmax.f32 %v6713, 0.0
        %v7386 = vmax.f32 %v6715, 0.0
        %v7387 = vmax.f32 %v6859, 0.0
        %v7388 = vmax.f32 %v6861, 0.0
        %v7389 = vmax.f32 %v7005, 0.0
        %v7390 = vmax.f32 %v7007, 0.0
        %v7391 = vmax.f32 %v7151, 0.0
        %v7392 = vmax.f32 %v7153, 0.0
        %v7393 = vmax.f32 %v7297, 0.0
        %v7394 = vmax.f32 %v7299, 0.0
        %v7395 = vmax.f32 %v5113, 0.0
        %v7396 = vmax.f32 %v5115, 0.0
        %v7397 = vmax.f32 %v5259, 0.0
        %v7398 = vmax.f32 %v5261, 0.0
        %v7399 = vmax.f32 %v5405, 0.0
        %v7400 = vmax.f32 %v5407, 0.0
        %v7401 = vmax.f32 %v5551, 0.0
        %v7402 = vmax.f32 %v5553, 0.0
        %v7403 = vmax.f32 %v5697, 0.0
        %v7404 = vmax.f32 %v5699, 0.0
        %v7405 = vmax.f32 %v5843, 0.0
        %v7406 = vmax.f32 %v5845, 0.0
        %v7407 = vmax.f32 %v5989, 0.0
        %v7408 = vmax.f32 %v5991, 0.0
        %v7409 = vmax.f32 %v6135, 0.0
        %v7410 = vmax.f32 %v6137, 0.0
        %v7411 = vmax.f32 %v6281, 0.0
        %v7412 = vmax.f32 %v6283, 0.0
        %v7413 = vmax.f32 %v6427, 0.0
        %v7414 = vmax.f32 %v6429, 0.0
        %v7415 = vmax.f32 %v6573, 0.0
        %v7416 = vmax.f32 %v6575, 0.0
        %v7417 = vmax.f32 %v6719, 0.0
        %v7418 = vmax.f32 %v6721, 0.0
        %v7419 = vmax.f32 %v6865, 0.0
        %v7420 = vmax.f32 %v6867, 0.0
        %v7421 = vmax.f32 %v7011, 0.0
        %v7422 = vmax.f32 %v7013, 0.0
        %v7423 = vmax.f32 %v7157, 0.0
        %v7424 = vmax.f32 %v7159, 0.0
        %v7425 = vmax.f32 %v7303, 0.0
        %v7426 = vmax.f32 %v7305, 0.0
        %v7427 = vmax.f32 %v5117, 0.0
        %v7428 = vmax.f32 %v5119, 0.0
        %v7429 = vmax.f32 %v5263, 0.0
        %v7430 = vmax.f32 %v5265, 0.0
        %v7431 = vmax.f32 %v5409, 0.0
        %v7432 = vmax.f32 %v5411, 0.0
        %v7433 = vmax.f32 %v5555, 0.0
        %v7434 = vmax.f32 %v5557, 0.0
        %v7435 = vmax.f32 %v5701, 0.0
        %v7436 = vmax.f32 %v5703, 0.0
        %v7437 = vmax.f32 %v5847, 0.0
        %v7438 = vmax.f32 %v5849, 0.0
        %v7439 = vmax.f32 %v5993, 0.0
        %v7440 = vmax.f32 %v5995, 0.0
        %v7441 = vmax.f32 %v6139, 0.0
        %v7442 = vmax.f32 %v6141, 0.0
        %v7443 = vmax.f32 %v6285, 0.0
        %v7444 = vmax.f32 %v6287, 0.0
        %v7445 = vmax.f32 %v6431, 0.0
        %v7446 = vmax.f32 %v6433, 0.0
        %v7447 = vmax.f32 %v6577, 0.0
        %v7448 = vmax.f32 %v6579, 0.0
        %v7449 = vmax.f32 %v6723, 0.0
        %v7450 = vmax.f32 %v6725, 0.0
        %v7451 = vmax.f32 %v6869, 0.0
        %v7452 = vmax.f32 %v6871, 0.0
        %v7453 = vmax.f32 %v7015, 0.0
        %v7454 = vmax.f32 %v7017, 0.0
        %v7455 = vmax.f32 %v7161, 0.0
        %v7456 = vmax.f32 %v7163, 0.0
        %v7457 = vmax.f32 %v7307, 0.0
        %v7458 = vmax.f32 %v7309, 0.0
        %v7459 = vmax.f32 %v5123, 0.0
        %v7460 = vmax.f32 %v5125, 0.0
        %v7461 = vmax.f32 %v5269, 0.0
        %v7462 = vmax.f32 %v5271, 0.0
        %v7463 = vmax.f32 %v5415, 0.0
        %v7464 = vmax.f32 %v5417, 0.0
        %v7465 = vmax.f32 %v5561, 0.0
        %v7466 = vmax.f32 %v5563, 0.0
        %v7467 = vmax.f32 %v5707, 0.0
        %v7468 = vmax.f32 %v5709, 0.0
        %v7469 = vmax.f32 %v5853, 0.0
        %v7470 = vmax.f32 %v5855, 0.0
        %v7471 = vmax.f32 %v5999, 0.0
        %v7472 = vmax.f32 %v6001, 0.0
        %v7473 = vmax.f32 %v6145, 0.0
        %v7474 = vmax.f32 %v6147, 0.0
        %v7475 = vmax.f32 %v6291, 0.0
        %v7476 = vmax.f32 %v6293, 0.0
        %v7477 = vmax.f32 %v6437, 0.0
        %v7478 = vmax.f32 %v6439, 0.0
        %v7479 = vmax.f32 %v6583, 0.0
        %v7480 = vmax.f32 %v6585, 0.0
        %v7481 = vmax.f32 %v6729, 0.0
        %v7482 = vmax.f32 %v6731, 0.0
        %v7483 = vmax.f32 %v6875, 0.0
        %v7484 = vmax.f32 %v6877, 0.0
        %v7485 = vmax.f32 %v7021, 0.0
        %v7486 = vmax.f32 %v7023, 0.0
        %v7487 = vmax.f32 %v7167, 0.0
        %v7488 = vmax.f32 %v7169, 0.0
        %v7489 = vmax.f32 %v7313, 0.0
        %v7490 = vmax.f32 %v7315, 0.0
        %v7491 = vmax.f32 %v5127, 0.0
        %v7492 = vmax.f32 %v5129, 0.0
        %v7493 = vmax.f32 %v5273, 0.0
        %v7494 = vmax.f32 %v5275, 0.0
        %v7495 = vmax.f32 %v5419, 0.0
        %v7496 = vmax.f32 %v5421, 0.0
        %v7497 = vmax.f32 %v5565, 0.0
        %v7498 = vmax.f32 %v5567, 0.0
        %v7499 = vmax.f32 %v5711, 0.0
        %v7500 = vmax.f32 %v5713, 0.0
        %v7501 = vmax.f32 %v5857, 0.0
        %v7502 = vmax.f32 %v5859, 0.0
        %v7503 = vmax.f32 %v6003, 0.0
        %v7504 = vmax.f32 %v6005, 0.0
        %v7505 = vmax.f32 %v6149, 0.0
        %v7506 = vmax.f32 %v6151, 0.0
        %v7507 = vmax.f32 %v6295, 0.0
        %v7508 = vmax.f32 %v6297, 0.0
        %v7509 = vmax.f32 %v6441, 0.0
        %v7510 = vmax.f32 %v6443, 0.0
        %v7511 = vmax.f32 %v6587, 0.0
        %v7512 = vmax.f32 %v6589, 0.0
        %v7513 = vmax.f32 %v6733, 0.0
        %v7514 = vmax.f32 %v6735, 0.0
        %v7515 = vmax.f32 %v6879, 0.0
        %v7516 = vmax.f32 %v6881, 0.0
        %v7517 = vmax.f32 %v7025, 0.0
        %v7518 = vmax.f32 %v7027, 0.0
        %v7519 = vmax.f32 %v7171, 0.0
        %v7520 = vmax.f32 %v7173, 0.0
        %v7521 = vmax.f32 %v7317, 0.0
        %v7522 = vmax.f32 %v7319, 0.0
        %v7523 = vmax.f32 %v5133, 0.0
        %v7524 = vmax.f32 %v5135, 0.0
        %v7525 = vmax.f32 %v5279, 0.0
        %v7526 = vmax.f32 %v5281, 0.0
        %v7527 = vmax.f32 %v5425, 0.0
        %v7528 = vmax.f32 %v5427, 0.0
        %v7529 = vmax.f32 %v5571, 0.0
        %v7530 = vmax.f32 %v5573, 0.0
        %v7531 = vmax.f32 %v5717, 0.0
        %v7532 = vmax.f32 %v5719, 0.0
        %v7533 = vmax.f32 %v5863, 0.0
        %v7534 = vmax.f32 %v5865, 0.0
        %v7535 = vmax.f32 %v6009, 0.0
        %v7536 = vmax.f32 %v6011, 0.0
        %v7537 = vmax.f32 %v6155, 0.0
        %v7538 = vmax.f32 %v6157, 0.0
        %v7539 = vmax.f32 %v6301, 0.0
        %v7540 = vmax.f32 %v6303, 0.0
        %v7541 = vmax.f32 %v6447, 0.0
        %v7542 = vmax.f32 %v6449, 0.0
        %v7543 = vmax.f32 %v6593, 0.0
        %v7544 = vmax.f32 %v6595, 0.0
        %v7545 = vmax.f32 %v6739, 0.0
        %v7546 = vmax.f32 %v6741, 0.0
        %v7547 = vmax.f32 %v6885, 0.0
        %v7548 = vmax.f32 %v6887, 0.0
        %v7549 = vmax.f32 %v7031, 0.0
        %v7550 = vmax.f32 %v7033, 0.0
        %v7551 = vmax.f32 %v7177, 0.0
        %v7552 = vmax.f32 %v7179, 0.0
        %v7553 = vmax.f32 %v7323, 0.0
        %v7554 = vmax.f32 %v7325, 0.0
        %v7555 = vmax.f32 %v5137, 0.0
        %v7556 = vmax.f32 %v5139, 0.0
        %v7557 = vmax.f32 %v5283, 0.0
        %v7558 = vmax.f32 %v5285, 0.0
        %v7559 = vmax.f32 %v5429, 0.0
        %v7560 = vmax.f32 %v5431, 0.0
        %v7561 = vmax.f32 %v5575, 0.0
        %v7562 = vmax.f32 %v5577, 0.0
        %v7563 = vmax.f32 %v5721, 0.0
        %v7564 = vmax.f32 %v5723, 0.0
        %v7565 = vmax.f32 %v5867, 0.0
        %v7566 = vmax.f32 %v5869, 0.0
        %v7567 = vmax.f32 %v6013, 0.0
        %v7568 = vmax.f32 %v6015, 0.0
        %v7569 = vmax.f32 %v6159, 0.0
        %v7570 = vmax.f32 %v6161, 0.0
        %v7571 = vmax.f32 %v6305, 0.0
        %v7572 = vmax.f32 %v6307, 0.0
        %v7573 = vmax.f32 %v6451, 0.0
        %v7574 = vmax.f32 %v6453, 0.0
        %v7575 = vmax.f32 %v6597, 0.0
        %v7576 = vmax.f32 %v6599, 0.0
        %v7577 = vmax.f32 %v6743, 0.0
        %v7578 = vmax.f32 %v6745, 0.0
        %v7579 = vmax.f32 %v6889, 0.0
        %v7580 = vmax.f32 %v6891, 0.0
        %v7581 = vmax.f32 %v7035, 0.0
        %v7582 = vmax.f32 %v7037, 0.0
        %v7583 = vmax.f32 %v7181, 0.0
        %v7584 = vmax.f32 %v7183, 0.0
        %v7585 = vmax.f32 %v7327, 0.0
        %v7586 = vmax.f32 %v7329, 0.0
        %v7587 = vrot.slane %v7331, 4
        %v7588 = vmax.f32 %v7331, %v7587
        %v7589 = vrot.slane %v7588, 2
        %v7590 = vmax.f32 %v7588, %v7589
        %v7591 = vrot.slane %v7590, 1
        %v7592 = vmax.f32 %v7590, %v7591
        %v7593 = vrot.slane %v7332, 4
        %v7594 = vmax.f32 %v7332, %v7593
        %v7595 = vrot.slane %v7594, 2
        %v7596 = vmax.f32 %v7594, %v7595
        %v7597 = vrot.slane %v7596, 1
        %v7598 = vmax.f32 %v7596, %v7597
        %v7599 = vrot.slane %v7333, 4
        %v7600 = vmax.f32 %v7333, %v7599
        %v7601 = vrot.slane %v7600, 2
        %v7602 = vmax.f32 %v7600, %v7601
        %v7603 = vrot.slane %v7602, 1
        %v7604 = vmax.f32 %v7602, %v7603
        %v7605 = vrot.slane %v7334, 4
        %v7606 = vmax.f32 %v7334, %v7605
        %v7607 = vrot.slane %v7606, 2
        %v7608 = vmax.f32 %v7606, %v7607
        %v7609 = vrot.slane %v7608, 1
        %v7610 = vmax.f32 %v7608, %v7609
        %v7611 = vrot.slane %v7335, 4
        %v7612 = vmax.f32 %v7335, %v7611
        %v7613 = vrot.slane %v7612, 2
        %v7614 = vmax.f32 %v7612, %v7613
        %v7615 = vrot.slane %v7614, 1
        %v7616 = vmax.f32 %v7614, %v7615
        %v7617 = vrot.slane %v7336, 4
        %v7618 = vmax.f32 %v7336, %v7617
        %v7619 = vrot.slane %v7618, 2
        %v7620 = vmax.f32 %v7618, %v7619
        %v7621 = vrot.slane %v7620, 1
        %v7622 = vmax.f32 %v7620, %v7621
        %v7623 = vrot.slane %v7337, 4
        %v7624 = vmax.f32 %v7337, %v7623
        %v7625 = vrot.slane %v7624, 2
        %v7626 = vmax.f32 %v7624, %v7625
        %v7627 = vrot.slane %v7626, 1
        %v7628 = vmax.f32 %v7626, %v7627
        %v7629 = vrot.slane %v7338, 4
        %v7630 = vmax.f32 %v7338, %v7629
        %v7631 = vrot.slane %v7630, 2
        %v7632 = vmax.f32 %v7630, %v7631
        %v7633 = vrot.slane %v7632, 1
        %v7634 = vmax.f32 %v7632, %v7633
        %v7635 = vrot.slane %v7339, 4
        %v7636 = vmax.f32 %v7339, %v7635
        %v7637 = vrot.slane %v7636, 2
        %v7638 = vmax.f32 %v7636, %v7637
        %v7639 = vrot.slane %v7638, 1
        %v7640 = vmax.f32 %v7638, %v7639
        %v7641 = vrot.slane %v7340, 4
        %v7642 = vmax.f32 %v7340, %v7641
        %v7643 = vrot.slane %v7642, 2
        %v7644 = vmax.f32 %v7642, %v7643
        %v7645 = vrot.slane %v7644, 1
        %v7646 = vmax.f32 %v7644, %v7645
        %v7647 = vrot.slane %v7341, 4
        %v7648 = vmax.f32 %v7341, %v7647
        %v7649 = vrot.slane %v7648, 2
        %v7650 = vmax.f32 %v7648, %v7649
        %v7651 = vrot.slane %v7650, 1
        %v7652 = vmax.f32 %v7650, %v7651
        %v7653 = vrot.slane %v7342, 4
        %v7654 = vmax.f32 %v7342, %v7653
        %v7655 = vrot.slane %v7654, 2
        %v7656 = vmax.f32 %v7654, %v7655
        %v7657 = vrot.slane %v7656, 1
        %v7658 = vmax.f32 %v7656, %v7657
        %v7659 = vrot.slane %v7343, 4
        %v7660 = vmax.f32 %v7343, %v7659
        %v7661 = vrot.slane %v7660, 2
        %v7662 = vmax.f32 %v7660, %v7661
        %v7663 = vrot.slane %v7662, 1
        %v7664 = vmax.f32 %v7662, %v7663
        %v7665 = vrot.slane %v7344, 4
        %v7666 = vmax.f32 %v7344, %v7665
        %v7667 = vrot.slane %v7666, 2
        %v7668 = vmax.f32 %v7666, %v7667
        %v7669 = vrot.slane %v7668, 1
        %v7670 = vmax.f32 %v7668, %v7669
        %v7671 = vrot.slane %v7345, 4
        %v7672 = vmax.f32 %v7345, %v7671
        %v7673 = vrot.slane %v7672, 2
        %v7674 = vmax.f32 %v7672, %v7673
        %v7675 = vrot.slane %v7674, 1
        %v7676 = vmax.f32 %v7674, %v7675
        %v7677 = vrot.slane %v7346, 4
        %v7678 = vmax.f32 %v7346, %v7677
        %v7679 = vrot.slane %v7678, 2
        %v7680 = vmax.f32 %v7678, %v7679
        %v7681 = vrot.slane %v7680, 1
        %v7682 = vmax.f32 %v7680, %v7681
        %v7683 = vrot.slane %v7347, 4
        %v7684 = vmax.f32 %v7347, %v7683
        %v7685 = vrot.slane %v7684, 2
        %v7686 = vmax.f32 %v7684, %v7685
        %v7687 = vrot.slane %v7686, 1
        %v7688 = vmax.f32 %v7686, %v7687
        %v7689 = vrot.slane %v7348, 4
        %v7690 = vmax.f32 %v7348, %v7689
        %v7691 = vrot.slane %v7690, 2
        %v7692 = vmax.f32 %v7690, %v7691
        %v7693 = vrot.slane %v7692, 1
        %v7694 = vmax.f32 %v7692, %v7693
        %v7695 = vrot.slane %v7349, 4
        %v7696 = vmax.f32 %v7349, %v7695
        %v7697 = vrot.slane %v7696, 2
        %v7698 = vmax.f32 %v7696, %v7697
        %v7699 = vrot.slane %v7698, 1
        %v7700 = vmax.f32 %v7698, %v7699
        %v7701 = vrot.slane %v7350, 4
        %v7702 = vmax.f32 %v7350, %v7701
        %v7703 = vrot.slane %v7702, 2
        %v7704 = vmax.f32 %v7702, %v7703
        %v7705 = vrot.slane %v7704, 1
        %v7706 = vmax.f32 %v7704, %v7705
        %v7707 = vrot.slane %v7351, 4
        %v7708 = vmax.f32 %v7351, %v7707
        %v7709 = vrot.slane %v7708, 2
        %v7710 = vmax.f32 %v7708, %v7709
        %v7711 = vrot.slane %v7710, 1
        %v7712 = vmax.f32 %v7710, %v7711
        %v7713 = vrot.slane %v7352, 4
        %v7714 = vmax.f32 %v7352, %v7713
        %v7715 = vrot.slane %v7714, 2
        %v7716 = vmax.f32 %v7714, %v7715
        %v7717 = vrot.slane %v7716, 1
        %v7718 = vmax.f32 %v7716, %v7717
        %v7719 = vrot.slane %v7353, 4
        %v7720 = vmax.f32 %v7353, %v7719
        %v7721 = vrot.slane %v7720, 2
        %v7722 = vmax.f32 %v7720, %v7721
        %v7723 = vrot.slane %v7722, 1
        %v7724 = vmax.f32 %v7722, %v7723
        %v7725 = vrot.slane %v7354, 4
        %v7726 = vmax.f32 %v7354, %v7725
        %v7727 = vrot.slane %v7726, 2
        %v7728 = vmax.f32 %v7726, %v7727
        %v7729 = vrot.slane %v7728, 1
        %v7730 = vmax.f32 %v7728, %v7729
        %v7731 = vrot.slane %v7355, 4
        %v7732 = vmax.f32 %v7355, %v7731
        %v7733 = vrot.slane %v7732, 2
        %v7734 = vmax.f32 %v7732, %v7733
        %v7735 = vrot.slane %v7734, 1
        %v7736 = vmax.f32 %v7734, %v7735
        %v7737 = vrot.slane %v7356, 4
        %v7738 = vmax.f32 %v7356, %v7737
        %v7739 = vrot.slane %v7738, 2
        %v7740 = vmax.f32 %v7738, %v7739
        %v7741 = vrot.slane %v7740, 1
        %v7742 = vmax.f32 %v7740, %v7741
        %v7743 = vrot.slane %v7357, 4
        %v7744 = vmax.f32 %v7357, %v7743
        %v7745 = vrot.slane %v7744, 2
        %v7746 = vmax.f32 %v7744, %v7745
        %v7747 = vrot.slane %v7746, 1
        %v7748 = vmax.f32 %v7746, %v7747
        %v7749 = vrot.slane %v7358, 4
        %v7750 = vmax.f32 %v7358, %v7749
        %v7751 = vrot.slane %v7750, 2
        %v7752 = vmax.f32 %v7750, %v7751
        %v7753 = vrot.slane %v7752, 1
        %v7754 = vmax.f32 %v7752, %v7753
        %v7755 = vrot.slane %v7359, 4
        %v7756 = vmax.f32 %v7359, %v7755
        %v7757 = vrot.slane %v7756, 2
        %v7758 = vmax.f32 %v7756, %v7757
        %v7759 = vrot.slane %v7758, 1
        %v7760 = vmax.f32 %v7758, %v7759
        %v7761 = vrot.slane %v7360, 4
        %v7762 = vmax.f32 %v7360, %v7761
        %v7763 = vrot.slane %v7762, 2
        %v7764 = vmax.f32 %v7762, %v7763
        %v7765 = vrot.slane %v7764, 1
        %v7766 = vmax.f32 %v7764, %v7765
        %v7767 = vrot.slane %v7361, 4
        %v7768 = vmax.f32 %v7361, %v7767
        %v7769 = vrot.slane %v7768, 2
        %v7770 = vmax.f32 %v7768, %v7769
        %v7771 = vrot.slane %v7770, 1
        %v7772 = vmax.f32 %v7770, %v7771
        %v7773 = vrot.slane %v7362, 4
        %v7774 = vmax.f32 %v7362, %v7773
        %v7775 = vrot.slane %v7774, 2
        %v7776 = vmax.f32 %v7774, %v7775
        %v7777 = vrot.slane %v7776, 1
        %v7778 = vmax.f32 %v7776, %v7777
        %v7779 = vrot.slane %v7363, 4
        %v7780 = vmax.f32 %v7363, %v7779
        %v7781 = vrot.slane %v7780, 2
        %v7782 = vmax.f32 %v7780, %v7781
        %v7783 = vrot.slane %v7782, 1
        %v7784 = vmax.f32 %v7782, %v7783
        %v7785 = vrot.slane %v7364, 4
        %v7786 = vmax.f32 %v7364, %v7785
        %v7787 = vrot.slane %v7786, 2
        %v7788 = vmax.f32 %v7786, %v7787
        %v7789 = vrot.slane %v7788, 1
        %v7790 = vmax.f32 %v7788, %v7789
        %v7791 = vrot.slane %v7365, 4
        %v7792 = vmax.f32 %v7365, %v7791
        %v7793 = vrot.slane %v7792, 2
        %v7794 = vmax.f32 %v7792, %v7793
        %v7795 = vrot.slane %v7794, 1
        %v7796 = vmax.f32 %v7794, %v7795
        %v7797 = vrot.slane %v7366, 4
        %v7798 = vmax.f32 %v7366, %v7797
        %v7799 = vrot.slane %v7798, 2
        %v7800 = vmax.f32 %v7798, %v7799
        %v7801 = vrot.slane %v7800, 1
        %v7802 = vmax.f32 %v7800, %v7801
        %v7803 = vrot.slane %v7367, 4
        %v7804 = vmax.f32 %v7367, %v7803
        %v7805 = vrot.slane %v7804, 2
        %v7806 = vmax.f32 %v7804, %v7805
        %v7807 = vrot.slane %v7806, 1
        %v7808 = vmax.f32 %v7806, %v7807
        %v7809 = vrot.slane %v7368, 4
        %v7810 = vmax.f32 %v7368, %v7809
        %v7811 = vrot.slane %v7810, 2
        %v7812 = vmax.f32 %v7810, %v7811
        %v7813 = vrot.slane %v7812, 1
        %v7814 = vmax.f32 %v7812, %v7813
        %v7815 = vrot.slane %v7369, 4
        %v7816 = vmax.f32 %v7369, %v7815
        %v7817 = vrot.slane %v7816, 2
        %v7818 = vmax.f32 %v7816, %v7817
        %v7819 = vrot.slane %v7818, 1
        %v7820 = vmax.f32 %v7818, %v7819
        %v7821 = vrot.slane %v7370, 4
        %v7822 = vmax.f32 %v7370, %v7821
        %v7823 = vrot.slane %v7822, 2
        %v7824 = vmax.f32 %v7822, %v7823
        %v7825 = vrot.slane %v7824, 1
        %v7826 = vmax.f32 %v7824, %v7825
        %v7827 = vrot.slane %v7371, 4
        %v7828 = vmax.f32 %v7371, %v7827
        %v7829 = vrot.slane %v7828, 2
        %v7830 = vmax.f32 %v7828, %v7829
        %v7831 = vrot.slane %v7830, 1
        %v7832 = vmax.f32 %v7830, %v7831
        %v7833 = vrot.slane %v7372, 4
        %v7834 = vmax.f32 %v7372, %v7833
        %v7835 = vrot.slane %v7834, 2
        %v7836 = vmax.f32 %v7834, %v7835
        %v7837 = vrot.slane %v7836, 1
        %v7838 = vmax.f32 %v7836, %v7837
        %v7839 = vrot.slane %v7373, 4
        %v7840 = vmax.f32 %v7373, %v7839
        %v7841 = vrot.slane %v7840, 2
        %v7842 = vmax.f32 %v7840, %v7841
        %v7843 = vrot.slane %v7842, 1
        %v7844 = vmax.f32 %v7842, %v7843
        %v7845 = vrot.slane %v7374, 4
        %v7846 = vmax.f32 %v7374, %v7845
        %v7847 = vrot.slane %v7846, 2
        %v7848 = vmax.f32 %v7846, %v7847
        %v7849 = vrot.slane %v7848, 1
        %v7850 = vmax.f32 %v7848, %v7849
        %v7851 = vrot.slane %v7375, 4
        %v7852 = vmax.f32 %v7375, %v7851
        %v7853 = vrot.slane %v7852, 2
        %v7854 = vmax.f32 %v7852, %v7853
        %v7855 = vrot.slane %v7854, 1
        %v7856 = vmax.f32 %v7854, %v7855
        %v7857 = vrot.slane %v7376, 4
        %v7858 = vmax.f32 %v7376, %v7857
        %v7859 = vrot.slane %v7858, 2
        %v7860 = vmax.f32 %v7858, %v7859
        %v7861 = vrot.slane %v7860, 1
        %v7862 = vmax.f32 %v7860, %v7861
        %v7863 = vrot.slane %v7377, 4
        %v7864 = vmax.f32 %v7377, %v7863
        %v7865 = vrot.slane %v7864, 2
        %v7866 = vmax.f32 %v7864, %v7865
        %v7867 = vrot.slane %v7866, 1
        %v7868 = vmax.f32 %v7866, %v7867
        %v7869 = vrot.slane %v7378, 4
        %v7870 = vmax.f32 %v7378, %v7869
        %v7871 = vrot.slane %v7870, 2
        %v7872 = vmax.f32 %v7870, %v7871
        %v7873 = vrot.slane %v7872, 1
        %v7874 = vmax.f32 %v7872, %v7873
        %v7875 = vrot.slane %v7379, 4
        %v7876 = vmax.f32 %v7379, %v7875
        %v7877 = vrot.slane %v7876, 2
        %v7878 = vmax.f32 %v7876, %v7877
        %v7879 = vrot.slane %v7878, 1
        %v7880 = vmax.f32 %v7878, %v7879
        %v7881 = vrot.slane %v7380, 4
        %v7882 = vmax.f32 %v7380, %v7881
        %v7883 = vrot.slane %v7882, 2
        %v7884 = vmax.f32 %v7882, %v7883
        %v7885 = vrot.slane %v7884, 1
        %v7886 = vmax.f32 %v7884, %v7885
        %v7887 = vrot.slane %v7381, 4
        %v7888 = vmax.f32 %v7381, %v7887
        %v7889 = vrot.slane %v7888, 2
        %v7890 = vmax.f32 %v7888, %v7889
        %v7891 = vrot.slane %v7890, 1
        %v7892 = vmax.f32 %v7890, %v7891
        %v7893 = vrot.slane %v7382, 4
        %v7894 = vmax.f32 %v7382, %v7893
        %v7895 = vrot.slane %v7894, 2
        %v7896 = vmax.f32 %v7894, %v7895
        %v7897 = vrot.slane %v7896, 1
        %v7898 = vmax.f32 %v7896, %v7897
        %v7899 = vrot.slane %v7383, 4
        %v7900 = vmax.f32 %v7383, %v7899
        %v7901 = vrot.slane %v7900, 2
        %v7902 = vmax.f32 %v7900, %v7901
        %v7903 = vrot.slane %v7902, 1
        %v7904 = vmax.f32 %v7902, %v7903
        %v7905 = vrot.slane %v7384, 4
        %v7906 = vmax.f32 %v7384, %v7905
        %v7907 = vrot.slane %v7906, 2
        %v7908 = vmax.f32 %v7906, %v7907
        %v7909 = vrot.slane %v7908, 1
        %v7910 = vmax.f32 %v7908, %v7909
        %v7911 = vrot.slane %v7385, 4
        %v7912 = vmax.f32 %v7385, %v7911
        %v7913 = vrot.slane %v7912, 2
        %v7914 = vmax.f32 %v7912, %v7913
        %v7915 = vrot.slane %v7914, 1
        %v7916 = vmax.f32 %v7914, %v7915
        %v7917 = vrot.slane %v7386, 4
        %v7918 = vmax.f32 %v7386, %v7917
        %v7919 = vrot.slane %v7918, 2
        %v7920 = vmax.f32 %v7918, %v7919
        %v7921 = vrot.slane %v7920, 1
        %v7922 = vmax.f32 %v7920, %v7921
        %v7923 = vrot.slane %v7387, 4
        %v7924 = vmax.f32 %v7387, %v7923
        %v7925 = vrot.slane %v7924, 2
        %v7926 = vmax.f32 %v7924, %v7925
        %v7927 = vrot.slane %v7926, 1
        %v7928 = vmax.f32 %v7926, %v7927
        %v7929 = vrot.slane %v7388, 4
        %v7930 = vmax.f32 %v7388, %v7929
        %v7931 = vrot.slane %v7930, 2
        %v7932 = vmax.f32 %v7930, %v7931
        %v7933 = vrot.slane %v7932, 1
        %v7934 = vmax.f32 %v7932, %v7933
        %v7935 = vrot.slane %v7389, 4
        %v7936 = vmax.f32 %v7389, %v7935
        %v7937 = vrot.slane %v7936, 2
        %v7938 = vmax.f32 %v7936, %v7937
        %v7939 = vrot.slane %v7938, 1
        %v7940 = vmax.f32 %v7938, %v7939
        %v7941 = vrot.slane %v7390, 4
        %v7942 = vmax.f32 %v7390, %v7941
        %v7943 = vrot.slane %v7942, 2
        %v7944 = vmax.f32 %v7942, %v7943
        %v7945 = vrot.slane %v7944, 1
        %v7946 = vmax.f32 %v7944, %v7945
        %v7947 = vrot.slane %v7391, 4
        %v7948 = vmax.f32 %v7391, %v7947
        %v7949 = vrot.slane %v7948, 2
        %v7950 = vmax.f32 %v7948, %v7949
        %v7951 = vrot.slane %v7950, 1
        %v7952 = vmax.f32 %v7950, %v7951
        %v7953 = vrot.slane %v7392, 4
        %v7954 = vmax.f32 %v7392, %v7953
        %v7955 = vrot.slane %v7954, 2
        %v7956 = vmax.f32 %v7954, %v7955
        %v7957 = vrot.slane %v7956, 1
        %v7958 = vmax.f32 %v7956, %v7957
        %v7959 = vrot.slane %v7393, 4
        %v7960 = vmax.f32 %v7393, %v7959
        %v7961 = vrot.slane %v7960, 2
        %v7962 = vmax.f32 %v7960, %v7961
        %v7963 = vrot.slane %v7962, 1
        %v7964 = vmax.f32 %v7962, %v7963
        %v7965 = vrot.slane %v7394, 4
        %v7966 = vmax.f32 %v7394, %v7965
        %v7967 = vrot.slane %v7966, 2
        %v7968 = vmax.f32 %v7966, %v7967
        %v7969 = vrot.slane %v7968, 1
        %v7970 = vmax.f32 %v7968, %v7969
        %v7971 = vrot.slane %v7395, 4
        %v7972 = vmax.f32 %v7395, %v7971
        %v7973 = vrot.slane %v7972, 2
        %v7974 = vmax.f32 %v7972, %v7973
        %v7975 = vrot.slane %v7974, 1
        %v7976 = vmax.f32 %v7974, %v7975
        %v7977 = vrot.slane %v7396, 4
        %v7978 = vmax.f32 %v7396, %v7977
        %v7979 = vrot.slane %v7978, 2
        %v7980 = vmax.f32 %v7978, %v7979
        %v7981 = vrot.slane %v7980, 1
        %v7982 = vmax.f32 %v7980, %v7981
        %v7983 = vrot.slane %v7397, 4
        %v7984 = vmax.f32 %v7397, %v7983
        %v7985 = vrot.slane %v7984, 2
        %v7986 = vmax.f32 %v7984, %v7985
        %v7987 = vrot.slane %v7986, 1
        %v7988 = vmax.f32 %v7986, %v7987
        %v7989 = vrot.slane %v7398, 4
        %v7990 = vmax.f32 %v7398, %v7989
        %v7991 = vrot.slane %v7990, 2
        %v7992 = vmax.f32 %v7990, %v7991
        %v7993 = vrot.slane %v7992, 1
        %v7994 = vmax.f32 %v7992, %v7993
        %v7995 = vrot.slane %v7399, 4
        %v7996 = vmax.f32 %v7399, %v7995
        %v7997 = vrot.slane %v7996, 2
        %v7998 = vmax.f32 %v7996, %v7997
        %v7999 = vrot.slane %v7998, 1
        %v8000 = vmax.f32 %v7998, %v7999
        %v8001 = vrot.slane %v7400, 4
        %v8002 = vmax.f32 %v7400, %v8001
        %v8003 = vrot.slane %v8002, 2
        %v8004 = vmax.f32 %v8002, %v8003
        %v8005 = vrot.slane %v8004, 1
        %v8006 = vmax.f32 %v8004, %v8005
        %v8007 = vrot.slane %v7401, 4
        %v8008 = vmax.f32 %v7401, %v8007
        %v8009 = vrot.slane %v8008, 2
        %v8010 = vmax.f32 %v8008, %v8009
        %v8011 = vrot.slane %v8010, 1
        %v8012 = vmax.f32 %v8010, %v8011
        %v8013 = vrot.slane %v7402, 4
        %v8014 = vmax.f32 %v7402, %v8013
        %v8015 = vrot.slane %v8014, 2
        %v8016 = vmax.f32 %v8014, %v8015
        %v8017 = vrot.slane %v8016, 1
        %v8018 = vmax.f32 %v8016, %v8017
        %v8019 = vrot.slane %v7403, 4
        %v8020 = vmax.f32 %v7403, %v8019
        %v8021 = vrot.slane %v8020, 2
        %v8022 = vmax.f32 %v8020, %v8021
        %v8023 = vrot.slane %v8022, 1
        %v8024 = vmax.f32 %v8022, %v8023
        %v8025 = vrot.slane %v7404, 4
        %v8026 = vmax.f32 %v7404, %v8025
        %v8027 = vrot.slane %v8026, 2
        %v8028 = vmax.f32 %v8026, %v8027
        %v8029 = vrot.slane %v8028, 1
        %v8030 = vmax.f32 %v8028, %v8029
        %v8031 = vrot.slane %v7405, 4
        %v8032 = vmax.f32 %v7405, %v8031
        %v8033 = vrot.slane %v8032, 2
        %v8034 = vmax.f32 %v8032, %v8033
        %v8035 = vrot.slane %v8034, 1
        %v8036 = vmax.f32 %v8034, %v8035
        %v8037 = vrot.slane %v7406, 4
        %v8038 = vmax.f32 %v7406, %v8037
        %v8039 = vrot.slane %v8038, 2
        %v8040 = vmax.f32 %v8038, %v8039
        %v8041 = vrot.slane %v8040, 1
        %v8042 = vmax.f32 %v8040, %v8041
        %v8043 = vrot.slane %v7407, 4
        %v8044 = vmax.f32 %v7407, %v8043
        %v8045 = vrot.slane %v8044, 2
        %v8046 = vmax.f32 %v8044, %v8045
        %v8047 = vrot.slane %v8046, 1
        %v8048 = vmax.f32 %v8046, %v8047
        %v8049 = vrot.slane %v7408, 4
        %v8050 = vmax.f32 %v7408, %v8049
        %v8051 = vrot.slane %v8050, 2
        %v8052 = vmax.f32 %v8050, %v8051
        %v8053 = vrot.slane %v8052, 1
        %v8054 = vmax.f32 %v8052, %v8053
        %v8055 = vrot.slane %v7409, 4
        %v8056 = vmax.f32 %v7409, %v8055
        %v8057 = vrot.slane %v8056, 2
        %v8058 = vmax.f32 %v8056, %v8057
        %v8059 = vrot.slane %v8058, 1
        %v8060 = vmax.f32 %v8058, %v8059
        %v8061 = vrot.slane %v7410, 4
        %v8062 = vmax.f32 %v7410, %v8061
        %v8063 = vrot.slane %v8062, 2
        %v8064 = vmax.f32 %v8062, %v8063
        %v8065 = vrot.slane %v8064, 1
        %v8066 = vmax.f32 %v8064, %v8065
        %v8067 = vrot.slane %v7411, 4
        %v8068 = vmax.f32 %v7411, %v8067
        %v8069 = vrot.slane %v8068, 2
        %v8070 = vmax.f32 %v8068, %v8069
        %v8071 = vrot.slane %v8070, 1
        %v8072 = vmax.f32 %v8070, %v8071
        %v8073 = vrot.slane %v7412, 4
        %v8074 = vmax.f32 %v7412, %v8073
        %v8075 = vrot.slane %v8074, 2
        %v8076 = vmax.f32 %v8074, %v8075
        %v8077 = vrot.slane %v8076, 1
        %v8078 = vmax.f32 %v8076, %v8077
        %v8079 = vrot.slane %v7413, 4
        %v8080 = vmax.f32 %v7413, %v8079
        %v8081 = vrot.slane %v8080, 2
        %v8082 = vmax.f32 %v8080, %v8081
        %v8083 = vrot.slane %v8082, 1
        %v8084 = vmax.f32 %v8082, %v8083
        %v8085 = vrot.slane %v7414, 4
        %v8086 = vmax.f32 %v7414, %v8085
        %v8087 = vrot.slane %v8086, 2
        %v8088 = vmax.f32 %v8086, %v8087
        %v8089 = vrot.slane %v8088, 1
        %v8090 = vmax.f32 %v8088, %v8089
        %v8091 = vrot.slane %v7415, 4
        %v8092 = vmax.f32 %v7415, %v8091
        %v8093 = vrot.slane %v8092, 2
        %v8094 = vmax.f32 %v8092, %v8093
        %v8095 = vrot.slane %v8094, 1
        %v8096 = vmax.f32 %v8094, %v8095
        %v8097 = vrot.slane %v7416, 4
        %v8098 = vmax.f32 %v7416, %v8097
        %v8099 = vrot.slane %v8098, 2
        %v8100 = vmax.f32 %v8098, %v8099
        %v8101 = vrot.slane %v8100, 1
        %v8102 = vmax.f32 %v8100, %v8101
        %v8103 = vrot.slane %v7417, 4
        %v8104 = vmax.f32 %v7417, %v8103
        %v8105 = vrot.slane %v8104, 2
        %v8106 = vmax.f32 %v8104, %v8105
        %v8107 = vrot.slane %v8106, 1
        %v8108 = vmax.f32 %v8106, %v8107
        %v8109 = vrot.slane %v7418, 4
        %v8110 = vmax.f32 %v7418, %v8109
        %v8111 = vrot.slane %v8110, 2
        %v8112 = vmax.f32 %v8110, %v8111
        %v8113 = vrot.slane %v8112, 1
        %v8114 = vmax.f32 %v8112, %v8113
        %v8115 = vrot.slane %v7419, 4
        %v8116 = vmax.f32 %v7419, %v8115
        %v8117 = vrot.slane %v8116, 2
        %v8118 = vmax.f32 %v8116, %v8117
        %v8119 = vrot.slane %v8118, 1
        %v8120 = vmax.f32 %v8118, %v8119
        %v8121 = vrot.slane %v7420, 4
        %v8122 = vmax.f32 %v7420, %v8121
        %v8123 = vrot.slane %v8122, 2
        %v8124 = vmax.f32 %v8122, %v8123
        %v8125 = vrot.slane %v8124, 1
        %v8126 = vmax.f32 %v8124, %v8125
        %v8127 = vrot.slane %v7421, 4
        %v8128 = vmax.f32 %v7421, %v8127
        %v8129 = vrot.slane %v8128, 2
        %v8130 = vmax.f32 %v8128, %v8129
        %v8131 = vrot.slane %v8130, 1
        %v8132 = vmax.f32 %v8130, %v8131
        %v8133 = vrot.slane %v7422, 4
        %v8134 = vmax.f32 %v7422, %v8133
        %v8135 = vrot.slane %v8134, 2
        %v8136 = vmax.f32 %v8134, %v8135
        %v8137 = vrot.slane %v8136, 1
        %v8138 = vmax.f32 %v8136, %v8137
        %v8139 = vrot.slane %v7423, 4
        %v8140 = vmax.f32 %v7423, %v8139
        %v8141 = vrot.slane %v8140, 2
        %v8142 = vmax.f32 %v8140, %v8141
        %v8143 = vrot.slane %v8142, 1
        %v8144 = vmax.f32 %v8142, %v8143
        %v8145 = vrot.slane %v7424, 4
        %v8146 = vmax.f32 %v7424, %v8145
        %v8147 = vrot.slane %v8146, 2
        %v8148 = vmax.f32 %v8146, %v8147
        %v8149 = vrot.slane %v8148, 1
        %v8150 = vmax.f32 %v8148, %v8149
        %v8151 = vrot.slane %v7425, 4
        %v8152 = vmax.f32 %v7425, %v8151
        %v8153 = vrot.slane %v8152, 2
        %v8154 = vmax.f32 %v8152, %v8153
        %v8155 = vrot.slane %v8154, 1
        %v8156 = vmax.f32 %v8154, %v8155
        %v8157 = vrot.slane %v7426, 4
        %v8158 = vmax.f32 %v7426, %v8157
        %v8159 = vrot.slane %v8158, 2
        %v8160 = vmax.f32 %v8158, %v8159
        %v8161 = vrot.slane %v8160, 1
        %v8162 = vmax.f32 %v8160, %v8161
        %v8163 = vrot.slane %v7427, 4
        %v8164 = vmax.f32 %v7427, %v8163
        %v8165 = vrot.slane %v8164, 2
        %v8166 = vmax.f32 %v8164, %v8165
        %v8167 = vrot.slane %v8166, 1
        %v8168 = vmax.f32 %v8166, %v8167
        %v8169 = vrot.slane %v7428, 4
        %v8170 = vmax.f32 %v7428, %v8169
        %v8171 = vrot.slane %v8170, 2
        %v8172 = vmax.f32 %v8170, %v8171
        %v8173 = vrot.slane %v8172, 1
        %v8174 = vmax.f32 %v8172, %v8173
        %v8175 = vrot.slane %v7429, 4
        %v8176 = vmax.f32 %v7429, %v8175
        %v8177 = vrot.slane %v8176, 2
        %v8178 = vmax.f32 %v8176, %v8177
        %v8179 = vrot.slane %v8178, 1
        %v8180 = vmax.f32 %v8178, %v8179
        %v8181 = vrot.slane %v7430, 4
        %v8182 = vmax.f32 %v7430, %v8181
        %v8183 = vrot.slane %v8182, 2
        %v8184 = vmax.f32 %v8182, %v8183
        %v8185 = vrot.slane %v8184, 1
        %v8186 = vmax.f32 %v8184, %v8185
        %v8187 = vrot.slane %v7431, 4
        %v8188 = vmax.f32 %v7431, %v8187
        %v8189 = vrot.slane %v8188, 2
        %v8190 = vmax.f32 %v8188, %v8189
        %v8191 = vrot.slane %v8190, 1
        %v8192 = vmax.f32 %v8190, %v8191
        %v8193 = vrot.slane %v7432, 4
        %v8194 = vmax.f32 %v7432, %v8193
        %v8195 = vrot.slane %v8194, 2
        %v8196 = vmax.f32 %v8194, %v8195
        %v8197 = vrot.slane %v8196, 1
        %v8198 = vmax.f32 %v8196, %v8197
        %v8199 = vrot.slane %v7433, 4
        %v8200 = vmax.f32 %v7433, %v8199
        %v8201 = vrot.slane %v8200, 2
        %v8202 = vmax.f32 %v8200, %v8201
        %v8203 = vrot.slane %v8202, 1
        %v8204 = vmax.f32 %v8202, %v8203
        %v8205 = vrot.slane %v7434, 4
        %v8206 = vmax.f32 %v7434, %v8205
        %v8207 = vrot.slane %v8206, 2
        %v8208 = vmax.f32 %v8206, %v8207
        %v8209 = vrot.slane %v8208, 1
        %v8210 = vmax.f32 %v8208, %v8209
        %v8211 = vrot.slane %v7435, 4
        %v8212 = vmax.f32 %v7435, %v8211
        %v8213 = vrot.slane %v8212, 2
        %v8214 = vmax.f32 %v8212, %v8213
        %v8215 = vrot.slane %v8214, 1
        %v8216 = vmax.f32 %v8214, %v8215
        %v8217 = vrot.slane %v7436, 4
        %v8218 = vmax.f32 %v7436, %v8217
        %v8219 = vrot.slane %v8218, 2
        %v8220 = vmax.f32 %v8218, %v8219
        %v8221 = vrot.slane %v8220, 1
        %v8222 = vmax.f32 %v8220, %v8221
        %v8223 = vrot.slane %v7437, 4
        %v8224 = vmax.f32 %v7437, %v8223
        %v8225 = vrot.slane %v8224, 2
        %v8226 = vmax.f32 %v8224, %v8225
        %v8227 = vrot.slane %v8226, 1
        %v8228 = vmax.f32 %v8226, %v8227
        %v8229 = vrot.slane %v7438, 4
        %v8230 = vmax.f32 %v7438, %v8229
        %v8231 = vrot.slane %v8230, 2
        %v8232 = vmax.f32 %v8230, %v8231
        %v8233 = vrot.slane %v8232, 1
        %v8234 = vmax.f32 %v8232, %v8233
        %v8235 = vrot.slane %v7439, 4
        %v8236 = vmax.f32 %v7439, %v8235
        %v8237 = vrot.slane %v8236, 2
        %v8238 = vmax.f32 %v8236, %v8237
        %v8239 = vrot.slane %v8238, 1
        %v8240 = vmax.f32 %v8238, %v8239
        %v8241 = vrot.slane %v7440, 4
        %v8242 = vmax.f32 %v7440, %v8241
        %v8243 = vrot.slane %v8242, 2
        %v8244 = vmax.f32 %v8242, %v8243
        %v8245 = vrot.slane %v8244, 1
        %v8246 = vmax.f32 %v8244, %v8245
        %v8247 = vrot.slane %v7441, 4
        %v8248 = vmax.f32 %v7441, %v8247
        %v8249 = vrot.slane %v8248, 2
        %v8250 = vmax.f32 %v8248, %v8249
        %v8251 = vrot.slane %v8250, 1
        %v8252 = vmax.f32 %v8250, %v8251
        %v8253 = vrot.slane %v7442, 4
        %v8254 = vmax.f32 %v7442, %v8253
        %v8255 = vrot.slane %v8254, 2
        %v8256 = vmax.f32 %v8254, %v8255
        %v8257 = vrot.slane %v8256, 1
        %v8258 = vmax.f32 %v8256, %v8257
        %v8259 = vrot.slane %v7443, 4
        %v8260 = vmax.f32 %v7443, %v8259
        %v8261 = vrot.slane %v8260, 2
        %v8262 = vmax.f32 %v8260, %v8261
        %v8263 = vrot.slane %v8262, 1
        %v8264 = vmax.f32 %v8262, %v8263
        %v8265 = vrot.slane %v7444, 4
        %v8266 = vmax.f32 %v7444, %v8265
        %v8267 = vrot.slane %v8266, 2
        %v8268 = vmax.f32 %v8266, %v8267
        %v8269 = vrot.slane %v8268, 1
        %v8270 = vmax.f32 %v8268, %v8269
        %v8271 = vrot.slane %v7445, 4
        %v8272 = vmax.f32 %v7445, %v8271
        %v8273 = vrot.slane %v8272, 2
        %v8274 = vmax.f32 %v8272, %v8273
        %v8275 = vrot.slane %v8274, 1
        %v8276 = vmax.f32 %v8274, %v8275
        %v8277 = vrot.slane %v7446, 4
        %v8278 = vmax.f32 %v7446, %v8277
        %v8279 = vrot.slane %v8278, 2
        %v8280 = vmax.f32 %v8278, %v8279
        %v8281 = vrot.slane %v8280, 1
        %v8282 = vmax.f32 %v8280, %v8281
        %v8283 = vrot.slane %v7447, 4
        %v8284 = vmax.f32 %v7447, %v8283
        %v8285 = vrot.slane %v8284, 2
        %v8286 = vmax.f32 %v8284, %v8285
        %v8287 = vrot.slane %v8286, 1
        %v8288 = vmax.f32 %v8286, %v8287
        %v8289 = vrot.slane %v7448, 4
        %v8290 = vmax.f32 %v7448, %v8289
        %v8291 = vrot.slane %v8290, 2
        %v8292 = vmax.f32 %v8290, %v8291
        %v8293 = vrot.slane %v8292, 1
        %v8294 = vmax.f32 %v8292, %v8293
        %v8295 = vrot.slane %v7449, 4
        %v8296 = vmax.f32 %v7449, %v8295
        %v8297 = vrot.slane %v8296, 2
        %v8298 = vmax.f32 %v8296, %v8297
        %v8299 = vrot.slane %v8298, 1
        %v8300 = vmax.f32 %v8298, %v8299
        %v8301 = vrot.slane %v7450, 4
        %v8302 = vmax.f32 %v7450, %v8301
        %v8303 = vrot.slane %v8302, 2
        %v8304 = vmax.f32 %v8302, %v8303
        %v8305 = vrot.slane %v8304, 1
        %v8306 = vmax.f32 %v8304, %v8305
        %v8307 = vrot.slane %v7451, 4
        %v8308 = vmax.f32 %v7451, %v8307
        %v8309 = vrot.slane %v8308, 2
        %v8310 = vmax.f32 %v8308, %v8309
        %v8311 = vrot.slane %v8310, 1
        %v8312 = vmax.f32 %v8310, %v8311
        %v8313 = vrot.slane %v7452, 4
        %v8314 = vmax.f32 %v7452, %v8313
        %v8315 = vrot.slane %v8314, 2
        %v8316 = vmax.f32 %v8314, %v8315
        %v8317 = vrot.slane %v8316, 1
        %v8318 = vmax.f32 %v8316, %v8317
        %v8319 = vrot.slane %v7453, 4
        %v8320 = vmax.f32 %v7453, %v8319
        %v8321 = vrot.slane %v8320, 2
        %v8322 = vmax.f32 %v8320, %v8321
        %v8323 = vrot.slane %v8322, 1
        %v8324 = vmax.f32 %v8322, %v8323
        %v8325 = vrot.slane %v7454, 4
        %v8326 = vmax.f32 %v7454, %v8325
        %v8327 = vrot.slane %v8326, 2
        %v8328 = vmax.f32 %v8326, %v8327
        %v8329 = vrot.slane %v8328, 1
        %v8330 = vmax.f32 %v8328, %v8329
        %v8331 = vrot.slane %v7455, 4
        %v8332 = vmax.f32 %v7455, %v8331
        %v8333 = vrot.slane %v8332, 2
        %v8334 = vmax.f32 %v8332, %v8333
        %v8335 = vrot.slane %v8334, 1
        %v8336 = vmax.f32 %v8334, %v8335
        %v8337 = vrot.slane %v7456, 4
        %v8338 = vmax.f32 %v7456, %v8337
        %v8339 = vrot.slane %v8338, 2
        %v8340 = vmax.f32 %v8338, %v8339
        %v8341 = vrot.slane %v8340, 1
        %v8342 = vmax.f32 %v8340, %v8341
        %v8343 = vrot.slane %v7457, 4
        %v8344 = vmax.f32 %v7457, %v8343
        %v8345 = vrot.slane %v8344, 2
        %v8346 = vmax.f32 %v8344, %v8345
        %v8347 = vrot.slane %v8346, 1
        %v8348 = vmax.f32 %v8346, %v8347
        %v8349 = vrot.slane %v7458, 4
        %v8350 = vmax.f32 %v7458, %v8349
        %v8351 = vrot.slane %v8350, 2
        %v8352 = vmax.f32 %v8350, %v8351
        %v8353 = vrot.slane %v8352, 1
        %v8354 = vmax.f32 %v8352, %v8353
        %v8355 = vrot.slane %v7459, 4
        %v8356 = vmax.f32 %v7459, %v8355
        %v8357 = vrot.slane %v8356, 2
        %v8358 = vmax.f32 %v8356, %v8357
        %v8359 = vrot.slane %v8358, 1
        %v8360 = vmax.f32 %v8358, %v8359
        %v8361 = vrot.slane %v7460, 4
        %v8362 = vmax.f32 %v7460, %v8361
        %v8363 = vrot.slane %v8362, 2
        %v8364 = vmax.f32 %v8362, %v8363
        %v8365 = vrot.slane %v8364, 1
        %v8366 = vmax.f32 %v8364, %v8365
        %v8367 = vrot.slane %v7461, 4
        %v8368 = vmax.f32 %v7461, %v8367
        %v8369 = vrot.slane %v8368, 2
        %v8370 = vmax.f32 %v8368, %v8369
        %v8371 = vrot.slane %v8370, 1
        %v8372 = vmax.f32 %v8370, %v8371
        %v8373 = vrot.slane %v7462, 4
        %v8374 = vmax.f32 %v7462, %v8373
        %v8375 = vrot.slane %v8374, 2
        %v8376 = vmax.f32 %v8374, %v8375
        %v8377 = vrot.slane %v8376, 1
        %v8378 = vmax.f32 %v8376, %v8377
        %v8379 = vrot.slane %v7463, 4
        %v8380 = vmax.f32 %v7463, %v8379
        %v8381 = vrot.slane %v8380, 2
        %v8382 = vmax.f32 %v8380, %v8381
        %v8383 = vrot.slane %v8382, 1
        %v8384 = vmax.f32 %v8382, %v8383
        %v8385 = vrot.slane %v7464, 4
        %v8386 = vmax.f32 %v7464, %v8385
        %v8387 = vrot.slane %v8386, 2
        %v8388 = vmax.f32 %v8386, %v8387
        %v8389 = vrot.slane %v8388, 1
        %v8390 = vmax.f32 %v8388, %v8389
        %v8391 = vrot.slane %v7465, 4
        %v8392 = vmax.f32 %v7465, %v8391
        %v8393 = vrot.slane %v8392, 2
        %v8394 = vmax.f32 %v8392, %v8393
        %v8395 = vrot.slane %v8394, 1
        %v8396 = vmax.f32 %v8394, %v8395
        %v8397 = vrot.slane %v7466, 4
        %v8398 = vmax.f32 %v7466, %v8397
        %v8399 = vrot.slane %v8398, 2
        %v8400 = vmax.f32 %v8398, %v8399
        %v8401 = vrot.slane %v8400, 1
        %v8402 = vmax.f32 %v8400, %v8401
        %v8403 = vrot.slane %v7467, 4
        %v8404 = vmax.f32 %v7467, %v8403
        %v8405 = vrot.slane %v8404, 2
        %v8406 = vmax.f32 %v8404, %v8405
        %v8407 = vrot.slane %v8406, 1
        %v8408 = vmax.f32 %v8406, %v8407
        %v8409 = vrot.slane %v7468, 4
        %v8410 = vmax.f32 %v7468, %v8409
        %v8411 = vrot.slane %v8410, 2
        %v8412 = vmax.f32 %v8410, %v8411
        %v8413 = vrot.slane %v8412, 1
        %v8414 = vmax.f32 %v8412, %v8413
        %v8415 = vrot.slane %v7469, 4
        %v8416 = vmax.f32 %v7469, %v8415
        %v8417 = vrot.slane %v8416, 2
        %v8418 = vmax.f32 %v8416, %v8417
        %v8419 = vrot.slane %v8418, 1
        %v8420 = vmax.f32 %v8418, %v8419
        %v8421 = vrot.slane %v7470, 4
        %v8422 = vmax.f32 %v7470, %v8421
        %v8423 = vrot.slane %v8422, 2
        %v8424 = vmax.f32 %v8422, %v8423
        %v8425 = vrot.slane %v8424, 1
        %v8426 = vmax.f32 %v8424, %v8425
        %v8427 = vrot.slane %v7471, 4
        %v8428 = vmax.f32 %v7471, %v8427
        %v8429 = vrot.slane %v8428, 2
        %v8430 = vmax.f32 %v8428, %v8429
        %v8431 = vrot.slane %v8430, 1
        %v8432 = vmax.f32 %v8430, %v8431
        %v8433 = vrot.slane %v7472, 4
        %v8434 = vmax.f32 %v7472, %v8433
        %v8435 = vrot.slane %v8434, 2
        %v8436 = vmax.f32 %v8434, %v8435
        %v8437 = vrot.slane %v8436, 1
        %v8438 = vmax.f32 %v8436, %v8437
        %v8439 = vrot.slane %v7473, 4
        %v8440 = vmax.f32 %v7473, %v8439
        %v8441 = vrot.slane %v8440, 2
        %v8442 = vmax.f32 %v8440, %v8441
        %v8443 = vrot.slane %v8442, 1
        %v8444 = vmax.f32 %v8442, %v8443
        %v8445 = vrot.slane %v7474, 4
        %v8446 = vmax.f32 %v7474, %v8445
        %v8447 = vrot.slane %v8446, 2
        %v8448 = vmax.f32 %v8446, %v8447
        %v8449 = vrot.slane %v8448, 1
        %v8450 = vmax.f32 %v8448, %v8449
        %v8451 = vrot.slane %v7475, 4
        %v8452 = vmax.f32 %v7475, %v8451
        %v8453 = vrot.slane %v8452, 2
        %v8454 = vmax.f32 %v8452, %v8453
        %v8455 = vrot.slane %v8454, 1
        %v8456 = vmax.f32 %v8454, %v8455
        %v8457 = vrot.slane %v7476, 4
        %v8458 = vmax.f32 %v7476, %v8457
        %v8459 = vrot.slane %v8458, 2
        %v8460 = vmax.f32 %v8458, %v8459
        %v8461 = vrot.slane %v8460, 1
        %v8462 = vmax.f32 %v8460, %v8461
        %v8463 = vrot.slane %v7477, 4
        %v8464 = vmax.f32 %v7477, %v8463
        %v8465 = vrot.slane %v8464, 2
        %v8466 = vmax.f32 %v8464, %v8465
        %v8467 = vrot.slane %v8466, 1
        %v8468 = vmax.f32 %v8466, %v8467
        %v8469 = vrot.slane %v7478, 4
        %v8470 = vmax.f32 %v7478, %v8469
        %v8471 = vrot.slane %v8470, 2
        %v8472 = vmax.f32 %v8470, %v8471
        %v8473 = vrot.slane %v8472, 1
        %v8474 = vmax.f32 %v8472, %v8473
        %v8475 = vrot.slane %v7479, 4
        %v8476 = vmax.f32 %v7479, %v8475
        %v8477 = vrot.slane %v8476, 2
        %v8478 = vmax.f32 %v8476, %v8477
        %v8479 = vrot.slane %v8478, 1
        %v8480 = vmax.f32 %v8478, %v8479
        %v8481 = vrot.slane %v7480, 4
        %v8482 = vmax.f32 %v7480, %v8481
        %v8483 = vrot.slane %v8482, 2
        %v8484 = vmax.f32 %v8482, %v8483
        %v8485 = vrot.slane %v8484, 1
        %v8486 = vmax.f32 %v8484, %v8485
        %v8487 = vrot.slane %v7481, 4
        %v8488 = vmax.f32 %v7481, %v8487
        %v8489 = vrot.slane %v8488, 2
        %v8490 = vmax.f32 %v8488, %v8489
        %v8491 = vrot.slane %v8490, 1
        %v8492 = vmax.f32 %v8490, %v8491
        %v8493 = vrot.slane %v7482, 4
        %v8494 = vmax.f32 %v7482, %v8493
        %v8495 = vrot.slane %v8494, 2
        %v8496 = vmax.f32 %v8494, %v8495
        %v8497 = vrot.slane %v8496, 1
        %v8498 = vmax.f32 %v8496, %v8497
        %v8499 = vrot.slane %v7483, 4
        %v8500 = vmax.f32 %v7483, %v8499
        %v8501 = vrot.slane %v8500, 2
        %v8502 = vmax.f32 %v8500, %v8501
        %v8503 = vrot.slane %v8502, 1
        %v8504 = vmax.f32 %v8502, %v8503
        %v8505 = vrot.slane %v7484, 4
        %v8506 = vmax.f32 %v7484, %v8505
        %v8507 = vrot.slane %v8506, 2
        %v8508 = vmax.f32 %v8506, %v8507
        %v8509 = vrot.slane %v8508, 1
        %v8510 = vmax.f32 %v8508, %v8509
        %v8511 = vrot.slane %v7485, 4
        %v8512 = vmax.f32 %v7485, %v8511
        %v8513 = vrot.slane %v8512, 2
        %v8514 = vmax.f32 %v8512, %v8513
        %v8515 = vrot.slane %v8514, 1
        %v8516 = vmax.f32 %v8514, %v8515
        %v8517 = vrot.slane %v7486, 4
        %v8518 = vmax.f32 %v7486, %v8517
        %v8519 = vrot.slane %v8518, 2
        %v8520 = vmax.f32 %v8518, %v8519
        %v8521 = vrot.slane %v8520, 1
        %v8522 = vmax.f32 %v8520, %v8521
        %v8523 = vrot.slane %v7487, 4
        %v8524 = vmax.f32 %v7487, %v8523
        %v8525 = vrot.slane %v8524, 2
        %v8526 = vmax.f32 %v8524, %v8525
        %v8527 = vrot.slane %v8526, 1
        %v8528 = vmax.f32 %v8526, %v8527
        %v8529 = vrot.slane %v7488, 4
        %v8530 = vmax.f32 %v7488, %v8529
        %v8531 = vrot.slane %v8530, 2
        %v8532 = vmax.f32 %v8530, %v8531
        %v8533 = vrot.slane %v8532, 1
        %v8534 = vmax.f32 %v8532, %v8533
        %v8535 = vrot.slane %v7489, 4
        %v8536 = vmax.f32 %v7489, %v8535
        %v8537 = vrot.slane %v8536, 2
        %v8538 = vmax.f32 %v8536, %v8537
        %v8539 = vrot.slane %v8538, 1
        %v8540 = vmax.f32 %v8538, %v8539
        %v8541 = vrot.slane %v7490, 4
        %v8542 = vmax.f32 %v7490, %v8541
        %v8543 = vrot.slane %v8542, 2
        %v8544 = vmax.f32 %v8542, %v8543
        %v8545 = vrot.slane %v8544, 1
        %v8546 = vmax.f32 %v8544, %v8545
        %v8547 = vrot.slane %v7491, 4
        %v8548 = vmax.f32 %v7491, %v8547
        %v8549 = vrot.slane %v8548, 2
        %v8550 = vmax.f32 %v8548, %v8549
        %v8551 = vrot.slane %v8550, 1
        %v8552 = vmax.f32 %v8550, %v8551
        %v8553 = vrot.slane %v7492, 4
        %v8554 = vmax.f32 %v7492, %v8553
        %v8555 = vrot.slane %v8554, 2
        %v8556 = vmax.f32 %v8554, %v8555
        %v8557 = vrot.slane %v8556, 1
        %v8558 = vmax.f32 %v8556, %v8557
        %v8559 = vrot.slane %v7493, 4
        %v8560 = vmax.f32 %v7493, %v8559
        %v8561 = vrot.slane %v8560, 2
        %v8562 = vmax.f32 %v8560, %v8561
        %v8563 = vrot.slane %v8562, 1
        %v8564 = vmax.f32 %v8562, %v8563
        %v8565 = vrot.slane %v7494, 4
        %v8566 = vmax.f32 %v7494, %v8565
        %v8567 = vrot.slane %v8566, 2
        %v8568 = vmax.f32 %v8566, %v8567
        %v8569 = vrot.slane %v8568, 1
        %v8570 = vmax.f32 %v8568, %v8569
        %v8571 = vrot.slane %v7495, 4
        %v8572 = vmax.f32 %v7495, %v8571
        %v8573 = vrot.slane %v8572, 2
        %v8574 = vmax.f32 %v8572, %v8573
        %v8575 = vrot.slane %v8574, 1
        %v8576 = vmax.f32 %v8574, %v8575
        %v8577 = vrot.slane %v7496, 4
        %v8578 = vmax.f32 %v7496, %v8577
        %v8579 = vrot.slane %v8578, 2
        %v8580 = vmax.f32 %v8578, %v8579
        %v8581 = vrot.slane %v8580, 1
        %v8582 = vmax.f32 %v8580, %v8581
        %v8583 = vrot.slane %v7497, 4
        %v8584 = vmax.f32 %v7497, %v8583
        %v8585 = vrot.slane %v8584, 2
        %v8586 = vmax.f32 %v8584, %v8585
        %v8587 = vrot.slane %v8586, 1
        %v8588 = vmax.f32 %v8586, %v8587
        %v8589 = vrot.slane %v7498, 4
        %v8590 = vmax.f32 %v7498, %v8589
        %v8591 = vrot.slane %v8590, 2
        %v8592 = vmax.f32 %v8590, %v8591
        %v8593 = vrot.slane %v8592, 1
        %v8594 = vmax.f32 %v8592, %v8593
        %v8595 = vrot.slane %v7499, 4
        %v8596 = vmax.f32 %v7499, %v8595
        %v8597 = vrot.slane %v8596, 2
        %v8598 = vmax.f32 %v8596, %v8597
        %v8599 = vrot.slane %v8598, 1
        %v8600 = vmax.f32 %v8598, %v8599
        %v8601 = vrot.slane %v7500, 4
        %v8602 = vmax.f32 %v7500, %v8601
        %v8603 = vrot.slane %v8602, 2
        %v8604 = vmax.f32 %v8602, %v8603
        %v8605 = vrot.slane %v8604, 1
        %v8606 = vmax.f32 %v8604, %v8605
        %v8607 = vrot.slane %v7501, 4
        %v8608 = vmax.f32 %v7501, %v8607
        %v8609 = vrot.slane %v8608, 2
        %v8610 = vmax.f32 %v8608, %v8609
        %v8611 = vrot.slane %v8610, 1
        %v8612 = vmax.f32 %v8610, %v8611
        %v8613 = vrot.slane %v7502, 4
        %v8614 = vmax.f32 %v7502, %v8613
        %v8615 = vrot.slane %v8614, 2
        %v8616 = vmax.f32 %v8614, %v8615
        %v8617 = vrot.slane %v8616, 1
        %v8618 = vmax.f32 %v8616, %v8617
        %v8619 = vrot.slane %v7503, 4
        %v8620 = vmax.f32 %v7503, %v8619
        %v8621 = vrot.slane %v8620, 2
        %v8622 = vmax.f32 %v8620, %v8621
        %v8623 = vrot.slane %v8622, 1
        %v8624 = vmax.f32 %v8622, %v8623
        %v8625 = vrot.slane %v7504, 4
        %v8626 = vmax.f32 %v7504, %v8625
        %v8627 = vrot.slane %v8626, 2
        %v8628 = vmax.f32 %v8626, %v8627
        %v8629 = vrot.slane %v8628, 1
        %v8630 = vmax.f32 %v8628, %v8629
        %v8631 = vrot.slane %v7505, 4
        %v8632 = vmax.f32 %v7505, %v8631
        %v8633 = vrot.slane %v8632, 2
        %v8634 = vmax.f32 %v8632, %v8633
        %v8635 = vrot.slane %v8634, 1
        %v8636 = vmax.f32 %v8634, %v8635
        %v8637 = vrot.slane %v7506, 4
        %v8638 = vmax.f32 %v7506, %v8637
        %v8639 = vrot.slane %v8638, 2
        %v8640 = vmax.f32 %v8638, %v8639
        %v8641 = vrot.slane %v8640, 1
        %v8642 = vmax.f32 %v8640, %v8641
        %v8643 = vrot.slane %v7507, 4
        %v8644 = vmax.f32 %v7507, %v8643
        %v8645 = vrot.slane %v8644, 2
        %v8646 = vmax.f32 %v8644, %v8645
        %v8647 = vrot.slane %v8646, 1
        %v8648 = vmax.f32 %v8646, %v8647
        %v8649 = vrot.slane %v7508, 4
        %v8650 = vmax.f32 %v7508, %v8649
        %v8651 = vrot.slane %v8650, 2
        %v8652 = vmax.f32 %v8650, %v8651
        %v8653 = vrot.slane %v8652, 1
        %v8654 = vmax.f32 %v8652, %v8653
        %v8655 = vrot.slane %v7509, 4
        %v8656 = vmax.f32 %v7509, %v8655
        %v8657 = vrot.slane %v8656, 2
        %v8658 = vmax.f32 %v8656, %v8657
        %v8659 = vrot.slane %v8658, 1
        %v8660 = vmax.f32 %v8658, %v8659
        %v8661 = vrot.slane %v7510, 4
        %v8662 = vmax.f32 %v7510, %v8661
        %v8663 = vrot.slane %v8662, 2
        %v8664 = vmax.f32 %v8662, %v8663
        %v8665 = vrot.slane %v8664, 1
        %v8666 = vmax.f32 %v8664, %v8665
        %v8667 = vrot.slane %v7511, 4
        %v8668 = vmax.f32 %v7511, %v8667
        %v8669 = vrot.slane %v8668, 2
        %v8670 = vmax.f32 %v8668, %v8669
        %v8671 = vrot.slane %v8670, 1
        %v8672 = vmax.f32 %v8670, %v8671
        %v8673 = vrot.slane %v7512, 4
        %v8674 = vmax.f32 %v7512, %v8673
        %v8675 = vrot.slane %v8674, 2
        %v8676 = vmax.f32 %v8674, %v8675
        %v8677 = vrot.slane %v8676, 1
        %v8678 = vmax.f32 %v8676, %v8677
        %v8679 = vrot.slane %v7513, 4
        %v8680 = vmax.f32 %v7513, %v8679
        %v8681 = vrot.slane %v8680, 2
        %v8682 = vmax.f32 %v8680, %v8681
        %v8683 = vrot.slane %v8682, 1
        %v8684 = vmax.f32 %v8682, %v8683
        %v8685 = vrot.slane %v7514, 4
        %v8686 = vmax.f32 %v7514, %v8685
        %v8687 = vrot.slane %v8686, 2
        %v8688 = vmax.f32 %v8686, %v8687
        %v8689 = vrot.slane %v8688, 1
        %v8690 = vmax.f32 %v8688, %v8689
        %v8691 = vrot.slane %v7515, 4
        %v8692 = vmax.f32 %v7515, %v8691
        %v8693 = vrot.slane %v8692, 2
        %v8694 = vmax.f32 %v8692, %v8693
        %v8695 = vrot.slane %v8694, 1
        %v8696 = vmax.f32 %v8694, %v8695
        %v8697 = vrot.slane %v7516, 4
        %v8698 = vmax.f32 %v7516, %v8697
        %v8699 = vrot.slane %v8698, 2
        %v8700 = vmax.f32 %v8698, %v8699
        %v8701 = vrot.slane %v8700, 1
        %v8702 = vmax.f32 %v8700, %v8701
        %v8703 = vrot.slane %v7517, 4
        %v8704 = vmax.f32 %v7517, %v8703
        %v8705 = vrot.slane %v8704, 2
        %v8706 = vmax.f32 %v8704, %v8705
        %v8707 = vrot.slane %v8706, 1
        %v8708 = vmax.f32 %v8706, %v8707
        %v8709 = vrot.slane %v7518, 4
        %v8710 = vmax.f32 %v7518, %v8709
        %v8711 = vrot.slane %v8710, 2
        %v8712 = vmax.f32 %v8710, %v8711
        %v8713 = vrot.slane %v8712, 1
        %v8714 = vmax.f32 %v8712, %v8713
        %v8715 = vrot.slane %v7519, 4
        %v8716 = vmax.f32 %v7519, %v8715
        %v8717 = vrot.slane %v8716, 2
        %v8718 = vmax.f32 %v8716, %v8717
        %v8719 = vrot.slane %v8718, 1
        %v8720 = vmax.f32 %v8718, %v8719
        %v8721 = vrot.slane %v7520, 4
        %v8722 = vmax.f32 %v7520, %v8721
        %v8723 = vrot.slane %v8722, 2
        %v8724 = vmax.f32 %v8722, %v8723
        %v8725 = vrot.slane %v8724, 1
        %v8726 = vmax.f32 %v8724, %v8725
        %v8727 = vrot.slane %v7521, 4
        %v8728 = vmax.f32 %v7521, %v8727
        %v8729 = vrot.slane %v8728, 2
        %v8730 = vmax.f32 %v8728, %v8729
        %v8731 = vrot.slane %v8730, 1
        %v8732 = vmax.f32 %v8730, %v8731
        %v8733 = vrot.slane %v7522, 4
        %v8734 = vmax.f32 %v7522, %v8733
        %v8735 = vrot.slane %v8734, 2
        %v8736 = vmax.f32 %v8734, %v8735
        %v8737 = vrot.slane %v8736, 1
        %v8738 = vmax.f32 %v8736, %v8737
        %v8739 = vrot.slane %v7523, 4
        %v8740 = vmax.f32 %v7523, %v8739
        %v8741 = vrot.slane %v8740, 2
        %v8742 = vmax.f32 %v8740, %v8741
        %v8743 = vrot.slane %v8742, 1
        %v8744 = vmax.f32 %v8742, %v8743
        %v8745 = vrot.slane %v7524, 4
        %v8746 = vmax.f32 %v7524, %v8745
        %v8747 = vrot.slane %v8746, 2
        %v8748 = vmax.f32 %v8746, %v8747
        %v8749 = vrot.slane %v8748, 1
        %v8750 = vmax.f32 %v8748, %v8749
        %v8751 = vrot.slane %v7525, 4
        %v8752 = vmax.f32 %v7525, %v8751
        %v8753 = vrot.slane %v8752, 2
        %v8754 = vmax.f32 %v8752, %v8753
        %v8755 = vrot.slane %v8754, 1
        %v8756 = vmax.f32 %v8754, %v8755
        %v8757 = vrot.slane %v7526, 4
        %v8758 = vmax.f32 %v7526, %v8757
        %v8759 = vrot.slane %v8758, 2
        %v8760 = vmax.f32 %v8758, %v8759
        %v8761 = vrot.slane %v8760, 1
        %v8762 = vmax.f32 %v8760, %v8761
        %v8763 = vrot.slane %v7527, 4
        %v8764 = vmax.f32 %v7527, %v8763
        %v8765 = vrot.slane %v8764, 2
        %v8766 = vmax.f32 %v8764, %v8765
        %v8767 = vrot.slane %v8766, 1
        %v8768 = vmax.f32 %v8766, %v8767
        %v8769 = vrot.slane %v7528, 4
        %v8770 = vmax.f32 %v7528, %v8769
        %v8771 = vrot.slane %v8770, 2
        %v8772 = vmax.f32 %v8770, %v8771
        %v8773 = vrot.slane %v8772, 1
        %v8774 = vmax.f32 %v8772, %v8773
        %v8775 = vrot.slane %v7529, 4
        %v8776 = vmax.f32 %v7529, %v8775
        %v8777 = vrot.slane %v8776, 2
        %v8778 = vmax.f32 %v8776, %v8777
        %v8779 = vrot.slane %v8778, 1
        %v8780 = vmax.f32 %v8778, %v8779
        %v8781 = vrot.slane %v7530, 4
        %v8782 = vmax.f32 %v7530, %v8781
        %v8783 = vrot.slane %v8782, 2
        %v8784 = vmax.f32 %v8782, %v8783
        %v8785 = vrot.slane %v8784, 1
        %v8786 = vmax.f32 %v8784, %v8785
        %v8787 = vrot.slane %v7531, 4
        %v8788 = vmax.f32 %v7531, %v8787
        %v8789 = vrot.slane %v8788, 2
        %v8790 = vmax.f32 %v8788, %v8789
        %v8791 = vrot.slane %v8790, 1
        %v8792 = vmax.f32 %v8790, %v8791
        %v8793 = vrot.slane %v7532, 4
        %v8794 = vmax.f32 %v7532, %v8793
        %v8795 = vrot.slane %v8794, 2
        %v8796 = vmax.f32 %v8794, %v8795
        %v8797 = vrot.slane %v8796, 1
        %v8798 = vmax.f32 %v8796, %v8797
        %v8799 = vrot.slane %v7533, 4
        %v8800 = vmax.f32 %v7533, %v8799
        %v8801 = vrot.slane %v8800, 2
        %v8802 = vmax.f32 %v8800, %v8801
        %v8803 = vrot.slane %v8802, 1
        %v8804 = vmax.f32 %v8802, %v8803
        %v8805 = vrot.slane %v7534, 4
        %v8806 = vmax.f32 %v7534, %v8805
        %v8807 = vrot.slane %v8806, 2
        %v8808 = vmax.f32 %v8806, %v8807
        %v8809 = vrot.slane %v8808, 1
        %v8810 = vmax.f32 %v8808, %v8809
        %v8811 = vrot.slane %v7535, 4
        %v8812 = vmax.f32 %v7535, %v8811
        %v8813 = vrot.slane %v8812, 2
        %v8814 = vmax.f32 %v8812, %v8813
        %v8815 = vrot.slane %v8814, 1
        %v8816 = vmax.f32 %v8814, %v8815
        %v8817 = vrot.slane %v7536, 4
        %v8818 = vmax.f32 %v7536, %v8817
        %v8819 = vrot.slane %v8818, 2
        %v8820 = vmax.f32 %v8818, %v8819
        %v8821 = vrot.slane %v8820, 1
        %v8822 = vmax.f32 %v8820, %v8821
        %v8823 = vrot.slane %v7537, 4
        %v8824 = vmax.f32 %v7537, %v8823
        %v8825 = vrot.slane %v8824, 2
        %v8826 = vmax.f32 %v8824, %v8825
        %v8827 = vrot.slane %v8826, 1
        %v8828 = vmax.f32 %v8826, %v8827
        %v8829 = vrot.slane %v7538, 4
        %v8830 = vmax.f32 %v7538, %v8829
        %v8831 = vrot.slane %v8830, 2
        %v8832 = vmax.f32 %v8830, %v8831
        %v8833 = vrot.slane %v8832, 1
        %v8834 = vmax.f32 %v8832, %v8833
        %v8835 = vrot.slane %v7539, 4
        %v8836 = vmax.f32 %v7539, %v8835
        %v8837 = vrot.slane %v8836, 2
        %v8838 = vmax.f32 %v8836, %v8837
        %v8839 = vrot.slane %v8838, 1
        %v8840 = vmax.f32 %v8838, %v8839
        %v8841 = vrot.slane %v7540, 4
        %v8842 = vmax.f32 %v7540, %v8841
        %v8843 = vrot.slane %v8842, 2
        %v8844 = vmax.f32 %v8842, %v8843
        %v8845 = vrot.slane %v8844, 1
        %v8846 = vmax.f32 %v8844, %v8845
        %v8847 = vrot.slane %v7541, 4
        %v8848 = vmax.f32 %v7541, %v8847
        %v8849 = vrot.slane %v8848, 2
        %v8850 = vmax.f32 %v8848, %v8849
        %v8851 = vrot.slane %v8850, 1
        %v8852 = vmax.f32 %v8850, %v8851
        %v8853 = vrot.slane %v7542, 4
        %v8854 = vmax.f32 %v7542, %v8853
        %v8855 = vrot.slane %v8854, 2
        %v8856 = vmax.f32 %v8854, %v8855
        %v8857 = vrot.slane %v8856, 1
        %v8858 = vmax.f32 %v8856, %v8857
        %v8859 = vrot.slane %v7543, 4
        %v8860 = vmax.f32 %v7543, %v8859
        %v8861 = vrot.slane %v8860, 2
        %v8862 = vmax.f32 %v8860, %v8861
        %v8863 = vrot.slane %v8862, 1
        %v8864 = vmax.f32 %v8862, %v8863
        %v8865 = vrot.slane %v7544, 4
        %v8866 = vmax.f32 %v7544, %v8865
        %v8867 = vrot.slane %v8866, 2
        %v8868 = vmax.f32 %v8866, %v8867
        %v8869 = vrot.slane %v8868, 1
        %v8870 = vmax.f32 %v8868, %v8869
        %v8871 = vrot.slane %v7545, 4
        %v8872 = vmax.f32 %v7545, %v8871
        %v8873 = vrot.slane %v8872, 2
        %v8874 = vmax.f32 %v8872, %v8873
        %v8875 = vrot.slane %v8874, 1
        %v8876 = vmax.f32 %v8874, %v8875
        %v8877 = vrot.slane %v7546, 4
        %v8878 = vmax.f32 %v7546, %v8877
        %v8879 = vrot.slane %v8878, 2
        %v8880 = vmax.f32 %v8878, %v8879
        %v8881 = vrot.slane %v8880, 1
        %v8882 = vmax.f32 %v8880, %v8881
        %v8883 = vrot.slane %v7547, 4
        %v8884 = vmax.f32 %v7547, %v8883
        %v8885 = vrot.slane %v8884, 2
        %v8886 = vmax.f32 %v8884, %v8885
        %v8887 = vrot.slane %v8886, 1
        %v8888 = vmax.f32 %v8886, %v8887
        %v8889 = vrot.slane %v7548, 4
        %v8890 = vmax.f32 %v7548, %v8889
        %v8891 = vrot.slane %v8890, 2
        %v8892 = vmax.f32 %v8890, %v8891
        %v8893 = vrot.slane %v8892, 1
        %v8894 = vmax.f32 %v8892, %v8893
        %v8895 = vrot.slane %v7549, 4
        %v8896 = vmax.f32 %v7549, %v8895
        %v8897 = vrot.slane %v8896, 2
        %v8898 = vmax.f32 %v8896, %v8897
        %v8899 = vrot.slane %v8898, 1
        %v8900 = vmax.f32 %v8898, %v8899
        %v8901 = vrot.slane %v7550, 4
        %v8902 = vmax.f32 %v7550, %v8901
        %v8903 = vrot.slane %v8902, 2
        %v8904 = vmax.f32 %v8902, %v8903
        %v8905 = vrot.slane %v8904, 1
        %v8906 = vmax.f32 %v8904, %v8905
        %v8907 = vrot.slane %v7551, 4
        %v8908 = vmax.f32 %v7551, %v8907
        %v8909 = vrot.slane %v8908, 2
        %v8910 = vmax.f32 %v8908, %v8909
        %v8911 = vrot.slane %v8910, 1
        %v8912 = vmax.f32 %v8910, %v8911
        %v8913 = vrot.slane %v7552, 4
        %v8914 = vmax.f32 %v7552, %v8913
        %v8915 = vrot.slane %v8914, 2
        %v8916 = vmax.f32 %v8914, %v8915
        %v8917 = vrot.slane %v8916, 1
        %v8918 = vmax.f32 %v8916, %v8917
        %v8919 = vrot.slane %v7553, 4
        %v8920 = vmax.f32 %v7553, %v8919
        %v8921 = vrot.slane %v8920, 2
        %v8922 = vmax.f32 %v8920, %v8921
        %v8923 = vrot.slane %v8922, 1
        %v8924 = vmax.f32 %v8922, %v8923
        %v8925 = vrot.slane %v7554, 4
        %v8926 = vmax.f32 %v7554, %v8925
        %v8927 = vrot.slane %v8926, 2
        %v8928 = vmax.f32 %v8926, %v8927
        %v8929 = vrot.slane %v8928, 1
        %v8930 = vmax.f32 %v8928, %v8929
        %v8931 = vrot.slane %v7555, 4
        %v8932 = vmax.f32 %v7555, %v8931
        %v8933 = vrot.slane %v8932, 2
        %v8934 = vmax.f32 %v8932, %v8933
        %v8935 = vrot.slane %v8934, 1
        %v8936 = vmax.f32 %v8934, %v8935
        %v8937 = vrot.slane %v7556, 4
        %v8938 = vmax.f32 %v7556, %v8937
        %v8939 = vrot.slane %v8938, 2
        %v8940 = vmax.f32 %v8938, %v8939
        %v8941 = vrot.slane %v8940, 1
        %v8942 = vmax.f32 %v8940, %v8941
        %v8943 = vrot.slane %v7557, 4
        %v8944 = vmax.f32 %v7557, %v8943
        %v8945 = vrot.slane %v8944, 2
        %v8946 = vmax.f32 %v8944, %v8945
        %v8947 = vrot.slane %v8946, 1
        %v8948 = vmax.f32 %v8946, %v8947
        %v8949 = vrot.slane %v7558, 4
        %v8950 = vmax.f32 %v7558, %v8949
        %v8951 = vrot.slane %v8950, 2
        %v8952 = vmax.f32 %v8950, %v8951
        %v8953 = vrot.slane %v8952, 1
        %v8954 = vmax.f32 %v8952, %v8953
        %v8955 = vrot.slane %v7559, 4
        %v8956 = vmax.f32 %v7559, %v8955
        %v8957 = vrot.slane %v8956, 2
        %v8958 = vmax.f32 %v8956, %v8957
        %v8959 = vrot.slane %v8958, 1
        %v8960 = vmax.f32 %v8958, %v8959
        %v8961 = vrot.slane %v7560, 4
        %v8962 = vmax.f32 %v7560, %v8961
        %v8963 = vrot.slane %v8962, 2
        %v8964 = vmax.f32 %v8962, %v8963
        %v8965 = vrot.slane %v8964, 1
        %v8966 = vmax.f32 %v8964, %v8965
        %v8967 = vrot.slane %v7561, 4
        %v8968 = vmax.f32 %v7561, %v8967
        %v8969 = vrot.slane %v8968, 2
        %v8970 = vmax.f32 %v8968, %v8969
        %v8971 = vrot.slane %v8970, 1
        %v8972 = vmax.f32 %v8970, %v8971
        %v8973 = vrot.slane %v7562, 4
        %v8974 = vmax.f32 %v7562, %v8973
        %v8975 = vrot.slane %v8974, 2
        %v8976 = vmax.f32 %v8974, %v8975
        %v8977 = vrot.slane %v8976, 1
        %v8978 = vmax.f32 %v8976, %v8977
        %v8979 = vrot.slane %v7563, 4
        %v8980 = vmax.f32 %v7563, %v8979
        %v8981 = vrot.slane %v8980, 2
        %v8982 = vmax.f32 %v8980, %v8981
        %v8983 = vrot.slane %v8982, 1
        %v8984 = vmax.f32 %v8982, %v8983
        %v8985 = vrot.slane %v7564, 4
        %v8986 = vmax.f32 %v7564, %v8985
        %v8987 = vrot.slane %v8986, 2
        %v8988 = vmax.f32 %v8986, %v8987
        %v8989 = vrot.slane %v8988, 1
        %v8990 = vmax.f32 %v8988, %v8989
        %v8991 = vrot.slane %v7565, 4
        %v8992 = vmax.f32 %v7565, %v8991
        %v8993 = vrot.slane %v8992, 2
        %v8994 = vmax.f32 %v8992, %v8993
        %v8995 = vrot.slane %v8994, 1
        %v8996 = vmax.f32 %v8994, %v8995
        %v8997 = vrot.slane %v7566, 4
        %v8998 = vmax.f32 %v7566, %v8997
        %v8999 = vrot.slane %v8998, 2
        %v9000 = vmax.f32 %v8998, %v8999
        %v9001 = vrot.slane %v9000, 1
        %v9002 = vmax.f32 %v9000, %v9001
        %v9003 = vrot.slane %v7567, 4
        %v9004 = vmax.f32 %v7567, %v9003
        %v9005 = vrot.slane %v9004, 2
        %v9006 = vmax.f32 %v9004, %v9005
        %v9007 = vrot.slane %v9006, 1
        %v9008 = vmax.f32 %v9006, %v9007
        %v9009 = vrot.slane %v7568, 4
        %v9010 = vmax.f32 %v7568, %v9009
        %v9011 = vrot.slane %v9010, 2
        %v9012 = vmax.f32 %v9010, %v9011
        %v9013 = vrot.slane %v9012, 1
        %v9014 = vmax.f32 %v9012, %v9013
        %v9015 = vrot.slane %v7569, 4
        %v9016 = vmax.f32 %v7569, %v9015
        %v9017 = vrot.slane %v9016, 2
        %v9018 = vmax.f32 %v9016, %v9017
        %v9019 = vrot.slane %v9018, 1
        %v9020 = vmax.f32 %v9018, %v9019
        %v9021 = vrot.slane %v7570, 4
        %v9022 = vmax.f32 %v7570, %v9021
        %v9023 = vrot.slane %v9022, 2
        %v9024 = vmax.f32 %v9022, %v9023
        %v9025 = vrot.slane %v9024, 1
        %v9026 = vmax.f32 %v9024, %v9025
        %v9027 = vrot.slane %v7571, 4
        %v9028 = vmax.f32 %v7571, %v9027
        %v9029 = vrot.slane %v9028, 2
        %v9030 = vmax.f32 %v9028, %v9029
        %v9031 = vrot.slane %v9030, 1
        %v9032 = vmax.f32 %v9030, %v9031
        %v9033 = vrot.slane %v7572, 4
        %v9034 = vmax.f32 %v7572, %v9033
        %v9035 = vrot.slane %v9034, 2
        %v9036 = vmax.f32 %v9034, %v9035
        %v9037 = vrot.slane %v9036, 1
        %v9038 = vmax.f32 %v9036, %v9037
        %v9039 = vrot.slane %v7573, 4
        %v9040 = vmax.f32 %v7573, %v9039
        %v9041 = vrot.slane %v9040, 2
        %v9042 = vmax.f32 %v9040, %v9041
        %v9043 = vrot.slane %v9042, 1
        %v9044 = vmax.f32 %v9042, %v9043
        %v9045 = vrot.slane %v7574, 4
        %v9046 = vmax.f32 %v7574, %v9045
        %v9047 = vrot.slane %v9046, 2
        %v9048 = vmax.f32 %v9046, %v9047
        %v9049 = vrot.slane %v9048, 1
        %v9050 = vmax.f32 %v9048, %v9049
        %v9051 = vrot.slane %v7575, 4
        %v9052 = vmax.f32 %v7575, %v9051
        %v9053 = vrot.slane %v9052, 2
        %v9054 = vmax.f32 %v9052, %v9053
        %v9055 = vrot.slane %v9054, 1
        %v9056 = vmax.f32 %v9054, %v9055
        %v9057 = vrot.slane %v7576, 4
        %v9058 = vmax.f32 %v7576, %v9057
        %v9059 = vrot.slane %v9058, 2
        %v9060 = vmax.f32 %v9058, %v9059
        %v9061 = vrot.slane %v9060, 1
        %v9062 = vmax.f32 %v9060, %v9061
        %v9063 = vrot.slane %v7577, 4
        %v9064 = vmax.f32 %v7577, %v9063
        %v9065 = vrot.slane %v9064, 2
        %v9066 = vmax.f32 %v9064, %v9065
        %v9067 = vrot.slane %v9066, 1
        %v9068 = vmax.f32 %v9066, %v9067
        %v9069 = vrot.slane %v7578, 4
        %v9070 = vmax.f32 %v7578, %v9069
        %v9071 = vrot.slane %v9070, 2
        %v9072 = vmax.f32 %v9070, %v9071
        %v9073 = vrot.slane %v9072, 1
        %v9074 = vmax.f32 %v9072, %v9073
        %v9075 = vrot.slane %v7579, 4
        %v9076 = vmax.f32 %v7579, %v9075
        %v9077 = vrot.slane %v9076, 2
        %v9078 = vmax.f32 %v9076, %v9077
        %v9079 = vrot.slane %v9078, 1
        %v9080 = vmax.f32 %v9078, %v9079
        %v9081 = vrot.slane %v7580, 4
        %v9082 = vmax.f32 %v7580, %v9081
        %v9083 = vrot.slane %v9082, 2
        %v9084 = vmax.f32 %v9082, %v9083
        %v9085 = vrot.slane %v9084, 1
        %v9086 = vmax.f32 %v9084, %v9085
        %v9087 = vrot.slane %v7581, 4
        %v9088 = vmax.f32 %v7581, %v9087
        %v9089 = vrot.slane %v9088, 2
        %v9090 = vmax.f32 %v9088, %v9089
        %v9091 = vrot.slane %v9090, 1
        %v9092 = vmax.f32 %v9090, %v9091
        %v9093 = vrot.slane %v7582, 4
        %v9094 = vmax.f32 %v7582, %v9093
        %v9095 = vrot.slane %v9094, 2
        %v9096 = vmax.f32 %v9094, %v9095
        %v9097 = vrot.slane %v9096, 1
        %v9098 = vmax.f32 %v9096, %v9097
        %v9099 = vrot.slane %v7583, 4
        %v9100 = vmax.f32 %v7583, %v9099
        %v9101 = vrot.slane %v9100, 2
        %v9102 = vmax.f32 %v9100, %v9101
        %v9103 = vrot.slane %v9102, 1
        %v9104 = vmax.f32 %v9102, %v9103
        %v9105 = vrot.slane %v7584, 4
        %v9106 = vmax.f32 %v7584, %v9105
        %v9107 = vrot.slane %v9106, 2
        %v9108 = vmax.f32 %v9106, %v9107
        %v9109 = vrot.slane %v9108, 1
        %v9110 = vmax.f32 %v9108, %v9109
        %v9111 = vrot.slane %v7585, 4
        %v9112 = vmax.f32 %v7585, %v9111
        %v9113 = vrot.slane %v9112, 2
        %v9114 = vmax.f32 %v9112, %v9113
        %v9115 = vrot.slane %v9114, 1
        %v9116 = vmax.f32 %v9114, %v9115
        %v9117 = vrot.slane %v7586, 4
        %v9118 = vmax.f32 %v7586, %v9117
        %v9119 = vrot.slane %v9118, 2
        %v9120 = vmax.f32 %v9118, %v9119
        %v9121 = vrot.slane %v9120, 1
        %v9122 = vmax.f32 %v9120, %v9121
        %v9123 = vmax.f32 %v7592, %v7616
        %v9124 = vmax.f32 %v7598, %v7622
        %v9125 = vmax.f32 %v7604, %v7628
        %v9126 = vmax.f32 %v7610, %v7634
        %v9127 = vmax.f32 %v7784, %v7808
        %v9128 = vmax.f32 %v7790, %v7814
        %v9129 = vmax.f32 %v7796, %v7820
        %v9130 = vmax.f32 %v7802, %v7826
        %v9131 = vmax.f32 %v7976, %v8000
        %v9132 = vmax.f32 %v7982, %v8006
        %v9133 = vmax.f32 %v7988, %v8012
        %v9134 = vmax.f32 %v7994, %v8018
        %v9135 = vmax.f32 %v8168, %v8192
        %v9136 = vmax.f32 %v8174, %v8198
        %v9137 = vmax.f32 %v8180, %v8204
        %v9138 = vmax.f32 %v8186, %v8210
        %v9139 = vmax.f32 %v8360, %v8384
        %v9140 = vmax.f32 %v8366, %v8390
        %v9141 = vmax.f32 %v8372, %v8396
        %v9142 = vmax.f32 %v8378, %v8402
        %v9143 = vmax.f32 %v8552, %v8576
        %v9144 = vmax.f32 %v8558, %v8582
        %v9145 = vmax.f32 %v8564, %v8588
        %v9146 = vmax.f32 %v8570, %v8594
        %v9147 = vmax.f32 %v8744, %v8768
        %v9148 = vmax.f32 %v8750, %v8774
        %v9149 = vmax.f32 %v8756, %v8780
        %v9150 = vmax.f32 %v8762, %v8786
        %v9151 = vmax.f32 %v8936, %v8960
        %v9152 = vmax.f32 %v8942, %v8966
        %v9153 = vmax.f32 %v8948, %v8972
        %v9154 = vmax.f32 %v8954, %v8978
        %v9155 = vmax.f32 %v9123, %v7640
        %v9156 = vmax.f32 %v9124, %v7646
        %v9157 = vmax.f32 %v9125, %v7652
        %v9158 = vmax.f32 %v9126, %v7658
        %v9159 = vmax.f32 %v9127, %v7832
        %v9160 = vmax.f32 %v9128, %v7838
        %v9161 = vmax.f32 %v9129, %v7844
        %v9162 = vmax.f32 %v9130, %v7850
        %v9163 = vmax.f32 %v9131, %v8024
        %v9164 = vmax.f32 %v9132, %v8030
        %v9165 = vmax.f32 %v9133, %v8036
        %v9166 = vmax.f32 %v9134, %v8042
        %v9167 = vmax.f32 %v9135, %v8216
        %v9168 = vmax.f32 %v9136, %v8222
        %v9169 = vmax.f32 %v9137, %v8228
        %v9170 = vmax.f32 %v9138, %v8234
        %v9171 = vmax.f32 %v9139, %v8408
        %v9172 = vmax.f32 %v9140, %v8414
        %v9173 = vmax.f32 %v9141, %v8420
        %v9174 = vmax.f32 %v9142, %v8426
        %v9175 = vmax.f32 %v9143, %v8600
        %v9176 = vmax.f32 %v9144, %v8606
        %v9177 = vmax.f32 %v9145, %v8612
        %v9178 = vmax.f32 %v9146, %v8618
        %v9179 = vmax.f32 %v9147, %v8792
        %v9180 = vmax.f32 %v9148, %v8798
        %v9181 = vmax.f32 %v9149, %v8804
        %v9182 = vmax.f32 %v9150, %v8810
        %v9183 = vmax.f32 %v9151, %v8984
        %v9184 = vmax.f32 %v9152, %v8990
        %v9185 = vmax.f32 %v9153, %v8996
        %v9186 = vmax.f32 %v9154, %v9002
        %v9187 = vmax.f32 %v9155, %v7664
        %v9188 = vmax.f32 %v9156, %v7670
        %v9189 = vmax.f32 %v9157, %v7676
        %v9190 = vmax.f32 %v9158, %v7682
        %v9191 = vmax.f32 %v9159, %v7856
        %v9192 = vmax.f32 %v9160, %v7862
        %v9193 = vmax.f32 %v9161, %v7868
        %v9194 = vmax.f32 %v9162, %v7874
        %v9195 = vmax.f32 %v9163, %v8048
        %v9196 = vmax.f32 %v9164, %v8054
        %v9197 = vmax.f32 %v9165, %v8060
        %v9198 = vmax.f32 %v9166, %v8066
        %v9199 = vmax.f32 %v9167, %v8240
        %v9200 = vmax.f32 %v9168, %v8246
        %v9201 = vmax.f32 %v9169, %v8252
        %v9202 = vmax.f32 %v9170, %v8258
        %v9203 = vmax.f32 %v9171, %v8432
        %v9204 = vmax.f32 %v9172, %v8438
        %v9205 = vmax.f32 %v9173, %v8444
        %v9206 = vmax.f32 %v9174, %v8450
        %v9207 = vmax.f32 %v9175, %v8624
        %v9208 = vmax.f32 %v9176, %v8630
        %v9209 = vmax.f32 %v9177, %v8636
        %v9210 = vmax.f32 %v9178, %v8642
        %v9211 = vmax.f32 %v9179, %v8816
        %v9212 = vmax.f32 %v9180, %v8822
        %v9213 = vmax.f32 %v9181, %v8828
        %v9214 = vmax.f32 %v9182, %v8834
        %v9215 = vmax.f32 %v9183, %v9008
        %v9216 = vmax.f32 %v9184, %v9014
        %v9217 = vmax.f32 %v9185, %v9020
        %v9218 = vmax.f32 %v9186, %v9026
        %v9219 = vmax.f32 %v9187, %v7688
        %v9220 = vmax.f32 %v9188, %v7694
        %v9221 = vmax.f32 %v9189, %v7700
        %v9222 = vmax.f32 %v9190, %v7706
        %v9223 = vmax.f32 %v9191, %v7880
        %v9224 = vmax.f32 %v9192, %v7886
        %v9225 = vmax.f32 %v9193, %v7892
        %v9226 = vmax.f32 %v9194, %v7898
        %v9227 = vmax.f32 %v9195, %v8072
        %v9228 = vmax.f32 %v9196, %v8078
        %v9229 = vmax.f32 %v9197, %v8084
        %v9230 = vmax.f32 %v9198, %v8090
        %v9231 = vmax.f32 %v9199, %v8264
        %v9232 = vmax.f32 %v9200, %v8270
        %v9233 = vmax.f32 %v9201, %v8276
        %v9234 = vmax.f32 %v9202, %v8282
        %v9235 = vmax.f32 %v9203, %v8456
        %v9236 = vmax.f32 %v9204, %v8462
        %v9237 = vmax.f32 %v9205, %v8468
        %v9238 = vmax.f32 %v9206, %v8474
        %v9239 = vmax.f32 %v9207, %v8648
        %v9240 = vmax.f32 %v9208, %v8654
        %v9241 = vmax.f32 %v9209, %v8660
        %v9242 = vmax.f32 %v9210, %v8666
        %v9243 = vmax.f32 %v9211, %v8840
        %v9244 = vmax.f32 %v9212, %v8846
        %v9245 = vmax.f32 %v9213, %v8852
        %v9246 = vmax.f32 %v9214, %v8858
        %v9247 = vmax.f32 %v9215, %v9032
        %v9248 = vmax.f32 %v9216, %v9038
        %v9249 = vmax.f32 %v9217, %v9044
        %v9250 = vmax.f32 %v9218, %v9050
        %v9251 = vmax.f32 %v9219, %v7712
        %v9252 = vmax.f32 %v9220, %v7718
        %v9253 = vmax.f32 %v9221, %v7724
        %v9254 = vmax.f32 %v9222, %v7730
        %v9255 = vmax.f32 %v9223, %v7904
        %v9256 = vmax.f32 %v9224, %v7910
        %v9257 = vmax.f32 %v9225, %v7916
        %v9258 = vmax.f32 %v9226, %v7922
        %v9259 = vmax.f32 %v9227, %v8096
        %v9260 = vmax.f32 %v9228, %v8102
        %v9261 = vmax.f32 %v9229, %v8108
        %v9262 = vmax.f32 %v9230, %v8114
        %v9263 = vmax.f32 %v9231, %v8288
        %v9264 = vmax.f32 %v9232, %v8294
        %v9265 = vmax.f32 %v9233, %v8300
        %v9266 = vmax.f32 %v9234, %v8306
        %v9267 = vmax.f32 %v9235, %v8480
        %v9268 = vmax.f32 %v9236, %v8486
        %v9269 = vmax.f32 %v9237, %v8492
        %v9270 = vmax.f32 %v9238, %v8498
        %v9271 = vmax.f32 %v9239, %v8672
        %v9272 = vmax.f32 %v9240, %v8678
        %v9273 = vmax.f32 %v9241, %v8684
        %v9274 = vmax.f32 %v9242, %v8690
        %v9275 = vmax.f32 %v9243, %v8864
        %v9276 = vmax.f32 %v9244, %v8870
        %v9277 = vmax.f32 %v9245, %v8876
        %v9278 = vmax.f32 %v9246, %v8882
        %v9279 = vmax.f32 %v9247, %v9056
        %v9280 = vmax.f32 %v9248, %v9062
        %v9281 = vmax.f32 %v9249, %v9068
        %v9282 = vmax.f32 %v9250, %v9074
        %v9283 = vmax.f32 %v9251, %v7736
        %v9284 = vmax.f32 %v9252, %v7742
        %v9285 = vmax.f32 %v9253, %v7748
        %v9286 = vmax.f32 %v9254, %v7754
        %v9287 = vmax.f32 %v9255, %v7928
        %v9288 = vmax.f32 %v9256, %v7934
        %v9289 = vmax.f32 %v9257, %v7940
        %v9290 = vmax.f32 %v9258, %v7946
        %v9291 = vmax.f32 %v9259, %v8120
        %v9292 = vmax.f32 %v9260, %v8126
        %v9293 = vmax.f32 %v9261, %v8132
        %v9294 = vmax.f32 %v9262, %v8138
        %v9295 = vmax.f32 %v9263, %v8312
        %v9296 = vmax.f32 %v9264, %v8318
        %v9297 = vmax.f32 %v9265, %v8324
        %v9298 = vmax.f32 %v9266, %v8330
        %v9299 = vmax.f32 %v9267, %v8504
        %v9300 = vmax.f32 %v9268, %v8510
        %v9301 = vmax.f32 %v9269, %v8516
        %v9302 = vmax.f32 %v9270, %v8522
        %v9303 = vmax.f32 %v9271, %v8696
        %v9304 = vmax.f32 %v9272, %v8702
        %v9305 = vmax.f32 %v9273, %v8708
        %v9306 = vmax.f32 %v9274, %v8714
        %v9307 = vmax.f32 %v9275, %v8888
        %v9308 = vmax.f32 %v9276, %v8894
        %v9309 = vmax.f32 %v9277, %v8900
        %v9310 = vmax.f32 %v9278, %v8906
        %v9311 = vmax.f32 %v9279, %v9080
        %v9312 = vmax.f32 %v9280, %v9086
        %v9313 = vmax.f32 %v9281, %v9092
        %v9314 = vmax.f32 %v9282, %v9098
        %v9315 = vmax.f32 %v9283, %v7760
        %v9316 = vmax.f32 %v9284, %v7766
        %v9317 = vmax.f32 %v9285, %v7772
        %v9318 = vmax.f32 %v9286, %v7778
        %v9319 = vmax.f32 %v9287, %v7952
        %v9320 = vmax.f32 %v9288, %v7958
        %v9321 = vmax.f32 %v9289, %v7964
        %v9322 = vmax.f32 %v9290, %v7970
        %v9323 = vmax.f32 %v9291, %v8144
        %v9324 = vmax.f32 %v9292, %v8150
        %v9325 = vmax.f32 %v9293, %v8156
        %v9326 = vmax.f32 %v9294, %v8162
        %v9327 = vmax.f32 %v9295, %v8336
        %v9328 = vmax.f32 %v9296, %v8342
        %v9329 = vmax.f32 %v9297, %v8348
        %v9330 = vmax.f32 %v9298, %v8354
        %v9331 = vmax.f32 %v9299, %v8528
        %v9332 = vmax.f32 %v9300, %v8534
        %v9333 = vmax.f32 %v9301, %v8540
        %v9334 = vmax.f32 %v9302, %v8546
        %v9335 = vmax.f32 %v9303, %v8720
        %v9336 = vmax.f32 %v9304, %v8726
        %v9337 = vmax.f32 %v9305, %v8732
        %v9338 = vmax.f32 %v9306, %v8738
        %v9339 = vmax.f32 %v9307, %v8912
        %v9340 = vmax.f32 %v9308, %v8918
        %v9341 = vmax.f32 %v9309, %v8924
        %v9342 = vmax.f32 %v9310, %v8930
        %v9343 = vmax.f32 %v9311, %v9104
        %v9344 = vmax.f32 %v9312, %v9110
        %v9345 = vmax.f32 %v9313, %v9116
        %v9346 = vmax.f32 %v9314, %v9122
        %9347 = vst [vmem:[#allocation3] sm:$0xff] 0.0
        %9348 = vst [vmem:[#allocation3 + $0x8] sm:$0xff] 0.0
        %9349 = vst [vmem:[#allocation3 + $0x10] sm:$0xff] 0.0
        %9350 = vst [vmem:[#allocation3 + $0x18] sm:$0xff] 0.0
        %9351 = vst [vmem:[#allocation3 + $0x20] sm:$0xff] 0.0
        %9352 = vst [vmem:[#allocation3 + $0x28] sm:$0xff] 0.0
        %9353 = vst [vmem:[#allocation3 + $0x30] sm:$0xf] 0.0
        %9354 = vst [vmem:[#allocation3 + $0x38] sm:$0xf] 0.0
        %9355 = vst [vmem:[#allocation3 + $0x40] sm:$0xf] 0.0
        %9356 = vst [vmem:[#allocation3 + $0x48] sm:$0xf] 0.0
        %9357 = vst [vmem:[#allocation3 + $0x50] sm:$0xf] 0.0
        %9358 = vst [vmem:[#allocation3 + $0x58] sm:$0xf] 0.0
        %vm9391 = vcmask 1043459
        %v9392 = vsel %vm9391, %v9319, %v9315
        %vm9393 = vcmask 1044484
        %v9394 = vsel %vm9393, %v9323, %v9392
        %vm9395 = vcmask 1045509
        %v9396 = vsel %vm9395, %v9327, %v9394
        %vm9397 = vcmask 1046534
        %v9398 = vsel %vm9397, %v9331, %v9396
        %vm9399 = vcmask 1047559
        %v9400 = vsel %vm9399, %v9335, %v9398
        %v9401 = vsel %vm9391, %v9320, %v9316
        %v9402 = vsel %vm9393, %v9324, %v9401
        %v9403 = vsel %vm9395, %v9328, %v9402
        %v9404 = vsel %vm9397, %v9332, %v9403
        %v9405 = vsel %vm9399, %v9336, %v9404
        %v9406 = vsel %vm9391, %v9321, %v9317
        %v9407 = vsel %vm9393, %v9325, %v9406
        %v9408 = vsel %vm9395, %v9329, %v9407
        %v9409 = vsel %vm9397, %v9333, %v9408
        %v9410 = vsel %vm9399, %v9337, %v9409
        %v9411 = vsel %vm9391, %v9322, %v9318
        %v9412 = vsel %vm9393, %v9326, %v9411
        %v9413 = vsel %vm9395, %v9330, %v9412
        %v9414 = vsel %vm9397, %v9334, %v9413
        %v9415 = vsel %vm9399, %v9338, %v9414
        %vm9416 = vcmask 1041409
        %v9417 = vsel %vm9416, %v9343, %v9339
        %v9418 = vsel %vm9416, %v9344, %v9340
        %v9419 = vsel %vm9416, %v9345, %v9341
        %v9420 = vsel %vm9416, %v9346, %v9342
        %9429 = vst [vmem:[#allocation3 + $0x8] sm:$0xfc] %v9400
        %9430 = vst [vmem:[#allocation3 + $0x10] sm:$0xfc] %v9405
        %9431 = vst [vmem:[#allocation3 + $0x18] sm:$0xfc] %v9410
        %9432 = vst [vmem:[#allocation3 + $0x20] sm:$0xfc] %v9415
        %9433 = vst [vmem:[#allocation3 + $0x38] sm:$0x3] %v9417
        %9434 = vst [vmem:[#allocation3 + $0x40] sm:$0x3] %v9418
        %9435 = vst [vmem:[#allocation3 + $0x48] sm:$0x3] %v9419
        %9436 = vst [vmem:[#allocation3 + $0x50] sm:$0x3] %v9420
        %v9437 = vld [vmem:[#allocation3] sm:$0xff]
        %v9438 = vld [vmem:[#allocation3 + $0x8] sm:$0xff]
        %v9439 = vld [vmem:[#allocation3 + $0x10] sm:$0xff]
        %v9440 = vpack.c.bf16 %v9437, %v9437
        %v9441 = vpack.c.bf16 %v9438, %v9438
        %v9442 = vpack.c.bf16 %v9439, %v9439
        %v9443 = vld [vmem:[#allocation3] sm:$0xfe]
        %v9444 = vld [vmem:[#allocation3 + $0x8] sm:$0xfe]
        %v9445 = vld [vmem:[#allocation3 + $0x10] sm:$0xfe]
        %v9446 = vld [vmem:[#allocation3 + $0x30] sm:$0x1]
        %v9447 = vld [vmem:[#allocation3 + $0x38] sm:$0x1]
        %v9448 = vld [vmem:[#allocation3 + $0x40] sm:$0x1]
        %v9449 = vpack.c.bf16 %v9446, %v9443
        %v9450 = vpack.c.bf16 %v9447, %v9444
        %v9451 = vpack.c.bf16 %v9448, %v9445
        %v9452 = vld [vmem:[#allocation3] sm:$0xfc]
        %v9453 = vld [vmem:[#allocation3 + $0x8] sm:$0xfc]
        %v9454 = vld [vmem:[#allocation3 + $0x10] sm:$0xfc]
        %v9455 = vld [vmem:[#allocation3 + $0x30] sm:$0x3]
        %v9456 = vld [vmem:[#allocation3 + $0x38] sm:$0x3]
        %v9457 = vld [vmem:[#allocation3 + $0x40] sm:$0x3]
        %v9458 = vpack.c.bf16 %v9455, %v9452
        %v9459 = vpack.c.bf16 %v9456, %v9453
        %v9460 = vpack.c.bf16 %v9457, %v9454
        %v9461 = vld [vmem:[#allocation3] sm:$0xf8]
        %v9462 = vld [vmem:[#allocation3 + $0x8] sm:$0xf8]
        %v9463 = vld [vmem:[#allocation3 + $0x10] sm:$0xf8]
        %v9464 = vld [vmem:[#allocation3 + $0x30] sm:$0x7]
        %v9465 = vld [vmem:[#allocation3 + $0x38] sm:$0x7]
        %v9466 = vld [vmem:[#allocation3 + $0x40] sm:$0x7]
        %v9467 = vpack.c.bf16 %v9464, %v9461
        %v9468 = vpack.c.bf16 %v9465, %v9462
        %v9469 = vpack.c.bf16 %v9466, %v9463
        %v9470 = vld [vmem:[#allocation3] sm:$0xf0]
        %v9471 = vld [vmem:[#allocation3 + $0x8] sm:$0xf0]
        %v9472 = vld [vmem:[#allocation3 + $0x10] sm:$0xf0]
        %v9473 = vld [vmem:[#allocation3 + $0x30] sm:$0xf]
        %v9474 = vld [vmem:[#allocation3 + $0x38] sm:$0xf]
        %v9475 = vld [vmem:[#allocation3 + $0x40] sm:$0xf]
        %v9476 = vpack.c.bf16 %v9473, %v9470
        %v9477 = vpack.c.bf16 %v9474, %v9471
        %v9478 = vpack.c.bf16 %v9475, %v9472
        %v9480 = vshrl.u32 %v9449, 16
        %v9482 = vshll.u32 %v9449, 16
        %v9484 = vrot.slane %v9482, 1
        %v9485 = vor.u32 %v9480, %v9484
        %v9487 = vshrl.u32 %v9450, 16
        %v9489 = vshll.u32 %v9450, 16
        %v9491 = vrot.slane %v9489, 1
        %v9492 = vor.u32 %v9487, %v9491
        %v9494 = vshrl.u32 %v9451, 16
        %v9496 = vshll.u32 %v9451, 16
        %v9498 = vrot.slane %v9496, 1
        %v9499 = vor.u32 %v9494, %v9498
        %9500 = vrot.lane.b32.xlu0 %v9485, 64
        %v9501 = vpop.permute.xlu0 %9500
        %9502 = vrot.lane.b32.xlu0 %v9492, 64
        %v9503 = vpop.permute.xlu0 %9502
        %9504 = vrot.lane.b32.xlu0 %v9499, 64
        %v9505 = vpop.permute.xlu0 %9504
        %vm9506 = vcmask 523264
        %v9507 = vsel %vm9506, %v9501, %v9503
        %v9508 = vsel %vm9506, %v9503, %v9505
        %v9512 = vrot.slane %v9458, 1
        %v9513 = vrot.slane %v9459, 1
        %v9514 = vrot.slane %v9460, 1
        %v9516 = vshrl.u32 %v9467, 16
        %v9518 = vrot.slane %v9516, 1
        %v9519 = vshll.u32 %v9467, 16
        %v9521 = vrot.slane %v9519, 2
        %v9522 = vor.u32 %v9518, %v9521
        %v9524 = vshrl.u32 %v9468, 16
        %v9526 = vrot.slane %v9524, 1
        %v9527 = vshll.u32 %v9468, 16
        %v9529 = vrot.slane %v9527, 2
        %v9530 = vor.u32 %v9526, %v9529
        %v9532 = vshrl.u32 %v9469, 16
        %v9534 = vrot.slane %v9532, 1
        %v9535 = vshll.u32 %v9469, 16
        %v9537 = vrot.slane %v9535, 2
        %v9538 = vor.u32 %v9534, %v9537
        %9539 = vrot.lane.b32.xlu0 %v9522, 64
        %v9540 = vpop.permute.xlu0 %9539
        %9541 = vrot.lane.b32.xlu0 %v9530, 64
        %v9542 = vpop.permute.xlu0 %9541
        %9543 = vrot.lane.b32.xlu0 %v9538, 64
        %v9544 = vpop.permute.xlu0 %9543
        %v9545 = vsel %vm9506, %v9540, %v9542
        %v9546 = vsel %vm9506, %v9542, %v9544
        %v9550 = vrot.slane %v9476, 2
        %v9551 = vrot.slane %v9477, 2
        %v9552 = vrot.slane %v9478, 2
        %vm9553 = vcmask 523264
        %v9556 = vsel %vm9553, %v9442, %v9501
        %v9559 = vsel %vm9553, %v9514, %v9540
        %9563 = vrot.lane.b32.xlu0 %v9440, 64
        %v9564 = vpop.permute.xlu0 %9563
        %9565 = vrot.lane.b32.xlu0 %v9441, 64
        %v9566 = vpop.permute.xlu0 %9565
        %9567 = vrot.lane.b32.xlu0 %v9442, 64
        %v9568 = vpop.permute.xlu0 %9567
        %v9569 = vsel %vm9506, %v9564, %v9566
        %v9570 = vsel %vm9506, %v9566, %v9568
        %9571 = vrot.lane.b32.xlu0 %v9512, 64
        %v9572 = vpop.permute.xlu0 %9571
        %9573 = vrot.lane.b32.xlu0 %v9513, 64
        %v9574 = vpop.permute.xlu0 %9573
        %9575 = vrot.lane.b32.xlu0 %v9514, 64
        %v9576 = vpop.permute.xlu0 %9575
        %v9577 = vsel %vm9506, %v9572, %v9574
        %v9578 = vsel %vm9506, %v9574, %v9576
        %9579 = vrot.lane.b32.xlu0 %v9550, 64
        %v9580 = vpop.permute.xlu0 %9579
        %9581 = vrot.lane.b32.xlu0 %v9551, 64
        %v9582 = vpop.permute.xlu0 %9581
        %9583 = vrot.lane.b32.xlu0 %v9552, 64
        %v9584 = vpop.permute.xlu0 %9583
        %v9585 = vsel %vm9506, %v9580, %v9582
        %v9586 = vsel %vm9506, %v9582, %v9584
        %v9589 = vsel %vm9553, %v9568, %v9485
        %v9592 = vsel %vm9553, %v9576, %v9522
        %v9593 = vld [vmem:[#allocation3 + $0x18] sm:$0xff]
        %v9594 = vpack.c.bf16 %v9593, %v9593
        %v9595 = vld [vmem:[#allocation3 + $0x18] sm:$0xfe]
        %v9596 = vld [vmem:[#allocation3 + $0x48] sm:$0x1]
        %v9597 = vpack.c.bf16 %v9596, %v9595
        %v9598 = vld [vmem:[#allocation3 + $0x18] sm:$0xfc]
        %v9599 = vld [vmem:[#allocation3 + $0x48] sm:$0x3]
        %v9600 = vpack.c.bf16 %v9599, %v9598
        %v9601 = vld [vmem:[#allocation3 + $0x18] sm:$0xf8]
        %v9602 = vld [vmem:[#allocation3 + $0x48] sm:$0x7]
        %v9603 = vpack.c.bf16 %v9602, %v9601
        %v9604 = vld [vmem:[#allocation3 + $0x18] sm:$0xf0]
        %v9605 = vld [vmem:[#allocation3 + $0x48] sm:$0xf]
        %v9606 = vpack.c.bf16 %v9605, %v9604
        %v9608 = vshrl.u32 %v9597, 16
        %v9610 = vshll.u32 %v9597, 16
        %v9612 = vrot.slane %v9610, 1
        %v9613 = vor.u32 %v9608, %v9612
        %9614 = vrot.lane.b32.xlu0 %v9613, 64
        %v9615 = vpop.permute.xlu0 %9614
        %v9616 = vsel %vm9506, %v9505, %v9615
        %v9618 = vrot.slane %v9600, 1
        %v9620 = vshrl.u32 %v9603, 16
        %v9622 = vrot.slane %v9620, 1
        %v9623 = vshll.u32 %v9603, 16
        %v9625 = vrot.slane %v9623, 2
        %v9626 = vor.u32 %v9622, %v9625
        %9627 = vrot.lane.b32.xlu0 %v9626, 64
        %v9628 = vpop.permute.xlu0 %9627
        %v9629 = vsel %vm9506, %v9544, %v9628
        %v9631 = vrot.slane %v9606, 2
        %v9634 = vsel %vm9553, %v9594, %v9503
        %v9637 = vsel %vm9553, %v9618, %v9542
        %9639 = vrot.lane.b32.xlu0 %v9594, 64
        %v9640 = vpop.permute.xlu0 %9639
        %v9641 = vsel %vm9506, %v9568, %v9640
        %9642 = vrot.lane.b32.xlu0 %v9618, 64
        %v9643 = vpop.permute.xlu0 %9642
        %v9644 = vsel %vm9506, %v9576, %v9643
        %9645 = vrot.lane.b32.xlu0 %v9631, 64
        %v9646 = vpop.permute.xlu0 %9645
        %v9647 = vsel %vm9506, %v9584, %v9646
        %v9650 = vsel %vm9553, %v9640, %v9492
        %v9653 = vsel %vm9553, %v9643, %v9530
        %v9654 = vld [vmem:[#allocation3 + $0x20] sm:$0xff]
        %v9655 = vpack.c.bf16 %v9654, %v9654
        %v9656 = vld [vmem:[#allocation3 + $0x20] sm:$0xfe]
        %v9657 = vld [vmem:[#allocation3 + $0x50] sm:$0x1]
        %v9658 = vpack.c.bf16 %v9657, %v9656
        %v9659 = vld [vmem:[#allocation3 + $0x20] sm:$0xfc]
        %v9660 = vld [vmem:[#allocation3 + $0x50] sm:$0x3]
        %v9661 = vpack.c.bf16 %v9660, %v9659
        %v9662 = vld [vmem:[#allocation3 + $0x20] sm:$0xf8]
        %v9663 = vld [vmem:[#allocation3 + $0x50] sm:$0x7]
        %v9664 = vpack.c.bf16 %v9663, %v9662
        %v9665 = vld [vmem:[#allocation3 + $0x20] sm:$0xf0]
        %v9666 = vld [vmem:[#allocation3 + $0x50] sm:$0xf]
        %v9667 = vpack.c.bf16 %v9666, %v9665
        %v9669 = vshrl.u32 %v9658, 16
        %v9671 = vshll.u32 %v9658, 16
        %v9673 = vrot.slane %v9671, 1
        %v9674 = vor.u32 %v9669, %v9673
        %9675 = vrot.lane.b32.xlu0 %v9674, 64
        %v9676 = vpop.permute.xlu0 %9675
        %v9677 = vsel %vm9506, %v9615, %v9676
        %v9679 = vrot.slane %v9661, 1
        %v9681 = vshrl.u32 %v9664, 16
        %v9683 = vrot.slane %v9681, 1
        %v9684 = vshll.u32 %v9664, 16
        %v9686 = vrot.slane %v9684, 2
        %v9687 = vor.u32 %v9683, %v9686
        %9688 = vrot.lane.b32.xlu0 %v9687, 64
        %v9689 = vpop.permute.xlu0 %9688
        %v9690 = vsel %vm9506, %v9628, %v9689
        %v9692 = vrot.slane %v9667, 2
        %v9695 = vsel %vm9553, %v9655, %v9505
        %v9698 = vsel %vm9553, %v9679, %v9544
        %9700 = vrot.lane.b32.xlu0 %v9655, 64
        %v9701 = vpop.permute.xlu0 %9700
        %v9702 = vsel %vm9506, %v9640, %v9701
        %9703 = vrot.lane.b32.xlu0 %v9679, 64
        %v9704 = vpop.permute.xlu0 %9703
        %v9705 = vsel %vm9506, %v9643, %v9704
        %9706 = vrot.lane.b32.xlu0 %v9692, 64
        %v9707 = vpop.permute.xlu0 %9706
        %v9708 = vsel %vm9506, %v9646, %v9707
        %v9711 = vsel %vm9553, %v9701, %v9499
        %v9714 = vsel %vm9553, %v9704, %v9538
        %v9715 = vld [vmem:[#allocation3 + $0x28] sm:$0xff]
        %v9716 = vpack.c.bf16 %v9715, %v9715
        %v9717 = vld [vmem:[#allocation3 + $0x28] sm:$0xfe]
        %v9718 = vld [vmem:[#allocation3 + $0x58] sm:$0x1]
        %v9719 = vpack.c.bf16 %v9718, %v9717
        %v9720 = vld [vmem:[#allocation3 + $0x28] sm:$0xfc]
        %v9721 = vld [vmem:[#allocation3 + $0x58] sm:$0x3]
        %v9722 = vpack.c.bf16 %v9721, %v9720
        %v9723 = vld [vmem:[#allocation3 + $0x28] sm:$0xf8]
        %v9724 = vld [vmem:[#allocation3 + $0x58] sm:$0x7]
        %v9725 = vpack.c.bf16 %v9724, %v9723
        %v9726 = vld [vmem:[#allocation3 + $0x28] sm:$0xf0]
        %v9727 = vld [vmem:[#allocation3 + $0x58] sm:$0xf]
        %v9728 = vpack.c.bf16 %v9727, %v9726
        %v9730 = vshrl.u32 %v9719, 16
        %v9732 = vshll.u32 %v9719, 16
        %v9734 = vrot.slane %v9732, 1
        %v9735 = vor.u32 %v9730, %v9734
        %9736 = vrot.lane.b32.xlu0 %v9735, 64
        %v9737 = vpop.permute.xlu0 %9736
        %v9738 = vsel %vm9506, %v9676, %v9737
        %v9740 = vrot.slane %v9722, 1
        %v9742 = vshrl.u32 %v9725, 16
        %v9744 = vrot.slane %v9742, 1
        %v9745 = vshll.u32 %v9725, 16
        %v9747 = vrot.slane %v9745, 2
        %v9748 = vor.u32 %v9744, %v9747
        %9749 = vrot.lane.b32.xlu0 %v9748, 64
        %v9750 = vpop.permute.xlu0 %9749
        %v9751 = vsel %vm9506, %v9689, %v9750
        %v9753 = vrot.slane %v9728, 2
        %v9756 = vsel %vm9553, %v9716, %v9615
        %v9759 = vsel %vm9553, %v9740, %v9628
        %9761 = vrot.lane.b32.xlu0 %v9716, 64
        %v9762 = vpop.permute.xlu0 %9761
        %v9763 = vsel %vm9506, %v9701, %v9762
        %9764 = vrot.lane.b32.xlu0 %v9740, 64
        %v9765 = vpop.permute.xlu0 %9764
        %v9766 = vsel %vm9506, %v9704, %v9765
        %9767 = vrot.lane.b32.xlu0 %v9753, 64
        %v9768 = vpop.permute.xlu0 %9767
        %v9769 = vsel %vm9506, %v9707, %v9768
        %v9772 = vsel %vm9553, %v9762, %v9613
        %v9775 = vsel %vm9553, %v9765, %v9626
        %v9778 = vrot.slane %v9569, 4
        %v9779 = vrot.slane %v9570, 4
        %v9780 = vrot.slane %v9589, 4
        %v9781 = vrot.slane %v9492, 4
        %v9782 = vrot.slane %v9499, 4
        %v9783 = vrot.slane %v9577, 4
        %v9784 = vrot.slane %v9578, 4
        %v9785 = vrot.slane %v9592, 4
        %v9786 = vrot.slane %v9530, 4
        %v9787 = vrot.slane %v9538, 4
        %v9788 = vrot.slane %v9585, 4
        %v9789 = vrot.slane %v9586, 4
        %v9790 = vrot.slane %v9584, 4
        %v9793 = vrot.slane %v9641, 4
        %v9794 = vrot.slane %v9650, 4
        %v9795 = vrot.slane %v9613, 4
        %v9796 = vrot.slane %v9644, 4
        %v9797 = vrot.slane %v9653, 4
        %v9798 = vrot.slane %v9626, 4
        %v9799 = vrot.slane %v9647, 4
        %v9800 = vrot.slane %v9646, 4
        %v9803 = vrot.slane %v9702, 4
        %v9804 = vrot.slane %v9711, 4
        %v9805 = vrot.slane %v9674, 4
        %v9806 = vrot.slane %v9705, 4
        %v9807 = vrot.slane %v9714, 4
        %v9808 = vrot.slane %v9687, 4
        %v9809 = vrot.slane %v9708, 4
        %v9810 = vrot.slane %v9707, 4
        %v9813 = vrot.slane %v9763, 4
        %v9814 = vrot.slane %v9772, 4
        %v9815 = vrot.slane %v9735, 4
        %v9816 = vrot.slane %v9766, 4
        %v9817 = vrot.slane %v9775, 4
        %v9818 = vrot.slane %v9748, 4
        %v9819 = vrot.slane %v9769, 4
        %v9820 = vrot.slane %v9768, 4
        %vm9821 = vcmask 1043456
        %v9824 = vsel %vm9821, %v9440, %v9778
        %v9828 = vsel %vm9821, %v9441, %v9779
        %v9831 = vsel %vm9821, %v9556, %v9780
        %v9835 = vsel %vm9821, %v9507, %v9781
        %v9839 = vsel %vm9821, %v9508, %v9782
        %v9843 = vsel %vm9821, %v9512, %v9783
        %v9847 = vsel %vm9821, %v9513, %v9784
        %v9850 = vsel %vm9821, %v9559, %v9785
        %v9854 = vsel %vm9821, %v9545, %v9786
        %v9858 = vsel %vm9821, %v9546, %v9787
        %v9862 = vsel %vm9821, %v9550, %v9788
        %v9866 = vsel %vm9821, %v9551, %v9789
        %v9870 = vsel %vm9821, %v9552, %v9790
        %v9872 = vsel %vm9821, %v9442, %v9793
        %v9875 = vsel %vm9821, %v9634, %v9794
        %v9879 = vsel %vm9821, %v9616, %v9795
        %v9882 = vsel %vm9821, %v9514, %v9796
        %v9885 = vsel %vm9821, %v9637, %v9797
        %v9889 = vsel %vm9821, %v9629, %v9798
        %v9892 = vsel %vm9821, %v9552, %v9799
        %v9896 = vsel %vm9821, %v9631, %v9800
        %v9898 = vsel %vm9821, %v9594, %v9803
        %v9901 = vsel %vm9821, %v9695, %v9804
        %v9905 = vsel %vm9821, %v9677, %v9805
        %v9908 = vsel %vm9821, %v9618, %v9806
        %v9911 = vsel %vm9821, %v9698, %v9807
        %v9915 = vsel %vm9821, %v9690, %v9808
        %v9918 = vsel %vm9821, %v9631, %v9809
        %v9922 = vsel %vm9821, %v9692, %v9810
        %v9924 = vsel %vm9821, %v9655, %v9813
        %v9927 = vsel %vm9821, %v9756, %v9814
        %v9931 = vsel %vm9821, %v9738, %v9815
        %v9934 = vsel %vm9821, %v9679, %v9816
        %v9937 = vsel %vm9821, %v9759, %v9817
        %v9941 = vsel %vm9821, %v9751, %v9818
        %v9944 = vsel %vm9821, %v9692, %v9819
        %v9948 = vsel %vm9821, %v9753, %v9820
        %v9949 = vld [vmem:[#allocation10] sm:$0xff]
        %v9950 = vld [vmem:[#allocation10 + $0x8] sm:$0xff]
        %v9951 = vld [vmem:[#allocation10 + $0x10] sm:$0xff]
        %v9952 = vld [vmem:[#allocation10 + $0x18] sm:$0xff]
        %v9953 = vld [vmem:[#allocation10 + $0x20] sm:$0xff]
        %v9954 = vld [vmem:[#allocation10 + $0x28] sm:$0xff]
        %v9955 = vld [vmem:[#allocation10 + $0x30] sm:$0xff]
        %v9956 = vld [vmem:[#allocation10 + $0x38] sm:$0xff]
        %v9957 = vld [vmem:[#allocation10 + $0x40] sm:$0xff]
        %v9958 = vld [vmem:[#allocation10 + $0x48] sm:$0xff]
        %v9959 = vld [vmem:[#allocation10 + $0x50] sm:$0xff]
        %v9960 = vld [vmem:[#allocation10 + $0x58] sm:$0xff]
        %v9961 = vld [vmem:[#allocation10 + $0x60] sm:$0xff]
        %v9962 = vld [vmem:[#allocation10 + $0x68] sm:$0xff]
        %v9963 = vld [vmem:[#allocation10 + $0x70] sm:$0xff]
        %v9964 = vld [vmem:[#allocation10 + $0x78] sm:$0xff]
        %v9965 = vld [vmem:[#allocation10 + $0x80] sm:$0xff]
        %v9966 = vld [vmem:[#allocation10 + $0x88] sm:$0xff]
        %v9967 = vld [vmem:[#allocation10 + $0x90] sm:$0xff]
        %v9968 = vld [vmem:[#allocation10 + $0x98] sm:$0xff]
        %v9969 = vld [vmem:[#allocation10 + $0xa0] sm:$0xff]
        %v9970 = vld [vmem:[#allocation10 + $0xa8] sm:$0xff]
        %v9971 = vld [vmem:[#allocation10 + $0xb0] sm:$0xff]
        %v9972 = vld [vmem:[#allocation10 + $0xb8] sm:$0xff]
        %v9973 = vld [vmem:[#allocation10 + $0xc0] sm:$0xff]
        %v9974 = vld [vmem:[#allocation10 + $0xc8] sm:$0xff]
        %v9975 = vld [vmem:[#allocation10 + $0xd0] sm:$0xff]
        %v9976 = vld [vmem:[#allocation10 + $0xd8] sm:$0xff]
        %v9977 = vld [vmem:[#allocation10 + $0xe0] sm:$0xff]
        %v9978 = vld [vmem:[#allocation10 + $0xe8] sm:$0xff]
        %v9979 = vld [vmem:[#allocation10 + $0xf0] sm:$0xff]
        %v9980 = vld [vmem:[#allocation10 + $0xf8] sm:$0xff]
        %v9981 = vld [vmem:[#allocation10 + $0x100] sm:$0xff]
        %v9982 = vld [vmem:[#allocation10 + $0x108] sm:$0xff]
        %v9983 = vld [vmem:[#allocation10 + $0x110] sm:$0xff]
        %v9984 = vld [vmem:[#allocation10 + $0x118] sm:$0xff]
        %v9985 = vld [vmem:[#allocation10 + $0x120] sm:$0xff]
        %v9986 = vld [vmem:[#allocation10 + $0x128] sm:$0xff]
        %v9987 = vld [vmem:[#allocation10 + $0x130] sm:$0xff]
        %v9988 = vld [vmem:[#allocation10 + $0x138] sm:$0xff]
        %v9989 = vld [vmem:[#allocation10 + $0x140] sm:$0xff]
        %v9990 = vld [vmem:[#allocation10 + $0x148] sm:$0xff]
        %v9991 = vld [vmem:[#allocation10 + $0x150] sm:$0xff]
        %v9992 = vld [vmem:[#allocation10 + $0x158] sm:$0xff]
        %v9993 = vld [vmem:[#allocation10 + $0x160] sm:$0xff]
        %v9994 = vld [vmem:[#allocation10 + $0x168] sm:$0xff]
        %v9995 = vld [vmem:[#allocation10 + $0x170] sm:$0xff]
        %v9996 = vld [vmem:[#allocation10 + $0x178] sm:$0xff]
        %v9997 = vld [vmem:[#allocation10 + $0x180] sm:$0xff]
        %v9998 = vld [vmem:[#allocation10 + $0x188] sm:$0xff]
        %v9999 = vld [vmem:[#allocation10 + $0x190] sm:$0xff]
        %v10000 = vld [vmem:[#allocation10 + $0x198] sm:$0xff]
        %v10001 = vld [vmem:[#allocation10 + $0x1a0] sm:$0xff]
        %v10002 = vld [vmem:[#allocation10 + $0x1a8] sm:$0xff]
        %v10003 = vld [vmem:[#allocation10 + $0x1b0] sm:$0xff]
        %v10004 = vld [vmem:[#allocation10 + $0x1b8] sm:$0xff]
        %v10005 = vld [vmem:[#allocation10 + $0x1c0] sm:$0xff]
        %v10006 = vld [vmem:[#allocation10 + $0x1c8] sm:$0xff]
        %v10007 = vld [vmem:[#allocation10 + $0x1d0] sm:$0xff]
        %v10008 = vld [vmem:[#allocation10 + $0x1d8] sm:$0xff]
        %v10009 = vld [vmem:[#allocation10 + $0x1e0] sm:$0xff]
        %v10010 = vld [vmem:[#allocation10 + $0x1e8] sm:$0xff]
        %v10011 = vld [vmem:[#allocation10 + $0x1f0] sm:$0xff]
        %v10012 = vld [vmem:[#allocation10 + $0x1f8] sm:$0xff]
        %v10013 = vld [vmem:[#allocation10 + $0x200] sm:$0xff]
        %v10014 = vld [vmem:[#allocation10 + $0x208] sm:$0xff]
        %v10015 = vld [vmem:[#allocation10 + $0x210] sm:$0xff]
        %v10016 = vld [vmem:[#allocation10 + $0x218] sm:$0xff]
        %v10017 = vld [vmem:[#allocation10 + $0x220] sm:$0xff]
        %v10018 = vld [vmem:[#allocation10 + $0x228] sm:$0xff]
        %v10019 = vld [vmem:[#allocation10 + $0x230] sm:$0xff]
        %v10020 = vld [vmem:[#allocation10 + $0x238] sm:$0xff]
        %v10021 = vld [vmem:[#allocation10 + $0x240] sm:$0xff]
        %v10022 = vld [vmem:[#allocation10 + $0x248] sm:$0xff]
        %v10023 = vld [vmem:[#allocation10 + $0x250] sm:$0xff]
        %v10024 = vld [vmem:[#allocation10 + $0x258] sm:$0xff]
        %v10025 = vld [vmem:[#allocation10 + $0x260] sm:$0xff]
        %v10026 = vld [vmem:[#allocation10 + $0x268] sm:$0xff]
        %v10027 = vld [vmem:[#allocation10 + $0x270] sm:$0xff]
        %v10028 = vld [vmem:[#allocation10 + $0x278] sm:$0xff]
        %v10029 = vld [vmem:[#allocation10 + $0x280] sm:$0xff]
        %v10030 = vld [vmem:[#allocation10 + $0x288] sm:$0xff]
        %v10031 = vld [vmem:[#allocation10 + $0x290] sm:$0xff]
        %v10032 = vld [vmem:[#allocation10 + $0x298] sm:$0xff]
        %v10033 = vld [vmem:[#allocation10 + $0x2a0] sm:$0xff]
        %v10034 = vld [vmem:[#allocation10 + $0x2a8] sm:$0xff]
        %v10035 = vld [vmem:[#allocation10 + $0x2b0] sm:$0xff]
        %v10036 = vld [vmem:[#allocation10 + $0x2b8] sm:$0xff]
        %v10037 = vld [vmem:[#allocation10 + $0x2c0] sm:$0xff]
        %v10038 = vld [vmem:[#allocation10 + $0x2c8] sm:$0xff]
        %v10039 = vld [vmem:[#allocation10 + $0x2d0] sm:$0xff]
        %v10040 = vld [vmem:[#allocation10 + $0x2d8] sm:$0xff]
        %v10041 = vld [vmem:[#allocation10 + $0x2e0] sm:$0xff]
        %v10042 = vld [vmem:[#allocation10 + $0x2e8] sm:$0xff]
        %v10043 = vld [vmem:[#allocation10 + $0x2f0] sm:$0xff]
        %v10044 = vld [vmem:[#allocation10 + $0x2f8] sm:$0xff]
        %v10045 = vld [vmem:[#allocation10 + $0x300] sm:$0xff]
        %v10046 = vld [vmem:[#allocation10 + $0x308] sm:$0xff]
        %v10047 = vld [vmem:[#allocation10 + $0x310] sm:$0xff]
        %v10048 = vld [vmem:[#allocation10 + $0x318] sm:$0xff]
        %v10049 = vld [vmem:[#allocation10 + $0x320] sm:$0xff]
        %v10050 = vld [vmem:[#allocation10 + $0x328] sm:$0xff]
        %v10051 = vld [vmem:[#allocation10 + $0x330] sm:$0xff]
        %v10052 = vld [vmem:[#allocation10 + $0x338] sm:$0xff]
        %v10053 = vld [vmem:[#allocation10 + $0x340] sm:$0xff]
        %v10054 = vld [vmem:[#allocation10 + $0x348] sm:$0xff]
        %v10055 = vld [vmem:[#allocation10 + $0x350] sm:$0xff]
        %v10056 = vld [vmem:[#allocation10 + $0x358] sm:$0xff]
        %v10057 = vld [vmem:[#allocation10 + $0x360] sm:$0xff]
        %v10058 = vld [vmem:[#allocation10 + $0x368] sm:$0xff]
        %v10059 = vld [vmem:[#allocation10 + $0x370] sm:$0xff]
        %v10060 = vld [vmem:[#allocation10 + $0x378] sm:$0xff]
        %v10061 = vld [vmem:[#allocation10 + $0x380] sm:$0xff]
        %v10062 = vld [vmem:[#allocation10 + $0x388] sm:$0xff]
        %v10063 = vld [vmem:[#allocation10 + $0x390] sm:$0xff]
        %v10064 = vld [vmem:[#allocation10 + $0x398] sm:$0xff]
        %v10065 = vld [vmem:[#allocation10 + $0x3a0] sm:$0xff]
        %v10066 = vld [vmem:[#allocation10 + $0x3a8] sm:$0xff]
        %v10067 = vld [vmem:[#allocation10 + $0x3b0] sm:$0xff]
        %v10068 = vld [vmem:[#allocation10 + $0x3b8] sm:$0xff]
        %v10069 = vld [vmem:[#allocation10 + $0x3c0] sm:$0xff]
        %v10070 = vld [vmem:[#allocation10 + $0x3c8] sm:$0xff]
        %v10071 = vld [vmem:[#allocation10 + $0x3d0] sm:$0xff]
        %v10072 = vld [vmem:[#allocation10 + $0x3d8] sm:$0xff]
        %v10073 = vld [vmem:[#allocation10 + $0x3e0] sm:$0xff]
        %v10074 = vld [vmem:[#allocation10 + $0x3e8] sm:$0xff]
        %v10075 = vld [vmem:[#allocation10 + $0x3f0] sm:$0xff]
        %v10076 = vld [vmem:[#allocation10 + $0x3f8] sm:$0xff]
        %v10077 = vld [vmem:[#allocation10 + $0x400] sm:$0xff]
        %v10078 = vld [vmem:[#allocation10 + $0x408] sm:$0xff]
        %v10079 = vld [vmem:[#allocation10 + $0x410] sm:$0xff]
        %v10080 = vld [vmem:[#allocation10 + $0x418] sm:$0xff]
        %v10081 = vld [vmem:[#allocation10 + $0x420] sm:$0xff]
        %v10082 = vld [vmem:[#allocation10 + $0x428] sm:$0xff]
        %v10083 = vld [vmem:[#allocation10 + $0x430] sm:$0xff]
        %v10084 = vld [vmem:[#allocation10 + $0x438] sm:$0xff]
        %v10085 = vld [vmem:[#allocation10 + $0x440] sm:$0xff]
        %v10086 = vld [vmem:[#allocation10 + $0x448] sm:$0xff]
        %v10087 = vld [vmem:[#allocation10 + $0x450] sm:$0xff]
        %v10088 = vld [vmem:[#allocation10 + $0x458] sm:$0xff]
        %v10089 = vld [vmem:[#allocation10 + $0x460] sm:$0xff]
        %v10090 = vld [vmem:[#allocation10 + $0x468] sm:$0xff]
        %v10091 = vld [vmem:[#allocation10 + $0x470] sm:$0xff]
        %v10092 = vld [vmem:[#allocation10 + $0x478] sm:$0xff]
        %v10093 = vld [vmem:[#allocation10 + $0x480] sm:$0xff]
        %v10094 = vld [vmem:[#allocation10 + $0x488] sm:$0xff]
        %v10095 = vld [vmem:[#allocation10 + $0x490] sm:$0xff]
        %v10096 = vld [vmem:[#allocation10 + $0x498] sm:$0xff]
        %v10097 = vld [vmem:[#allocation10 + $0x4a0] sm:$0xff]
        %v10098 = vld [vmem:[#allocation10 + $0x4a8] sm:$0xff]
        %v10099 = vld [vmem:[#allocation10 + $0x4b0] sm:$0xff]
        %v10100 = vld [vmem:[#allocation10 + $0x4b8] sm:$0xff]
        %v10101 = vld [vmem:[#allocation10 + $0x4c0] sm:$0xff]
        %v10102 = vld [vmem:[#allocation10 + $0x4c8] sm:$0xff]
        %v10103 = vld [vmem:[#allocation10 + $0x4d0] sm:$0xff]
        %v10104 = vld [vmem:[#allocation10 + $0x4d8] sm:$0xff]
        %v10105 = vld [vmem:[#allocation10 + $0x4e0] sm:$0xff]
        %v10106 = vld [vmem:[#allocation10 + $0x4e8] sm:$0xff]
        %v10107 = vld [vmem:[#allocation10 + $0x4f0] sm:$0xff]
        %v10108 = vld [vmem:[#allocation10 + $0x4f8] sm:$0xff]
        %v10109 = vld [vmem:[#allocation10 + $0x500] sm:$0xff]
        %v10110 = vld [vmem:[#allocation10 + $0x508] sm:$0xff]
        %v10111 = vld [vmem:[#allocation10 + $0x510] sm:$0xff]
        %v10112 = vld [vmem:[#allocation10 + $0x518] sm:$0xff]
        %v10113 = vld [vmem:[#allocation10 + $0x520] sm:$0xff]
        %v10114 = vld [vmem:[#allocation10 + $0x528] sm:$0xff]
        %v10115 = vld [vmem:[#allocation10 + $0x530] sm:$0xff]
        %v10116 = vld [vmem:[#allocation10 + $0x538] sm:$0xff]
        %v10117 = vld [vmem:[#allocation10 + $0x540] sm:$0xff]
        %v10118 = vld [vmem:[#allocation10 + $0x548] sm:$0xff]
        %v10119 = vld [vmem:[#allocation10 + $0x550] sm:$0xff]
        %v10120 = vld [vmem:[#allocation10 + $0x558] sm:$0xff]
        %v10121 = vld [vmem:[#allocation10 + $0x560] sm:$0xff]
        %v10122 = vld [vmem:[#allocation10 + $0x568] sm:$0xff]
        %v10123 = vld [vmem:[#allocation10 + $0x570] sm:$0xff]
        %v10124 = vld [vmem:[#allocation10 + $0x578] sm:$0xff]
        %v10125 = vld [vmem:[#allocation10 + $0x580] sm:$0xff]
        %v10126 = vld [vmem:[#allocation10 + $0x588] sm:$0xff]
        %v10127 = vld [vmem:[#allocation10 + $0x590] sm:$0xff]
        %v10128 = vld [vmem:[#allocation10 + $0x598] sm:$0xff]
        %v10129 = vld [vmem:[#allocation10 + $0x5a0] sm:$0xff]
        %v10130 = vld [vmem:[#allocation10 + $0x5a8] sm:$0xff]
        %v10131 = vld [vmem:[#allocation10 + $0x5b0] sm:$0xff]
        %v10132 = vld [vmem:[#allocation10 + $0x5b8] sm:$0xff]
        %v10133 = vld [vmem:[#allocation10 + $0x5c0] sm:$0xff]
        %v10134 = vld [vmem:[#allocation10 + $0x5c8] sm:$0xff]
        %v10135 = vld [vmem:[#allocation10 + $0x5d0] sm:$0xff]
        %v10136 = vld [vmem:[#allocation10 + $0x5d8] sm:$0xff]
        %v10137 = vld [vmem:[#allocation10 + $0x5e0] sm:$0xff]
        %v10138 = vld [vmem:[#allocation10 + $0x5e8] sm:$0xff]
        %v10139 = vld [vmem:[#allocation10 + $0x5f0] sm:$0xff]
        %v10140 = vld [vmem:[#allocation10 + $0x5f8] sm:$0xff]
        %v10141 = vld [vmem:[#allocation10 + $0x600] sm:$0xff]
        %v10142 = vld [vmem:[#allocation10 + $0x608] sm:$0xff]
        %v10143 = vld [vmem:[#allocation10 + $0x610] sm:$0xff]
        %v10144 = vld [vmem:[#allocation10 + $0x618] sm:$0xff]
        %v10145 = vld [vmem:[#allocation10 + $0x620] sm:$0xff]
        %v10146 = vld [vmem:[#allocation10 + $0x628] sm:$0xff]
        %v10147 = vld [vmem:[#allocation10 + $0x630] sm:$0xff]
        %v10148 = vld [vmem:[#allocation10 + $0x638] sm:$0xff]
        %v10149 = vld [vmem:[#allocation12] sm:$0x3]
        %v10151 = vlaneseq
        %v10152 = vshrl.u32 %v10151, 7
        %v10153 = vsub.s32 0, %v10152
        %v10154 = vrot.slane %v10149, %v10153
        %v10155 = vlaneseq
        %v10156 = vshrl.u32 %v10155, 7
        %v10157 = vsub.s32 1, %v10156
        %v10158 = vrot.slane %v10149, %v10157
        %v10361 = vunpack.c.l.b16 %v9949
        %v10362 = vunpack.c.h.b16 %v9949
        %v10363 = vunpack.c.l.b16 %v9950
        %v10364 = vunpack.c.h.b16 %v9950
        %v10365 = vunpack.c.l.b16 %v9951
        %v10366 = vunpack.c.h.b16 %v9951
        %v10367 = vunpack.c.l.b16 %v9952
        %v10368 = vunpack.c.h.b16 %v9952
        %v10369 = vunpack.c.l.b16 %v9953
        %v10370 = vunpack.c.h.b16 %v9953
        %v10371 = vunpack.c.l.b16 %v9954
        %v10372 = vunpack.c.h.b16 %v9954
        %v10373 = vunpack.c.l.b16 %v9955
        %v10374 = vunpack.c.h.b16 %v9955
        %v10375 = vunpack.c.l.b16 %v9956
        %v10376 = vunpack.c.h.b16 %v9956
        %v10377 = vunpack.c.l.b16 %v9957
        %v10378 = vunpack.c.h.b16 %v9957
        %v10379 = vunpack.c.l.b16 %v9958
        %v10380 = vunpack.c.h.b16 %v9958
        %v10381 = vunpack.c.l.b16 %v9959
        %v10382 = vunpack.c.h.b16 %v9959
        %v10383 = vunpack.c.l.b16 %v9960
        %v10384 = vunpack.c.h.b16 %v9960
        %v10385 = vunpack.c.l.b16 %v9961
        %v10386 = vunpack.c.h.b16 %v9961
        %v10387 = vunpack.c.l.b16 %v9962
        %v10388 = vunpack.c.h.b16 %v9962
        %v10389 = vunpack.c.l.b16 %v9963
        %v10390 = vunpack.c.h.b16 %v9963
        %v10391 = vunpack.c.l.b16 %v9964
        %v10392 = vunpack.c.h.b16 %v9964
        %v10393 = vunpack.c.l.b16 %v9965
        %v10394 = vunpack.c.h.b16 %v9965
        %v10395 = vunpack.c.l.b16 %v9966
        %v10396 = vunpack.c.h.b16 %v9966
        %v10397 = vunpack.c.l.b16 %v9967
        %v10398 = vunpack.c.h.b16 %v9967
        %v10399 = vunpack.c.l.b16 %v9968
        %v10400 = vunpack.c.h.b16 %v9968
        %v10401 = vunpack.c.l.b16 %v9969
        %v10402 = vunpack.c.h.b16 %v9969
        %v10403 = vunpack.c.l.b16 %v9970
        %v10404 = vunpack.c.h.b16 %v9970
        %v10405 = vunpack.c.l.b16 %v9971
        %v10406 = vunpack.c.h.b16 %v9971
        %v10407 = vunpack.c.l.b16 %v9972
        %v10408 = vunpack.c.h.b16 %v9972
        %v10409 = vunpack.c.l.b16 %v9973
        %v10410 = vunpack.c.h.b16 %v9973
        %v10411 = vunpack.c.l.b16 %v9974
        %v10412 = vunpack.c.h.b16 %v9974
        %v10413 = vunpack.c.l.b16 %v9975
        %v10414 = vunpack.c.h.b16 %v9975
        %v10415 = vunpack.c.l.b16 %v9976
        %v10416 = vunpack.c.h.b16 %v9976
        %v10417 = vunpack.c.l.b16 %v9977
        %v10418 = vunpack.c.h.b16 %v9977
        %v10419 = vunpack.c.l.b16 %v9978
        %v10420 = vunpack.c.h.b16 %v9978
        %v10421 = vunpack.c.l.b16 %v9979
        %v10422 = vunpack.c.h.b16 %v9979
        %v10423 = vunpack.c.l.b16 %v9980
        %v10424 = vunpack.c.h.b16 %v9980
        %v10425 = vunpack.c.l.b16 %v9981
        %v10426 = vunpack.c.h.b16 %v9981
        %v10427 = vunpack.c.l.b16 %v9982
        %v10428 = vunpack.c.h.b16 %v9982
        %v10429 = vunpack.c.l.b16 %v9983
        %v10430 = vunpack.c.h.b16 %v9983
        %v10431 = vunpack.c.l.b16 %v9984
        %v10432 = vunpack.c.h.b16 %v9984
        %v10433 = vunpack.c.l.b16 %v9985
        %v10434 = vunpack.c.h.b16 %v9985
        %v10435 = vunpack.c.l.b16 %v9986
        %v10436 = vunpack.c.h.b16 %v9986
        %v10437 = vunpack.c.l.b16 %v9987
        %v10438 = vunpack.c.h.b16 %v9987
        %v10439 = vunpack.c.l.b16 %v9988
        %v10440 = vunpack.c.h.b16 %v9988
        %v10441 = vunpack.c.l.b16 %v9989
        %v10442 = vunpack.c.h.b16 %v9989
        %v10443 = vunpack.c.l.b16 %v9990
        %v10444 = vunpack.c.h.b16 %v9990
        %v10445 = vunpack.c.l.b16 %v9991
        %v10446 = vunpack.c.h.b16 %v9991
        %v10447 = vunpack.c.l.b16 %v9992
        %v10448 = vunpack.c.h.b16 %v9992
        %v10449 = vunpack.c.l.b16 %v9993
        %v10450 = vunpack.c.h.b16 %v9993
        %v10451 = vunpack.c.l.b16 %v9994
        %v10452 = vunpack.c.h.b16 %v9994
        %v10453 = vunpack.c.l.b16 %v9995
        %v10454 = vunpack.c.h.b16 %v9995
        %v10455 = vunpack.c.l.b16 %v9996
        %v10456 = vunpack.c.h.b16 %v9996
        %v10457 = vunpack.c.l.b16 %v9997
        %v10458 = vunpack.c.h.b16 %v9997
        %v10459 = vunpack.c.l.b16 %v9998
        %v10460 = vunpack.c.h.b16 %v9998
        %v10461 = vunpack.c.l.b16 %v9999
        %v10462 = vunpack.c.h.b16 %v9999
        %v10463 = vunpack.c.l.b16 %v10000
        %v10464 = vunpack.c.h.b16 %v10000
        %v10465 = vunpack.c.l.b16 %v10001
        %v10466 = vunpack.c.h.b16 %v10001
        %v10467 = vunpack.c.l.b16 %v10002
        %v10468 = vunpack.c.h.b16 %v10002
        %v10469 = vunpack.c.l.b16 %v10003
        %v10470 = vunpack.c.h.b16 %v10003
        %v10471 = vunpack.c.l.b16 %v10004
        %v10472 = vunpack.c.h.b16 %v10004
        %v10473 = vunpack.c.l.b16 %v10005
        %v10474 = vunpack.c.h.b16 %v10005
        %v10475 = vunpack.c.l.b16 %v10006
        %v10476 = vunpack.c.h.b16 %v10006
        %v10477 = vunpack.c.l.b16 %v10007
        %v10478 = vunpack.c.h.b16 %v10007
        %v10479 = vunpack.c.l.b16 %v10008
        %v10480 = vunpack.c.h.b16 %v10008
        %v10481 = vunpack.c.l.b16 %v10009
        %v10482 = vunpack.c.h.b16 %v10009
        %v10483 = vunpack.c.l.b16 %v10010
        %v10484 = vunpack.c.h.b16 %v10010
        %v10485 = vunpack.c.l.b16 %v10011
        %v10486 = vunpack.c.h.b16 %v10011
        %v10487 = vunpack.c.l.b16 %v10012
        %v10488 = vunpack.c.h.b16 %v10012
        %v10489 = vunpack.c.l.b16 %v10013
        %v10490 = vunpack.c.h.b16 %v10013
        %v10491 = vunpack.c.l.b16 %v10014
        %v10492 = vunpack.c.h.b16 %v10014
        %v10493 = vunpack.c.l.b16 %v10015
        %v10494 = vunpack.c.h.b16 %v10015
        %v10495 = vunpack.c.l.b16 %v10016
        %v10496 = vunpack.c.h.b16 %v10016
        %v10497 = vunpack.c.l.b16 %v10017
        %v10498 = vunpack.c.h.b16 %v10017
        %v10499 = vunpack.c.l.b16 %v10018
        %v10500 = vunpack.c.h.b16 %v10018
        %v10501 = vunpack.c.l.b16 %v10019
        %v10502 = vunpack.c.h.b16 %v10019
        %v10503 = vunpack.c.l.b16 %v10020
        %v10504 = vunpack.c.h.b16 %v10020
        %v10505 = vunpack.c.l.b16 %v10021
        %v10506 = vunpack.c.h.b16 %v10021
        %v10507 = vunpack.c.l.b16 %v10022
        %v10508 = vunpack.c.h.b16 %v10022
        %v10509 = vunpack.c.l.b16 %v10023
        %v10510 = vunpack.c.h.b16 %v10023
        %v10511 = vunpack.c.l.b16 %v10024
        %v10512 = vunpack.c.h.b16 %v10024
        %v10513 = vunpack.c.l.b16 %v10025
        %v10514 = vunpack.c.h.b16 %v10025
        %v10515 = vunpack.c.l.b16 %v10026
        %v10516 = vunpack.c.h.b16 %v10026
        %v10517 = vunpack.c.l.b16 %v10027
        %v10518 = vunpack.c.h.b16 %v10027
        %v10519 = vunpack.c.l.b16 %v10028
        %v10520 = vunpack.c.h.b16 %v10028
        %v10521 = vunpack.c.l.b16 %v10029
        %v10522 = vunpack.c.h.b16 %v10029
        %v10523 = vunpack.c.l.b16 %v10030
        %v10524 = vunpack.c.h.b16 %v10030
        %v10525 = vunpack.c.l.b16 %v10031
        %v10526 = vunpack.c.h.b16 %v10031
        %v10527 = vunpack.c.l.b16 %v10032
        %v10528 = vunpack.c.h.b16 %v10032
        %v10529 = vunpack.c.l.b16 %v10033
        %v10530 = vunpack.c.h.b16 %v10033
        %v10531 = vunpack.c.l.b16 %v10034
        %v10532 = vunpack.c.h.b16 %v10034
        %v10533 = vunpack.c.l.b16 %v10035
        %v10534 = vunpack.c.h.b16 %v10035
        %v10535 = vunpack.c.l.b16 %v10036
        %v10536 = vunpack.c.h.b16 %v10036
        %v10537 = vunpack.c.l.b16 %v10037
        %v10538 = vunpack.c.h.b16 %v10037
        %v10539 = vunpack.c.l.b16 %v10038
        %v10540 = vunpack.c.h.b16 %v10038
        %v10541 = vunpack.c.l.b16 %v10039
        %v10542 = vunpack.c.h.b16 %v10039
        %v10543 = vunpack.c.l.b16 %v10040
        %v10544 = vunpack.c.h.b16 %v10040
        %v10545 = vunpack.c.l.b16 %v10041
        %v10546 = vunpack.c.h.b16 %v10041
        %v10547 = vunpack.c.l.b16 %v10042
        %v10548 = vunpack.c.h.b16 %v10042
        %v10549 = vunpack.c.l.b16 %v10043
        %v10550 = vunpack.c.h.b16 %v10043
        %v10551 = vunpack.c.l.b16 %v10044
        %v10552 = vunpack.c.h.b16 %v10044
        %v10553 = vunpack.c.l.b16 %v10045
        %v10554 = vunpack.c.h.b16 %v10045
        %v10555 = vunpack.c.l.b16 %v10046
        %v10556 = vunpack.c.h.b16 %v10046
        %v10557 = vunpack.c.l.b16 %v10047
        %v10558 = vunpack.c.h.b16 %v10047
        %v10559 = vunpack.c.l.b16 %v10048
        %v10560 = vunpack.c.h.b16 %v10048
        %v10561 = vunpack.c.l.b16 %v10049
        %v10562 = vunpack.c.h.b16 %v10049
        %v10563 = vunpack.c.l.b16 %v10050
        %v10564 = vunpack.c.h.b16 %v10050
        %v10565 = vunpack.c.l.b16 %v10051
        %v10566 = vunpack.c.h.b16 %v10051
        %v10567 = vunpack.c.l.b16 %v10052
        %v10568 = vunpack.c.h.b16 %v10052
        %v10569 = vunpack.c.l.b16 %v10053
        %v10570 = vunpack.c.h.b16 %v10053
        %v10571 = vunpack.c.l.b16 %v10054
        %v10572 = vunpack.c.h.b16 %v10054
        %v10573 = vunpack.c.l.b16 %v10055
        %v10574 = vunpack.c.h.b16 %v10055
        %v10575 = vunpack.c.l.b16 %v10056
        %v10576 = vunpack.c.h.b16 %v10056
        %v10577 = vunpack.c.l.b16 %v10057
        %v10578 = vunpack.c.h.b16 %v10057
        %v10579 = vunpack.c.l.b16 %v10058
        %v10580 = vunpack.c.h.b16 %v10058
        %v10581 = vunpack.c.l.b16 %v10059
        %v10582 = vunpack.c.h.b16 %v10059
        %v10583 = vunpack.c.l.b16 %v10060
        %v10584 = vunpack.c.h.b16 %v10060
        %v10585 = vunpack.c.l.b16 %v10061
        %v10586 = vunpack.c.h.b16 %v10061
        %v10587 = vunpack.c.l.b16 %v10062
        %v10588 = vunpack.c.h.b16 %v10062
        %v10589 = vunpack.c.l.b16 %v10063
        %v10590 = vunpack.c.h.b16 %v10063
        %v10591 = vunpack.c.l.b16 %v10064
        %v10592 = vunpack.c.h.b16 %v10064
        %v10593 = vunpack.c.l.b16 %v10065
        %v10594 = vunpack.c.h.b16 %v10065
        %v10595 = vunpack.c.l.b16 %v10066
        %v10596 = vunpack.c.h.b16 %v10066
        %v10597 = vunpack.c.l.b16 %v10067
        %v10598 = vunpack.c.h.b16 %v10067
        %v10599 = vunpack.c.l.b16 %v10068
        %v10600 = vunpack.c.h.b16 %v10068
        %v10601 = vunpack.c.l.b16 %v10069
        %v10602 = vunpack.c.h.b16 %v10069
        %v10603 = vunpack.c.l.b16 %v10070
        %v10604 = vunpack.c.h.b16 %v10070
        %v10605 = vunpack.c.l.b16 %v10071
        %v10606 = vunpack.c.h.b16 %v10071
        %v10607 = vunpack.c.l.b16 %v10072
        %v10608 = vunpack.c.h.b16 %v10072
        %v10609 = vunpack.c.l.b16 %v10073
        %v10610 = vunpack.c.h.b16 %v10073
        %v10611 = vunpack.c.l.b16 %v10074
        %v10612 = vunpack.c.h.b16 %v10074
        %v10613 = vunpack.c.l.b16 %v10075
        %v10614 = vunpack.c.h.b16 %v10075
        %v10615 = vunpack.c.l.b16 %v10076
        %v10616 = vunpack.c.h.b16 %v10076
        %v10617 = vunpack.c.l.b16 %v10077
        %v10618 = vunpack.c.h.b16 %v10077
        %v10619 = vunpack.c.l.b16 %v10078
        %v10620 = vunpack.c.h.b16 %v10078
        %v10621 = vunpack.c.l.b16 %v10079
        %v10622 = vunpack.c.h.b16 %v10079
        %v10623 = vunpack.c.l.b16 %v10080
        %v10624 = vunpack.c.h.b16 %v10080
        %v10625 = vunpack.c.l.b16 %v10081
        %v10626 = vunpack.c.h.b16 %v10081
        %v10627 = vunpack.c.l.b16 %v10082
        %v10628 = vunpack.c.h.b16 %v10082
        %v10629 = vunpack.c.l.b16 %v10083
        %v10630 = vunpack.c.h.b16 %v10083
        %v10631 = vunpack.c.l.b16 %v10084
        %v10632 = vunpack.c.h.b16 %v10084
        %v10633 = vunpack.c.l.b16 %v10085
        %v10634 = vunpack.c.h.b16 %v10085
        %v10635 = vunpack.c.l.b16 %v10086
        %v10636 = vunpack.c.h.b16 %v10086
        %v10637 = vunpack.c.l.b16 %v10087
        %v10638 = vunpack.c.h.b16 %v10087
        %v10639 = vunpack.c.l.b16 %v10088
        %v10640 = vunpack.c.h.b16 %v10088
        %v10641 = vunpack.c.l.b16 %v10089
        %v10642 = vunpack.c.h.b16 %v10089
        %v10643 = vunpack.c.l.b16 %v10090
        %v10644 = vunpack.c.h.b16 %v10090
        %v10645 = vunpack.c.l.b16 %v10091
        %v10646 = vunpack.c.h.b16 %v10091
        %v10647 = vunpack.c.l.b16 %v10092
        %v10648 = vunpack.c.h.b16 %v10092
        %v10649 = vunpack.c.l.b16 %v10093
        %v10650 = vunpack.c.h.b16 %v10093
        %v10651 = vunpack.c.l.b16 %v10094
        %v10652 = vunpack.c.h.b16 %v10094
        %v10653 = vunpack.c.l.b16 %v10095
        %v10654 = vunpack.c.h.b16 %v10095
        %v10655 = vunpack.c.l.b16 %v10096
        %v10656 = vunpack.c.h.b16 %v10096
        %v10657 = vunpack.c.l.b16 %v10097
        %v10658 = vunpack.c.h.b16 %v10097
        %v10659 = vunpack.c.l.b16 %v10098
        %v10660 = vunpack.c.h.b16 %v10098
        %v10661 = vunpack.c.l.b16 %v10099
        %v10662 = vunpack.c.h.b16 %v10099
        %v10663 = vunpack.c.l.b16 %v10100
        %v10664 = vunpack.c.h.b16 %v10100
        %v10665 = vunpack.c.l.b16 %v10101
        %v10666 = vunpack.c.h.b16 %v10101
        %v10667 = vunpack.c.l.b16 %v10102
        %v10668 = vunpack.c.h.b16 %v10102
        %v10669 = vunpack.c.l.b16 %v10103
        %v10670 = vunpack.c.h.b16 %v10103
        %v10671 = vunpack.c.l.b16 %v10104
        %v10672 = vunpack.c.h.b16 %v10104
        %v10673 = vunpack.c.l.b16 %v10105
        %v10674 = vunpack.c.h.b16 %v10105
        %v10675 = vunpack.c.l.b16 %v10106
        %v10676 = vunpack.c.h.b16 %v10106
        %v10677 = vunpack.c.l.b16 %v10107
        %v10678 = vunpack.c.h.b16 %v10107
        %v10679 = vunpack.c.l.b16 %v10108
        %v10680 = vunpack.c.h.b16 %v10108
        %v10681 = vunpack.c.l.b16 %v10109
        %v10682 = vunpack.c.h.b16 %v10109
        %v10683 = vunpack.c.l.b16 %v10110
        %v10684 = vunpack.c.h.b16 %v10110
        %v10685 = vunpack.c.l.b16 %v10111
        %v10686 = vunpack.c.h.b16 %v10111
        %v10687 = vunpack.c.l.b16 %v10112
        %v10688 = vunpack.c.h.b16 %v10112
        %v10689 = vunpack.c.l.b16 %v10113
        %v10690 = vunpack.c.h.b16 %v10113
        %v10691 = vunpack.c.l.b16 %v10114
        %v10692 = vunpack.c.h.b16 %v10114
        %v10693 = vunpack.c.l.b16 %v10115
        %v10694 = vunpack.c.h.b16 %v10115
        %v10695 = vunpack.c.l.b16 %v10116
        %v10696 = vunpack.c.h.b16 %v10116
        %v10697 = vunpack.c.l.b16 %v10117
        %v10698 = vunpack.c.h.b16 %v10117
        %v10699 = vunpack.c.l.b16 %v10118
        %v10700 = vunpack.c.h.b16 %v10118
        %v10701 = vunpack.c.l.b16 %v10119
        %v10702 = vunpack.c.h.b16 %v10119
        %v10703 = vunpack.c.l.b16 %v10120
        %v10704 = vunpack.c.h.b16 %v10120
        %v10705 = vunpack.c.l.b16 %v10121
        %v10706 = vunpack.c.h.b16 %v10121
        %v10707 = vunpack.c.l.b16 %v10122
        %v10708 = vunpack.c.h.b16 %v10122
        %v10709 = vunpack.c.l.b16 %v10123
        %v10710 = vunpack.c.h.b16 %v10123
        %v10711 = vunpack.c.l.b16 %v10124
        %v10712 = vunpack.c.h.b16 %v10124
        %v10713 = vunpack.c.l.b16 %v10125
        %v10714 = vunpack.c.h.b16 %v10125
        %v10715 = vunpack.c.l.b16 %v10126
        %v10716 = vunpack.c.h.b16 %v10126
        %v10717 = vunpack.c.l.b16 %v10127
        %v10718 = vunpack.c.h.b16 %v10127
        %v10719 = vunpack.c.l.b16 %v10128
        %v10720 = vunpack.c.h.b16 %v10128
        %v10721 = vunpack.c.l.b16 %v10129
        %v10722 = vunpack.c.h.b16 %v10129
        %v10723 = vunpack.c.l.b16 %v10130
        %v10724 = vunpack.c.h.b16 %v10130
        %v10725 = vunpack.c.l.b16 %v10131
        %v10726 = vunpack.c.h.b16 %v10131
        %v10727 = vunpack.c.l.b16 %v10132
        %v10728 = vunpack.c.h.b16 %v10132
        %v10729 = vunpack.c.l.b16 %v10133
        %v10730 = vunpack.c.h.b16 %v10133
        %v10731 = vunpack.c.l.b16 %v10134
        %v10732 = vunpack.c.h.b16 %v10134
        %v10733 = vunpack.c.l.b16 %v10135
        %v10734 = vunpack.c.h.b16 %v10135
        %v10735 = vunpack.c.l.b16 %v10136
        %v10736 = vunpack.c.h.b16 %v10136
        %v10737 = vunpack.c.l.b16 %v10137
        %v10738 = vunpack.c.h.b16 %v10137
        %v10739 = vunpack.c.l.b16 %v10138
        %v10740 = vunpack.c.h.b16 %v10138
        %v10741 = vunpack.c.l.b16 %v10139
        %v10742 = vunpack.c.h.b16 %v10139
        %v10743 = vunpack.c.l.b16 %v10140
        %v10744 = vunpack.c.h.b16 %v10140
        %v10745 = vunpack.c.l.b16 %v10141
        %v10746 = vunpack.c.h.b16 %v10141
        %v10747 = vunpack.c.l.b16 %v10142
        %v10748 = vunpack.c.h.b16 %v10142
        %v10749 = vunpack.c.l.b16 %v10143
        %v10750 = vunpack.c.h.b16 %v10143
        %v10751 = vunpack.c.l.b16 %v10144
        %v10752 = vunpack.c.h.b16 %v10144
        %v10753 = vunpack.c.l.b16 %v10145
        %v10754 = vunpack.c.h.b16 %v10145
        %v10755 = vunpack.c.l.b16 %v10146
        %v10756 = vunpack.c.h.b16 %v10146
        %v10757 = vunpack.c.l.b16 %v10147
        %v10758 = vunpack.c.h.b16 %v10147
        %v10759 = vunpack.c.l.b16 %v10148
        %v10760 = vunpack.c.h.b16 %v10148
        %v10761 = vpack.c.b16 %v10363, %v10361
        %v10762 = vpack.c.b16 %v10364, %v10362
        %v10763 = vpack.c.b16 %v10367, %v10365
        %v10764 = vpack.c.b16 %v10368, %v10366
        %v10765 = vpack.c.b16 %v10371, %v10369
        %v10766 = vpack.c.b16 %v10372, %v10370
        %v10767 = vpack.c.b16 %v10375, %v10373
        %v10768 = vpack.c.b16 %v10376, %v10374
        %v10769 = vpack.c.b16 %v10379, %v10377
        %v10770 = vpack.c.b16 %v10380, %v10378
        %v10771 = vpack.c.b16 %v10383, %v10381
        %v10772 = vpack.c.b16 %v10384, %v10382
        %v10773 = vpack.c.b16 %v10387, %v10385
        %v10774 = vpack.c.b16 %v10388, %v10386
        %v10775 = vpack.c.b16 %v10391, %v10389
        %v10776 = vpack.c.b16 %v10392, %v10390
        %v10777 = vpack.c.b16 %v10395, %v10393
        %v10778 = vpack.c.b16 %v10396, %v10394
        %v10779 = vpack.c.b16 %v10399, %v10397
        %v10780 = vpack.c.b16 %v10400, %v10398
        %v10781 = vpack.c.b16 %v10403, %v10401
        %v10782 = vpack.c.b16 %v10404, %v10402
        %v10783 = vpack.c.b16 %v10407, %v10405
        %v10784 = vpack.c.b16 %v10408, %v10406
        %v10785 = vpack.c.b16 %v10411, %v10409
        %v10786 = vpack.c.b16 %v10412, %v10410
        %v10787 = vpack.c.b16 %v10415, %v10413
        %v10788 = vpack.c.b16 %v10416, %v10414
        %v10789 = vpack.c.b16 %v10419, %v10417
        %v10790 = vpack.c.b16 %v10420, %v10418
        %v10791 = vpack.c.b16 %v10423, %v10421
        %v10792 = vpack.c.b16 %v10424, %v10422
        %v10793 = vpack.c.b16 %v10427, %v10425
        %v10794 = vpack.c.b16 %v10428, %v10426
        %v10795 = vpack.c.b16 %v10431, %v10429
        %v10796 = vpack.c.b16 %v10432, %v10430
        %v10797 = vpack.c.b16 %v10435, %v10433
        %v10798 = vpack.c.b16 %v10436, %v10434
        %v10799 = vpack.c.b16 %v10439, %v10437
        %v10800 = vpack.c.b16 %v10440, %v10438
        %v10801 = vpack.c.b16 %v10443, %v10441
        %v10802 = vpack.c.b16 %v10444, %v10442
        %v10803 = vpack.c.b16 %v10447, %v10445
        %v10804 = vpack.c.b16 %v10448, %v10446
        %v10805 = vpack.c.b16 %v10451, %v10449
        %v10806 = vpack.c.b16 %v10452, %v10450
        %v10807 = vpack.c.b16 %v10455, %v10453
        %v10808 = vpack.c.b16 %v10456, %v10454
        %v10809 = vpack.c.b16 %v10459, %v10457
        %v10810 = vpack.c.b16 %v10460, %v10458
        %v10811 = vpack.c.b16 %v10463, %v10461
        %v10812 = vpack.c.b16 %v10464, %v10462
        %v10813 = vpack.c.b16 %v10467, %v10465
        %v10814 = vpack.c.b16 %v10468, %v10466
        %v10815 = vpack.c.b16 %v10471, %v10469
        %v10816 = vpack.c.b16 %v10472, %v10470
        %v10817 = vpack.c.b16 %v10475, %v10473
        %v10818 = vpack.c.b16 %v10476, %v10474
        %v10819 = vpack.c.b16 %v10479, %v10477
        %v10820 = vpack.c.b16 %v10480, %v10478
        %v10821 = vpack.c.b16 %v10483, %v10481
        %v10822 = vpack.c.b16 %v10484, %v10482
        %v10823 = vpack.c.b16 %v10487, %v10485
        %v10824 = vpack.c.b16 %v10488, %v10486
        %v10825 = vpack.c.b16 %v10491, %v10489
        %v10826 = vpack.c.b16 %v10492, %v10490
        %v10827 = vpack.c.b16 %v10495, %v10493
        %v10828 = vpack.c.b16 %v10496, %v10494
        %v10829 = vpack.c.b16 %v10499, %v10497
        %v10830 = vpack.c.b16 %v10500, %v10498
        %v10831 = vpack.c.b16 %v10503, %v10501
        %v10832 = vpack.c.b16 %v10504, %v10502
        %v10833 = vpack.c.b16 %v10507, %v10505
        %v10834 = vpack.c.b16 %v10508, %v10506
        %v10835 = vpack.c.b16 %v10511, %v10509
        %v10836 = vpack.c.b16 %v10512, %v10510
        %v10837 = vpack.c.b16 %v10515, %v10513
        %v10838 = vpack.c.b16 %v10516, %v10514
        %v10839 = vpack.c.b16 %v10519, %v10517
        %v10840 = vpack.c.b16 %v10520, %v10518
        %v10841 = vpack.c.b16 %v10523, %v10521
        %v10842 = vpack.c.b16 %v10524, %v10522
        %v10843 = vpack.c.b16 %v10527, %v10525
        %v10844 = vpack.c.b16 %v10528, %v10526
        %v10845 = vpack.c.b16 %v10531, %v10529
        %v10846 = vpack.c.b16 %v10532, %v10530
        %v10847 = vpack.c.b16 %v10535, %v10533
        %v10848 = vpack.c.b16 %v10536, %v10534
        %v10849 = vpack.c.b16 %v10539, %v10537
        %v10850 = vpack.c.b16 %v10540, %v10538
        %v10851 = vpack.c.b16 %v10543, %v10541
        %v10852 = vpack.c.b16 %v10544, %v10542
        %v10853 = vpack.c.b16 %v10547, %v10545
        %v10854 = vpack.c.b16 %v10548, %v10546
        %v10855 = vpack.c.b16 %v10551, %v10549
        %v10856 = vpack.c.b16 %v10552, %v10550
        %v10857 = vpack.c.b16 %v10555, %v10553
        %v10858 = vpack.c.b16 %v10556, %v10554
        %v10859 = vpack.c.b16 %v10559, %v10557
        %v10860 = vpack.c.b16 %v10560, %v10558
        %v10861 = vpack.c.b16 %v10563, %v10561
        %v10862 = vpack.c.b16 %v10564, %v10562
        %v10863 = vpack.c.b16 %v10567, %v10565
        %v10864 = vpack.c.b16 %v10568, %v10566
        %v10865 = vpack.c.b16 %v10571, %v10569
        %v10866 = vpack.c.b16 %v10572, %v10570
        %v10867 = vpack.c.b16 %v10575, %v10573
        %v10868 = vpack.c.b16 %v10576, %v10574
        %v10869 = vpack.c.b16 %v10579, %v10577
        %v10870 = vpack.c.b16 %v10580, %v10578
        %v10871 = vpack.c.b16 %v10583, %v10581
        %v10872 = vpack.c.b16 %v10584, %v10582
        %v10873 = vpack.c.b16 %v10587, %v10585
        %v10874 = vpack.c.b16 %v10588, %v10586
        %v10875 = vpack.c.b16 %v10591, %v10589
        %v10876 = vpack.c.b16 %v10592, %v10590
        %v10877 = vpack.c.b16 %v10595, %v10593
        %v10878 = vpack.c.b16 %v10596, %v10594
        %v10879 = vpack.c.b16 %v10599, %v10597
        %v10880 = vpack.c.b16 %v10600, %v10598
        %v10881 = vpack.c.b16 %v10603, %v10601
        %v10882 = vpack.c.b16 %v10604, %v10602
        %v10883 = vpack.c.b16 %v10607, %v10605
        %v10884 = vpack.c.b16 %v10608, %v10606
        %v10885 = vpack.c.b16 %v10611, %v10609
        %v10886 = vpack.c.b16 %v10612, %v10610
        %v10887 = vpack.c.b16 %v10615, %v10613
        %v10888 = vpack.c.b16 %v10616, %v10614
        %v10889 = vpack.c.b16 %v10619, %v10617
        %v10890 = vpack.c.b16 %v10620, %v10618
        %v10891 = vpack.c.b16 %v10623, %v10621
        %v10892 = vpack.c.b16 %v10624, %v10622
        %v10893 = vpack.c.b16 %v10627, %v10625
        %v10894 = vpack.c.b16 %v10628, %v10626
        %v10895 = vpack.c.b16 %v10631, %v10629
        %v10896 = vpack.c.b16 %v10632, %v10630
        %v10897 = vpack.c.b16 %v10635, %v10633
        %v10898 = vpack.c.b16 %v10636, %v10634
        %v10899 = vpack.c.b16 %v10639, %v10637
        %v10900 = vpack.c.b16 %v10640, %v10638
        %v10901 = vpack.c.b16 %v10643, %v10641
        %v10902 = vpack.c.b16 %v10644, %v10642
        %v10903 = vpack.c.b16 %v10647, %v10645
        %v10904 = vpack.c.b16 %v10648, %v10646
        %v10905 = vpack.c.b16 %v10651, %v10649
        %v10906 = vpack.c.b16 %v10652, %v10650
        %v10907 = vpack.c.b16 %v10655, %v10653
        %v10908 = vpack.c.b16 %v10656, %v10654
        %v10909 = vpack.c.b16 %v10659, %v10657
        %v10910 = vpack.c.b16 %v10660, %v10658
        %v10911 = vpack.c.b16 %v10663, %v10661
        %v10912 = vpack.c.b16 %v10664, %v10662
        %v10913 = vpack.c.b16 %v10667, %v10665
        %v10914 = vpack.c.b16 %v10668, %v10666
        %v10915 = vpack.c.b16 %v10671, %v10669
        %v10916 = vpack.c.b16 %v10672, %v10670
        %v10917 = vpack.c.b16 %v10675, %v10673
        %v10918 = vpack.c.b16 %v10676, %v10674
        %v10919 = vpack.c.b16 %v10679, %v10677
        %v10920 = vpack.c.b16 %v10680, %v10678
        %v10921 = vpack.c.b16 %v10683, %v10681
        %v10922 = vpack.c.b16 %v10684, %v10682
        %v10923 = vpack.c.b16 %v10687, %v10685
        %v10924 = vpack.c.b16 %v10688, %v10686
        %v10925 = vpack.c.b16 %v10691, %v10689
        %v10926 = vpack.c.b16 %v10692, %v10690
        %v10927 = vpack.c.b16 %v10695, %v10693
        %v10928 = vpack.c.b16 %v10696, %v10694
        %v10929 = vpack.c.b16 %v10699, %v10697
        %v10930 = vpack.c.b16 %v10700, %v10698
        %v10931 = vpack.c.b16 %v10703, %v10701
        %v10932 = vpack.c.b16 %v10704, %v10702
        %v10933 = vpack.c.b16 %v10707, %v10705
        %v10934 = vpack.c.b16 %v10708, %v10706
        %v10935 = vpack.c.b16 %v10711, %v10709
        %v10936 = vpack.c.b16 %v10712, %v10710
        %v10937 = vpack.c.b16 %v10715, %v10713
        %v10938 = vpack.c.b16 %v10716, %v10714
        %v10939 = vpack.c.b16 %v10719, %v10717
        %v10940 = vpack.c.b16 %v10720, %v10718
        %v10941 = vpack.c.b16 %v10723, %v10721
        %v10942 = vpack.c.b16 %v10724, %v10722
        %v10943 = vpack.c.b16 %v10727, %v10725
        %v10944 = vpack.c.b16 %v10728, %v10726
        %v10945 = vpack.c.b16 %v10731, %v10729
        %v10946 = vpack.c.b16 %v10732, %v10730
        %v10947 = vpack.c.b16 %v10735, %v10733
        %v10948 = vpack.c.b16 %v10736, %v10734
        %v10949 = vpack.c.b16 %v10739, %v10737
        %v10950 = vpack.c.b16 %v10740, %v10738
        %v10951 = vpack.c.b16 %v10743, %v10741
        %v10952 = vpack.c.b16 %v10744, %v10742
        %v10953 = vpack.c.b16 %v10747, %v10745
        %v10954 = vpack.c.b16 %v10748, %v10746
        %v10955 = vpack.c.b16 %v10751, %v10749
        %v10956 = vpack.c.b16 %v10752, %v10750
        %v10957 = vpack.c.b16 %v10755, %v10753
        %v10958 = vpack.c.b16 %v10756, %v10754
        %v10959 = vpack.c.b16 %v10759, %v10757
        %v10960 = vpack.c.b16 %v10760, %v10758
        %v11161 = vsel %vm9553, %v9870, 0
        %v11163 = vsel %vm9553, %v9896, 0
        %v11165 = vsel %vm9553, %v9922, 0
        %v11167 = vsel %vm9553, %v9948, 0
        %11169 = vmatprep.subr.bf16.mxu0 %v10762
        %11170 = vmatpush1.bf16.msra.mxu0 %v10761
        %11171 = vmatprep.subr.bf16.mxu0 %v10764
        %11172 = vmatpush1.bf16.msra.mxu0 %v10763
        %11173 = vmatprep.subr.bf16.mxu0 %v10766
        %11174 = vmatpush1.bf16.msra.mxu0 %v10765
        %11175 = vmatprep.subr.bf16.mxu0 %v10768
        %11176 = vmatpush1.bf16.msra.mxu0 %v10767
        %11177 = vmatprep.subr.bf16.mxu0 %v10770
        %11178 = vmatpush1.bf16.msra.mxu0 %v10769
        %11179 = vmatprep.subr.bf16.mxu0 %v10772
        %11180 = vmatpush1.bf16.msra.mxu0 %v10771
        %11181 = vmatprep.subr.bf16.mxu0 %v10774
        %11182 = vmatpush1.bf16.msra.mxu0 %v10773
        %11183 = vmatprep.subr.bf16.mxu0 %v10776
        %11184 = vmatpush1.bf16.msra.mxu0 %v10775
        %11185 = vmatprep.subr.bf16.mxu0 %v10778
        %11186 = vmatpush1.bf16.msra.mxu0 %v10777
        %11187 = vmatprep.subr.bf16.mxu0 %v10780
        %11188 = vmatpush1.bf16.msra.mxu0 %v10779
        %11189 = vmatprep.subr.bf16.mxu0 %v10782
        %11190 = vmatpush1.bf16.msra.mxu0 %v10781
        %11191 = vmatprep.subr.bf16.mxu0 %v10784
        %11192 = vmatpush1.bf16.msra.mxu0 %v10783
        %11193 = vmatprep.subr.bf16.mxu0 %v10786
        %11194 = vmatpush1.bf16.msra.mxu0 %v10785
        %11195 = vmatprep.subr.bf16.mxu0 %v10788
        %11196 = vmatpush1.bf16.msra.mxu0 %v10787
        %11197 = vmatprep.subr.bf16.mxu0 %v10790
        %11198 = vmatpush1.bf16.msra.mxu0 %v10789
        %11199 = vmatprep.subr.bf16.mxu0 %v10792
        %11200 = vmatpush1.bf16.msra.mxu0 %v10791
        %11201 = vmatprep.mubr.bf16.mxu0 %v9828
        %11202 = vmatmul.mubr.bf16.gmra.mrb[0].mxu0 %v9824
        %v11203 = vpop.f32.mrb[0].mxu0
        %v11204 = vadd.f32 %v10154, %v11203
        %v11205 = vpop.f32.mrb[0].mxu0
        %v11206 = vadd.f32 %v10158, %v11205
        %v11207 = vpop.f32.mrb[0].mxu0
        %v11208 = vadd.f32 %v10154, %v11207
        %v11209 = vpop.f32.mrb[0].mxu0
        %v11210 = vadd.f32 %v10158, %v11209
        %11211 = vmatprep.mubr.bf16.mxu0 %v9872
        %11212 = vmatmul.mubr.bf16.gmra.mrb[0].mxu0 %v9828
        %v11213 = vpop.f32.mrb[0].mxu0
        %v11214 = vadd.f32 %v10154, %v11213
        %v11215 = vpop.f32.mrb[0].mxu0
        %v11216 = vadd.f32 %v10158, %v11215
        %v11217 = vpop.f32.mrb[0].mxu0
        %v11218 = vadd.f32 %v10154, %v11217
        %v11219 = vpop.f32.mrb[0].mxu0
        %v11220 = vadd.f32 %v10158, %v11219
        %11221 = vmatprep.mubr.bf16.mxu0 %v9898
        %11222 = vmatmul.mubr.bf16.gmra.mrb[0].mxu0 %v9872
        %v11223 = vpop.f32.mrb[0].mxu0
        %v11224 = vadd.f32 %v10154, %v11223
        %v11225 = vpop.f32.mrb[0].mxu0
        %v11226 = vadd.f32 %v10158, %v11225
        %v11227 = vpop.f32.mrb[0].mxu0
        %v11228 = vadd.f32 %v10154, %v11227
        %v11229 = vpop.f32.mrb[0].mxu0
        %v11230 = vadd.f32 %v10158, %v11229
        %11231 = vmatprep.mubr.bf16.mxu0 %v9924
        %11232 = vmatmul.mubr.bf16.gmra.mrb[0].mxu0 %v9898
        %v11233 = vpop.f32.mrb[0].mxu0
        %v11234 = vadd.f32 %v10154, %v11233
        %v11235 = vpop.f32.mrb[0].mxu0
        %v11236 = vadd.f32 %v10158, %v11235
        %v11237 = vpop.f32.mrb[0].mxu0
        %v11238 = vadd.f32 %v10154, %v11237
        %v11239 = vpop.f32.mrb[0].mxu0
        %v11240 = vadd.f32 %v10158, %v11239
        %11241 = vdwg.mxu0
        %11242 = vmatprep.subr.bf16.mxu0 %v10794
        %11243 = vmatpush1.bf16.msra.mxu0 %v10793
        %11244 = vmatprep.subr.bf16.mxu0 %v10796
        %11245 = vmatpush1.bf16.msra.mxu0 %v10795
        %11246 = vmatprep.subr.bf16.mxu0 %v10798
        %11247 = vmatpush1.bf16.msra.mxu0 %v10797
        %11248 = vmatprep.subr.bf16.mxu0 %v10800
        %11249 = vmatpush1.bf16.msra.mxu0 %v10799
        %11250 = vmatprep.subr.bf16.mxu0 %v10802
        %11251 = vmatpush1.bf16.msra.mxu0 %v10801
        %11252 = vmatprep.subr.bf16.mxu0 %v10804
        %11253 = vmatpush1.bf16.msra.mxu0 %v10803
        %11254 = vmatprep.subr.bf16.mxu0 %v10806
        %11255 = vmatpush1.bf16.msra.mxu0 %v10805
        %11256 = vmatprep.subr.bf16.mxu0 %v10808
        %11257 = vmatpush1.bf16.msra.mxu0 %v10807
        %11258 = vmatprep.subr.bf16.mxu0 %v10810
        %11259 = vmatpush1.bf16.msra.mxu0 %v10809
        %11260 = vmatprep.subr.bf16.mxu0 %v10812
        %11261 = vmatpush1.bf16.msra.mxu0 %v10811
        %11262 = vmatprep.subr.bf16.mxu0 %v10814
        %11263 = vmatpush1.bf16.msra.mxu0 %v10813
        %11264 = vmatprep.subr.bf16.mxu0 %v10816
        %11265 = vmatpush1.bf16.msra.mxu0 %v10815
        %11266 = vmatprep.subr.bf16.mxu0 %v10818
        %11267 = vmatpush1.bf16.msra.mxu0 %v10817
        %11268 = vmatprep.subr.bf16.mxu0 %v10820
        %11269 = vmatpush1.bf16.msra.mxu0 %v10819
        %11270 = vmatprep.subr.bf16.mxu0 %v10822
        %11271 = vmatpush1.bf16.msra.mxu0 %v10821
        %11272 = vmatprep.subr.bf16.mxu0 %v10824
        %11273 = vmatpush1.bf16.msra.mxu0 %v10823
        %11274 = vmatprep.mubr.bf16.mxu0 %v9835
        %11275 = vmatmul.mubr.bf16.gmra.mrb[0].mxu0 %v9831
        %v11276 = vpop.f32.mrb[0].mxu0
        %v11277 = vadd.f32 %v11204, %v11276
        %v11278 = vpop.f32.mrb[0].mxu0
        %v11279 = vadd.f32 %v11206, %v11278
        %v11280 = vpop.f32.mrb[0].mxu0
        %v11281 = vadd.f32 %v11208, %v11280
        %v11282 = vpop.f32.mrb[0].mxu0
        %v11283 = vadd.f32 %v11210, %v11282
        %11284 = vmatprep.mubr.bf16.mxu0 %v9839
        %11285 = vmatmul.mubr.bf16.gmra.mrb[0].mxu0 %v9875
        %v11286 = vpop.f32.mrb[0].mxu0
        %v11287 = vadd.f32 %v11214, %v11286
        %v11288 = vpop.f32.mrb[0].mxu0
        %v11289 = vadd.f32 %v11216, %v11288
        %v11290 = vpop.f32.mrb[0].mxu0
        %v11291 = vadd.f32 %v11218, %v11290
        %v11292 = vpop.f32.mrb[0].mxu0
        %v11293 = vadd.f32 %v11220, %v11292
        %11294 = vmatprep.mubr.bf16.mxu0 %v9879
        %11295 = vmatmul.mubr.bf16.gmra.mrb[0].mxu0 %v9901
        %v11296 = vpop.f32.mrb[0].mxu0
        %v11297 = vadd.f32 %v11224, %v11296
        %v11298 = vpop.f32.mrb[0].mxu0
        %v11299 = vadd.f32 %v11226, %v11298
        %v11300 = vpop.f32.mrb[0].mxu0
        %v11301 = vadd.f32 %v11228, %v11300
        %v11302 = vpop.f32.mrb[0].mxu0
        %v11303 = vadd.f32 %v11230, %v11302
        %11304 = vmatprep.mubr.bf16.mxu0 %v9905
        %11305 = vmatmul.mubr.bf16.gmra.mrb[0].mxu0 %v9927
        %v11306 = vpop.f32.mrb[0].mxu0
        %v11307 = vadd.f32 %v11234, %v11306
        %v11308 = vpop.f32.mrb[0].mxu0
        %v11309 = vadd.f32 %v11236, %v11308
        %v11310 = vpop.f32.mrb[0].mxu0
        %v11311 = vadd.f32 %v11238, %v11310
        %v11312 = vpop.f32.mrb[0].mxu0
        %v11313 = vadd.f32 %v11240, %v11312
        %11314 = vdwg.mxu0
        %11315 = vmatprep.subr.bf16.mxu0 %v10826
        %11316 = vmatpush1.bf16.msra.mxu0 %v10825
        %11317 = vmatprep.subr.bf16.mxu0 %v10828
        %11318 = vmatpush1.bf16.msra.mxu0 %v10827
        %11319 = vmatprep.subr.bf16.mxu0 %v10830
        %11320 = vmatpush1.bf16.msra.mxu0 %v10829
        %11321 = vmatprep.subr.bf16.mxu0 %v10832
        %11322 = vmatpush1.bf16.msra.mxu0 %v10831
        %11323 = vmatprep.subr.bf16.mxu0 %v10834
        %11324 = vmatpush1.bf16.msra.mxu0 %v10833
        %11325 = vmatprep.subr.bf16.mxu0 %v10836
        %11326 = vmatpush1.bf16.msra.mxu0 %v10835
        %11327 = vmatprep.subr.bf16.mxu0 %v10838
        %11328 = vmatpush1.bf16.msra.mxu0 %v10837
        %11329 = vmatprep.subr.bf16.mxu0 %v10840
        %11330 = vmatpush1.bf16.msra.mxu0 %v10839
        %11331 = vmatprep.subr.bf16.mxu0 %v10842
        %11332 = vmatpush1.bf16.msra.mxu0 %v10841
        %11333 = vmatprep.subr.bf16.mxu0 %v10844
        %11334 = vmatpush1.bf16.msra.mxu0 %v10843
        %11335 = vmatprep.subr.bf16.mxu0 %v10846
        %11336 = vmatpush1.bf16.msra.mxu0 %v10845
        %11337 = vmatprep.subr.bf16.mxu0 %v10848
        %11338 = vmatpush1.bf16.msra.mxu0 %v10847
        %11339 = vmatprep.subr.bf16.mxu0 %v10850
        %11340 = vmatpush1.bf16.msra.mxu0 %v10849
        %11341 = vmatprep.subr.bf16.mxu0 %v10852
        %11342 = vmatpush1.bf16.msra.mxu0 %v10851
        %11343 = vmatprep.subr.bf16.mxu0 %v10854
        %11344 = vmatpush1.bf16.msra.mxu0 %v10853
        %11345 = vmatprep.subr.bf16.mxu0 %v10856
        %11346 = vmatpush1.bf16.msra.mxu0 %v10855
        %11347 = vmatprep.mubr.bf16.mxu0 %v9843
        %11348 = vmatmul.mubr.bf16.gmra.mrb[0].mxu0 %v9839
        %v11349 = vpop.f32.mrb[0].mxu0
        %v11350 = vadd.f32 %v11277, %v11349
        %v11351 = vpop.f32.mrb[0].mxu0
        %v11352 = vadd.f32 %v11279, %v11351
        %v11353 = vpop.f32.mrb[0].mxu0
        %v11354 = vadd.f32 %v11281, %v11353
        %v11355 = vpop.f32.mrb[0].mxu0
        %v11356 = vadd.f32 %v11283, %v11355
        %11357 = vmatprep.mubr.bf16.mxu0 %v9847
        %11358 = vmatmul.mubr.bf16.gmra.mrb[0].mxu0 %v9879
        %v11359 = vpop.f32.mrb[0].mxu0
        %v11360 = vadd.f32 %v11287, %v11359
        %v11361 = vpop.f32.mrb[0].mxu0
        %v11362 = vadd.f32 %v11289, %v11361
        %v11363 = vpop.f32.mrb[0].mxu0
        %v11364 = vadd.f32 %v11291, %v11363
        %v11365 = vpop.f32.mrb[0].mxu0
        %v11366 = vadd.f32 %v11293, %v11365
        %11367 = vmatprep.mubr.bf16.mxu0 %v9882
        %11368 = vmatmul.mubr.bf16.gmra.mrb[0].mxu0 %v9905
        %v11369 = vpop.f32.mrb[0].mxu0
        %v11370 = vadd.f32 %v11297, %v11369
        %v11371 = vpop.f32.mrb[0].mxu0
        %v11372 = vadd.f32 %v11299, %v11371
        %v11373 = vpop.f32.mrb[0].mxu0
        %v11374 = vadd.f32 %v11301, %v11373
        %v11375 = vpop.f32.mrb[0].mxu0
        %v11376 = vadd.f32 %v11303, %v11375
        %11377 = vmatprep.mubr.bf16.mxu0 %v9908
        %11378 = vmatmul.mubr.bf16.gmra.mrb[0].mxu0 %v9931
        %v11379 = vpop.f32.mrb[0].mxu0
        %v11380 = vadd.f32 %v11307, %v11379
        %v11381 = vpop.f32.mrb[0].mxu0
        %v11382 = vadd.f32 %v11309, %v11381
        %v11383 = vpop.f32.mrb[0].mxu0
        %v11384 = vadd.f32 %v11311, %v11383
        %v11385 = vpop.f32.mrb[0].mxu0
        %v11386 = vadd.f32 %v11313, %v11385
        %11387 = vdwg.mxu0
        %11388 = vmatprep.subr.bf16.mxu0 %v10858
        %11389 = vmatpush1.bf16.msra.mxu0 %v10857
        %11390 = vmatprep.subr.bf16.mxu0 %v10860
        %11391 = vmatpush1.bf16.msra.mxu0 %v10859
        %11392 = vmatprep.subr.bf16.mxu0 %v10862
        %11393 = vmatpush1.bf16.msra.mxu0 %v10861
        %11394 = vmatprep.subr.bf16.mxu0 %v10864
        %11395 = vmatpush1.bf16.msra.mxu0 %v10863
        %11396 = vmatprep.subr.bf16.mxu0 %v10866
        %11397 = vmatpush1.bf16.msra.mxu0 %v10865
        %11398 = vmatprep.subr.bf16.mxu0 %v10868
        %11399 = vmatpush1.bf16.msra.mxu0 %v10867
        %11400 = vmatprep.subr.bf16.mxu0 %v10870
        %11401 = vmatpush1.bf16.msra.mxu0 %v10869
        %11402 = vmatprep.subr.bf16.mxu0 %v10872
        %11403 = vmatpush1.bf16.msra.mxu0 %v10871
        %11404 = vmatprep.subr.bf16.mxu0 %v10874
        %11405 = vmatpush1.bf16.msra.mxu0 %v10873
        %11406 = vmatprep.subr.bf16.mxu0 %v10876
        %11407 = vmatpush1.bf16.msra.mxu0 %v10875
        %11408 = vmatprep.subr.bf16.mxu0 %v10878
        %11409 = vmatpush1.bf16.msra.mxu0 %v10877
        %11410 = vmatprep.subr.bf16.mxu0 %v10880
        %11411 = vmatpush1.bf16.msra.mxu0 %v10879
        %11412 = vmatprep.subr.bf16.mxu0 %v10882
        %11413 = vmatpush1.bf16.msra.mxu0 %v10881
        %11414 = vmatprep.subr.bf16.mxu0 %v10884
        %11415 = vmatpush1.bf16.msra.mxu0 %v10883
        %11416 = vmatprep.subr.bf16.mxu0 %v10886
        %11417 = vmatpush1.bf16.msra.mxu0 %v10885
        %11418 = vmatprep.subr.bf16.mxu0 %v10888
        %11419 = vmatpush1.bf16.msra.mxu0 %v10887
        %11420 = vmatprep.mubr.bf16.mxu0 %v9850
        %11421 = vmatmul.mubr.bf16.gmra.mrb[0].mxu0 %v9847
        %v11422 = vpop.f32.mrb[0].mxu0
        %v11423 = vadd.f32 %v11350, %v11422
        %v11424 = vpop.f32.mrb[0].mxu0
        %v11425 = vadd.f32 %v11352, %v11424
        %v11426 = vpop.f32.mrb[0].mxu0
        %v11427 = vadd.f32 %v11354, %v11426
        %v11428 = vpop.f32.mrb[0].mxu0
        %v11429 = vadd.f32 %v11356, %v11428
        %11430 = vmatprep.mubr.bf16.mxu0 %v9885
        %11431 = vmatmul.mubr.bf16.gmra.mrb[0].mxu0 %v9882
        %v11432 = vpop.f32.mrb[0].mxu0
        %v11433 = vadd.f32 %v11360, %v11432
        %v11434 = vpop.f32.mrb[0].mxu0
        %v11435 = vadd.f32 %v11362, %v11434
        %v11436 = vpop.f32.mrb[0].mxu0
        %v11437 = vadd.f32 %v11364, %v11436
        %v11438 = vpop.f32.mrb[0].mxu0
        %v11439 = vadd.f32 %v11366, %v11438
        %11440 = vmatprep.mubr.bf16.mxu0 %v9911
        %11441 = vmatmul.mubr.bf16.gmra.mrb[0].mxu0 %v9908
        %v11442 = vpop.f32.mrb[0].mxu0
        %v11443 = vadd.f32 %v11370, %v11442
        %v11444 = vpop.f32.mrb[0].mxu0
        %v11445 = vadd.f32 %v11372, %v11444
        %v11446 = vpop.f32.mrb[0].mxu0
        %v11447 = vadd.f32 %v11374, %v11446
        %v11448 = vpop.f32.mrb[0].mxu0
        %v11449 = vadd.f32 %v11376, %v11448
        %11450 = vmatprep.mubr.bf16.mxu0 %v9937
        %11451 = vmatmul.mubr.bf16.gmra.mrb[0].mxu0 %v9934
        %v11452 = vpop.f32.mrb[0].mxu0
        %v11453 = vadd.f32 %v11380, %v11452
        %v11454 = vpop.f32.mrb[0].mxu0
        %v11455 = vadd.f32 %v11382, %v11454
        %v11456 = vpop.f32.mrb[0].mxu0
        %v11457 = vadd.f32 %v11384, %v11456
        %v11458 = vpop.f32.mrb[0].mxu0
        %v11459 = vadd.f32 %v11386, %v11458
        %11460 = vdwg.mxu0
        %11461 = vmatprep.subr.bf16.mxu0 %v10890
        %11462 = vmatpush1.bf16.msra.mxu0 %v10889
        %11463 = vmatprep.subr.bf16.mxu0 %v10892
        %11464 = vmatpush1.bf16.msra.mxu0 %v10891
        %11465 = vmatprep.subr.bf16.mxu0 %v10894
        %11466 = vmatpush1.bf16.msra.mxu0 %v10893
        %11467 = vmatprep.subr.bf16.mxu0 %v10896
        %11468 = vmatpush1.bf16.msra.mxu0 %v10895
        %11469 = vmatprep.subr.bf16.mxu0 %v10898
        %11470 = vmatpush1.bf16.msra.mxu0 %v10897
        %11471 = vmatprep.subr.bf16.mxu0 %v10900
        %11472 = vmatpush1.bf16.msra.mxu0 %v10899
        %11473 = vmatprep.subr.bf16.mxu0 %v10902
        %11474 = vmatpush1.bf16.msra.mxu0 %v10901
        %11475 = vmatprep.subr.bf16.mxu0 %v10904
        %11476 = vmatpush1.bf16.msra.mxu0 %v10903
        %11477 = vmatprep.subr.bf16.mxu0 %v10906
        %11478 = vmatpush1.bf16.msra.mxu0 %v10905
        %11479 = vmatprep.subr.bf16.mxu0 %v10908
        %11480 = vmatpush1.bf16.msra.mxu0 %v10907
        %11481 = vmatprep.subr.bf16.mxu0 %v10910
        %11482 = vmatpush1.bf16.msra.mxu0 %v10909
        %11483 = vmatprep.subr.bf16.mxu0 %v10912
        %11484 = vmatpush1.bf16.msra.mxu0 %v10911
        %11485 = vmatprep.subr.bf16.mxu0 %v10914
        %11486 = vmatpush1.bf16.msra.mxu0 %v10913
        %11487 = vmatprep.subr.bf16.mxu0 %v10916
        %11488 = vmatpush1.bf16.msra.mxu0 %v10915
        %11489 = vmatprep.subr.bf16.mxu0 %v10918
        %11490 = vmatpush1.bf16.msra.mxu0 %v10917
        %11491 = vmatprep.subr.bf16.mxu0 %v10920
        %11492 = vmatpush1.bf16.msra.mxu0 %v10919
        %11493 = vmatprep.mubr.bf16.mxu0 %v9858
        %11494 = vmatmul.mubr.bf16.gmra.mrb[0].mxu0 %v9854
        %v11495 = vpop.f32.mrb[0].mxu0
        %v11496 = vadd.f32 %v11423, %v11495
        %v11497 = vpop.f32.mrb[0].mxu0
        %v11498 = vadd.f32 %v11425, %v11497
        %v11499 = vpop.f32.mrb[0].mxu0
        %v11500 = vadd.f32 %v11427, %v11499
        %v11501 = vpop.f32.mrb[0].mxu0
        %v11502 = vadd.f32 %v11429, %v11501
        %11503 = vmatprep.mubr.bf16.mxu0 %v9889
        %11504 = vmatmul.mubr.bf16.gmra.mrb[0].mxu0 %v9858
        %v11505 = vpop.f32.mrb[0].mxu0
        %v11506 = vadd.f32 %v11433, %v11505
        %v11507 = vpop.f32.mrb[0].mxu0
        %v11508 = vadd.f32 %v11435, %v11507
        %v11509 = vpop.f32.mrb[0].mxu0
        %v11510 = vadd.f32 %v11437, %v11509
        %v11511 = vpop.f32.mrb[0].mxu0
        %v11512 = vadd.f32 %v11439, %v11511
        %11513 = vmatprep.mubr.bf16.mxu0 %v9915
        %11514 = vmatmul.mubr.bf16.gmra.mrb[0].mxu0 %v9889
        %v11515 = vpop.f32.mrb[0].mxu0
        %v11516 = vadd.f32 %v11443, %v11515
        %v11517 = vpop.f32.mrb[0].mxu0
        %v11518 = vadd.f32 %v11445, %v11517
        %v11519 = vpop.f32.mrb[0].mxu0
        %v11520 = vadd.f32 %v11447, %v11519
        %v11521 = vpop.f32.mrb[0].mxu0
        %v11522 = vadd.f32 %v11449, %v11521
        %11523 = vmatprep.mubr.bf16.mxu0 %v9941
        %11524 = vmatmul.mubr.bf16.gmra.mrb[0].mxu0 %v9915
        %v11525 = vpop.f32.mrb[0].mxu0
        %v11526 = vadd.f32 %v11453, %v11525
        %v11527 = vpop.f32.mrb[0].mxu0
        %v11528 = vadd.f32 %v11455, %v11527
        %v11529 = vpop.f32.mrb[0].mxu0
        %v11530 = vadd.f32 %v11457, %v11529
        %v11531 = vpop.f32.mrb[0].mxu0
        %v11532 = vadd.f32 %v11459, %v11531
        %11533 = vdwg.mxu0
        %11534 = vmatprep.subr.bf16.mxu0 %v10922
        %11535 = vmatpush1.bf16.msra.mxu0 %v10921
        %11536 = vmatprep.subr.bf16.mxu0 %v10924
        %11537 = vmatpush1.bf16.msra.mxu0 %v10923
        %11538 = vmatprep.subr.bf16.mxu0 %v10926
        %11539 = vmatpush1.bf16.msra.mxu0 %v10925
        %11540 = vmatprep.subr.bf16.mxu0 %v10928
        %11541 = vmatpush1.bf16.msra.mxu0 %v10927
        %11542 = vmatprep.subr.bf16.mxu0 %v10930
        %11543 = vmatpush1.bf16.msra.mxu0 %v10929
        %11544 = vmatprep.subr.bf16.mxu0 %v10932
        %11545 = vmatpush1.bf16.msra.mxu0 %v10931
        %11546 = vmatprep.subr.bf16.mxu0 %v10934
        %11547 = vmatpush1.bf16.msra.mxu0 %v10933
        %11548 = vmatprep.subr.bf16.mxu0 %v10936
        %11549 = vmatpush1.bf16.msra.mxu0 %v10935
        %11550 = vmatprep.subr.bf16.mxu0 %v10938
        %11551 = vmatpush1.bf16.msra.mxu0 %v10937
        %11552 = vmatprep.subr.bf16.mxu0 %v10940
        %11553 = vmatpush1.bf16.msra.mxu0 %v10939
        %11554 = vmatprep.subr.bf16.mxu0 %v10942
        %11555 = vmatpush1.bf16.msra.mxu0 %v10941
        %11556 = vmatprep.subr.bf16.mxu0 %v10944
        %11557 = vmatpush1.bf16.msra.mxu0 %v10943
        %11558 = vmatprep.subr.bf16.mxu0 %v10946
        %11559 = vmatpush1.bf16.msra.mxu0 %v10945
        %11560 = vmatprep.subr.bf16.mxu0 %v10948
        %11561 = vmatpush1.bf16.msra.mxu0 %v10947
        %11562 = vmatprep.subr.bf16.mxu0 %v10950
        %11563 = vmatpush1.bf16.msra.mxu0 %v10949
        %11564 = vmatprep.subr.bf16.mxu0 %v10952
        %11565 = vmatpush1.bf16.msra.mxu0 %v10951
        %11566 = vmatprep.mubr.bf16.mxu0 %v9866
        %11567 = vmatmul.mubr.bf16.gmra.mrb[0].mxu0 %v9862
        %v11568 = vpop.f32.mrb[0].mxu0
        %v11569 = vadd.f32 %v11496, %v11568
        %v11570 = vpop.f32.mrb[0].mxu0
        %v11571 = vadd.f32 %v11498, %v11570
        %v11572 = vpop.f32.mrb[0].mxu0
        %v11573 = vadd.f32 %v11500, %v11572
        %v11574 = vpop.f32.mrb[0].mxu0
        %v11575 = vadd.f32 %v11502, %v11574
        %11576 = vmatprep.mubr.bf16.mxu0 %v9892
        %11577 = vmatmul.mubr.bf16.gmra.mrb[0].mxu0 %v9866
        %v11578 = vpop.f32.mrb[0].mxu0
        %v11579 = vadd.f32 %v11506, %v11578
        %v11580 = vpop.f32.mrb[0].mxu0
        %v11581 = vadd.f32 %v11508, %v11580
        %v11582 = vpop.f32.mrb[0].mxu0
        %v11583 = vadd.f32 %v11510, %v11582
        %v11584 = vpop.f32.mrb[0].mxu0
        %v11585 = vadd.f32 %v11512, %v11584
        %11586 = vmatprep.mubr.bf16.mxu0 %v9918
        %11587 = vmatmul.mubr.bf16.gmra.mrb[0].mxu0 %v9892
        %v11588 = vpop.f32.mrb[0].mxu0
        %v11589 = vadd.f32 %v11516, %v11588
        %v11590 = vpop.f32.mrb[0].mxu0
        %v11591 = vadd.f32 %v11518, %v11590
        %v11592 = vpop.f32.mrb[0].mxu0
        %v11593 = vadd.f32 %v11520, %v11592
        %v11594 = vpop.f32.mrb[0].mxu0
        %v11595 = vadd.f32 %v11522, %v11594
        %11596 = vmatprep.mubr.bf16.mxu0 %v9944
        %11597 = vmatmul.mubr.bf16.gmra.mrb[0].mxu0 %v9918
        %v11598 = vpop.f32.mrb[0].mxu0
        %v11599 = vadd.f32 %v11526, %v11598
        %v11600 = vpop.f32.mrb[0].mxu0
        %v11601 = vadd.f32 %v11528, %v11600
        %v11602 = vpop.f32.mrb[0].mxu0
        %v11603 = vadd.f32 %v11530, %v11602
        %v11604 = vpop.f32.mrb[0].mxu0
        %v11605 = vadd.f32 %v11532, %v11604
        %11606 = vdwg.mxu0
        %11607 = vmatprep.subr.bf16.mxu0 %v10954
        %11608 = vmatpush1.bf16.msra.mxu0 %v10953
        %11609 = vmatprep.subr.bf16.mxu0 %v10956
        %11610 = vmatpush1.bf16.msra.mxu0 %v10955
        %11611 = vmatprep.subr.bf16.mxu0 %v10958
        %11612 = vmatpush1.bf16.msra.mxu0 %v10957
        %11613 = vmatprep.subr.bf16.mxu0 %v10960
        %11614 = vmatpush1.bf16.msra.mxu0 %v10959
        %11615 = vmatprep.subr.bf16.mxu0 0
        %11616 = vmatpush1.bf16.msra.mxu0 0
        %11617 = vmatprep.subr.bf16.mxu0 0
        %11618 = vmatpush1.bf16.msra.mxu0 0
        %11619 = vmatprep.subr.bf16.mxu0 0
        %11620 = vmatpush1.bf16.msra.mxu0 0
        %11621 = vmatprep.subr.bf16.mxu0 0
        %11622 = vmatpush1.bf16.msra.mxu0 0
        %11623 = vmatprep.subr.bf16.mxu0 0
        %11624 = vmatpush1.bf16.msra.mxu0 0
        %11625 = vmatprep.subr.bf16.mxu0 0
        %11626 = vmatpush1.bf16.msra.mxu0 0
        %11627 = vmatprep.subr.bf16.mxu0 0
        %11628 = vmatpush1.bf16.msra.mxu0 0
        %11629 = vmatprep.subr.bf16.mxu0 0
        %11630 = vmatpush1.bf16.msra.mxu0 0
        %11631 = vmatprep.subr.bf16.mxu0 0
        %11632 = vmatpush1.bf16.msra.mxu0 0
        %11633 = vmatprep.subr.bf16.mxu0 0
        %11634 = vmatpush1.bf16.msra.mxu0 0
        %11635 = vmatprep.subr.bf16.mxu0 0
        %11636 = vmatpush1.bf16.msra.mxu0 0
        %11637 = vmatprep.subr.bf16.mxu0 0
        %11638 = vmatpush1.bf16.msra.mxu0 0
        %11639 = vmatprep.mubr.bf16.mxu0 0
        %11640 = vmatmul.mubr.bf16.gmra.mrb[0].mxu0 %v11161
        %v11641 = vpop.f32.mrb[0].mxu0
        %v11642 = vadd.f32 %v11569, %v11641
        %v11643 = vpop.f32.mrb[0].mxu0
        %v11644 = vadd.f32 %v11571, %v11643
        %v11645 = vpop.f32.mrb[0].mxu0
        %v11646 = vadd.f32 %v11573, %v11645
        %v11647 = vpop.f32.mrb[0].mxu0
        %v11648 = vadd.f32 %v11575, %v11647
        %11649 = vmatprep.mubr.bf16.mxu0 0
        %11650 = vmatmul.mubr.bf16.gmra.mrb[0].mxu0 %v11163
        %v11651 = vpop.f32.mrb[0].mxu0
        %v11652 = vadd.f32 %v11579, %v11651
        %v11653 = vpop.f32.mrb[0].mxu0
        %v11654 = vadd.f32 %v11581, %v11653
        %v11655 = vpop.f32.mrb[0].mxu0
        %v11656 = vadd.f32 %v11583, %v11655
        %v11657 = vpop.f32.mrb[0].mxu0
        %v11658 = vadd.f32 %v11585, %v11657
        %11659 = vmatprep.mubr.bf16.mxu0 0
        %11660 = vmatmul.mubr.bf16.gmra.mrb[0].mxu0 %v11165
        %v11661 = vpop.f32.mrb[0].mxu0
        %v11662 = vadd.f32 %v11589, %v11661
        %v11663 = vpop.f32.mrb[0].mxu0
        %v11664 = vadd.f32 %v11591, %v11663
        %v11665 = vpop.f32.mrb[0].mxu0
        %v11666 = vadd.f32 %v11593, %v11665
        %v11667 = vpop.f32.mrb[0].mxu0
        %v11668 = vadd.f32 %v11595, %v11667
        %11669 = vmatprep.mubr.bf16.mxu0 0
        %11670 = vmatmul.mubr.bf16.gmra.mrb[0].mxu0 %v11167
        %v11671 = vpop.f32.mrb[0].mxu0
        %v11672 = vadd.f32 %v11599, %v11671
        %v11673 = vpop.f32.mrb[0].mxu0
        %v11674 = vadd.f32 %v11601, %v11673
        %v11675 = vpop.f32.mrb[0].mxu0
        %v11676 = vadd.f32 %v11603, %v11675
        %v11677 = vpop.f32.mrb[0].mxu0
        %v11678 = vadd.f32 %v11605, %v11677
        %11679 = vdwg.mxu0
        %v11680 = vmax.f32 %v11642, 0.0
        %v11681 = vmax.f32 %v11644, 0.0
        %v11682 = vmax.f32 %v11646, 0.0
        %v11683 = vmax.f32 %v11648, 0.0
        %v11684 = vmax.f32 %v11652, 0.0
        %v11685 = vmax.f32 %v11654, 0.0
        %v11686 = vmax.f32 %v11656, 0.0
        %v11687 = vmax.f32 %v11658, 0.0
        %v11688 = vmax.f32 %v11662, 0.0
        %v11689 = vmax.f32 %v11664, 0.0
        %v11690 = vmax.f32 %v11666, 0.0
        %v11691 = vmax.f32 %v11668, 0.0
        %v11692 = vmax.f32 %v11672, 0.0
        %v11693 = vmax.f32 %v11674, 0.0
        %v11694 = vmax.f32 %v11676, 0.0
        %v11695 = vmax.f32 %v11678, 0.0
        %v11696 = vrot.slane %v11680, 4
        %v11697 = vmax.f32 %v11680, %v11696
        %v11698 = vrot.slane %v11697, 2
        %v11699 = vmax.f32 %v11697, %v11698
        %v11700 = vrot.slane %v11699, 1
        %v11701 = vmax.f32 %v11699, %v11700
        %v11702 = vrot.slane %v11681, 4
        %v11703 = vmax.f32 %v11681, %v11702
        %v11704 = vrot.slane %v11703, 2
        %v11705 = vmax.f32 %v11703, %v11704
        %v11706 = vrot.slane %v11705, 1
        %v11707 = vmax.f32 %v11705, %v11706
        %v11708 = vrot.slane %v11682, 4
        %v11709 = vmax.f32 %v11682, %v11708
        %v11710 = vrot.slane %v11709, 2
        %v11711 = vmax.f32 %v11709, %v11710
        %v11712 = vrot.slane %v11711, 1
        %v11713 = vmax.f32 %v11711, %v11712
        %v11714 = vrot.slane %v11683, 4
        %v11715 = vmax.f32 %v11683, %v11714
        %v11716 = vrot.slane %v11715, 2
        %v11717 = vmax.f32 %v11715, %v11716
        %v11718 = vrot.slane %v11717, 1
        %v11719 = vmax.f32 %v11717, %v11718
        %v11720 = vrot.slane %v11684, 4
        %v11721 = vmax.f32 %v11684, %v11720
        %v11722 = vrot.slane %v11721, 2
        %v11723 = vmax.f32 %v11721, %v11722
        %v11724 = vrot.slane %v11723, 1
        %v11725 = vmax.f32 %v11723, %v11724
        %v11726 = vrot.slane %v11685, 4
        %v11727 = vmax.f32 %v11685, %v11726
        %v11728 = vrot.slane %v11727, 2
        %v11729 = vmax.f32 %v11727, %v11728
        %v11730 = vrot.slane %v11729, 1
        %v11731 = vmax.f32 %v11729, %v11730
        %v11732 = vrot.slane %v11686, 4
        %v11733 = vmax.f32 %v11686, %v11732
        %v11734 = vrot.slane %v11733, 2
        %v11735 = vmax.f32 %v11733, %v11734
        %v11736 = vrot.slane %v11735, 1
        %v11737 = vmax.f32 %v11735, %v11736
        %v11738 = vrot.slane %v11687, 4
        %v11739 = vmax.f32 %v11687, %v11738
        %v11740 = vrot.slane %v11739, 2
        %v11741 = vmax.f32 %v11739, %v11740
        %v11742 = vrot.slane %v11741, 1
        %v11743 = vmax.f32 %v11741, %v11742
        %v11744 = vrot.slane %v11688, 4
        %v11745 = vmax.f32 %v11688, %v11744
        %v11746 = vrot.slane %v11745, 2
        %v11747 = vmax.f32 %v11745, %v11746
        %v11748 = vrot.slane %v11747, 1
        %v11749 = vmax.f32 %v11747, %v11748
        %v11750 = vrot.slane %v11689, 4
        %v11751 = vmax.f32 %v11689, %v11750
        %v11752 = vrot.slane %v11751, 2
        %v11753 = vmax.f32 %v11751, %v11752
        %v11754 = vrot.slane %v11753, 1
        %v11755 = vmax.f32 %v11753, %v11754
        %v11756 = vrot.slane %v11690, 4
        %v11757 = vmax.f32 %v11690, %v11756
        %v11758 = vrot.slane %v11757, 2
        %v11759 = vmax.f32 %v11757, %v11758
        %v11760 = vrot.slane %v11759, 1
        %v11761 = vmax.f32 %v11759, %v11760
        %v11762 = vrot.slane %v11691, 4
        %v11763 = vmax.f32 %v11691, %v11762
        %v11764 = vrot.slane %v11763, 2
        %v11765 = vmax.f32 %v11763, %v11764
        %v11766 = vrot.slane %v11765, 1
        %v11767 = vmax.f32 %v11765, %v11766
        %v11768 = vrot.slane %v11692, 4
        %v11769 = vmax.f32 %v11692, %v11768
        %v11770 = vrot.slane %v11769, 2
        %v11771 = vmax.f32 %v11769, %v11770
        %v11772 = vrot.slane %v11771, 1
        %v11773 = vmax.f32 %v11771, %v11772
        %v11774 = vrot.slane %v11693, 4
        %v11775 = vmax.f32 %v11693, %v11774
        %v11776 = vrot.slane %v11775, 2
        %v11777 = vmax.f32 %v11775, %v11776
        %v11778 = vrot.slane %v11777, 1
        %v11779 = vmax.f32 %v11777, %v11778
        %v11780 = vrot.slane %v11694, 4
        %v11781 = vmax.f32 %v11694, %v11780
        %v11782 = vrot.slane %v11781, 2
        %v11783 = vmax.f32 %v11781, %v11782
        %v11784 = vrot.slane %v11783, 1
        %v11785 = vmax.f32 %v11783, %v11784
        %v11786 = vrot.slane %v11695, 4
        %v11787 = vmax.f32 %v11695, %v11786
        %v11788 = vrot.slane %v11787, 2
        %v11789 = vmax.f32 %v11787, %v11788
        %v11790 = vrot.slane %v11789, 1
        %v11791 = vmax.f32 %v11789, %v11790
        %v11792 = vmax.f32 %v11701, %v11713
        %v11793 = vmax.f32 %v11707, %v11719
        %v11794 = vmax.f32 %v11792, %v11725
        %v11795 = vmax.f32 %v11793, %v11731
        %v11796 = vmax.f32 %v11794, %v11737
        %v11797 = vmax.f32 %v11795, %v11743
        %v11798 = vmax.f32 %v11796, %v11749
        %v11799 = vmax.f32 %v11797, %v11755
        %v11800 = vmax.f32 %v11798, %v11761
        %v11801 = vmax.f32 %v11799, %v11767
        %v11802 = vmax.f32 %v11800, %v11773
        %v11803 = vmax.f32 %v11801, %v11779
        %v11804 = vmax.f32 %v11802, %v11785
        %v11805 = vmax.f32 %v11803, %v11791
        %v11806 = vpack.c.bf16 %v11804, %v11804
        %v11807 = vpack.c.bf16 %v11805, %v11805
        %v11808 = vld [vmem:[#allocation13] sm:$0xf]
        %v11809 = vld [vmem:[#allocation13 + $0x4] sm:$0xf]
        %v11810 = vld [vmem:[#allocation13 + $0x8] sm:$0xf]
        %v11811 = vld [vmem:[#allocation13 + $0xc] sm:$0xf]
        %v11812 = vld [vmem:[#allocation13 + $0x10] sm:$0xf]
        %v11813 = vld [vmem:[#allocation13 + $0x14] sm:$0xf]
        %v11814 = vld [vmem:[#allocation13 + $0x18] sm:$0xf]
        %v11815 = vld [vmem:[#allocation13 + $0x1c] sm:$0xf]
        %v11816 = vld [vmem:[#allocation13 + $0x20] sm:$0xf]
        %v11817 = vld [vmem:[#allocation13 + $0x24] sm:$0xf]
        %v11818 = vld [vmem:[#allocation13 + $0x28] sm:$0xf]
        %v11819 = vld [vmem:[#allocation13 + $0x2c] sm:$0xf]
        %v11820 = vld [vmem:[#allocation13 + $0x30] sm:$0xf]
        %v11821 = vld [vmem:[#allocation13 + $0x34] sm:$0xf]
        %v11822 = vld [vmem:[#allocation13 + $0x38] sm:$0xf]
        %v11823 = vld [vmem:[#allocation13 + $0x3c] sm:$0xf]
        %v11824 = vld [vmem:[#allocation13 + $0x40] sm:$0xf]
        %v11825 = vld [vmem:[#allocation13 + $0x44] sm:$0xf]
        %v11826 = vld [vmem:[#allocation13 + $0x48] sm:$0xf]
        %v11827 = vld [vmem:[#allocation13 + $0x4c] sm:$0xf]
        %v11828 = vld [vmem:[#allocation13 + $0x50] sm:$0xf]
        %v11829 = vld [vmem:[#allocation13 + $0x54] sm:$0xf]
        %v11830 = vld [vmem:[#allocation13 + $0x58] sm:$0xf]
        %v11831 = vld [vmem:[#allocation13 + $0x5c] sm:$0xf]
        %v11832 = vld [vmem:[#allocation13 + $0x60] sm:$0xf]
        %v11833 = vld [vmem:[#allocation13 + $0x64] sm:$0xf]
        %v11834 = vld [vmem:[#allocation13 + $0x68] sm:$0xf]
        %v11835 = vld [vmem:[#allocation13 + $0x6c] sm:$0xf]
        %v11836 = vld [vmem:[#allocation13 + $0x70] sm:$0xf]
        %v11837 = vld [vmem:[#allocation13 + $0x74] sm:$0xf]
        %v11838 = vld [vmem:[#allocation13 + $0x78] sm:$0xf]
        %v11839 = vld [vmem:[#allocation13 + $0x7c] sm:$0xf]
        %v11840 = vld [vmem:[#allocation15] sm:$0x1]
        %v11873 = vunpack.c.l.b16 %v11808
        %v11874 = vunpack.c.l.b16 %v11809
        %v11875 = vunpack.c.l.b16 %v11810
        %v11876 = vunpack.c.l.b16 %v11811
        %v11877 = vunpack.c.l.b16 %v11812
        %v11878 = vunpack.c.l.b16 %v11813
        %v11879 = vunpack.c.l.b16 %v11814
        %v11880 = vunpack.c.l.b16 %v11815
        %v11881 = vunpack.c.l.b16 %v11816
        %v11882 = vunpack.c.l.b16 %v11817
        %v11883 = vunpack.c.l.b16 %v11818
        %v11884 = vunpack.c.l.b16 %v11819
        %v11885 = vunpack.c.l.b16 %v11820
        %v11886 = vunpack.c.l.b16 %v11821
        %v11887 = vunpack.c.l.b16 %v11822
        %v11888 = vunpack.c.l.b16 %v11823
        %v11889 = vunpack.c.l.b16 %v11824
        %v11890 = vunpack.c.l.b16 %v11825
        %v11891 = vunpack.c.l.b16 %v11826
        %v11892 = vunpack.c.l.b16 %v11827
        %v11893 = vunpack.c.l.b16 %v11828
        %v11894 = vunpack.c.l.b16 %v11829
        %v11895 = vunpack.c.l.b16 %v11830
        %v11896 = vunpack.c.l.b16 %v11831
        %v11897 = vunpack.c.l.b16 %v11832
        %v11898 = vunpack.c.l.b16 %v11833
        %v11899 = vunpack.c.l.b16 %v11834
        %v11900 = vunpack.c.l.b16 %v11835
        %v11901 = vunpack.c.l.b16 %v11836
        %v11902 = vunpack.c.l.b16 %v11837
        %v11903 = vunpack.c.l.b16 %v11838
        %v11904 = vunpack.c.l.b16 %v11839
        %v11905 = vpack.c.b16 %v11874, %v11873
        %v11906 = vpack.c.b16 %v11876, %v11875
        %v11907 = vpack.c.b16 %v11878, %v11877
        %v11908 = vpack.c.b16 %v11880, %v11879
        %v11909 = vpack.c.b16 %v11882, %v11881
        %v11910 = vpack.c.b16 %v11884, %v11883
        %v11911 = vpack.c.b16 %v11886, %v11885
        %v11912 = vpack.c.b16 %v11888, %v11887
        %v11913 = vpack.c.b16 %v11890, %v11889
        %v11914 = vpack.c.b16 %v11892, %v11891
        %v11915 = vpack.c.b16 %v11894, %v11893
        %v11916 = vpack.c.b16 %v11896, %v11895
        %v11917 = vpack.c.b16 %v11898, %v11897
        %v11918 = vpack.c.b16 %v11900, %v11899
        %v11919 = vpack.c.b16 %v11902, %v11901
        %v11920 = vpack.c.b16 %v11904, %v11903
        %11937 = vmatprep.subr.bf16.mxu0 0
        %11938 = vmatpush1.bf16.msra.mxu0 %v11905
        %11939 = vmatprep.subr.bf16.mxu0 0
        %11940 = vmatpush1.bf16.msra.mxu0 %v11906
        %11941 = vmatprep.subr.bf16.mxu0 0
        %11942 = vmatpush1.bf16.msra.mxu0 %v11907
        %11943 = vmatprep.subr.bf16.mxu0 0
        %11944 = vmatpush1.bf16.msra.mxu0 %v11908
        %11945 = vmatprep.subr.bf16.mxu0 0
        %11946 = vmatpush1.bf16.msra.mxu0 %v11909
        %11947 = vmatprep.subr.bf16.mxu0 0
        %11948 = vmatpush1.bf16.msra.mxu0 %v11910
        %11949 = vmatprep.subr.bf16.mxu0 0
        %11950 = vmatpush1.bf16.msra.mxu0 %v11911
        %11951 = vmatprep.subr.bf16.mxu0 0
        %11952 = vmatpush1.bf16.msra.mxu0 %v11912
        %11953 = vmatprep.subr.bf16.mxu0 0
        %11954 = vmatpush1.bf16.msra.mxu0 %v11913
        %11955 = vmatprep.subr.bf16.mxu0 0
        %11956 = vmatpush1.bf16.msra.mxu0 %v11914
        %11957 = vmatprep.subr.bf16.mxu0 0
        %11958 = vmatpush1.bf16.msra.mxu0 %v11915
        %11959 = vmatprep.subr.bf16.mxu0 0
        %11960 = vmatpush1.bf16.msra.mxu0 %v11916
        %11961 = vmatprep.subr.bf16.mxu0 0
        %11962 = vmatpush1.bf16.msra.mxu0 %v11917
        %11963 = vmatprep.subr.bf16.mxu0 0
        %11964 = vmatpush1.bf16.msra.mxu0 %v11918
        %11965 = vmatprep.subr.bf16.mxu0 0
        %11966 = vmatpush1.bf16.msra.mxu0 %v11919
        %11967 = vmatprep.subr.bf16.mxu0 0
        %11968 = vmatpush1.bf16.msra.mxu0 %v11920
        %11969 = vmatprep.mubr.bf16.mxu0 %v11807
        %11970 = vmatmul.mubr.bf16.gmra.mrb[0].mxu0 %v11806
        %v11971 = vpop.f32.mrb[0].mxu0
        %v11972 = vadd.f32 %v11840, %v11971
        %v11973 = vpop.f32.mrb[0].mxu0
        %v11974 = vpop.f32.mrb[0].mxu0
        %v11975 = vpop.f32.mrb[0].mxu0
        %11976 = vdwg.mxu0
        %vm11977 = vcmask 73728
        %11978 = vst.msk [vmem:[%s376] sm:$0x1] %vm11977, %v11972
        %s11979 = sand.u32 %s187, 1
        %s11980 = scalar_lea.sflag [#allocation6], %s11979
        %s11981 = sand.u32 %s187, 1
        %s11982 = scalar_lea.vmem [#allocation16], %s11981
        // Predicated region
        $region77: #{tpu_custom_call.1} parent=47 // pred_check
          %p11983 = pneg %p197
        $region78: #{tpu_custom_call.1} parent=47 // pred_check_branch
          %11985 = sbr.rel (%p11983) target = $region80
        $region79: #{tpu_custom_call.1} parent=47 // pred_region
          %s11987 = ssub.s32 16, 16
          %11988 = vsyncadd %s11980, %s11987
          %s11989 = smul.addr %s27, 16
          %s11990 = scalar_lea.hbm %s7, %s11989
          %s11992 = sshll.u32 %s11982, 4
          %s11993 = int_to_ptr.vmem [resolvable:$true] %s11992
          %11995 = dma.vmem_to_hbm [thread:$0]  %s11993, 16, %s11990, %s11980
        $region80: #{tpu_custom_call.1} parent=47 // pred_fallthru
          _
      $region48: #{tpu_custom_call.1} parent=5 // pred_fallthru
        _
      %p11996 = scmp.le.s32.totalorder 2, %s22
      // Predicated region
      $region81: #{tpu_custom_call.1} parent=5 // pred_check
        %p11997 = pneg %p11996
      $region82: #{tpu_custom_call.1} parent=5 // pred_check_branch
        %11999 = sbr.rel (%p11997) target = $region84
      $region83: #{tpu_custom_call.1} parent=5 // pred_region
        %s12000 = ssub.s32 %s22, 2
        // Predicated region
        $region85: #{tpu_custom_call.1} parent=83 // pred_check
          %p12001 = pneg %p203
        $region86: #{tpu_custom_call.1} parent=83 // pred_check_branch
          %12003 = sbr.rel (%p12001) target = $region88
        $region87: #{tpu_custom_call.1} parent=83 // pred_region
          %s12004 = sand.u32 %s188, 1
          %s12005 = scalar_lea.sflag [#allocation6], %s12004
          %s12006 = sand.u32 %s188, 1
          %s12007 = scalar_lea.vmem [#allocation16], %s12006
          %12008 = dma.done %s12005, 16
        $region88: #{tpu_custom_call.1} parent=83 // pred_fallthru
          _
      $region84: #{tpu_custom_call.1} parent=5 // pred_fallthru
        _
    $region6: #{tpu_custom_call.1} parent=1 // loop_footer
      %s26 = sadd.s32 1, %s22
    $region7: #{tpu_custom_call.1} parent=1 // loop_footer_branch
      %21 = sbr.rel target = $region3
    $region8: #{tpu_custom_call.1} parent=1 // loop_exit
      _
    %12009 = vsyncpa [#allocation5], 1
    %s12010 = scalar_lea.sflag [#allocation5], 1
    %12011 = vsyncpa %s12010, 1
    %12012 = vsyncpa [#allocation8], 1
    %12013 = vsyncpa [#allocation11], 1
    %12014 = vsyncpa [#allocation14], 1
    %12015 = vsyncpa [#allocation6], 1
    %s12016 = scalar_lea.sflag [#allocation6], 1
    %12017 = vsyncpa %s12016, 1

</llo_original>
